<compile_context>
chip_gen: v6e
topology: v6e:2x2x1
jax: 0.10.0
libtpu: 0.0.40
codegen_flags: <defaults>
</compile_context>

<pallas_src>
from functools import partial

import jax
import jax.numpy as jnp
from jax import lax
from jax.experimental import pallas as pl
from jax.experimental.pallas import tpu as pltpu

LANE = 128


def _round_up(x, m):
    return (x + m - 1) // m * m


def basic_block_kernel(H, W, Cin, Cmid, Cout, A0,
                       x_ref, w1_ref, b1_ref, w2_ref, b2_ref,
                       o_ref, s_ref, col_ref):
    """One image per grid step.

    s_ref  : (S_ROWS, max(Cin,Cmid)) bf16 flat activation scratch; interior rows
             [A0, A0+H*W) hold the current activation, rows above/below are a zero halo.
    col_ref: (H*W, 128) bf16 packed-K im2col (+ shortcut lanes for conv2).
    """
    HW = H * W
    K1 = 9 * Cin                     # packed K used by conv1
    K2 = 9 * Cmid                    # packed K used by conv2 (shortcut x at [K2, K2+Cin))
    KL = col_ref.shape[-1]           # 128
    Cs = s_ref.shape[-1]
    S_ROWS = s_ref.shape[0]
    bf16, f32 = jnp.bfloat16, jnp.float32

    # ---- per-step init (megacore-safe): zero the two aligned halo row blocks and the
    #      never-written tail lanes of col (keeps first-step VMEM garbage/NaN out). ----
    s_ref[0:A0, :] = jnp.zeros((A0, Cs), bf16)
    s_ref[A0 + HW:S_ROWS, :] = jnp.zeros((S_ROWS - A0 - HW, Cs), bf16)
    tail = min(K1, K2 + Cin)
    col_ref[:, tail:] = jnp.zeros((HW, KL - tail), bf16)

    # Column-edge validity masks for the w-1 / w+1 taps (the flat row halo only covers
    # the H direction; the W wrap-around is masked instead of physically padded).
    wcol = lax.broadcasted_iota(jnp.int32, (HW, 1), 0) % W
    m_left = wcol > 0            # reading column w-1 is valid
    m_right = wcol < (W - 1)     # reading column w+1 is valid

    def build_cols(c):
        # Pack the 9 taps (c real channels each) of the activation currently in s_ref's
        # interior into col_ref[:, :9*c].  One small ref slice per tap (no full-halo
        # load; live range is a single lane-sparse tap at a time).
        for kh in range(3):
            for kw in range(3):
                t = kh * 3 + kw
                start = kh * W + kw + (A0 - W - 1)          # static row offset into s_ref
                tap = s_ref[start:start + HW, 0:c]
                if kw == 0:
                    tap = jnp.where(m_left, tap, jnp.zeros_like(tap))
                elif kw == 2:
                    tap = jnp.where(m_right, tap, jnp.zeros_like(tap))
                col_ref[:, t * c:(t + 1) * c] = tap

    # ---- conv1 (3x3, pad=1) with BN1 scale folded into w1; bias + ReLU in f32 ----
    s_ref[A0:A0 + HW, 0:Cin] = x_ref[...].reshape(HW, Cin).astype(bf16)
    build_cols(Cin)
    acc1 = jnp.dot(col_ref[...], w1_ref[...], preferred_element_type=f32)
    h = jnp.maximum(acc1 + b1_ref[...], 0.0)                 # (HW, 128) f32

    # ---- conv2 (3x3, pad=1, stride=1) + BN2, fused with the 1x1-conv+BN shortcut in a
    #      single K=128 matmul (x rides in lanes [K2, K2+Cin)); residual bias combined ----
    s_ref[A0:A0 + HW, 0:Cmid] = h[:, 0:Cmid].astype(bf16)
    build_cols(Cmid)
    col_ref[:, K2:K2 + Cin] = x_ref[...].reshape(HW, Cin).astype(bf16)
    acc2 = jnp.dot(col_ref[...], w2_ref[...], preferred_element_type=f32)
    out = jnp.maximum(acc2 + b2_ref[...], 0.0)
    o_ref[...] = out[:, 0:Cout].astype(o_ref.dtype).reshape(1, HW, Cout)


def fold_bn(gamma, beta, mean, var, eps=1e-5):
    scale = gamma / jnp.sqrt(var + eps)
    bias = beta - mean * scale
    return scale.astype(jnp.float32), bias.astype(jnp.float32)


def basic_block(x_nhwc, params):
    (w1, s1, b1, w2, s2, b2, ws, ss, bs) = params
    N, H, W, Cin = x_nhwc.shape
    Cmid = w1.shape[-1]
    Cout = w2.shape[-1]
    f32, bf16 = jnp.float32, jnp.bfloat16

    KL = LANE
    K1 = 9 * Cin
    K2 = 9 * Cmid
    HW = H * W
    assert K1 <= KL and K2 + Cin <= KL, "packed-K path needs 9*C (+Cin) <= 128"
    # TODO(synk): large-channel fallback = per-tap K=128 accumulating matmuls.

    A0 = _round_up(W + 1, 16)                    # aligned interior start row of the scratch
    S_ROWS = A0 + HW + _round_up(W + 1, 16)      # + aligned bottom halo block

    # ---- pack weights: fold BN scale into output columns, 9 taps packed along K ----
    w1k = (w1 * s1.reshape(1, 1, 1, -1)).reshape(K1, Cmid)          # rows = (kh,kw,cin)
    w1p = jnp.zeros((KL, KL), f32).at[:K1, :Cmid].set(w1k).astype(bf16)

    w2k = (w2 * s2.reshape(1, 1, 1, -1)).reshape(K2, Cout)
    wsk = ws * ss.reshape(1, -1)                                     # (Cin, Cout), BN_sc folded
    w2p = (jnp.zeros((KL, KL), f32)
           .at[:K2, :Cout].set(w2k)
           .at[K2:K2 + Cin, :Cout].set(wsk)).astype(bf16)

    b1p = jnp.zeros((1, KL), f32).at[0, :Cmid].set(b1)
    b2p = jnp.zeros((1, KL), f32).at[0, :Cout].set(b2 + bs)          # conv2 + shortcut biases

    x_flat = x_nhwc.reshape(N, HW, Cin)          # free metadata reshape, no channel padding

    kernel = partial(basic_block_kernel, H, W, Cin, Cmid, Cout, A0)

    out = pl.pallas_call(
        kernel,
        out_shape=jax.ShapeDtypeStruct((N, HW, Cout), bf16),          # bf16 out: half the HBM write
        grid=(N,),
        in_specs=[
            pl.BlockSpec((1, HW, Cin), lambda n: (n, 0, 0)),          # x (raw channels, no pad)
            pl.BlockSpec((KL, KL), lambda n: (0, 0)),                 # w1 packed (scale folded)
            pl.BlockSpec((1, KL), lambda n: (0, 0)),                  # b1 folded
            pl.BlockSpec((KL, KL), lambda n: (0, 0)),                 # w2 + shortcut packed
            pl.BlockSpec((1, KL), lambda n: (0, 0)),                  # b2 + bs folded
        ],
        out_specs=pl.BlockSpec((1, HW, Cout), lambda n: (n, 0, 0)),
        scratch_shapes=[
            pltpu.VMEM((S_ROWS, max(Cin, Cmid)), bf16),               # flat row-halo'd activation
            pltpu.VMEM((HW, KL), bf16),                               # packed-K col (64 KiB)
        ],
        compiler_params=pltpu.CompilerParams(
            dimension_semantics=("parallel",),                        # batch axis across cores
            vmem_limit_bytes=32 * 1024 * 1024,                        # ~0.4 MiB actual residency
        ),
    )(x_flat, w1p, b1p, w2p, b2p)

    return out.reshape(N, H, W, Cout)            # bf16; free reshape (cast at network exit if needed)


def reference(x_nhwc, params):
    """Pure-JAX reference mirroring the kernel's quantization points
    (BN scale folded into bf16 weights, bf16 operands, f32 accumulation)."""
    (w1, s1, b1, w2, s2, b2, ws, ss, bs) = params
    dn = ('NHWC', 'HWIO', 'NHWC')
    f32, bf16 = jnp.float32, jnp.bfloat16
    xb = x_nhwc.astype(bf16)

    w1f = (w1 * s1.reshape(1, 1, 1, -1)).astype(bf16)
    c1 = lax.conv_general_dilated(xb, w1f, (1, 1), 'SAME',
                                  dimension_numbers=dn, preferred_element_type=f32)
    h = jnp.maximum(c1 + b1.reshape(1, 1, 1, -1), 0.0)

    w2f = (w2 * s2.reshape(1, 1, 1, -1)).astype(bf16)
    c2 = lax.conv_general_dilated(h.astype(bf16), w2f, (1, 1), 'SAME',
                                  dimension_numbers=dn, preferred_element_type=f32)

    wsf = (ws * ss.reshape(1, -1)).reshape(1, 1, *ws.shape).astype(bf16)
    sc = lax.conv_general_dilated(xb, wsf, (1, 1), 'SAME',
                                  dimension_numbers=dn, preferred_element_type=f32)

    return jnp.maximum(c2 + sc + (b2 + bs).reshape(1, 1, 1, -1), 0.0)


if __name__ == "__main__":
    # Small shapes consistent with the module: in_planes=4, planes=8, stride=(1,1).
    N, Cin, H, W = 2, 4, 16, 16
    Cmid = Cout = 8

    key = jax.random.PRNGKey(0)
    ks = jax.random.split(key, 8)

    # Input in PyTorch NCHW convention -> NHWC for the kernel.
    x_nchw = jax.random.normal(ks[0], (N, Cin, H, W), jnp.float32)
    x_nhwc = jnp.transpose(x_nchw, (0, 2, 3, 1))

    # Conv weights in HWIO (deterministic synthetic init).
    w1 = 0.1 * jax.random.normal(ks[1], (3, 3, Cin, Cmid), jnp.float32)
    w2 = 0.1 * jax.random.normal(ks[2], (3, 3, Cmid, Cout), jnp.float32)
    ws = 0.1 * jax.random.normal(ks[3], (Cin, Cout), jnp.float32)     # 1x1 shortcut conv

    def bn_params(k, c):
        k1, k2, k3, k4 = jax.random.split(k, 4)
        gamma = 0.5 + jax.random.uniform(k1, (c,), jnp.float32)
        beta = 0.1 * jax.random.normal(k2, (c,), jnp.float32)
        mean = 0.1 * jax.random.normal(k3, (c,), jnp.float32)
        var = 0.5 + jax.random.uniform(k4, (c,), jnp.float32)
        return fold_bn(gamma, beta, mean, var)

    s1, b1 = bn_params(ks[4], Cmid)
    s2, b2 = bn_params(ks[5], Cout)
    ss, bs = bn_params(ks[6], Cout)

    params = (w1, s1, b1, w2, s2, b2, ws, ss, bs)

    out = jax.block_until_ready(basic_block(x_nhwc, params))
    ref = jax.block_until_ready(reference(x_nhwc, params))

    assert out.shape == (N, H, W, Cout)
    assert out.dtype == jnp.bfloat16
    # bf16 MXU operands on both paths -> bf16-level tolerance.
    assert jnp.allclose(out.astype(jnp.float32), ref, atol=2e-2, rtol=2e-2), \
        f"mismatch vs JAX reference (max abs err {jnp.max(jnp.abs(out.astype(jnp.float32) - ref))})"

    print("KERNEL_OK")
</pallas_src>

<mosaic_0001>
module attributes {stable_mosaic.version = 11 : i64} {
  func.func @basic_block_kernel(%arg0: i32, %arg1: memref<1x256x4xf32, #tpu.memory_space<vmem>>, %arg2: memref<128x128xbf16, #tpu.memory_space<vmem>>, %arg3: memref<1x128xf32, #tpu.memory_space<vmem>>, %arg4: memref<128x128xbf16, #tpu.memory_space<vmem>>, %arg5: memref<1x128xf32, #tpu.memory_space<vmem>>, %arg6: memref<1x256x8xbf16, #tpu.memory_space<vmem>>, %arg7: memref<320x8xbf16, #tpu.memory_space<vmem>>, %arg8: memref<256x128xbf16, #tpu.memory_space<vmem>>) attributes {dimension_semantics = [#tpu.dimension_semantics<parallel>], iteration_bounds = array<i64: 2>, scalar_prefetch = 0 : i64, scratch_operands = 2 : i64, tpu.core_type = #tpu.core_type<tc>, window_params = [{transform_indices = @transform_0, window_bounds = array<i64: 1, 256, 4>}, {pipeline_mode = #tpu.pipeline_mode<synchronous>, transform_indices = @transform_1, window_bounds = array<i64: 128, 128>}, {pipeline_mode = #tpu.pipeline_mode<synchronous>, transform_indices = @transform_2, window_bounds = array<i64: 1, 128>}, {pipeline_mode = #tpu.pipeline_mode<synchronous>, transform_indices = @transform_3, window_bounds = array<i64: 128, 128>}, {pipeline_mode = #tpu.pipeline_mode<synchronous>, transform_indices = @transform_4, window_bounds = array<i64: 1, 128>}, {transform_indices = @transform_5, window_bounds = array<i64: 1, 256, 8>}]} {
    %cst = arith.constant 0.000000e+00 : bf16
    %0 = vector.broadcast %cst : bf16 to vector<32x8xbf16>
    %c0 = arith.constant 0 : index
    %c0_0 = arith.constant 0 : index
    %1 = vector.load %arg7[%c0, %c0_0] : memref<320x8xbf16, #tpu.memory_space<vmem>>, vector<32x8xbf16>
    tpu.vector_store %arg7[%c0, %c0_0], %0 {strides = array<i32>} : memref<320x8xbf16, #tpu.memory_space<vmem>>, vector<32x8xbf16>,
    %cst_1 = arith.constant 0.000000e+00 : bf16
    %2 = vector.broadcast %cst_1 : bf16 to vector<32x8xbf16>
    %c288 = arith.constant 288 : index
    %c0_2 = arith.constant 0 : index
    %3 = vector.load %arg7[%c288, %c0_2] : memref<320x8xbf16, #tpu.memory_space<vmem>>, vector<32x8xbf16>
    tpu.vector_store %arg7[%c288, %c0_2], %2 {strides = array<i32>} : memref<320x8xbf16, #tpu.memory_space<vmem>>, vector<32x8xbf16>,
    %cst_3 = arith.constant 0.000000e+00 : bf16
    %4 = vector.broadcast %cst_3 : bf16 to vector<256x92xbf16>
    %c0_4 = arith.constant 0 : index
    %c36 = arith.constant 36 : index
    %5 = vector.load %arg8[%c0_4, %c36] : memref<256x128xbf16, #tpu.memory_space<vmem>>, vector<256x92xbf16>
    tpu.vector_store %arg8[%c0_4, %c36], %4 {strides = array<i32>} : memref<256x128xbf16, #tpu.memory_space<vmem>>, vector<256x92xbf16>,
    %6 = tpu.iota {dimensions = array<i32: 0>} : vector<256x1xi32>
    %c16_i32 = arith.constant 16 : i32
    %c0_i32 = arith.constant 0 : i32
    %7 = arith.cmpi eq, %c16_i32, %c0_i32 : i32
    %c1_i32 = arith.constant 1 : i32
    %8 = arith.select %7, %c1_i32, %c16_i32 : i32
    %9 = vector.broadcast %8 : i32 to vector<256x1xi32>
    %10 = arith.remsi %6, %9 : vector<256x1xi32>
    %c0_i32_5 = arith.constant 0 : i32
    %11 = vector.broadcast %c0_i32_5 : i32 to vector<256x1xi32>
    %12 = arith.cmpi ne, %10, %11 : vector<256x1xi32>
    %c0_i32_6 = arith.constant 0 : i32
    %13 = vector.broadcast %c0_i32_6 : i32 to vector<256x1xi32>
    %14 = arith.cmpi slt, %10, %13 : vector<256x1xi32>
    %c0_i32_7 = arith.constant 0 : i32
    %15 = arith.cmpi slt, %8, %c0_i32_7 : i32
    %16 = vector.broadcast %15 : i1 to vector<256x1xi1>
    %17 = vector.broadcast %16 : vector<256x1xi1> to vector<256x1xi1>
    %18 = arith.xori %14, %17 : vector<256x1xi1>
    %19 = arith.andi %18, %12 : vector<256x1xi1>
    %20 = vector.broadcast %8 : i32 to vector<256x1xi32>
    %21 = arith.addi %10, %20 : vector<256x1xi32>
    %22 = arith.select %19, %21, %10 : vector<256x1xi1>, vector<256x1xi32>
    %c0_i32_8 = arith.constant 0 : i32
    %23 = vector.broadcast %c0_i32_8 : i32 to vector<256x1xi32>
    %24 = arith.cmpi sgt, %22, %23 : vector<256x1xi32>
    %c15_i32 = arith.constant 15 : i32
    %25 = vector.broadcast %c15_i32 : i32 to vector<256x1xi32>
    %26 = arith.cmpi slt, %22, %25 : vector<256x1xi32>
    %c0_9 = arith.constant 0 : index
    %c0_10 = arith.constant 0 : index
    %c0_11 = arith.constant 0 : index
    %27 = vector.load %arg1[%c0_9, %c0_10, %c0_11] : memref<1x256x4xf32, #tpu.memory_space<vmem>>, vector<1x256x4xf32>
    %28 = vector.shape_cast %27 : vector<1x256x4xf32> to vector<256x4xf32>
    %29 = arith.truncf %28 : vector<256x4xf32> to vector<256x4xbf16>
    %c32 = arith.constant 32 : index
    %c0_12 = arith.constant 0 : index
    %30 = vector.load %arg7[%c32, %c0_12] : memref<320x8xbf16, #tpu.memory_space<vmem>>, vector<256x4xbf16>
    tpu.vector_store %arg7[%c32, %c0_12], %29 {strides = array<i32>} : memref<320x8xbf16, #tpu.memory_space<vmem>>, vector<256x4xbf16>,
    %c15 = arith.constant 15 : index
    %c0_13 = arith.constant 0 : index
    %31 = vector.load %arg7[%c15, %c0_13] : memref<320x8xbf16, #tpu.memory_space<vmem>>, vector<256x4xbf16>
    %cst_14 = arith.constant 0.000000e+00 : bf16
    %32 = vector.broadcast %cst_14 : bf16 to vector<256x4xbf16>
    %33 = vector.shape_cast %24 : vector<256x1xi1> to vector<256x1xi1>
    %34 = vector.broadcast %33 : vector<256x1xi1> to vector<256x4xi1>
    %35 = arith.select %34, %31, %32 : vector<256x4xi1>, vector<256x4xbf16>
    %c0_15 = arith.constant 0 : index
    %c0_16 = arith.constant 0 : index
    %36 = vector.load %arg8[%c0_15, %c0_16] : memref<256x128xbf16, #tpu.memory_space<vmem>>, vector<256x4xbf16>
    tpu.vector_store %arg8[%c0_15, %c0_16], %35 {strides = array<i32>} : memref<256x128xbf16, #tpu.memory_space<vmem>>, vector<256x4xbf16>,
    %c16 = arith.constant 16 : index
    %c0_17 = arith.constant 0 : index
    %37 = vector.load %arg7[%c16, %c0_17] : memref<320x8xbf16, #tpu.memory_space<vmem>>, vector<256x4xbf16>
    %c0_18 = arith.constant 0 : index
    %c4 = arith.constant 4 : index
    %38 = vector.load %arg8[%c0_18, %c4] : memref<256x128xbf16, #tpu.memory_space<vmem>>, vector<256x4xbf16>
    tpu.vector_store %arg8[%c0_18, %c4], %37 {strides = array<i32>} : memref<256x128xbf16, #tpu.memory_space<vmem>>, vector<256x4xbf16>,
    %c17 = arith.constant 17 : index
    %c0_19 = arith.constant 0 : index
    %39 = vector.load %arg7[%c17, %c0_19] : memref<320x8xbf16, #tpu.memory_space<vmem>>, vector<256x4xbf16>
    %cst_20 = arith.constant 0.000000e+00 : bf16
    %40 = vector.broadcast %cst_20 : bf16 to vector<256x4xbf16>
    %41 = vector.shape_cast %26 : vector<256x1xi1> to vector<256x1xi1>
    %42 = vector.broadcast %41 : vector<256x1xi1> to vector<256x4xi1>
    %43 = arith.select %42, %39, %40 : vector<256x4xi1>, vector<256x4xbf16>
    %c0_21 = arith.constant 0 : index
    %c8 = arith.constant 8 : index
    %44 = vector.load %arg8[%c0_21, %c8] : memref<256x128xbf16, #tpu.memory_space<vmem>>, vector<256x4xbf16>
    tpu.vector_store %arg8[%c0_21, %c8], %43 {strides = array<i32>} : memref<256x128xbf16, #tpu.memory_space<vmem>>, vector<256x4xbf16>,
    %c31 = arith.constant 31 : index
    %c0_22 = arith.constant 0 : index
    %45 = vector.load %arg7[%c31, %c0_22] : memref<320x8xbf16, #tpu.memory_space<vmem>>, vector<256x4xbf16>
    %cst_23 = arith.constant 0.000000e+00 : bf16
    %46 = vector.broadcast %cst_23 : bf16 to vector<256x4xbf16>
    %47 = vector.shape_cast %24 : vector<256x1xi1> to vector<256x1xi1>
    %48 = vector.broadcast %47 : vector<256x1xi1> to vector<256x4xi1>
    %49 = arith.select %48, %45, %46 : vector<256x4xi1>, vector<256x4xbf16>
    %c0_24 = arith.constant 0 : index
    %c12 = arith.constant 12 : index
    %50 = vector.load %arg8[%c0_24, %c12] : memref<256x128xbf16, #tpu.memory_space<vmem>>, vector<256x4xbf16>
    tpu.vector_store %arg8[%c0_24, %c12], %49 {strides = array<i32>} : memref<256x128xbf16, #tpu.memory_space<vmem>>, vector<256x4xbf16>,
    %c32_25 = arith.constant 32 : index
    %c0_26 = arith.constant 0 : index
    %51 = vector.load %arg7[%c32_25, %c0_26] : memref<320x8xbf16, #tpu.memory_space<vmem>>, vector<256x4xbf16>
    %c0_27 = arith.constant 0 : index
    %c16_28 = arith.constant 16 : index
    %52 = vector.load %arg8[%c0_27, %c16_28] : memref<256x128xbf16, #tpu.memory_space<vmem>>, vector<256x4xbf16>
    tpu.vector_store %arg8[%c0_27, %c16_28], %51 {strides = array<i32>} : memref<256x128xbf16, #tpu.memory_space<vmem>>, vector<256x4xbf16>,
    %c33 = arith.constant 33 : index
    %c0_29 = arith.constant 0 : index
    %53 = vector.load %arg7[%c33, %c0_29] : memref<320x8xbf16, #tpu.memory_space<vmem>>, vector<256x4xbf16>
    %cst_30 = arith.constant 0.000000e+00 : bf16
    %54 = vector.broadcast %cst_30 : bf16 to vector<256x4xbf16>
    %55 = vector.shape_cast %26 : vector<256x1xi1> to vector<256x1xi1>
    %56 = vector.broadcast %55 : vector<256x1xi1> to vector<256x4xi1>
    %57 = arith.select %56, %53, %54 : vector<256x4xi1>, vector<256x4xbf16>
    %c0_31 = arith.constant 0 : index
    %c20 = arith.constant 20 : index
    %58 = vector.load %arg8[%c0_31, %c20] : memref<256x128xbf16, #tpu.memory_space<vmem>>, vector<256x4xbf16>
    tpu.vector_store %arg8[%c0_31, %c20], %57 {strides = array<i32>} : memref<256x128xbf16, #tpu.memory_space<vmem>>, vector<256x4xbf16>,
    %c47 = arith.constant 47 : index
    %c0_32 = arith.constant 0 : index
    %59 = vector.load %arg7[%c47, %c0_32] : memref<320x8xbf16, #tpu.memory_space<vmem>>, vector<256x4xbf16>
    %cst_33 = arith.constant 0.000000e+00 : bf16
    %60 = vector.broadcast %cst_33 : bf16 to vector<256x4xbf16>
    %61 = vector.shape_cast %24 : vector<256x1xi1> to vector<256x1xi1>
    %62 = vector.broadcast %61 : vector<256x1xi1> to vector<256x4xi1>
    %63 = arith.select %62, %59, %60 : vector<256x4xi1>, vector<256x4xbf16>
    %c0_34 = arith.constant 0 : index
    %c24 = arith.constant 24 : index
    %64 = vector.load %arg8[%c0_34, %c24] : memref<256x128xbf16, #tpu.memory_space<vmem>>, vector<256x4xbf16>
    tpu.vector_store %arg8[%c0_34, %c24], %63 {strides = array<i32>} : memref<256x128xbf16, #tpu.memory_space<vmem>>, vector<256x4xbf16>,
    %c48 = arith.constant 48 : index
    %c0_35 = arith.constant 0 : index
    %65 = vector.load %arg7[%c48, %c0_35] : memref<320x8xbf16, #tpu.memory_space<vmem>>, vector<256x4xbf16>
    %c0_36 = arith.constant 0 : index
    %c28 = arith.constant 28 : index
    %66 = vector.load %arg8[%c0_36, %c28] : memref<256x128xbf16, #tpu.memory_space<vmem>>, vector<256x4xbf16>
    tpu.vector_store %arg8[%c0_36, %c28], %65 {strides = array<i32>} : memref<256x128xbf16, #tpu.memory_space<vmem>>, vector<256x4xbf16>,
    %c49 = arith.constant 49 : index
    %c0_37 = arith.constant 0 : index
    %67 = vector.load %arg7[%c49, %c0_37] : memref<320x8xbf16, #tpu.memory_space<vmem>>, vector<256x4xbf16>
    %cst_38 = arith.constant 0.000000e+00 : bf16
    %68 = vector.broadcast %cst_38 : bf16 to vector<256x4xbf16>
    %69 = vector.shape_cast %26 : vector<256x1xi1> to vector<256x1xi1>
    %70 = vector.broadcast %69 : vector<256x1xi1> to vector<256x4xi1>
    %71 = arith.select %70, %67, %68 : vector<256x4xi1>, vector<256x4xbf16>
    %c0_39 = arith.constant 0 : index
    %c32_40 = arith.constant 32 : index
    %72 = vector.load %arg8[%c0_39, %c32_40] : memref<256x128xbf16, #tpu.memory_space<vmem>>, vector<256x4xbf16>
    tpu.vector_store %arg8[%c0_39, %c32_40], %71 {strides = array<i32>} : memref<256x128xbf16, #tpu.memory_space<vmem>>, vector<256x4xbf16>,
    %c0_41 = arith.constant 0 : index
    %c0_42 = arith.constant 0 : index
    %73 = vector.load %arg8[%c0_41, %c0_42] : memref<256x128xbf16, #tpu.memory_space<vmem>>, vector<256x128xbf16>
    %c0_43 = arith.constant 0 : index
    %c0_44 = arith.constant 0 : index
    %74 = vector.load %arg2[%c0_43, %c0_44] : memref<128x128xbf16, #tpu.memory_space<vmem>>, vector<128x128xbf16>
    %cst_45 = arith.constant dense<0.000000e+00> : vector<256x128xf32>
    %75 = tpu.matmul %73, %74, %cst_45 {dimension_numbers = #tpu.dot_dimension_numbers<[1], [0], [0], [1], [0, 0, 1, 1], [], []>} : vector<256x128xbf16>, vector<128x128xbf16>, vector<256x128xf32> -> vector<256x128xf32>
    %c0_46 = arith.constant 0 : index
    %c0_47 = arith.constant 0 : index
    %76 = vector.load %arg3[%c0_46, %c0_47] : memref<1x128xf32, #tpu.memory_space<vmem>>, vector<1x128xf32>
    %77 = vector.broadcast %76 : vector<1x128xf32> to vector<256x128xf32>
    %78 = arith.addf %75, %77 : vector<256x128xf32>
    %cst_48 = arith.constant 0.000000e+00 : f32
    %79 = vector.broadcast %cst_48 : f32 to vector<256x128xf32>
    %80 = arith.maximumf %78, %79 : vector<256x128xf32>
    %81 = vector.extract_strided_slice %80 {offsets = [0, 0], sizes = [256, 8], strides = [1, 1]} : vector<256x128xf32> to vector<256x8xf32>
    %82 = arith.truncf %81 : vector<256x8xf32> to vector<256x8xbf16>
    %c32_49 = arith.constant 32 : index
    %c0_50 = arith.constant 0 : index
    %83 = vector.load %arg7[%c32_49, %c0_50] : memref<320x8xbf16, #tpu.memory_space<vmem>>, vector<256x8xbf16>
    tpu.vector_store %arg7[%c32_49, %c0_50], %82 {strides = array<i32>} : memref<320x8xbf16, #tpu.memory_space<vmem>>, vector<256x8xbf16>,
    %c15_51 = arith.constant 15 : index
    %c0_52 = arith.constant 0 : index
    %84 = vector.load %arg7[%c15_51, %c0_52] : memref<320x8xbf16, #tpu.memory_space<vmem>>, vector<256x8xbf16>
    %cst_53 = arith.constant 0.000000e+00 : bf16
    %85 = vector.broadcast %cst_53 : bf16 to vector<256x8xbf16>
    %86 = vector.shape_cast %24 : vector<256x1xi1> to vector<256x1xi1>
    %87 = vector.broadcast %86 : vector<256x1xi1> to vector<256x8xi1>
    %88 = arith.select %87, %84, %85 : vector<256x8xi1>, vector<256x8xbf16>
    %c0_54 = arith.constant 0 : index
    %c0_55 = arith.constant 0 : index
    %89 = vector.load %arg8[%c0_54, %c0_55] : memref<256x128xbf16, #tpu.memory_space<vmem>>, vector<256x8xbf16>
    tpu.vector_store %arg8[%c0_54, %c0_55], %88 {strides = array<i32>} : memref<256x128xbf16, #tpu.memory_space<vmem>>, vector<256x8xbf16>,
    %c16_56 = arith.constant 16 : index
    %c0_57 = arith.constant 0 : index
    %90 = vector.load %arg7[%c16_56, %c0_57] : memref<320x8xbf16, #tpu.memory_space<vmem>>, vector<256x8xbf16>
    %c0_58 = arith.constant 0 : index
    %c8_59 = arith.constant 8 : index
    %91 = vector.load %arg8[%c0_58, %c8_59] : memref<256x128xbf16, #tpu.memory_space<vmem>>, vector<256x8xbf16>
    tpu.vector_store %arg8[%c0_58, %c8_59], %90 {strides = array<i32>} : memref<256x128xbf16, #tpu.memory_space<vmem>>, vector<256x8xbf16>,
    %c17_60 = arith.constant 17 : index
    %c0_61 = arith.constant 0 : index
    %92 = vector.load %arg7[%c17_60, %c0_61] : memref<320x8xbf16, #tpu.memory_space<vmem>>, vector<256x8xbf16>
    %cst_62 = arith.constant 0.000000e+00 : bf16
    %93 = vector.broadcast %cst_62 : bf16 to vector<256x8xbf16>
    %94 = vector.shape_cast %26 : vector<256x1xi1> to vector<256x1xi1>
    %95 = vector.broadcast %94 : vector<256x1xi1> to vector<256x8xi1>
    %96 = arith.select %95, %92, %93 : vector<256x8xi1>, vector<256x8xbf16>
    %c0_63 = arith.constant 0 : index
    %c16_64 = arith.constant 16 : index
    %97 = vector.load %arg8[%c0_63, %c16_64] : memref<256x128xbf16, #tpu.memory_space<vmem>>, vector<256x8xbf16>
    tpu.vector_store %arg8[%c0_63, %c16_64], %96 {strides = array<i32>} : memref<256x128xbf16, #tpu.memory_space<vmem>>, vector<256x8xbf16>,
    %c31_65 = arith.constant 31 : index
    %c0_66 = arith.constant 0 : index
    %98 = vector.load %arg7[%c31_65, %c0_66] : memref<320x8xbf16, #tpu.memory_space<vmem>>, vector<256x8xbf16>
    %cst_67 = arith.constant 0.000000e+00 : bf16
    %99 = vector.broadcast %cst_67 : bf16 to vector<256x8xbf16>
    %100 = vector.shape_cast %24 : vector<256x1xi1> to vector<256x1xi1>
    %101 = vector.broadcast %100 : vector<256x1xi1> to vector<256x8xi1>
    %102 = arith.select %101, %98, %99 : vector<256x8xi1>, vector<256x8xbf16>
    %c0_68 = arith.constant 0 : index
    %c24_69 = arith.constant 24 : index
    %103 = vector.load %arg8[%c0_68, %c24_69] : memref<256x128xbf16, #tpu.memory_space<vmem>>, vector<256x8xbf16>
    tpu.vector_store %arg8[%c0_68, %c24_69], %102 {strides = array<i32>} : memref<256x128xbf16, #tpu.memory_space<vmem>>, vector<256x8xbf16>,
    %c32_70 = arith.constant 32 : index
    %c0_71 = arith.constant 0 : index
    %104 = vector.load %arg7[%c32_70, %c0_71] : memref<320x8xbf16, #tpu.memory_space<vmem>>, vector<256x8xbf16>
    %c0_72 = arith.constant 0 : index
    %c32_73 = arith.constant 32 : index
    %105 = vector.load %arg8[%c0_72, %c32_73] : memref<256x128xbf16, #tpu.memory_space<vmem>>, vector<256x8xbf16>
    tpu.vector_store %arg8[%c0_72, %c32_73], %104 {strides = array<i32>} : memref<256x128xbf16, #tpu.memory_space<vmem>>, vector<256x8xbf16>,
    %c33_74 = arith.constant 33 : index
    %c0_75 = arith.constant 0 : index
    %106 = vector.load %arg7[%c33_74, %c0_75] : memref<320x8xbf16, #tpu.memory_space<vmem>>, vector<256x8xbf16>
    %cst_76 = arith.constant 0.000000e+00 : bf16
    %107 = vector.broadcast %cst_76 : bf16 to vector<256x8xbf16>
    %108 = vector.shape_cast %26 : vector<256x1xi1> to vector<256x1xi1>
    %109 = vector.broadcast %108 : vector<256x1xi1> to vector<256x8xi1>
    %110 = arith.select %109, %106, %107 : vector<256x8xi1>, vector<256x8xbf16>
    %c0_77 = arith.constant 0 : index
    %c40 = arith.constant 40 : index
    %111 = vector.load %arg8[%c0_77, %c40] : memref<256x128xbf16, #tpu.memory_space<vmem>>, vector<256x8xbf16>
    tpu.vector_store %arg8[%c0_77, %c40], %110 {strides = array<i32>} : memref<256x128xbf16, #tpu.memory_space<vmem>>, vector<256x8xbf16>,
    %c47_78 = arith.constant 47 : index
    %c0_79 = arith.constant 0 : index
    %112 = vector.load %arg7[%c47_78, %c0_79] : memref<320x8xbf16, #tpu.memory_space<vmem>>, vector<256x8xbf16>
    %cst_80 = arith.constant 0.000000e+00 : bf16
    %113 = vector.broadcast %cst_80 : bf16 to vector<256x8xbf16>
    %114 = vector.shape_cast %24 : vector<256x1xi1> to vector<256x1xi1>
    %115 = vector.broadcast %114 : vector<256x1xi1> to vector<256x8xi1>
    %116 = arith.select %115, %112, %113 : vector<256x8xi1>, vector<256x8xbf16>
    %c0_81 = arith.constant 0 : index
    %c48_82 = arith.constant 48 : index
    %117 = vector.load %arg8[%c0_81, %c48_82] : memref<256x128xbf16, #tpu.memory_space<vmem>>, vector<256x8xbf16>
    tpu.vector_store %arg8[%c0_81, %c48_82], %116 {strides = array<i32>} : memref<256x128xbf16, #tpu.memory_space<vmem>>, vector<256x8xbf16>,
    %c48_83 = arith.constant 48 : index
    %c0_84 = arith.constant 0 : index
    %118 = vector.load %arg7[%c48_83, %c0_84] : memref<320x8xbf16, #tpu.memory_space<vmem>>, vector<256x8xbf16>
    %c0_85 = arith.constant 0 : index
    %c56 = arith.constant 56 : index
    %119 = vector.load %arg8[%c0_85, %c56] : memref<256x128xbf16, #tpu.memory_space<vmem>>, vector<256x8xbf16>
    tpu.vector_store %arg8[%c0_85, %c56], %118 {strides = array<i32>} : memref<256x128xbf16, #tpu.memory_space<vmem>>, vector<256x8xbf16>,
    %c49_86 = arith.constant 49 : index
    %c0_87 = arith.constant 0 : index
    %120 = vector.load %arg7[%c49_86, %c0_87] : memref<320x8xbf16, #tpu.memory_space<vmem>>, vector<256x8xbf16>
    %cst_88 = arith.constant 0.000000e+00 : bf16
    %121 = vector.broadcast %cst_88 : bf16 to vector<256x8xbf16>
    %122 = vector.shape_cast %26 : vector<256x1xi1> to vector<256x1xi1>
    %123 = vector.broadcast %122 : vector<256x1xi1> to vector<256x8xi1>
    %124 = arith.select %123, %120, %121 : vector<256x8xi1>, vector<256x8xbf16>
    %c0_89 = arith.constant 0 : index
    %c64 = arith.constant 64 : index
    %125 = vector.load %arg8[%c0_89, %c64] : memref<256x128xbf16, #tpu.memory_space<vmem>>, vector<256x8xbf16>
    tpu.vector_store %arg8[%c0_89, %c64], %124 {strides = array<i32>} : memref<256x128xbf16, #tpu.memory_space<vmem>>, vector<256x8xbf16>,
    %c0_90 = arith.constant 0 : index
    %c0_91 = arith.constant 0 : index
    %c0_92 = arith.constant 0 : index
    %126 = vector.load %arg1[%c0_90, %c0_91, %c0_92] : memref<1x256x4xf32, #tpu.memory_space<vmem>>, vector<1x256x4xf32>
    %127 = vector.shape_cast %126 : vector<1x256x4xf32> to vector<256x4xf32>
    %128 = arith.truncf %127 : vector<256x4xf32> to vector<256x4xbf16>
    %c0_93 = arith.constant 0 : index
    %c72 = arith.constant 72 : index
    %129 = vector.load %arg8[%c0_93, %c72] : memref<256x128xbf16, #tpu.memory_space<vmem>>, vector<256x4xbf16>
    tpu.vector_store %arg8[%c0_93, %c72], %128 {strides = array<i32>} : memref<256x128xbf16, #tpu.memory_space<vmem>>, vector<256x4xbf16>,
    %c0_94 = arith.constant 0 : index
    %c0_95 = arith.constant 0 : index
    %130 = vector.load %arg8[%c0_94, %c0_95] : memref<256x128xbf16, #tpu.memory_space<vmem>>, vector<256x128xbf16>
    %c0_96 = arith.constant 0 : index
    %c0_97 = arith.constant 0 : index
    %131 = vector.load %arg4[%c0_96, %c0_97] : memref<128x128xbf16, #tpu.memory_space<vmem>>, vector<128x128xbf16>
    %cst_98 = arith.constant dense<0.000000e+00> : vector<256x128xf32>
    %132 = tpu.matmul %130, %131, %cst_98 {dimension_numbers = #tpu.dot_dimension_numbers<[1], [0], [0], [1], [0, 0, 1, 1], [], []>} : vector<256x128xbf16>, vector<128x128xbf16>, vector<256x128xf32> -> vector<256x128xf32>
    %c0_99 = arith.constant 0 : index
    %c0_100 = arith.constant 0 : index
    %133 = vector.load %arg5[%c0_99, %c0_100] : memref<1x128xf32, #tpu.memory_space<vmem>>, vector<1x128xf32>
    %134 = vector.broadcast %133 : vector<1x128xf32> to vector<256x128xf32>
    %135 = arith.addf %132, %134 : vector<256x128xf32>
    %cst_101 = arith.constant 0.000000e+00 : f32
    %136 = vector.broadcast %cst_101 : f32 to vector<256x128xf32>
    %137 = arith.maximumf %135, %136 : vector<256x128xf32>
    %138 = vector.extract_strided_slice %137 {offsets = [0, 0], sizes = [256, 8], strides = [1, 1]} : vector<256x128xf32> to vector<256x8xf32>
    %139 = arith.truncf %138 : vector<256x8xf32> to vector<256x8xbf16>
    %140 = vector.shape_cast %139 : vector<256x8xbf16> to vector<1x256x8xbf16>
    %c0_102 = arith.constant 0 : index
    %c0_103 = arith.constant 0 : index
    %c0_104 = arith.constant 0 : index
    %141 = vector.load %arg6[%c0_102, %c0_103, %c0_104] : memref<1x256x8xbf16, #tpu.memory_space<vmem>>, vector<1x256x8xbf16>
    tpu.vector_store %arg6[%c0_102, %c0_103, %c0_104], %140 {strides = array<i32>} : memref<1x256x8xbf16, #tpu.memory_space<vmem>>, vector<1x256x8xbf16>,
    return
  }
  func.func @transform_0(%arg0: i32) -> (i32, i32, i32) {
    %c0_i32 = arith.constant 0 : i32
    %c0_i32_0 = arith.constant 0 : i32
    %c0_i32_1 = arith.constant 0 : i32
    return %arg0, %c0_i32, %c0_i32_0 : i32, i32, i32
  }
  func.func @transform_1(%arg0: i32) -> (i32, i32) {
    %c0_i32 = arith.constant 0 : i32
    %c0_i32_0 = arith.constant 0 : i32
    %c0_i32_1 = arith.constant 0 : i32
    return %c0_i32, %c0_i32_0 : i32, i32
  }
  func.func @transform_2(%arg0: i32) -> (i32, i32) {
    %c0_i32 = arith.constant 0 : i32
    %c0_i32_0 = arith.constant 0 : i32
    %c0_i32_1 = arith.constant 0 : i32
    return %c0_i32, %c0_i32_0 : i32, i32
  }
  func.func @transform_3(%arg0: i32) -> (i32, i32) {
    %c0_i32 = arith.constant 0 : i32
    %c0_i32_0 = arith.constant 0 : i32
    %c0_i32_1 = arith.constant 0 : i32
    return %c0_i32, %c0_i32_0 : i32, i32
  }
  func.func @transform_4(%arg0: i32) -> (i32, i32) {
    %c0_i32 = arith.constant 0 : i32
    %c0_i32_0 = arith.constant 0 : i32
    %c0_i32_1 = arith.constant 0 : i32
    return %c0_i32, %c0_i32_0 : i32, i32
  }
  func.func @transform_5(%arg0: i32) -> (i32, i32, i32) {
    %c0_i32 = arith.constant 0 : i32
    %c0_i32_0 = arith.constant 0 : i32
    %c0_i32_1 = arith.constant 0 : i32
    return %arg0, %c0_i32, %c0_i32_0 : i32, i32, i32
  }
}

</mosaic_0001>

<llo_original>
// kernel: tpu_custom_call.1
$region0: #{tpu_custom_call.1}
  #allocation0 [shape = 'u32[]', space=smem, size = 0x4, offset = 0x4, fixed_abs, tag = 'smem constant byte address 0x4 - core index']
  #allocation1 [shape = 'u32[144,128]{1,0:T(1,128)}', space=vmem, size = 0x12000, scoped, tag = 'internal scratch']
  #allocation2 [shape = 'bf16[320,8]{1,0:T(8,128)(2,1)}', space=vmem, size = 0x14000, scoped, tag = 'scratch operand']
  #allocation3 [shape = 'bf16[256,128]{1,0:T(8,128)(2,1)}', space=vmem, size = 0x10000, scoped, tag = 'scratch operand']
  %s0 = inlined_call_operand.vmem [shape: f32[2,256,4], index: 0, kind: input, shape index: {}]
  %s1 = inlined_call_operand.vmem [shape: bf16[128,128], index: 1, kind: input, shape index: {}]
  %s2 = inlined_call_operand.vmem [shape: f32[1,128], index: 2, kind: input, shape index: {}]
  %s3 = inlined_call_operand.vmem [shape: bf16[128,128], index: 3, kind: input, shape index: {}]
  %s4 = inlined_call_operand.vmem [shape: f32[1,128], index: 4, kind: input, shape index: {}]
  %s5 = inlined_call_operand.vmem [shape: bf16[2,256,8], index: 5, kind: output, shape index: {}]
  %s6 = sld [smem:[#allocation0]]
  $region53: #{tpu_custom_call.1} parent=0
    _
  %s8 = ssub.s32 1, %s6
  %s9 = scalar_select 0, %s8, %s6
  loop: start=0, step=1, limit=4
  $region2: #{tpu_custom_call.1} parent=0 // loop_pre_header
    _
  $region3: #{tpu_custom_call.1} parent=0 // loop_header
    %s11 = sphi 0, %s15
    %p12 = scmp.ge.s32.totalorder %s11, 4
    %s21 = sphi 0, %s23
    %s24 = sphi 0, %s21
    %s25 = sphi 0, %s24
    %s41 = sphi 0, %s25
    %s45 = sphi 0, %s45
    %s47 = sphi 0, %s45
    %s48 = sphi 0, %s47
    %s62 = sphi 0, %s48
    %s66 = sphi 0, %s66
    %s68 = sphi 0, %s66
    %s69 = sphi 0, %s68
    %s83 = sphi 0, %s69
    %s87 = sphi 0, %s87
    %s89 = sphi 0, %s87
    %s90 = sphi 0, %s89
    %s104 = sphi 0, %s90
    %s108 = sphi 0, %s108
    %s110 = sphi 0, %s108
    %s111 = sphi 0, %s110
    %s125 = sphi 0, %s111
    %s131 = sphi 0, %s133
    %s134 = sphi 0, %s131
    %s135 = sphi 0, %s134
    %s151 = sphi 0, %s135
  $region4: #{tpu_custom_call.1} parent=0 // loop_header_branch
    %14 = sbr.rel (%p12) target = $region8
  $region5: #{tpu_custom_call.1} parent=0 // loop_body
    %s16 = ssub.s32 %s11, 1
    %s17 = ssub.s32 %s11, 2
    %s18 = sadd.s32 %s11, 1
    %s19 = ssub.s32 %s11, %s18
    %p20 = scmp.eq.s32.totalorder %s19, 0
    %s22 = sadd.s32 %s21, 1
    %s23 = scalar_select %p20, %s21, %s22
    %p26 = pneg %p20
    %p27 = scmp.eq.s32.totalorder %s11, 1
    %p28 = por %p26, %p27
    %p29 = scmp.ne.s32.totalorder %s21, %s24
    %p30 = scmp.eq.s32.totalorder %s11, 0
    %p31 = por %p29, %p30
    %p32 = scmp.ne.s32.totalorder %s21, %s24
    %p33 = scmp.eq.s32.totalorder %s16, 1
    %p34 = por %p32, %p33
    %p35 = scmp.ne.s32.totalorder %s24, %s25
    %p36 = scmp.eq.s32.totalorder %s16, 0
    %p37 = por %p35, %p36
    %p38 = scmp.ne.s32.totalorder %s24, %s25
    %p39 = scmp.eq.s32.totalorder %s17, 1
    %p40 = por %p38, %p39
    %p42 = scmp.ne.s32.totalorder %s25, %s41
    %p43 = scmp.eq.s32.totalorder %s17, 0
    %p44 = por %p42, %p43
    %s46 = sadd.s32 %s45, 1
    %p49 = scmp.eq.s32.totalorder %s11, 1
    %p50 = scmp.ne.s32.totalorder %s45, %s47
    %p51 = scmp.eq.s32.totalorder %s11, 0
    %p52 = por %p50, %p51
    %p53 = scmp.ne.s32.totalorder %s45, %s47
    %p54 = scmp.eq.s32.totalorder %s16, 1
    %p55 = por %p53, %p54
    %p56 = scmp.ne.s32.totalorder %s47, %s48
    %p57 = scmp.eq.s32.totalorder %s16, 0
    %p58 = por %p56, %p57
    %p59 = scmp.ne.s32.totalorder %s47, %s48
    %p60 = scmp.eq.s32.totalorder %s17, 1
    %p61 = por %p59, %p60
    %p63 = scmp.ne.s32.totalorder %s48, %s62
    %p64 = scmp.eq.s32.totalorder %s17, 0
    %p65 = por %p63, %p64
    %s67 = sadd.s32 %s66, 1
    %p70 = scmp.eq.s32.totalorder %s11, 1
    %p71 = scmp.ne.s32.totalorder %s66, %s68
    %p72 = scmp.eq.s32.totalorder %s11, 0
    %p73 = por %p71, %p72
    %p74 = scmp.ne.s32.totalorder %s66, %s68
    %p75 = scmp.eq.s32.totalorder %s16, 1
    %p76 = por %p74, %p75
    %p77 = scmp.ne.s32.totalorder %s68, %s69
    %p78 = scmp.eq.s32.totalorder %s16, 0
    %p79 = por %p77, %p78
    %p80 = scmp.ne.s32.totalorder %s68, %s69
    %p81 = scmp.eq.s32.totalorder %s17, 1
    %p82 = por %p80, %p81
    %p84 = scmp.ne.s32.totalorder %s69, %s83
    %p85 = scmp.eq.s32.totalorder %s17, 0
    %p86 = por %p84, %p85
    %s88 = sadd.s32 %s87, 1
    %p91 = scmp.eq.s32.totalorder %s11, 1
    %p92 = scmp.ne.s32.totalorder %s87, %s89
    %p93 = scmp.eq.s32.totalorder %s11, 0
    %p94 = por %p92, %p93
    %p95 = scmp.ne.s32.totalorder %s87, %s89
    %p96 = scmp.eq.s32.totalorder %s16, 1
    %p97 = por %p95, %p96
    %p98 = scmp.ne.s32.totalorder %s89, %s90
    %p99 = scmp.eq.s32.totalorder %s16, 0
    %p100 = por %p98, %p99
    %p101 = scmp.ne.s32.totalorder %s89, %s90
    %p102 = scmp.eq.s32.totalorder %s17, 1
    %p103 = por %p101, %p102
    %p105 = scmp.ne.s32.totalorder %s90, %s104
    %p106 = scmp.eq.s32.totalorder %s17, 0
    %p107 = por %p105, %p106
    %s109 = sadd.s32 %s108, 1
    %p112 = scmp.eq.s32.totalorder %s11, 1
    %p113 = scmp.ne.s32.totalorder %s108, %s110
    %p114 = scmp.eq.s32.totalorder %s11, 0
    %p115 = por %p113, %p114
    %p116 = scmp.ne.s32.totalorder %s108, %s110
    %p117 = scmp.eq.s32.totalorder %s16, 1
    %p118 = por %p116, %p117
    %p119 = scmp.ne.s32.totalorder %s110, %s111
    %p120 = scmp.eq.s32.totalorder %s16, 0
    %p121 = por %p119, %p120
    %p122 = scmp.ne.s32.totalorder %s110, %s111
    %p123 = scmp.eq.s32.totalorder %s17, 1
    %p124 = por %p122, %p123
    %p126 = scmp.ne.s32.totalorder %s111, %s125
    %p127 = scmp.eq.s32.totalorder %s17, 0
    %p128 = por %p126, %p127
    %s129 = ssub.s32 %s11, %s18
    %p130 = scmp.eq.s32.totalorder %s129, 0
    %s132 = sadd.s32 %s131, 1
    %s133 = scalar_select %p130, %s131, %s132
    %p136 = pneg %p130
    %p137 = scmp.eq.s32.totalorder %s11, 1
    %p138 = por %p136, %p137
    %p139 = scmp.ne.s32.totalorder %s131, %s134
    %p140 = scmp.eq.s32.totalorder %s11, 0
    %p141 = por %p139, %p140
    %p142 = scmp.ne.s32.totalorder %s131, %s134
    %p143 = scmp.eq.s32.totalorder %s16, 1
    %p144 = por %p142, %p143
    %p145 = scmp.ne.s32.totalorder %s134, %s135
    %p146 = scmp.eq.s32.totalorder %s16, 0
    %p147 = por %p145, %p146
    %p148 = scmp.ne.s32.totalorder %s134, %s135
    %p149 = scmp.eq.s32.totalorder %s17, 1
    %p150 = por %p148, %p149
    %p152 = scmp.ne.s32.totalorder %s135, %s151
    %p153 = scmp.eq.s32.totalorder %s17, 0
    %p154 = por %p152, %p153
    %p155 = scmp.le.s32.totalorder 1, %s11
    %p156 = scmp.lt.s32.totalorder %s11, 3
    %p157 = pnand %p155, %p156
    %p158 = pneg %p157
    // Predicated region
    $region9: #{tpu_custom_call.1} parent=5 // pred_check
      _
    $region10: #{tpu_custom_call.1} parent=5 // pred_check_branch
      %160 = sbr.rel (%p157) target = $region12
    $region11: #{tpu_custom_call.1} parent=5 // pred_region
      %s161 = ssub.s32 %s11, 1
      // Predicated region
      $region13: #{tpu_custom_call.1} parent=11 // pred_check
        %p162 = pneg %p58
      $region14: #{tpu_custom_call.1} parent=11 // pred_check_branch
        %164 = sbr.rel (%p162) target = $region16
      $region15: #{tpu_custom_call.1} parent=11 // pred_region
        _
      $region16: #{tpu_custom_call.1} parent=11 // pred_fallthru
        _
      // Predicated region
      $region17: #{tpu_custom_call.1} parent=11 // pred_check
        %p165 = pneg %p79
      $region18: #{tpu_custom_call.1} parent=11 // pred_check_branch
        %167 = sbr.rel (%p165) target = $region20
      $region19: #{tpu_custom_call.1} parent=11 // pred_region
        _
      $region20: #{tpu_custom_call.1} parent=11 // pred_fallthru
        _
      // Predicated region
      $region21: #{tpu_custom_call.1} parent=11 // pred_check
        %p168 = pneg %p100
      $region22: #{tpu_custom_call.1} parent=11 // pred_check_branch
        %170 = sbr.rel (%p168) target = $region24
      $region23: #{tpu_custom_call.1} parent=11 // pred_region
        _
      $region24: #{tpu_custom_call.1} parent=11 // pred_fallthru
        _
      // Predicated region
      $region25: #{tpu_custom_call.1} parent=11 // pred_check
        %p171 = pneg %p121
      $region26: #{tpu_custom_call.1} parent=11 // pred_check_branch
        %173 = sbr.rel (%p171) target = $region28
      $region27: #{tpu_custom_call.1} parent=11 // pred_region
        _
      $region28: #{tpu_custom_call.1} parent=11 // pred_fallthru
        _
    $region12: #{tpu_custom_call.1} parent=5 // pred_fallthru
      _
    %p174 = scmp.lt.s32.totalorder %s11, 2
    // Predicated region
    $region29: #{tpu_custom_call.1} parent=5 // pred_check
      %p175 = pneg %p174
    $region30: #{tpu_custom_call.1} parent=5 // pred_check_branch
      %177 = sbr.rel (%p175) target = $region32
    $region31: #{tpu_custom_call.1} parent=5 // pred_region
      // Predicated region
      $region33: #{tpu_custom_call.1} parent=31 // pred_check
        %p178 = pneg %p31
      $region34: #{tpu_custom_call.1} parent=31 // pred_check_branch
        %180 = sbr.rel (%p178) target = $region36
      $region35: #{tpu_custom_call.1} parent=31 // pred_region
        %p181 = scmp.lt.s32.totalorder %s11, 1
        %s182 = scalar_select %p181, %s11, 1
        %s183 = smul.addr %s182, 32
        %s184 = smul.addr %s183, 8
        %s185 = scalar_lea.vmem %s0, %s184
      $region36: #{tpu_custom_call.1} parent=31 // pred_fallthru
        _
    $region32: #{tpu_custom_call.1} parent=5 // pred_fallthru
      _
    %p186 = scmp.le.s32.totalorder 1, %s11
    %p187 = scmp.lt.s32.totalorder %s11, 3
    %p188 = pnand %p186, %p187
    %p189 = pneg %p188
    // Predicated region
    $region37: #{tpu_custom_call.1} parent=5 // pred_check
      _
    $region38: #{tpu_custom_call.1} parent=5 // pred_check_branch
      %191 = sbr.rel (%p188) target = $region40
    $region39: #{tpu_custom_call.1} parent=5 // pred_region
      %s192 = ssub.s32 %s11, 1
      %p193 = scmp.lt.s32.totalorder %s16, 1
      %s194 = scalar_select %p193, %s16, 1
      %s195 = smul.addr %s194, 32
      %s196 = smul.addr %s195, 8
      %s197 = scalar_lea.vmem %s0, %s196
      %p198 = pneg %p37
      %p199 = pneg %p34
      %p200 = pneg %p58
      %p201 = pneg %p55
      %p202 = pneg %p79
      %p203 = pneg %p76
      %p204 = pneg %p100
      %p205 = pneg %p97
      %p206 = pneg %p121
      %p207 = pneg %p118
      %p208 = pneg %p147
      %p209 = pneg %p144
      %p210 = scmp.lt.s32.totalorder %s16, 1
      %s211 = scalar_select %p210, %s16, 1
      %s212 = smul.addr %s211, 32
      %s213 = smul.addr %s212, 4
      %s214 = scalar_lea.vmem %s5, %s213
      %p215 = scmp.lt.s32.totalorder %s16, 1
      %s216 = scalar_select %p215, %s16, 1
      %s217 = smul.addr %s216, 32
      %s218 = smul.addr %s217, 8
      %s219 = scalar_lea.vmem %s0, %s218
      %p220 = scmp.lt.s32.totalorder %s16, 1
      %s221 = scalar_select %p220, %s16, 1
      %s222 = smul.addr %s221, 32
      %s223 = smul.addr %s222, 4
      %s224 = scalar_lea.vmem %s5, %s223
      %vm228 = vcmask 60416
      %229 = vst.msk [vmem:[#allocation2] sm:$0xf] %vm228, 0
      %230 = vst.msk [vmem:[#allocation2 + $0x4] sm:$0xf] %vm228, 0
      %231 = vst.msk [vmem:[#allocation2 + $0x8] sm:$0xf] %vm228, 0
      %232 = vst.msk [vmem:[#allocation2 + $0xc] sm:$0xf] %vm228, 0
      %233 = vst.msk [vmem:[#allocation2 + $0x90] sm:$0xf] %vm228, 0
      %234 = vst.msk [vmem:[#allocation2 + $0x94] sm:$0xf] %vm228, 0
      %235 = vst.msk [vmem:[#allocation2 + $0x98] sm:$0xf] %vm228, 0
      %236 = vst.msk [vmem:[#allocation2 + $0x9c] sm:$0xf] %vm228, 0
      %vm237 = vcmask 1043744
      %238 = vst.msk [vmem:[#allocation3] sm:$0xf] %vm237, 0
      %239 = vst.msk [vmem:[#allocation3 + $0x4] sm:$0xf] %vm237, 0
      %240 = vst.msk [vmem:[#allocation3 + $0x8] sm:$0xf] %vm237, 0
      %241 = vst.msk [vmem:[#allocation3 + $0xc] sm:$0xf] %vm237, 0
      %242 = vst.msk [vmem:[#allocation3 + $0x10] sm:$0xf] %vm237, 0
      %243 = vst.msk [vmem:[#allocation3 + $0x14] sm:$0xf] %vm237, 0
      %244 = vst.msk [vmem:[#allocation3 + $0x18] sm:$0xf] %vm237, 0
      %245 = vst.msk [vmem:[#allocation3 + $0x1c] sm:$0xf] %vm237, 0
      %246 = vst.msk [vmem:[#allocation3 + $0x20] sm:$0xf] %vm237, 0
      %247 = vst.msk [vmem:[#allocation3 + $0x24] sm:$0xf] %vm237, 0
      %248 = vst.msk [vmem:[#allocation3 + $0x28] sm:$0xf] %vm237, 0
      %249 = vst.msk [vmem:[#allocation3 + $0x2c] sm:$0xf] %vm237, 0
      %250 = vst.msk [vmem:[#allocation3 + $0x30] sm:$0xf] %vm237, 0
      %251 = vst.msk [vmem:[#allocation3 + $0x34] sm:$0xf] %vm237, 0
      %252 = vst.msk [vmem:[#allocation3 + $0x38] sm:$0xf] %vm237, 0
      %253 = vst.msk [vmem:[#allocation3 + $0x3c] sm:$0xf] %vm237, 0
      %254 = vst.msk [vmem:[#allocation3 + $0x40] sm:$0xf] %vm237, 0
      %255 = vst.msk [vmem:[#allocation3 + $0x44] sm:$0xf] %vm237, 0
      %256 = vst.msk [vmem:[#allocation3 + $0x48] sm:$0xf] %vm237, 0
      %257 = vst.msk [vmem:[#allocation3 + $0x4c] sm:$0xf] %vm237, 0
      %258 = vst.msk [vmem:[#allocation3 + $0x50] sm:$0xf] %vm237, 0
      %259 = vst.msk [vmem:[#allocation3 + $0x54] sm:$0xf] %vm237, 0
      %260 = vst.msk [vmem:[#allocation3 + $0x58] sm:$0xf] %vm237, 0
      %261 = vst.msk [vmem:[#allocation3 + $0x5c] sm:$0xf] %vm237, 0
      %262 = vst.msk [vmem:[#allocation3 + $0x60] sm:$0xf] %vm237, 0
      %263 = vst.msk [vmem:[#allocation3 + $0x64] sm:$0xf] %vm237, 0
      %264 = vst.msk [vmem:[#allocation3 + $0x68] sm:$0xf] %vm237, 0
      %265 = vst.msk [vmem:[#allocation3 + $0x6c] sm:$0xf] %vm237, 0
      %266 = vst.msk [vmem:[#allocation3 + $0x70] sm:$0xf] %vm237, 0
      %267 = vst.msk [vmem:[#allocation3 + $0x74] sm:$0xf] %vm237, 0
      %268 = vst.msk [vmem:[#allocation3 + $0x78] sm:$0xf] %vm237, 0
      %269 = vst.msk [vmem:[#allocation3 + $0x7c] sm:$0xf] %vm237, 0
      %v270 = vlaneseq
      %v271 = vshrl.u32 %v270, 7
      %v272 = vadd.s32 %v271, 8
      %v273 = vadd.s32 %v271, 16
      %v274 = vadd.s32 %v271, 24
      %v275 = vadd.s32 %v271, 32
      %v276 = vadd.s32 %v271, 40
      %v277 = vadd.s32 %v271, 48
      %v278 = vadd.s32 %v271, 56
      %v279 = vadd.s32 %v271, 64
      %v280 = vadd.s32 %v271, 72
      %v281 = vadd.s32 %v271, 80
      %v282 = vadd.s32 %v271, 88
      %v283 = vadd.s32 %v271, 96
      %v284 = vadd.s32 %v271, 104
      %v285 = vadd.s32 %v271, 112
      %v286 = vadd.s32 %v271, 120
      %v287 = vadd.s32 %v271, 128
      %v288 = vadd.s32 %v271, 136
      %v289 = vadd.s32 %v271, 144
      %v290 = vadd.s32 %v271, 152
      %v291 = vadd.s32 %v271, 160
      %v292 = vadd.s32 %v271, 168
      %v293 = vadd.s32 %v271, 176
      %v294 = vadd.s32 %v271, 184
      %v295 = vadd.s32 %v271, 192
      %v296 = vadd.s32 %v271, 200
      %v297 = vadd.s32 %v271, 208
      %v298 = vadd.s32 %v271, 216
      %v299 = vadd.s32 %v271, 224
      %v300 = vadd.s32 %v271, 232
      %v301 = vadd.s32 %v271, 240
      %v302 = vadd.s32 %v271, 248
      %vm303 = vcmp.lt.s32.totalorder %v271, 0
      %v304 = vsub.s32 0, %v271
      %v305 = vsel %vm303, %v304, %v271
      %v306 = vshrl.u32 %v305, 4
      %v307 = vand.u32 %v305, 15
      %v308 = vsub.s32 0, %v307
      %v309 = vsel %vm303, %v308, %v307
      %vm310 = vcmp.lt.s32.totalorder %v272, 0
      %v311 = vsub.s32 0, %v272
      %v312 = vsel %vm310, %v311, %v272
      %v313 = vshrl.u32 %v312, 4
      %v314 = vand.u32 %v312, 15
      %v315 = vsub.s32 0, %v314
      %v316 = vsel %vm310, %v315, %v314
      %vm317 = vcmp.lt.s32.totalorder %v273, 0
      %v318 = vsub.s32 0, %v273
      %v319 = vsel %vm317, %v318, %v273
      %v320 = vshrl.u32 %v319, 4
      %v321 = vand.u32 %v319, 15
      %v322 = vsub.s32 0, %v321
      %v323 = vsel %vm317, %v322, %v321
      %vm324 = vcmp.lt.s32.totalorder %v274, 0
      %v325 = vsub.s32 0, %v274
      %v326 = vsel %vm324, %v325, %v274
      %v327 = vshrl.u32 %v326, 4
      %v328 = vand.u32 %v326, 15
      %v329 = vsub.s32 0, %v328
      %v330 = vsel %vm324, %v329, %v328
      %vm331 = vcmp.lt.s32.totalorder %v275, 0
      %v332 = vsub.s32 0, %v275
      %v333 = vsel %vm331, %v332, %v275
      %v334 = vshrl.u32 %v333, 4
      %v335 = vand.u32 %v333, 15
      %v336 = vsub.s32 0, %v335
      %v337 = vsel %vm331, %v336, %v335
      %vm338 = vcmp.lt.s32.totalorder %v276, 0
      %v339 = vsub.s32 0, %v276
      %v340 = vsel %vm338, %v339, %v276
      %v341 = vshrl.u32 %v340, 4
      %v342 = vand.u32 %v340, 15
      %v343 = vsub.s32 0, %v342
      %v344 = vsel %vm338, %v343, %v342
      %vm345 = vcmp.lt.s32.totalorder %v277, 0
      %v346 = vsub.s32 0, %v277
      %v347 = vsel %vm345, %v346, %v277
      %v348 = vshrl.u32 %v347, 4
      %v349 = vand.u32 %v347, 15
      %v350 = vsub.s32 0, %v349
      %v351 = vsel %vm345, %v350, %v349
      %vm352 = vcmp.lt.s32.totalorder %v278, 0
      %v353 = vsub.s32 0, %v278
      %v354 = vsel %vm352, %v353, %v278
      %v355 = vshrl.u32 %v354, 4
      %v356 = vand.u32 %v354, 15
      %v357 = vsub.s32 0, %v356
      %v358 = vsel %vm352, %v357, %v356
      %vm359 = vcmp.lt.s32.totalorder %v279, 0
      %v360 = vsub.s32 0, %v279
      %v361 = vsel %vm359, %v360, %v279
      %v362 = vshrl.u32 %v361, 4
      %v363 = vand.u32 %v361, 15
      %v364 = vsub.s32 0, %v363
      %v365 = vsel %vm359, %v364, %v363
      %vm366 = vcmp.lt.s32.totalorder %v280, 0
      %v367 = vsub.s32 0, %v280
      %v368 = vsel %vm366, %v367, %v280
      %v369 = vshrl.u32 %v368, 4
      %v370 = vand.u32 %v368, 15
      %v371 = vsub.s32 0, %v370
      %v372 = vsel %vm366, %v371, %v370
      %vm373 = vcmp.lt.s32.totalorder %v281, 0
      %v374 = vsub.s32 0, %v281
      %v375 = vsel %vm373, %v374, %v281
      %v376 = vshrl.u32 %v375, 4
      %v377 = vand.u32 %v375, 15
      %v378 = vsub.s32 0, %v377
      %v379 = vsel %vm373, %v378, %v377
      %vm380 = vcmp.lt.s32.totalorder %v282, 0
      %v381 = vsub.s32 0, %v282
      %v382 = vsel %vm380, %v381, %v282
      %v383 = vshrl.u32 %v382, 4
      %v384 = vand.u32 %v382, 15
      %v385 = vsub.s32 0, %v384
      %v386 = vsel %vm380, %v385, %v384
      %vm387 = vcmp.lt.s32.totalorder %v283, 0
      %v388 = vsub.s32 0, %v283
      %v389 = vsel %vm387, %v388, %v283
      %v390 = vshrl.u32 %v389, 4
      %v391 = vand.u32 %v389, 15
      %v392 = vsub.s32 0, %v391
      %v393 = vsel %vm387, %v392, %v391
      %vm394 = vcmp.lt.s32.totalorder %v284, 0
      %v395 = vsub.s32 0, %v284
      %v396 = vsel %vm394, %v395, %v284
      %v397 = vshrl.u32 %v396, 4
      %v398 = vand.u32 %v396, 15
      %v399 = vsub.s32 0, %v398
      %v400 = vsel %vm394, %v399, %v398
      %vm401 = vcmp.lt.s32.totalorder %v285, 0
      %v402 = vsub.s32 0, %v285
      %v403 = vsel %vm401, %v402, %v285
      %v404 = vshrl.u32 %v403, 4
      %v405 = vand.u32 %v403, 15
      %v406 = vsub.s32 0, %v405
      %v407 = vsel %vm401, %v406, %v405
      %vm408 = vcmp.lt.s32.totalorder %v286, 0
      %v409 = vsub.s32 0, %v286
      %v410 = vsel %vm408, %v409, %v286
      %v411 = vshrl.u32 %v410, 4
      %v412 = vand.u32 %v410, 15
      %v413 = vsub.s32 0, %v412
      %v414 = vsel %vm408, %v413, %v412
      %vm415 = vcmp.lt.s32.totalorder %v287, 0
      %v416 = vsub.s32 0, %v287
      %v417 = vsel %vm415, %v416, %v287
      %v418 = vshrl.u32 %v417, 4
      %v419 = vand.u32 %v417, 15
      %v420 = vsub.s32 0, %v419
      %v421 = vsel %vm415, %v420, %v419
      %vm422 = vcmp.lt.s32.totalorder %v288, 0
      %v423 = vsub.s32 0, %v288
      %v424 = vsel %vm422, %v423, %v288
      %v425 = vshrl.u32 %v424, 4
      %v426 = vand.u32 %v424, 15
      %v427 = vsub.s32 0, %v426
      %v428 = vsel %vm422, %v427, %v426
      %vm429 = vcmp.lt.s32.totalorder %v289, 0
      %v430 = vsub.s32 0, %v289
      %v431 = vsel %vm429, %v430, %v289
      %v432 = vshrl.u32 %v431, 4
      %v433 = vand.u32 %v431, 15
      %v434 = vsub.s32 0, %v433
      %v435 = vsel %vm429, %v434, %v433
      %vm436 = vcmp.lt.s32.totalorder %v290, 0
      %v437 = vsub.s32 0, %v290
      %v438 = vsel %vm436, %v437, %v290
      %v439 = vshrl.u32 %v438, 4
      %v440 = vand.u32 %v438, 15
      %v441 = vsub.s32 0, %v440
      %v442 = vsel %vm436, %v441, %v440
      %vm443 = vcmp.lt.s32.totalorder %v291, 0
      %v444 = vsub.s32 0, %v291
      %v445 = vsel %vm443, %v444, %v291
      %v446 = vshrl.u32 %v445, 4
      %v447 = vand.u32 %v445, 15
      %v448 = vsub.s32 0, %v447
      %v449 = vsel %vm443, %v448, %v447
      %vm450 = vcmp.lt.s32.totalorder %v292, 0
      %v451 = vsub.s32 0, %v292
      %v452 = vsel %vm450, %v451, %v292
      %v453 = vshrl.u32 %v452, 4
      %v454 = vand.u32 %v452, 15
      %v455 = vsub.s32 0, %v454
      %v456 = vsel %vm450, %v455, %v454
      %vm457 = vcmp.lt.s32.totalorder %v293, 0
      %v458 = vsub.s32 0, %v293
      %v459 = vsel %vm457, %v458, %v293
      %v460 = vshrl.u32 %v459, 4
      %v461 = vand.u32 %v459, 15
      %v462 = vsub.s32 0, %v461
      %v463 = vsel %vm457, %v462, %v461
      %vm464 = vcmp.lt.s32.totalorder %v294, 0
      %v465 = vsub.s32 0, %v294
      %v466 = vsel %vm464, %v465, %v294
      %v467 = vshrl.u32 %v466, 4
      %v468 = vand.u32 %v466, 15
      %v469 = vsub.s32 0, %v468
      %v470 = vsel %vm464, %v469, %v468
      %vm471 = vcmp.lt.s32.totalorder %v295, 0
      %v472 = vsub.s32 0, %v295
      %v473 = vsel %vm471, %v472, %v295
      %v474 = vshrl.u32 %v473, 4
      %v475 = vand.u32 %v473, 15
      %v476 = vsub.s32 0, %v475
      %v477 = vsel %vm471, %v476, %v475
      %vm478 = vcmp.lt.s32.totalorder %v296, 0
      %v479 = vsub.s32 0, %v296
      %v480 = vsel %vm478, %v479, %v296
      %v481 = vshrl.u32 %v480, 4
      %v482 = vand.u32 %v480, 15
      %v483 = vsub.s32 0, %v482
      %v484 = vsel %vm478, %v483, %v482
      %vm485 = vcmp.lt.s32.totalorder %v297, 0
      %v486 = vsub.s32 0, %v297
      %v487 = vsel %vm485, %v486, %v297
      %v488 = vshrl.u32 %v487, 4
      %v489 = vand.u32 %v487, 15
      %v490 = vsub.s32 0, %v489
      %v491 = vsel %vm485, %v490, %v489
      %vm492 = vcmp.lt.s32.totalorder %v298, 0
      %v493 = vsub.s32 0, %v298
      %v494 = vsel %vm492, %v493, %v298
      %v495 = vshrl.u32 %v494, 4
      %v496 = vand.u32 %v494, 15
      %v497 = vsub.s32 0, %v496
      %v498 = vsel %vm492, %v497, %v496
      %vm499 = vcmp.lt.s32.totalorder %v299, 0
      %v500 = vsub.s32 0, %v299
      %v501 = vsel %vm499, %v500, %v299
      %v502 = vshrl.u32 %v501, 4
      %v503 = vand.u32 %v501, 15
      %v504 = vsub.s32 0, %v503
      %v505 = vsel %vm499, %v504, %v503
      %vm506 = vcmp.lt.s32.totalorder %v300, 0
      %v507 = vsub.s32 0, %v300
      %v508 = vsel %vm506, %v507, %v300
      %v509 = vshrl.u32 %v508, 4
      %v510 = vand.u32 %v508, 15
      %v511 = vsub.s32 0, %v510
      %v512 = vsel %vm506, %v511, %v510
      %vm513 = vcmp.lt.s32.totalorder %v301, 0
      %v514 = vsub.s32 0, %v301
      %v515 = vsel %vm513, %v514, %v301
      %v516 = vshrl.u32 %v515, 4
      %v517 = vand.u32 %v515, 15
      %v518 = vsub.s32 0, %v517
      %v519 = vsel %vm513, %v518, %v517
      %vm520 = vcmp.lt.s32.totalorder %v302, 0
      %v521 = vsub.s32 0, %v302
      %v522 = vsel %vm520, %v521, %v302
      %v523 = vshrl.u32 %v522, 4
      %v524 = vand.u32 %v522, 15
      %v525 = vsub.s32 0, %v524
      %v526 = vsel %vm520, %v525, %v524
      %vm527 = vcmp.ne.s32.totalorder %v309, 0
      %vm528 = vcmp.ne.s32.totalorder %v316, 0
      %vm529 = vcmp.ne.s32.totalorder %v323, 0
      %vm530 = vcmp.ne.s32.totalorder %v330, 0
      %vm531 = vcmp.ne.s32.totalorder %v337, 0
      %vm532 = vcmp.ne.s32.totalorder %v344, 0
      %vm533 = vcmp.ne.s32.totalorder %v351, 0
      %vm534 = vcmp.ne.s32.totalorder %v358, 0
      %vm535 = vcmp.ne.s32.totalorder %v365, 0
      %vm536 = vcmp.ne.s32.totalorder %v372, 0
      %vm537 = vcmp.ne.s32.totalorder %v379, 0
      %vm538 = vcmp.ne.s32.totalorder %v386, 0
      %vm539 = vcmp.ne.s32.totalorder %v393, 0
      %vm540 = vcmp.ne.s32.totalorder %v400, 0
      %vm541 = vcmp.ne.s32.totalorder %v407, 0
      %vm542 = vcmp.ne.s32.totalorder %v414, 0
      %vm543 = vcmp.ne.s32.totalorder %v421, 0
      %vm544 = vcmp.ne.s32.totalorder %v428, 0
      %vm545 = vcmp.ne.s32.totalorder %v435, 0
      %vm546 = vcmp.ne.s32.totalorder %v442, 0
      %vm547 = vcmp.ne.s32.totalorder %v449, 0
      %vm548 = vcmp.ne.s32.totalorder %v456, 0
      %vm549 = vcmp.ne.s32.totalorder %v463, 0
      %vm550 = vcmp.ne.s32.totalorder %v470, 0
      %vm551 = vcmp.ne.s32.totalorder %v477, 0
      %vm552 = vcmp.ne.s32.totalorder %v484, 0
      %vm553 = vcmp.ne.s32.totalorder %v491, 0
      %vm554 = vcmp.ne.s32.totalorder %v498, 0
      %vm555 = vcmp.ne.s32.totalorder %v505, 0
      %vm556 = vcmp.ne.s32.totalorder %v512, 0
      %vm557 = vcmp.ne.s32.totalorder %v519, 0
      %vm558 = vcmp.ne.s32.totalorder %v526, 0
      %vm559 = vcmp.lt.s32.totalorder %v309, 0
      %vm560 = vcmp.lt.s32.totalorder %v316, 0
      %vm561 = vcmp.lt.s32.totalorder %v323, 0
      %vm562 = vcmp.lt.s32.totalorder %v330, 0
      %vm563 = vcmp.lt.s32.totalorder %v337, 0
      %vm564 = vcmp.lt.s32.totalorder %v344, 0
      %vm565 = vcmp.lt.s32.totalorder %v351, 0
      %vm566 = vcmp.lt.s32.totalorder %v358, 0
      %vm567 = vcmp.lt.s32.totalorder %v365, 0
      %vm568 = vcmp.lt.s32.totalorder %v372, 0
      %vm569 = vcmp.lt.s32.totalorder %v379, 0
      %vm570 = vcmp.lt.s32.totalorder %v386, 0
      %vm571 = vcmp.lt.s32.totalorder %v393, 0
      %vm572 = vcmp.lt.s32.totalorder %v400, 0
      %vm573 = vcmp.lt.s32.totalorder %v407, 0
      %vm574 = vcmp.lt.s32.totalorder %v414, 0
      %vm575 = vcmp.lt.s32.totalorder %v421, 0
      %vm576 = vcmp.lt.s32.totalorder %v428, 0
      %vm577 = vcmp.lt.s32.totalorder %v435, 0
      %vm578 = vcmp.lt.s32.totalorder %v442, 0
      %vm579 = vcmp.lt.s32.totalorder %v449, 0
      %vm580 = vcmp.lt.s32.totalorder %v456, 0
      %vm581 = vcmp.lt.s32.totalorder %v463, 0
      %vm582 = vcmp.lt.s32.totalorder %v470, 0
      %vm583 = vcmp.lt.s32.totalorder %v477, 0
      %vm584 = vcmp.lt.s32.totalorder %v484, 0
      %vm585 = vcmp.lt.s32.totalorder %v491, 0
      %vm586 = vcmp.lt.s32.totalorder %v498, 0
      %vm587 = vcmp.lt.s32.totalorder %v505, 0
      %vm588 = vcmp.lt.s32.totalorder %v512, 0
      %vm589 = vcmp.lt.s32.totalorder %v519, 0
      %vm590 = vcmp.lt.s32.totalorder %v526, 0
      %vm591 = vmand %vm559, %vm527
      %vm592 = vmand %vm560, %vm528
      %vm593 = vmand %vm561, %vm529
      %vm594 = vmand %vm562, %vm530
      %vm595 = vmand %vm563, %vm531
      %vm596 = vmand %vm564, %vm532
      %vm597 = vmand %vm565, %vm533
      %vm598 = vmand %vm566, %vm534
      %vm599 = vmand %vm567, %vm535
      %vm600 = vmand %vm568, %vm536
      %vm601 = vmand %vm569, %vm537
      %vm602 = vmand %vm570, %vm538
      %vm603 = vmand %vm571, %vm539
      %vm604 = vmand %vm572, %vm540
      %vm605 = vmand %vm573, %vm541
      %vm606 = vmand %vm574, %vm542
      %vm607 = vmand %vm575, %vm543
      %vm608 = vmand %vm576, %vm544
      %vm609 = vmand %vm577, %vm545
      %vm610 = vmand %vm578, %vm546
      %vm611 = vmand %vm579, %vm547
      %vm612 = vmand %vm580, %vm548
      %vm613 = vmand %vm581, %vm549
      %vm614 = vmand %vm582, %vm550
      %vm615 = vmand %vm583, %vm551
      %vm616 = vmand %vm584, %vm552
      %vm617 = vmand %vm585, %vm553
      %vm618 = vmand %vm586, %vm554
      %vm619 = vmand %vm587, %vm555
      %vm620 = vmand %vm588, %vm556
      %vm621 = vmand %vm589, %vm557
      %vm622 = vmand %vm590, %vm558
      %v623 = vadd.s32 %v309, 16
      %v624 = vadd.s32 %v316, 16
      %v625 = vadd.s32 %v323, 16
      %v626 = vadd.s32 %v330, 16
      %v627 = vadd.s32 %v337, 16
      %v628 = vadd.s32 %v344, 16
      %v629 = vadd.s32 %v351, 16
      %v630 = vadd.s32 %v358, 16
      %v631 = vadd.s32 %v365, 16
      %v632 = vadd.s32 %v372, 16
      %v633 = vadd.s32 %v379, 16
      %v634 = vadd.s32 %v386, 16
      %v635 = vadd.s32 %v393, 16
      %v636 = vadd.s32 %v400, 16
      %v637 = vadd.s32 %v407, 16
      %v638 = vadd.s32 %v414, 16
      %v639 = vadd.s32 %v421, 16
      %v640 = vadd.s32 %v428, 16
      %v641 = vadd.s32 %v435, 16
      %v642 = vadd.s32 %v442, 16
      %v643 = vadd.s32 %v449, 16
      %v644 = vadd.s32 %v456, 16
      %v645 = vadd.s32 %v463, 16
      %v646 = vadd.s32 %v470, 16
      %v647 = vadd.s32 %v477, 16
      %v648 = vadd.s32 %v484, 16
      %v649 = vadd.s32 %v491, 16
      %v650 = vadd.s32 %v498, 16
      %v651 = vadd.s32 %v505, 16
      %v652 = vadd.s32 %v512, 16
      %v653 = vadd.s32 %v519, 16
      %v654 = vadd.s32 %v526, 16
      %v655 = vsel %vm591, %v623, %v309
      %v656 = vsel %vm592, %v624, %v316
      %v657 = vsel %vm593, %v625, %v323
      %v658 = vsel %vm594, %v626, %v330
      %v659 = vsel %vm595, %v627, %v337
      %v660 = vsel %vm596, %v628, %v344
      %v661 = vsel %vm597, %v629, %v351
      %v662 = vsel %vm598, %v630, %v358
      %v663 = vsel %vm599, %v631, %v365
      %v664 = vsel %vm600, %v632, %v372
      %v665 = vsel %vm601, %v633, %v379
      %v666 = vsel %vm602, %v634, %v386
      %v667 = vsel %vm603, %v635, %v393
      %v668 = vsel %vm604, %v636, %v400
      %v669 = vsel %vm605, %v637, %v407
      %v670 = vsel %vm606, %v638, %v414
      %v671 = vsel %vm607, %v639, %v421
      %v672 = vsel %vm608, %v640, %v428
      %v673 = vsel %vm609, %v641, %v435
      %v674 = vsel %vm610, %v642, %v442
      %v675 = vsel %vm611, %v643, %v449
      %v676 = vsel %vm612, %v644, %v456
      %v677 = vsel %vm613, %v645, %v463
      %v678 = vsel %vm614, %v646, %v470
      %v679 = vsel %vm615, %v647, %v477
      %v680 = vsel %vm616, %v648, %v484
      %v681 = vsel %vm617, %v649, %v491
      %v682 = vsel %vm618, %v650, %v498
      %v683 = vsel %vm619, %v651, %v505
      %v684 = vsel %vm620, %v652, %v512
      %v685 = vsel %vm621, %v653, %v519
      %v686 = vsel %vm622, %v654, %v526
      %vm687 = vcmp.gt.s32.totalorder %v655, 0
      %vm688 = vcmp.gt.s32.totalorder %v656, 0
      %vm689 = vcmp.gt.s32.totalorder %v657, 0
      %vm690 = vcmp.gt.s32.totalorder %v658, 0
      %vm691 = vcmp.gt.s32.totalorder %v659, 0
      %vm692 = vcmp.gt.s32.totalorder %v660, 0
      %vm693 = vcmp.gt.s32.totalorder %v661, 0
      %vm694 = vcmp.gt.s32.totalorder %v662, 0
      %vm695 = vcmp.gt.s32.totalorder %v663, 0
      %vm696 = vcmp.gt.s32.totalorder %v664, 0
      %vm697 = vcmp.gt.s32.totalorder %v665, 0
      %vm698 = vcmp.gt.s32.totalorder %v666, 0
      %vm699 = vcmp.gt.s32.totalorder %v667, 0
      %vm700 = vcmp.gt.s32.totalorder %v668, 0
      %vm701 = vcmp.gt.s32.totalorder %v669, 0
      %vm702 = vcmp.gt.s32.totalorder %v670, 0
      %vm703 = vcmp.gt.s32.totalorder %v671, 0
      %vm704 = vcmp.gt.s32.totalorder %v672, 0
      %vm705 = vcmp.gt.s32.totalorder %v673, 0
      %vm706 = vcmp.gt.s32.totalorder %v674, 0
      %vm707 = vcmp.gt.s32.totalorder %v675, 0
      %vm708 = vcmp.gt.s32.totalorder %v676, 0
      %vm709 = vcmp.gt.s32.totalorder %v677, 0
      %vm710 = vcmp.gt.s32.totalorder %v678, 0
      %vm711 = vcmp.gt.s32.totalorder %v679, 0
      %vm712 = vcmp.gt.s32.totalorder %v680, 0
      %vm713 = vcmp.gt.s32.totalorder %v681, 0
      %vm714 = vcmp.gt.s32.totalorder %v682, 0
      %vm715 = vcmp.gt.s32.totalorder %v683, 0
      %vm716 = vcmp.gt.s32.totalorder %v684, 0
      %vm717 = vcmp.gt.s32.totalorder %v685, 0
      %vm718 = vcmp.gt.s32.totalorder %v686, 0
      %vm719 = vcmp.lt.s32.totalorder %v655, 15
      %vm720 = vcmp.lt.s32.totalorder %v656, 15
      %vm721 = vcmp.lt.s32.totalorder %v657, 15
      %vm722 = vcmp.lt.s32.totalorder %v658, 15
      %vm723 = vcmp.lt.s32.totalorder %v659, 15
      %vm724 = vcmp.lt.s32.totalorder %v660, 15
      %vm725 = vcmp.lt.s32.totalorder %v661, 15
      %vm726 = vcmp.lt.s32.totalorder %v662, 15
      %vm727 = vcmp.lt.s32.totalorder %v663, 15
      %vm728 = vcmp.lt.s32.totalorder %v664, 15
      %vm729 = vcmp.lt.s32.totalorder %v665, 15
      %vm730 = vcmp.lt.s32.totalorder %v666, 15
      %vm731 = vcmp.lt.s32.totalorder %v667, 15
      %vm732 = vcmp.lt.s32.totalorder %v668, 15
      %vm733 = vcmp.lt.s32.totalorder %v669, 15
      %vm734 = vcmp.lt.s32.totalorder %v670, 15
      %vm735 = vcmp.lt.s32.totalorder %v671, 15
      %vm736 = vcmp.lt.s32.totalorder %v672, 15
      %vm737 = vcmp.lt.s32.totalorder %v673, 15
      %vm738 = vcmp.lt.s32.totalorder %v674, 15
      %vm739 = vcmp.lt.s32.totalorder %v675, 15
      %vm740 = vcmp.lt.s32.totalorder %v676, 15
      %vm741 = vcmp.lt.s32.totalorder %v677, 15
      %vm742 = vcmp.lt.s32.totalorder %v678, 15
      %vm743 = vcmp.lt.s32.totalorder %v679, 15
      %vm744 = vcmp.lt.s32.totalorder %v680, 15
      %vm745 = vcmp.lt.s32.totalorder %v681, 15
      %vm746 = vcmp.lt.s32.totalorder %v682, 15
      %vm747 = vcmp.lt.s32.totalorder %v683, 15
      %vm748 = vcmp.lt.s32.totalorder %v684, 15
      %vm749 = vcmp.lt.s32.totalorder %v685, 15
      %vm750 = vcmp.lt.s32.totalorder %v686, 15
      %v751 = vld [vmem:[%s219] sm:$0xff]
      %v752 = vld [vmem:[%s219 + $0x8] sm:$0xff]
      %v753 = vld [vmem:[%s219 + $0x10] sm:$0xff]
      %v754 = vld [vmem:[%s219 + $0x18] sm:$0xff]
      %v755 = vld [vmem:[%s219 + $0x20] sm:$0xff]
      %v756 = vld [vmem:[%s219 + $0x28] sm:$0xff]
      %v757 = vld [vmem:[%s219 + $0x30] sm:$0xff]
      %v758 = vld [vmem:[%s219 + $0x38] sm:$0xff]
      %v759 = vld [vmem:[%s219 + $0x40] sm:$0xff]
      %v760 = vld [vmem:[%s219 + $0x48] sm:$0xff]
      %v761 = vld [vmem:[%s219 + $0x50] sm:$0xff]
      %v762 = vld [vmem:[%s219 + $0x58] sm:$0xff]
      %v763 = vld [vmem:[%s219 + $0x60] sm:$0xff]
      %v764 = vld [vmem:[%s219 + $0x68] sm:$0xff]
      %v765 = vld [vmem:[%s219 + $0x70] sm:$0xff]
      %v766 = vld [vmem:[%s219 + $0x78] sm:$0xff]
      %v767 = vld [vmem:[%s219 + $0x80] sm:$0xff]
      %v768 = vld [vmem:[%s219 + $0x88] sm:$0xff]
      %v769 = vld [vmem:[%s219 + $0x90] sm:$0xff]
      %v770 = vld [vmem:[%s219 + $0x98] sm:$0xff]
      %v771 = vld [vmem:[%s219 + $0xa0] sm:$0xff]
      %v772 = vld [vmem:[%s219 + $0xa8] sm:$0xff]
      %v773 = vld [vmem:[%s219 + $0xb0] sm:$0xff]
      %v774 = vld [vmem:[%s219 + $0xb8] sm:$0xff]
      %v775 = vld [vmem:[%s219 + $0xc0] sm:$0xff]
      %v776 = vld [vmem:[%s219 + $0xc8] sm:$0xff]
      %v777 = vld [vmem:[%s219 + $0xd0] sm:$0xff]
      %v778 = vld [vmem:[%s219 + $0xd8] sm:$0xff]
      %v779 = vld [vmem:[%s219 + $0xe0] sm:$0xff]
      %v780 = vld [vmem:[%s219 + $0xe8] sm:$0xff]
      %v781 = vld [vmem:[%s219 + $0xf0] sm:$0xff]
      %v782 = vld [vmem:[%s219 + $0xf8] sm:$0xff]
      %v783 = vpack.c.bf16 %v752, %v751
      %v784 = vpack.c.bf16 %v754, %v753
      %v785 = vpack.c.bf16 %v756, %v755
      %v786 = vpack.c.bf16 %v758, %v757
      %v787 = vpack.c.bf16 %v760, %v759
      %v788 = vpack.c.bf16 %v762, %v761
      %v789 = vpack.c.bf16 %v764, %v763
      %v790 = vpack.c.bf16 %v766, %v765
      %v791 = vpack.c.bf16 %v768, %v767
      %v792 = vpack.c.bf16 %v770, %v769
      %v793 = vpack.c.bf16 %v772, %v771
      %v794 = vpack.c.bf16 %v774, %v773
      %v795 = vpack.c.bf16 %v776, %v775
      %v796 = vpack.c.bf16 %v778, %v777
      %v797 = vpack.c.bf16 %v780, %v779
      %v798 = vpack.c.bf16 %v782, %v781
      %v815 = vunpack.c.l.b16 %v783
      %v816 = vunpack.c.h.b16 %v783
      %v817 = vunpack.c.l.b16 %v784
      %v818 = vunpack.c.h.b16 %v784
      %v819 = vunpack.c.l.b16 %v785
      %v820 = vunpack.c.h.b16 %v785
      %v821 = vunpack.c.l.b16 %v786
      %v822 = vunpack.c.h.b16 %v786
      %v823 = vunpack.c.l.b16 %v787
      %v824 = vunpack.c.h.b16 %v787
      %v825 = vunpack.c.l.b16 %v788
      %v826 = vunpack.c.h.b16 %v788
      %v827 = vunpack.c.l.b16 %v789
      %v828 = vunpack.c.h.b16 %v789
      %v829 = vunpack.c.l.b16 %v790
      %v830 = vunpack.c.h.b16 %v790
      %v831 = vunpack.c.l.b16 %v791
      %v832 = vunpack.c.h.b16 %v791
      %v833 = vunpack.c.l.b16 %v792
      %v834 = vunpack.c.h.b16 %v792
      %v835 = vunpack.c.l.b16 %v793
      %v836 = vunpack.c.h.b16 %v793
      %v837 = vunpack.c.l.b16 %v794
      %v838 = vunpack.c.h.b16 %v794
      %v839 = vunpack.c.l.b16 %v795
      %v840 = vunpack.c.h.b16 %v795
      %v841 = vunpack.c.l.b16 %v796
      %v842 = vunpack.c.h.b16 %v796
      %v843 = vunpack.c.l.b16 %v797
      %v844 = vunpack.c.h.b16 %v797
      %v845 = vunpack.c.l.b16 %v798
      %v846 = vunpack.c.h.b16 %v798
      %v847 = vpack.c.b16 %v815, %v815
      %v848 = vpack.c.b16 %v816, %v816
      %v849 = vpack.c.b16 %v817, %v817
      %v850 = vpack.c.b16 %v818, %v818
      %v851 = vpack.c.b16 %v819, %v819
      %v852 = vpack.c.b16 %v820, %v820
      %v853 = vpack.c.b16 %v821, %v821
      %v854 = vpack.c.b16 %v822, %v822
      %v855 = vpack.c.b16 %v823, %v823
      %v856 = vpack.c.b16 %v824, %v824
      %v857 = vpack.c.b16 %v825, %v825
      %v858 = vpack.c.b16 %v826, %v826
      %v859 = vpack.c.b16 %v827, %v827
      %v860 = vpack.c.b16 %v828, %v828
      %v861 = vpack.c.b16 %v829, %v829
      %v862 = vpack.c.b16 %v830, %v830
      %v863 = vpack.c.b16 %v831, %v831
      %v864 = vpack.c.b16 %v832, %v832
      %v865 = vpack.c.b16 %v833, %v833
      %v866 = vpack.c.b16 %v834, %v834
      %v867 = vpack.c.b16 %v835, %v835
      %v868 = vpack.c.b16 %v836, %v836
      %v869 = vpack.c.b16 %v837, %v837
      %v870 = vpack.c.b16 %v838, %v838
      %v871 = vpack.c.b16 %v839, %v839
      %v872 = vpack.c.b16 %v840, %v840
      %v873 = vpack.c.b16 %v841, %v841
      %v874 = vpack.c.b16 %v842, %v842
      %v875 = vpack.c.b16 %v843, %v843
      %v876 = vpack.c.b16 %v844, %v844
      %v877 = vpack.c.b16 %v845, %v845
      %v878 = vpack.c.b16 %v846, %v846
      %vm911 = vcmask 27648
      %912 = vst.msk [vmem:[#allocation2 + $0x10] sm:$0xf] %vm911, %v847
      %913 = vst.msk [vmem:[#allocation2 + $0x14] sm:$0xf] %vm911, %v848
      %914 = vst.msk [vmem:[#allocation2 + $0x18] sm:$0xf] %vm911, %v849
      %915 = vst.msk [vmem:[#allocation2 + $0x1c] sm:$0xf] %vm911, %v850
      %916 = vst.msk [vmem:[#allocation2 + $0x20] sm:$0xf] %vm911, %v851
      %917 = vst.msk [vmem:[#allocation2 + $0x24] sm:$0xf] %vm911, %v852
      %918 = vst.msk [vmem:[#allocation2 + $0x28] sm:$0xf] %vm911, %v853
      %919 = vst.msk [vmem:[#allocation2 + $0x2c] sm:$0xf] %vm911, %v854
      %920 = vst.msk [vmem:[#allocation2 + $0x30] sm:$0xf] %vm911, %v855
      %921 = vst.msk [vmem:[#allocation2 + $0x34] sm:$0xf] %vm911, %v856
      %922 = vst.msk [vmem:[#allocation2 + $0x38] sm:$0xf] %vm911, %v857
      %923 = vst.msk [vmem:[#allocation2 + $0x3c] sm:$0xf] %vm911, %v858
      %924 = vst.msk [vmem:[#allocation2 + $0x40] sm:$0xf] %vm911, %v859
      %925 = vst.msk [vmem:[#allocation2 + $0x44] sm:$0xf] %vm911, %v860
      %926 = vst.msk [vmem:[#allocation2 + $0x48] sm:$0xf] %vm911, %v861
      %927 = vst.msk [vmem:[#allocation2 + $0x4c] sm:$0xf] %vm911, %v862
      %928 = vst.msk [vmem:[#allocation2 + $0x50] sm:$0xf] %vm911, %v863
      %929 = vst.msk [vmem:[#allocation2 + $0x54] sm:$0xf] %vm911, %v864
      %930 = vst.msk [vmem:[#allocation2 + $0x58] sm:$0xf] %vm911, %v865
      %931 = vst.msk [vmem:[#allocation2 + $0x5c] sm:$0xf] %vm911, %v866
      %932 = vst.msk [vmem:[#allocation2 + $0x60] sm:$0xf] %vm911, %v867
      %933 = vst.msk [vmem:[#allocation2 + $0x64] sm:$0xf] %vm911, %v868
      %934 = vst.msk [vmem:[#allocation2 + $0x68] sm:$0xf] %vm911, %v869
      %935 = vst.msk [vmem:[#allocation2 + $0x6c] sm:$0xf] %vm911, %v870
      %936 = vst.msk [vmem:[#allocation2 + $0x70] sm:$0xf] %vm911, %v871
      %937 = vst.msk [vmem:[#allocation2 + $0x74] sm:$0xf] %vm911, %v872
      %938 = vst.msk [vmem:[#allocation2 + $0x78] sm:$0xf] %vm911, %v873
      %939 = vst.msk [vmem:[#allocation2 + $0x7c] sm:$0xf] %vm911, %v874
      %940 = vst.msk [vmem:[#allocation2 + $0x80] sm:$0xf] %vm911, %v875
      %941 = vst.msk [vmem:[#allocation2 + $0x84] sm:$0xf] %vm911, %v876
      %942 = vst.msk [vmem:[#allocation2 + $0x88] sm:$0xf] %vm911, %v877
      %943 = vst.msk [vmem:[#allocation2 + $0x8c] sm:$0xf] %vm911, %v878
      %v944 = vld [vmem:[#allocation2 + $0x4] sm:$0x8]
      %v945 = vld [vmem:[#allocation2 + $0x8] sm:$0xf]
      %v946 = vld [vmem:[#allocation2 + $0xc] sm:$0xf]
      %v947 = vld [vmem:[#allocation2 + $0x10] sm:$0xf]
      %v948 = vld [vmem:[#allocation2 + $0x14] sm:$0xf]
      %v949 = vld [vmem:[#allocation2 + $0x18] sm:$0xf]
      %v950 = vld [vmem:[#allocation2 + $0x1c] sm:$0xf]
      %v951 = vld [vmem:[#allocation2 + $0x20] sm:$0xf]
      %v952 = vld [vmem:[#allocation2 + $0x24] sm:$0xf]
      %v953 = vld [vmem:[#allocation2 + $0x28] sm:$0xf]
      %v954 = vld [vmem:[#allocation2 + $0x2c] sm:$0xf]
      %v955 = vld [vmem:[#allocation2 + $0x30] sm:$0xf]
      %v956 = vld [vmem:[#allocation2 + $0x34] sm:$0xf]
      %v957 = vld [vmem:[#allocation2 + $0x38] sm:$0xf]
      %v958 = vld [vmem:[#allocation2 + $0x3c] sm:$0xf]
      %v959 = vld [vmem:[#allocation2 + $0x40] sm:$0xf]
      %v960 = vld [vmem:[#allocation2 + $0x44] sm:$0xf]
      %v961 = vld [vmem:[#allocation2 + $0x48] sm:$0xf]
      %v962 = vld [vmem:[#allocation2 + $0x4c] sm:$0xf]
      %v963 = vld [vmem:[#allocation2 + $0x50] sm:$0xf]
      %v964 = vld [vmem:[#allocation2 + $0x54] sm:$0xf]
      %v965 = vld [vmem:[#allocation2 + $0x58] sm:$0xf]
      %v966 = vld [vmem:[#allocation2 + $0x5c] sm:$0xf]
      %v967 = vld [vmem:[#allocation2 + $0x60] sm:$0xf]
      %v968 = vld [vmem:[#allocation2 + $0x64] sm:$0xf]
      %v969 = vld [vmem:[#allocation2 + $0x68] sm:$0xf]
      %v970 = vld [vmem:[#allocation2 + $0x6c] sm:$0xf]
      %v971 = vld [vmem:[#allocation2 + $0x70] sm:$0xf]
      %v972 = vld [vmem:[#allocation2 + $0x74] sm:$0xf]
      %v973 = vld [vmem:[#allocation2 + $0x78] sm:$0xf]
      %v974 = vld [vmem:[#allocation2 + $0x7c] sm:$0xf]
      %v975 = vld [vmem:[#allocation2 + $0x80] sm:$0xf]
      %v976 = vld [vmem:[#allocation2 + $0x84] sm:$0xf]
      %v977 = vsel %vm687, 1, 0
      %v978 = vsel %vm688, 1, 0
      %v979 = vsel %vm689, 1, 0
      %v980 = vsel %vm690, 1, 0
      %v981 = vsel %vm691, 1, 0
      %v982 = vsel %vm692, 1, 0
      %v983 = vsel %vm693, 1, 0
      %v984 = vsel %vm694, 1, 0
      %v985 = vsel %vm695, 1, 0
      %v986 = vsel %vm696, 1, 0
      %v987 = vsel %vm697, 1, 0
      %v988 = vsel %vm698, 1, 0
      %v989 = vsel %vm699, 1, 0
      %v990 = vsel %vm700, 1, 0
      %v991 = vsel %vm701, 1, 0
      %v992 = vsel %vm702, 1, 0
      %v993 = vsel %vm703, 1, 0
      %v994 = vsel %vm704, 1, 0
      %v995 = vsel %vm705, 1, 0
      %v996 = vsel %vm706, 1, 0
      %v997 = vsel %vm707, 1, 0
      %v998 = vsel %vm708, 1, 0
      %v999 = vsel %vm709, 1, 0
      %v1000 = vsel %vm710, 1, 0
      %v1001 = vsel %vm711, 1, 0
      %v1002 = vsel %vm712, 1, 0
      %v1003 = vsel %vm713, 1, 0
      %v1004 = vsel %vm714, 1, 0
      %v1005 = vsel %vm715, 1, 0
      %v1006 = vsel %vm716, 1, 0
      %v1007 = vsel %vm717, 1, 0
      %v1008 = vsel %vm718, 1, 0
      %vm1009 = vcmp.eq.s32.totalorder %v977, 1
      %vm1010 = vcmp.eq.s32.totalorder %v978, 1
      %vm1011 = vcmp.eq.s32.totalorder %v979, 1
      %vm1012 = vcmp.eq.s32.totalorder %v980, 1
      %vm1013 = vcmp.eq.s32.totalorder %v981, 1
      %vm1014 = vcmp.eq.s32.totalorder %v982, 1
      %vm1015 = vcmp.eq.s32.totalorder %v983, 1
      %vm1016 = vcmp.eq.s32.totalorder %v984, 1
      %vm1017 = vcmp.eq.s32.totalorder %v985, 1
      %vm1018 = vcmp.eq.s32.totalorder %v986, 1
      %vm1019 = vcmp.eq.s32.totalorder %v987, 1
      %vm1020 = vcmp.eq.s32.totalorder %v988, 1
      %vm1021 = vcmp.eq.s32.totalorder %v989, 1
      %vm1022 = vcmp.eq.s32.totalorder %v990, 1
      %vm1023 = vcmp.eq.s32.totalorder %v991, 1
      %vm1024 = vcmp.eq.s32.totalorder %v992, 1
      %vm1025 = vcmp.eq.s32.totalorder %v993, 1
      %vm1026 = vcmp.eq.s32.totalorder %v994, 1
      %vm1027 = vcmp.eq.s32.totalorder %v995, 1
      %vm1028 = vcmp.eq.s32.totalorder %v996, 1
      %vm1029 = vcmp.eq.s32.totalorder %v997, 1
      %vm1030 = vcmp.eq.s32.totalorder %v998, 1
      %vm1031 = vcmp.eq.s32.totalorder %v999, 1
      %vm1032 = vcmp.eq.s32.totalorder %v1000, 1
      %vm1033 = vcmp.eq.s32.totalorder %v1001, 1
      %vm1034 = vcmp.eq.s32.totalorder %v1002, 1
      %vm1035 = vcmp.eq.s32.totalorder %v1003, 1
      %vm1036 = vcmp.eq.s32.totalorder %v1004, 1
      %vm1037 = vcmp.eq.s32.totalorder %v1005, 1
      %vm1038 = vcmp.eq.s32.totalorder %v1006, 1
      %vm1039 = vcmp.eq.s32.totalorder %v1007, 1
      %vm1040 = vcmp.eq.s32.totalorder %v1008, 1
      %vm1041 = vmpackc.low %vm1009, %vm1009
      %vm1042 = vmpackc.low %vm1010, %vm1010
      %vm1043 = vmpackc.low %vm1011, %vm1011
      %vm1044 = vmpackc.low %vm1012, %vm1012
      %vm1045 = vmpackc.low %vm1013, %vm1013
      %vm1046 = vmpackc.low %vm1014, %vm1014
      %vm1047 = vmpackc.low %vm1015, %vm1015
      %vm1048 = vmpackc.low %vm1016, %vm1016
      %vm1049 = vmpackc.low %vm1017, %vm1017
      %vm1050 = vmpackc.low %vm1018, %vm1018
      %vm1051 = vmpackc.low %vm1019, %vm1019
      %vm1052 = vmpackc.low %vm1020, %vm1020
      %vm1053 = vmpackc.low %vm1021, %vm1021
      %vm1054 = vmpackc.low %vm1022, %vm1022
      %vm1055 = vmpackc.low %vm1023, %vm1023
      %vm1056 = vmpackc.low %vm1024, %vm1024
      %vm1057 = vmpackc.low %vm1025, %vm1025
      %vm1058 = vmpackc.low %vm1026, %vm1026
      %vm1059 = vmpackc.low %vm1027, %vm1027
      %vm1060 = vmpackc.low %vm1028, %vm1028
      %vm1061 = vmpackc.low %vm1029, %vm1029
      %vm1062 = vmpackc.low %vm1030, %vm1030
      %vm1063 = vmpackc.low %vm1031, %vm1031
      %vm1064 = vmpackc.low %vm1032, %vm1032
      %vm1065 = vmpackc.low %vm1033, %vm1033
      %vm1066 = vmpackc.low %vm1034, %vm1034
      %vm1067 = vmpackc.low %vm1035, %vm1035
      %vm1068 = vmpackc.low %vm1036, %vm1036
      %vm1069 = vmpackc.low %vm1037, %vm1037
      %vm1070 = vmpackc.low %vm1038, %vm1038
      %vm1071 = vmpackc.low %vm1039, %vm1039
      %vm1072 = vmpackc.low %vm1040, %vm1040
      %v1073 = vsel %vm1041, 65537, 0
      %v1074 = vsel %vm1042, 65537, 0
      %v1075 = vsel %vm1043, 65537, 0
      %v1076 = vsel %vm1044, 65537, 0
      %v1077 = vsel %vm1045, 65537, 0
      %v1078 = vsel %vm1046, 65537, 0
      %v1079 = vsel %vm1047, 65537, 0
      %v1080 = vsel %vm1048, 65537, 0
      %v1081 = vsel %vm1049, 65537, 0
      %v1082 = vsel %vm1050, 65537, 0
      %v1083 = vsel %vm1051, 65537, 0
      %v1084 = vsel %vm1052, 65537, 0
      %v1085 = vsel %vm1053, 65537, 0
      %v1086 = vsel %vm1054, 65537, 0
      %v1087 = vsel %vm1055, 65537, 0
      %v1088 = vsel %vm1056, 65537, 0
      %v1089 = vsel %vm1057, 65537, 0
      %v1090 = vsel %vm1058, 65537, 0
      %v1091 = vsel %vm1059, 65537, 0
      %v1092 = vsel %vm1060, 65537, 0
      %v1093 = vsel %vm1061, 65537, 0
      %v1094 = vsel %vm1062, 65537, 0
      %v1095 = vsel %vm1063, 65537, 0
      %v1096 = vsel %vm1064, 65537, 0
      %v1097 = vsel %vm1065, 65537, 0
      %v1098 = vsel %vm1066, 65537, 0
      %v1099 = vsel %vm1067, 65537, 0
      %v1100 = vsel %vm1068, 65537, 0
      %v1101 = vsel %vm1069, 65537, 0
      %v1102 = vsel %vm1070, 65537, 0
      %v1103 = vsel %vm1071, 65537, 0
      %v1104 = vsel %vm1072, 65537, 0
      %vm1105 = vsmask.f32 3328
      %vm1106 = vsmask.f32 7440
      %vm1107 = vmor %vm1105, %vm1106
      %v1109 = vshll.u32 %v1073, 16
      %v1111 = vrot.slane %v1109, 5
      %v1112 = vshrl.u32 %v1073, 16
      %v1114 = vrot.slane %v1112, 4
      %v1115 = vor.u32 %v1114, %v1111
      %v1116 = vrot.slane %v1115, 4
      %v1118 = vshll.u32 %v1074, 16
      %v1120 = vrot.slane %v1118, 5
      %v1121 = vsel %vm1107, %v1116, %v1120
      %v1122 = vshrl.u32 %v1074, 16
      %v1124 = vrot.slane %v1122, 4
      %v1125 = vor.u32 %v1124, %v1120
      %v1126 = vrot.slane %v1125, 4
      %v1128 = vshll.u32 %v1075, 16
      %v1130 = vrot.slane %v1128, 5
      %v1131 = vsel %vm1107, %v1126, %v1130
      %v1132 = vshrl.u32 %v1075, 16
      %v1134 = vrot.slane %v1132, 4
      %v1135 = vor.u32 %v1134, %v1130
      %v1136 = vrot.slane %v1135, 4
      %v1138 = vshll.u32 %v1076, 16
      %v1140 = vrot.slane %v1138, 5
      %v1141 = vsel %vm1107, %v1136, %v1140
      %v1142 = vshrl.u32 %v1076, 16
      %v1144 = vrot.slane %v1142, 4
      %v1145 = vor.u32 %v1144, %v1140
      %v1146 = vrot.slane %v1145, 4
      %v1148 = vshll.u32 %v1077, 16
      %v1150 = vrot.slane %v1148, 5
      %v1151 = vsel %vm1107, %v1146, %v1150
      %v1152 = vshrl.u32 %v1077, 16
      %v1154 = vrot.slane %v1152, 4
      %v1155 = vor.u32 %v1154, %v1150
      %v1156 = vrot.slane %v1155, 4
      %v1158 = vshll.u32 %v1078, 16
      %v1160 = vrot.slane %v1158, 5
      %v1161 = vsel %vm1107, %v1156, %v1160
      %v1162 = vshrl.u32 %v1078, 16
      %v1164 = vrot.slane %v1162, 4
      %v1165 = vor.u32 %v1164, %v1160
      %v1166 = vrot.slane %v1165, 4
      %v1168 = vshll.u32 %v1079, 16
      %v1170 = vrot.slane %v1168, 5
      %v1171 = vsel %vm1107, %v1166, %v1170
      %v1172 = vshrl.u32 %v1079, 16
      %v1174 = vrot.slane %v1172, 4
      %v1175 = vor.u32 %v1174, %v1170
      %v1176 = vrot.slane %v1175, 4
      %v1178 = vshll.u32 %v1080, 16
      %v1180 = vrot.slane %v1178, 5
      %v1181 = vsel %vm1107, %v1176, %v1180
      %v1182 = vshrl.u32 %v1080, 16
      %v1184 = vrot.slane %v1182, 4
      %v1185 = vor.u32 %v1184, %v1180
      %v1186 = vrot.slane %v1185, 4
      %v1188 = vshll.u32 %v1081, 16
      %v1190 = vrot.slane %v1188, 5
      %v1191 = vsel %vm1107, %v1186, %v1190
      %v1192 = vshrl.u32 %v1081, 16
      %v1194 = vrot.slane %v1192, 4
      %v1195 = vor.u32 %v1194, %v1190
      %v1196 = vrot.slane %v1195, 4
      %v1198 = vshll.u32 %v1082, 16
      %v1200 = vrot.slane %v1198, 5
      %v1201 = vsel %vm1107, %v1196, %v1200
      %v1202 = vshrl.u32 %v1082, 16
      %v1204 = vrot.slane %v1202, 4
      %v1205 = vor.u32 %v1204, %v1200
      %v1206 = vrot.slane %v1205, 4
      %v1208 = vshll.u32 %v1083, 16
      %v1210 = vrot.slane %v1208, 5
      %v1211 = vsel %vm1107, %v1206, %v1210
      %v1212 = vshrl.u32 %v1083, 16
      %v1214 = vrot.slane %v1212, 4
      %v1215 = vor.u32 %v1214, %v1210
      %v1216 = vrot.slane %v1215, 4
      %v1218 = vshll.u32 %v1084, 16
      %v1220 = vrot.slane %v1218, 5
      %v1221 = vsel %vm1107, %v1216, %v1220
      %v1222 = vshrl.u32 %v1084, 16
      %v1224 = vrot.slane %v1222, 4
      %v1225 = vor.u32 %v1224, %v1220
      %v1226 = vrot.slane %v1225, 4
      %v1228 = vshll.u32 %v1085, 16
      %v1230 = vrot.slane %v1228, 5
      %v1231 = vsel %vm1107, %v1226, %v1230
      %v1232 = vshrl.u32 %v1085, 16
      %v1234 = vrot.slane %v1232, 4
      %v1235 = vor.u32 %v1234, %v1230
      %v1236 = vrot.slane %v1235, 4
      %v1238 = vshll.u32 %v1086, 16
      %v1240 = vrot.slane %v1238, 5
      %v1241 = vsel %vm1107, %v1236, %v1240
      %v1242 = vshrl.u32 %v1086, 16
      %v1244 = vrot.slane %v1242, 4
      %v1245 = vor.u32 %v1244, %v1240
      %v1246 = vrot.slane %v1245, 4
      %v1248 = vshll.u32 %v1087, 16
      %v1250 = vrot.slane %v1248, 5
      %v1251 = vsel %vm1107, %v1246, %v1250
      %v1252 = vshrl.u32 %v1087, 16
      %v1254 = vrot.slane %v1252, 4
      %v1255 = vor.u32 %v1254, %v1250
      %v1256 = vrot.slane %v1255, 4
      %v1258 = vshll.u32 %v1088, 16
      %v1260 = vrot.slane %v1258, 5
      %v1261 = vsel %vm1107, %v1256, %v1260
      %v1262 = vshrl.u32 %v1088, 16
      %v1264 = vrot.slane %v1262, 4
      %v1265 = vor.u32 %v1264, %v1260
      %v1266 = vrot.slane %v1265, 4
      %v1268 = vshll.u32 %v1089, 16
      %v1270 = vrot.slane %v1268, 5
      %v1271 = vsel %vm1107, %v1266, %v1270
      %v1272 = vshrl.u32 %v1089, 16
      %v1274 = vrot.slane %v1272, 4
      %v1275 = vor.u32 %v1274, %v1270
      %v1276 = vrot.slane %v1275, 4
      %v1278 = vshll.u32 %v1090, 16
      %v1280 = vrot.slane %v1278, 5
      %v1281 = vsel %vm1107, %v1276, %v1280
      %v1282 = vshrl.u32 %v1090, 16
      %v1284 = vrot.slane %v1282, 4
      %v1285 = vor.u32 %v1284, %v1280
      %v1286 = vrot.slane %v1285, 4
      %v1288 = vshll.u32 %v1091, 16
      %v1290 = vrot.slane %v1288, 5
      %v1291 = vsel %vm1107, %v1286, %v1290
      %v1292 = vshrl.u32 %v1091, 16
      %v1294 = vrot.slane %v1292, 4
      %v1295 = vor.u32 %v1294, %v1290
      %v1296 = vrot.slane %v1295, 4
      %v1298 = vshll.u32 %v1092, 16
      %v1300 = vrot.slane %v1298, 5
      %v1301 = vsel %vm1107, %v1296, %v1300
      %v1302 = vshrl.u32 %v1092, 16
      %v1304 = vrot.slane %v1302, 4
      %v1305 = vor.u32 %v1304, %v1300
      %v1306 = vrot.slane %v1305, 4
      %v1308 = vshll.u32 %v1093, 16
      %v1310 = vrot.slane %v1308, 5
      %v1311 = vsel %vm1107, %v1306, %v1310
      %v1312 = vshrl.u32 %v1093, 16
      %v1314 = vrot.slane %v1312, 4
      %v1315 = vor.u32 %v1314, %v1310
      %v1316 = vrot.slane %v1315, 4
      %v1318 = vshll.u32 %v1094, 16
      %v1320 = vrot.slane %v1318, 5
      %v1321 = vsel %vm1107, %v1316, %v1320
      %v1322 = vshrl.u32 %v1094, 16
      %v1324 = vrot.slane %v1322, 4
      %v1325 = vor.u32 %v1324, %v1320
      %v1326 = vrot.slane %v1325, 4
      %v1328 = vshll.u32 %v1095, 16
      %v1330 = vrot.slane %v1328, 5
      %v1331 = vsel %vm1107, %v1326, %v1330
      %v1332 = vshrl.u32 %v1095, 16
      %v1334 = vrot.slane %v1332, 4
      %v1335 = vor.u32 %v1334, %v1330
      %v1336 = vrot.slane %v1335, 4
      %v1338 = vshll.u32 %v1096, 16
      %v1340 = vrot.slane %v1338, 5
      %v1341 = vsel %vm1107, %v1336, %v1340
      %v1342 = vshrl.u32 %v1096, 16
      %v1344 = vrot.slane %v1342, 4
      %v1345 = vor.u32 %v1344, %v1340
      %v1346 = vrot.slane %v1345, 4
      %v1348 = vshll.u32 %v1097, 16
      %v1350 = vrot.slane %v1348, 5
      %v1351 = vsel %vm1107, %v1346, %v1350
      %v1352 = vshrl.u32 %v1097, 16
      %v1354 = vrot.slane %v1352, 4
      %v1355 = vor.u32 %v1354, %v1350
      %v1356 = vrot.slane %v1355, 4
      %v1358 = vshll.u32 %v1098, 16
      %v1360 = vrot.slane %v1358, 5
      %v1361 = vsel %vm1107, %v1356, %v1360
      %v1362 = vshrl.u32 %v1098, 16
      %v1364 = vrot.slane %v1362, 4
      %v1365 = vor.u32 %v1364, %v1360
      %v1366 = vrot.slane %v1365, 4
      %v1368 = vshll.u32 %v1099, 16
      %v1370 = vrot.slane %v1368, 5
      %v1371 = vsel %vm1107, %v1366, %v1370
      %v1372 = vshrl.u32 %v1099, 16
      %v1374 = vrot.slane %v1372, 4
      %v1375 = vor.u32 %v1374, %v1370
      %v1376 = vrot.slane %v1375, 4
      %v1378 = vshll.u32 %v1100, 16
      %v1380 = vrot.slane %v1378, 5
      %v1381 = vsel %vm1107, %v1376, %v1380
      %v1382 = vshrl.u32 %v1100, 16
      %v1384 = vrot.slane %v1382, 4
      %v1385 = vor.u32 %v1384, %v1380
      %v1386 = vrot.slane %v1385, 4
      %v1388 = vshll.u32 %v1101, 16
      %v1390 = vrot.slane %v1388, 5
      %v1391 = vsel %vm1107, %v1386, %v1390
      %v1392 = vshrl.u32 %v1101, 16
      %v1394 = vrot.slane %v1392, 4
      %v1395 = vor.u32 %v1394, %v1390
      %v1396 = vrot.slane %v1395, 4
      %v1398 = vshll.u32 %v1102, 16
      %v1400 = vrot.slane %v1398, 5
      %v1401 = vsel %vm1107, %v1396, %v1400
      %v1402 = vshrl.u32 %v1102, 16
      %v1404 = vrot.slane %v1402, 4
      %v1405 = vor.u32 %v1404, %v1400
      %v1406 = vrot.slane %v1405, 4
      %v1408 = vshll.u32 %v1103, 16
      %v1410 = vrot.slane %v1408, 5
      %v1411 = vsel %vm1107, %v1406, %v1410
      %v1412 = vshrl.u32 %v1103, 16
      %v1414 = vrot.slane %v1412, 4
      %v1415 = vor.u32 %v1414, %v1410
      %v1416 = vrot.slane %v1415, 4
      %v1418 = vshll.u32 %v1104, 16
      %v1420 = vrot.slane %v1418, 5
      %v1421 = vsel %vm1107, %v1416, %v1420
      %v1422 = vshrl.u32 %v1104, 16
      %v1424 = vrot.slane %v1422, 4
      %v1425 = vor.u32 %v1424, %v1420
      %v1426 = vrot.slane %v1425, 4
      %vm1427 = vcmp.ne.s16.totalorder %v1111, 0
      %vm1428 = vcmp.ne.s16.totalorder %v1121, 0
      %vm1429 = vcmp.ne.s16.totalorder %v1131, 0
      %vm1430 = vcmp.ne.s16.totalorder %v1141, 0
      %vm1431 = vcmp.ne.s16.totalorder %v1151, 0
      %vm1432 = vcmp.ne.s16.totalorder %v1161, 0
      %vm1433 = vcmp.ne.s16.totalorder %v1171, 0
      %vm1434 = vcmp.ne.s16.totalorder %v1181, 0
      %vm1435 = vcmp.ne.s16.totalorder %v1191, 0
      %vm1436 = vcmp.ne.s16.totalorder %v1201, 0
      %vm1437 = vcmp.ne.s16.totalorder %v1211, 0
      %vm1438 = vcmp.ne.s16.totalorder %v1221, 0
      %vm1439 = vcmp.ne.s16.totalorder %v1231, 0
      %vm1440 = vcmp.ne.s16.totalorder %v1241, 0
      %vm1441 = vcmp.ne.s16.totalorder %v1251, 0
      %vm1442 = vcmp.ne.s16.totalorder %v1261, 0
      %vm1443 = vcmp.ne.s16.totalorder %v1271, 0
      %vm1444 = vcmp.ne.s16.totalorder %v1281, 0
      %vm1445 = vcmp.ne.s16.totalorder %v1291, 0
      %vm1446 = vcmp.ne.s16.totalorder %v1301, 0
      %vm1447 = vcmp.ne.s16.totalorder %v1311, 0
      %vm1448 = vcmp.ne.s16.totalorder %v1321, 0
      %vm1449 = vcmp.ne.s16.totalorder %v1331, 0
      %vm1450 = vcmp.ne.s16.totalorder %v1341, 0
      %vm1451 = vcmp.ne.s16.totalorder %v1351, 0
      %vm1452 = vcmp.ne.s16.totalorder %v1361, 0
      %vm1453 = vcmp.ne.s16.totalorder %v1371, 0
      %vm1454 = vcmp.ne.s16.totalorder %v1381, 0
      %vm1455 = vcmp.ne.s16.totalorder %v1391, 0
      %vm1456 = vcmp.ne.s16.totalorder %v1401, 0
      %vm1457 = vcmp.ne.s16.totalorder %v1411, 0
      %vm1458 = vcmp.ne.s16.totalorder %v1421, 0
      %vm1459 = vcmp.ne.s16.totalorder %v1426, 0
      %v1460 = vsel %vm1427, %v944, 0
      %v1461 = vsel %vm1428, %v945, 0
      %v1462 = vsel %vm1429, %v946, 0
      %v1463 = vsel %vm1430, %v947, 0
      %v1464 = vsel %vm1431, %v948, 0
      %v1465 = vsel %vm1432, %v949, 0
      %v1466 = vsel %vm1433, %v950, 0
      %v1467 = vsel %vm1434, %v951, 0
      %v1468 = vsel %vm1435, %v952, 0
      %v1469 = vsel %vm1436, %v953, 0
      %v1470 = vsel %vm1437, %v954, 0
      %v1471 = vsel %vm1438, %v955, 0
      %v1472 = vsel %vm1439, %v956, 0
      %v1473 = vsel %vm1440, %v957, 0
      %v1474 = vsel %vm1441, %v958, 0
      %v1475 = vsel %vm1442, %v959, 0
      %v1476 = vsel %vm1443, %v960, 0
      %v1477 = vsel %vm1444, %v961, 0
      %v1478 = vsel %vm1445, %v962, 0
      %v1479 = vsel %vm1446, %v963, 0
      %v1480 = vsel %vm1447, %v964, 0
      %v1481 = vsel %vm1448, %v965, 0
      %v1482 = vsel %vm1449, %v966, 0
      %v1483 = vsel %vm1450, %v967, 0
      %v1484 = vsel %vm1451, %v968, 0
      %v1485 = vsel %vm1452, %v969, 0
      %v1486 = vsel %vm1453, %v970, 0
      %v1487 = vsel %vm1454, %v971, 0
      %v1488 = vsel %vm1455, %v972, 0
      %v1489 = vsel %vm1456, %v973, 0
      %v1490 = vsel %vm1457, %v974, 0
      %v1491 = vsel %vm1458, %v975, 0
      %v1492 = vsel %vm1459, %v976, 0
      %vm1493 = vsmask.f32 256
      %vm1494 = vsmask.f32 4368
      %vm1495 = vmor %vm1493, %vm1494
      %v1497 = vshrl.u32 %v1460, 16
      %v1499 = vrot.slane %v1497, 7
      %v1500 = vrot.slane %v1499, 4
      %v1502 = vshrl.u32 %v1461, 16
      %v1504 = vrot.slane %v1502, 7
      %v1505 = vshll.u32 %v1461, 16
      %v1507 = vor.u32 %v1504, %v1505
      %v1508 = vsel %vm1495, %v1500, %v1507
      %v1509 = vrot.slane %v1504, 4
      %v1511 = vshrl.u32 %v1462, 16
      %v1513 = vrot.slane %v1511, 7
      %v1514 = vshll.u32 %v1462, 16
      %v1516 = vor.u32 %v1513, %v1514
      %v1517 = vsel %vm1495, %v1509, %v1516
      %v1518 = vrot.slane %v1513, 4
      %v1520 = vshrl.u32 %v1463, 16
      %v1522 = vrot.slane %v1520, 7
      %v1523 = vshll.u32 %v1463, 16
      %v1525 = vor.u32 %v1522, %v1523
      %v1526 = vsel %vm1495, %v1518, %v1525
      %v1527 = vrot.slane %v1522, 4
      %v1529 = vshrl.u32 %v1464, 16
      %v1531 = vrot.slane %v1529, 7
      %v1532 = vshll.u32 %v1464, 16
      %v1534 = vor.u32 %v1531, %v1532
      %v1535 = vsel %vm1495, %v1527, %v1534
      %v1536 = vrot.slane %v1531, 4
      %v1538 = vshrl.u32 %v1465, 16
      %v1540 = vrot.slane %v1538, 7
      %v1541 = vshll.u32 %v1465, 16
      %v1543 = vor.u32 %v1540, %v1541
      %v1544 = vsel %vm1495, %v1536, %v1543
      %v1545 = vrot.slane %v1540, 4
      %v1547 = vshrl.u32 %v1466, 16
      %v1549 = vrot.slane %v1547, 7
      %v1550 = vshll.u32 %v1466, 16
      %v1552 = vor.u32 %v1549, %v1550
      %v1553 = vsel %vm1495, %v1545, %v1552
      %v1554 = vrot.slane %v1549, 4
      %v1556 = vshrl.u32 %v1467, 16
      %v1558 = vrot.slane %v1556, 7
      %v1559 = vshll.u32 %v1467, 16
      %v1561 = vor.u32 %v1558, %v1559
      %v1562 = vsel %vm1495, %v1554, %v1561
      %v1563 = vrot.slane %v1558, 4
      %v1565 = vshrl.u32 %v1468, 16
      %v1567 = vrot.slane %v1565, 7
      %v1568 = vshll.u32 %v1468, 16
      %v1570 = vor.u32 %v1567, %v1568
      %v1571 = vsel %vm1495, %v1563, %v1570
      %v1572 = vrot.slane %v1567, 4
      %v1574 = vshrl.u32 %v1469, 16
      %v1576 = vrot.slane %v1574, 7
      %v1577 = vshll.u32 %v1469, 16
      %v1579 = vor.u32 %v1576, %v1577
      %v1580 = vsel %vm1495, %v1572, %v1579
      %v1581 = vrot.slane %v1576, 4
      %v1583 = vshrl.u32 %v1470, 16
      %v1585 = vrot.slane %v1583, 7
      %v1586 = vshll.u32 %v1470, 16
      %v1588 = vor.u32 %v1585, %v1586
      %v1589 = vsel %vm1495, %v1581, %v1588
      %v1590 = vrot.slane %v1585, 4
      %v1592 = vshrl.u32 %v1471, 16
      %v1594 = vrot.slane %v1592, 7
      %v1595 = vshll.u32 %v1471, 16
      %v1597 = vor.u32 %v1594, %v1595
      %v1598 = vsel %vm1495, %v1590, %v1597
      %v1599 = vrot.slane %v1594, 4
      %v1601 = vshrl.u32 %v1472, 16
      %v1603 = vrot.slane %v1601, 7
      %v1604 = vshll.u32 %v1472, 16
      %v1606 = vor.u32 %v1603, %v1604
      %v1607 = vsel %vm1495, %v1599, %v1606
      %v1608 = vrot.slane %v1603, 4
      %v1610 = vshrl.u32 %v1473, 16
      %v1612 = vrot.slane %v1610, 7
      %v1613 = vshll.u32 %v1473, 16
      %v1615 = vor.u32 %v1612, %v1613
      %v1616 = vsel %vm1495, %v1608, %v1615
      %v1617 = vrot.slane %v1612, 4
      %v1619 = vshrl.u32 %v1474, 16
      %v1621 = vrot.slane %v1619, 7
      %v1622 = vshll.u32 %v1474, 16
      %v1624 = vor.u32 %v1621, %v1622
      %v1625 = vsel %vm1495, %v1617, %v1624
      %v1626 = vrot.slane %v1621, 4
      %v1628 = vshrl.u32 %v1475, 16
      %v1630 = vrot.slane %v1628, 7
      %v1631 = vshll.u32 %v1475, 16
      %v1633 = vor.u32 %v1630, %v1631
      %v1634 = vsel %vm1495, %v1626, %v1633
      %v1635 = vrot.slane %v1630, 4
      %v1637 = vshrl.u32 %v1476, 16
      %v1639 = vrot.slane %v1637, 7
      %v1640 = vshll.u32 %v1476, 16
      %v1642 = vor.u32 %v1639, %v1640
      %v1643 = vsel %vm1495, %v1635, %v1642
      %v1644 = vrot.slane %v1639, 4
      %v1646 = vshrl.u32 %v1477, 16
      %v1648 = vrot.slane %v1646, 7
      %v1649 = vshll.u32 %v1477, 16
      %v1651 = vor.u32 %v1648, %v1649
      %v1652 = vsel %vm1495, %v1644, %v1651
      %v1653 = vrot.slane %v1648, 4
      %v1655 = vshrl.u32 %v1478, 16
      %v1657 = vrot.slane %v1655, 7
      %v1658 = vshll.u32 %v1478, 16
      %v1660 = vor.u32 %v1657, %v1658
      %v1661 = vsel %vm1495, %v1653, %v1660
      %v1662 = vrot.slane %v1657, 4
      %v1664 = vshrl.u32 %v1479, 16
      %v1666 = vrot.slane %v1664, 7
      %v1667 = vshll.u32 %v1479, 16
      %v1669 = vor.u32 %v1666, %v1667
      %v1670 = vsel %vm1495, %v1662, %v1669
      %v1671 = vrot.slane %v1666, 4
      %v1673 = vshrl.u32 %v1480, 16
      %v1675 = vrot.slane %v1673, 7
      %v1676 = vshll.u32 %v1480, 16
      %v1678 = vor.u32 %v1675, %v1676
      %v1679 = vsel %vm1495, %v1671, %v1678
      %v1680 = vrot.slane %v1675, 4
      %v1682 = vshrl.u32 %v1481, 16
      %v1684 = vrot.slane %v1682, 7
      %v1685 = vshll.u32 %v1481, 16
      %v1687 = vor.u32 %v1684, %v1685
      %v1688 = vsel %vm1495, %v1680, %v1687
      %v1689 = vrot.slane %v1684, 4
      %v1691 = vshrl.u32 %v1482, 16
      %v1693 = vrot.slane %v1691, 7
      %v1694 = vshll.u32 %v1482, 16
      %v1696 = vor.u32 %v1693, %v1694
      %v1697 = vsel %vm1495, %v1689, %v1696
      %v1698 = vrot.slane %v1693, 4
      %v1700 = vshrl.u32 %v1483, 16
      %v1702 = vrot.slane %v1700, 7
      %v1703 = vshll.u32 %v1483, 16
      %v1705 = vor.u32 %v1702, %v1703
      %v1706 = vsel %vm1495, %v1698, %v1705
      %v1707 = vrot.slane %v1702, 4
      %v1709 = vshrl.u32 %v1484, 16
      %v1711 = vrot.slane %v1709, 7
      %v1712 = vshll.u32 %v1484, 16
      %v1714 = vor.u32 %v1711, %v1712
      %v1715 = vsel %vm1495, %v1707, %v1714
      %v1716 = vrot.slane %v1711, 4
      %v1718 = vshrl.u32 %v1485, 16
      %v1720 = vrot.slane %v1718, 7
      %v1721 = vshll.u32 %v1485, 16
      %v1723 = vor.u32 %v1720, %v1721
      %v1724 = vsel %vm1495, %v1716, %v1723
      %v1725 = vrot.slane %v1720, 4
      %v1727 = vshrl.u32 %v1486, 16
      %v1729 = vrot.slane %v1727, 7
      %v1730 = vshll.u32 %v1486, 16
      %v1732 = vor.u32 %v1729, %v1730
      %v1733 = vsel %vm1495, %v1725, %v1732
      %v1734 = vrot.slane %v1729, 4
      %v1736 = vshrl.u32 %v1487, 16
      %v1738 = vrot.slane %v1736, 7
      %v1739 = vshll.u32 %v1487, 16
      %v1741 = vor.u32 %v1738, %v1739
      %v1742 = vsel %vm1495, %v1734, %v1741
      %v1743 = vrot.slane %v1738, 4
      %v1745 = vshrl.u32 %v1488, 16
      %v1747 = vrot.slane %v1745, 7
      %v1748 = vshll.u32 %v1488, 16
      %v1750 = vor.u32 %v1747, %v1748
      %v1751 = vsel %vm1495, %v1743, %v1750
      %v1752 = vrot.slane %v1747, 4
      %v1754 = vshrl.u32 %v1489, 16
      %v1756 = vrot.slane %v1754, 7
      %v1757 = vshll.u32 %v1489, 16
      %v1759 = vor.u32 %v1756, %v1757
      %v1760 = vsel %vm1495, %v1752, %v1759
      %v1761 = vrot.slane %v1756, 4
      %v1763 = vshrl.u32 %v1490, 16
      %v1765 = vrot.slane %v1763, 7
      %v1766 = vshll.u32 %v1490, 16
      %v1768 = vor.u32 %v1765, %v1766
      %v1769 = vsel %vm1495, %v1761, %v1768
      %v1770 = vrot.slane %v1765, 4
      %v1772 = vshrl.u32 %v1491, 16
      %v1774 = vrot.slane %v1772, 7
      %v1775 = vshll.u32 %v1491, 16
      %v1777 = vor.u32 %v1774, %v1775
      %v1778 = vsel %vm1495, %v1770, %v1777
      %v1779 = vrot.slane %v1774, 4
      %v1781 = vshrl.u32 %v1492, 16
      %v1783 = vrot.slane %v1781, 7
      %v1784 = vshll.u32 %v1492, 16
      %v1786 = vor.u32 %v1783, %v1784
      %v1787 = vsel %vm1495, %v1779, %v1786
      %1820 = vst.msk [vmem:[#allocation3] sm:$0xf] %vm911, %v1508
      %1821 = vst.msk [vmem:[#allocation3 + $0x4] sm:$0xf] %vm911, %v1517
      %1822 = vst.msk [vmem:[#allocation3 + $0x8] sm:$0xf] %vm911, %v1526
      %1823 = vst.msk [vmem:[#allocation3 + $0xc] sm:$0xf] %vm911, %v1535
      %1824 = vst.msk [vmem:[#allocation3 + $0x10] sm:$0xf] %vm911, %v1544
      %1825 = vst.msk [vmem:[#allocation3 + $0x14] sm:$0xf] %vm911, %v1553
      %1826 = vst.msk [vmem:[#allocation3 + $0x18] sm:$0xf] %vm911, %v1562
      %1827 = vst.msk [vmem:[#allocation3 + $0x1c] sm:$0xf] %vm911, %v1571
      %1828 = vst.msk [vmem:[#allocation3 + $0x20] sm:$0xf] %vm911, %v1580
      %1829 = vst.msk [vmem:[#allocation3 + $0x24] sm:$0xf] %vm911, %v1589
      %1830 = vst.msk [vmem:[#allocation3 + $0x28] sm:$0xf] %vm911, %v1598
      %1831 = vst.msk [vmem:[#allocation3 + $0x2c] sm:$0xf] %vm911, %v1607
      %1832 = vst.msk [vmem:[#allocation3 + $0x30] sm:$0xf] %vm911, %v1616
      %1833 = vst.msk [vmem:[#allocation3 + $0x34] sm:$0xf] %vm911, %v1625
      %1834 = vst.msk [vmem:[#allocation3 + $0x38] sm:$0xf] %vm911, %v1634
      %1835 = vst.msk [vmem:[#allocation3 + $0x3c] sm:$0xf] %vm911, %v1643
      %1836 = vst.msk [vmem:[#allocation3 + $0x40] sm:$0xf] %vm911, %v1652
      %1837 = vst.msk [vmem:[#allocation3 + $0x44] sm:$0xf] %vm911, %v1661
      %1838 = vst.msk [vmem:[#allocation3 + $0x48] sm:$0xf] %vm911, %v1670
      %1839 = vst.msk [vmem:[#allocation3 + $0x4c] sm:$0xf] %vm911, %v1679
      %1840 = vst.msk [vmem:[#allocation3 + $0x50] sm:$0xf] %vm911, %v1688
      %1841 = vst.msk [vmem:[#allocation3 + $0x54] sm:$0xf] %vm911, %v1697
      %1842 = vst.msk [vmem:[#allocation3 + $0x58] sm:$0xf] %vm911, %v1706
      %1843 = vst.msk [vmem:[#allocation3 + $0x5c] sm:$0xf] %vm911, %v1715
      %1844 = vst.msk [vmem:[#allocation3 + $0x60] sm:$0xf] %vm911, %v1724
      %1845 = vst.msk [vmem:[#allocation3 + $0x64] sm:$0xf] %vm911, %v1733
      %1846 = vst.msk [vmem:[#allocation3 + $0x68] sm:$0xf] %vm911, %v1742
      %1847 = vst.msk [vmem:[#allocation3 + $0x6c] sm:$0xf] %vm911, %v1751
      %1848 = vst.msk [vmem:[#allocation3 + $0x70] sm:$0xf] %vm911, %v1760
      %1849 = vst.msk [vmem:[#allocation3 + $0x74] sm:$0xf] %vm911, %v1769
      %1850 = vst.msk [vmem:[#allocation3 + $0x78] sm:$0xf] %vm911, %v1778
      %1851 = vst.msk [vmem:[#allocation3 + $0x7c] sm:$0xf] %vm911, %v1787
      %v1852 = vld [vmem:[#allocation2 + $0x8] sm:$0xf]
      %v1853 = vld [vmem:[#allocation2 + $0xc] sm:$0xf]
      %v1854 = vld [vmem:[#allocation2 + $0x10] sm:$0xf]
      %v1855 = vld [vmem:[#allocation2 + $0x14] sm:$0xf]
      %v1856 = vld [vmem:[#allocation2 + $0x18] sm:$0xf]
      %v1857 = vld [vmem:[#allocation2 + $0x1c] sm:$0xf]
      %v1858 = vld [vmem:[#allocation2 + $0x20] sm:$0xf]
      %v1859 = vld [vmem:[#allocation2 + $0x24] sm:$0xf]
      %v1860 = vld [vmem:[#allocation2 + $0x28] sm:$0xf]
      %v1861 = vld [vmem:[#allocation2 + $0x2c] sm:$0xf]
      %v1862 = vld [vmem:[#allocation2 + $0x30] sm:$0xf]
      %v1863 = vld [vmem:[#allocation2 + $0x34] sm:$0xf]
      %v1864 = vld [vmem:[#allocation2 + $0x38] sm:$0xf]
      %v1865 = vld [vmem:[#allocation2 + $0x3c] sm:$0xf]
      %v1866 = vld [vmem:[#allocation2 + $0x40] sm:$0xf]
      %v1867 = vld [vmem:[#allocation2 + $0x44] sm:$0xf]
      %v1868 = vld [vmem:[#allocation2 + $0x48] sm:$0xf]
      %v1869 = vld [vmem:[#allocation2 + $0x4c] sm:$0xf]
      %v1870 = vld [vmem:[#allocation2 + $0x50] sm:$0xf]
      %v1871 = vld [vmem:[#allocation2 + $0x54] sm:$0xf]
      %v1872 = vld [vmem:[#allocation2 + $0x58] sm:$0xf]
      %v1873 = vld [vmem:[#allocation2 + $0x5c] sm:$0xf]
      %v1874 = vld [vmem:[#allocation2 + $0x60] sm:$0xf]
      %v1875 = vld [vmem:[#allocation2 + $0x64] sm:$0xf]
      %v1876 = vld [vmem:[#allocation2 + $0x68] sm:$0xf]
      %v1877 = vld [vmem:[#allocation2 + $0x6c] sm:$0xf]
      %v1878 = vld [vmem:[#allocation2 + $0x70] sm:$0xf]
      %v1879 = vld [vmem:[#allocation2 + $0x74] sm:$0xf]
      %v1880 = vld [vmem:[#allocation2 + $0x78] sm:$0xf]
      %v1881 = vld [vmem:[#allocation2 + $0x7c] sm:$0xf]
      %v1882 = vld [vmem:[#allocation2 + $0x80] sm:$0xf]
      %v1883 = vld [vmem:[#allocation2 + $0x84] sm:$0xf]
      %1916 = vrot.lane.b32.xlu0 %v1852, 4
      %v1917 = vpop.permute.xlu0 %1916
      %1918 = vrot.lane.b32.xlu0 %v1853, 4
      %v1919 = vpop.permute.xlu0 %1918
      %1920 = vrot.lane.b32.xlu0 %v1854, 4
      %v1921 = vpop.permute.xlu0 %1920
      %1922 = vrot.lane.b32.xlu0 %v1855, 4
      %v1923 = vpop.permute.xlu0 %1922
      %1924 = vrot.lane.b32.xlu0 %v1856, 4
      %v1925 = vpop.permute.xlu0 %1924
      %1926 = vrot.lane.b32.xlu0 %v1857, 4
      %v1927 = vpop.permute.xlu0 %1926
      %1928 = vrot.lane.b32.xlu0 %v1858, 4
      %v1929 = vpop.permute.xlu0 %1928
      %1930 = vrot.lane.b32.xlu0 %v1859, 4
      %v1931 = vpop.permute.xlu0 %1930
      %1932 = vrot.lane.b32.xlu0 %v1860, 4
      %v1933 = vpop.permute.xlu0 %1932
      %1934 = vrot.lane.b32.xlu0 %v1861, 4
      %v1935 = vpop.permute.xlu0 %1934
      %1936 = vrot.lane.b32.xlu0 %v1862, 4
      %v1937 = vpop.permute.xlu0 %1936
      %1938 = vrot.lane.b32.xlu0 %v1863, 4
      %v1939 = vpop.permute.xlu0 %1938
      %1940 = vrot.lane.b32.xlu0 %v1864, 4
      %v1941 = vpop.permute.xlu0 %1940
      %1942 = vrot.lane.b32.xlu0 %v1865, 4
      %v1943 = vpop.permute.xlu0 %1942
      %1944 = vrot.lane.b32.xlu0 %v1866, 4
      %v1945 = vpop.permute.xlu0 %1944
      %1946 = vrot.lane.b32.xlu0 %v1867, 4
      %v1947 = vpop.permute.xlu0 %1946
      %1948 = vrot.lane.b32.xlu0 %v1868, 4
      %v1949 = vpop.permute.xlu0 %1948
      %1950 = vrot.lane.b32.xlu0 %v1869, 4
      %v1951 = vpop.permute.xlu0 %1950
      %1952 = vrot.lane.b32.xlu0 %v1870, 4
      %v1953 = vpop.permute.xlu0 %1952
      %1954 = vrot.lane.b32.xlu0 %v1871, 4
      %v1955 = vpop.permute.xlu0 %1954
      %1956 = vrot.lane.b32.xlu0 %v1872, 4
      %v1957 = vpop.permute.xlu0 %1956
      %1958 = vrot.lane.b32.xlu0 %v1873, 4
      %v1959 = vpop.permute.xlu0 %1958
      %1960 = vrot.lane.b32.xlu0 %v1874, 4
      %v1961 = vpop.permute.xlu0 %1960
      %1962 = vrot.lane.b32.xlu0 %v1875, 4
      %v1963 = vpop.permute.xlu0 %1962
      %1964 = vrot.lane.b32.xlu0 %v1876, 4
      %v1965 = vpop.permute.xlu0 %1964
      %1966 = vrot.lane.b32.xlu0 %v1877, 4
      %v1967 = vpop.permute.xlu0 %1966
      %1968 = vrot.lane.b32.xlu0 %v1878, 4
      %v1969 = vpop.permute.xlu0 %1968
      %1970 = vrot.lane.b32.xlu0 %v1879, 4
      %v1971 = vpop.permute.xlu0 %1970
      %1972 = vrot.lane.b32.xlu0 %v1880, 4
      %v1973 = vpop.permute.xlu0 %1972
      %1974 = vrot.lane.b32.xlu0 %v1881, 4
      %v1975 = vpop.permute.xlu0 %1974
      %1976 = vrot.lane.b32.xlu0 %v1882, 4
      %v1977 = vpop.permute.xlu0 %1976
      %1978 = vrot.lane.b32.xlu0 %v1883, 4
      %v1979 = vpop.permute.xlu0 %1978
      %vm2012 = vcmask 60448
      %2013 = vst.msk [vmem:[#allocation3] sm:$0xf] %vm2012, %v1917
      %2014 = vst.msk [vmem:[#allocation3 + $0x4] sm:$0xf] %vm2012, %v1919
      %2015 = vst.msk [vmem:[#allocation3 + $0x8] sm:$0xf] %vm2012, %v1921
      %2016 = vst.msk [vmem:[#allocation3 + $0xc] sm:$0xf] %vm2012, %v1923
      %2017 = vst.msk [vmem:[#allocation3 + $0x10] sm:$0xf] %vm2012, %v1925
      %2018 = vst.msk [vmem:[#allocation3 + $0x14] sm:$0xf] %vm2012, %v1927
      %2019 = vst.msk [vmem:[#allocation3 + $0x18] sm:$0xf] %vm2012, %v1929
      %2020 = vst.msk [vmem:[#allocation3 + $0x1c] sm:$0xf] %vm2012, %v1931
      %2021 = vst.msk [vmem:[#allocation3 + $0x20] sm:$0xf] %vm2012, %v1933
      %2022 = vst.msk [vmem:[#allocation3 + $0x24] sm:$0xf] %vm2012, %v1935
      %2023 = vst.msk [vmem:[#allocation3 + $0x28] sm:$0xf] %vm2012, %v1937
      %2024 = vst.msk [vmem:[#allocation3 + $0x2c] sm:$0xf] %vm2012, %v1939
      %2025 = vst.msk [vmem:[#allocation3 + $0x30] sm:$0xf] %vm2012, %v1941
      %2026 = vst.msk [vmem:[#allocation3 + $0x34] sm:$0xf] %vm2012, %v1943
      %2027 = vst.msk [vmem:[#allocation3 + $0x38] sm:$0xf] %vm2012, %v1945
      %2028 = vst.msk [vmem:[#allocation3 + $0x3c] sm:$0xf] %vm2012, %v1947
      %2029 = vst.msk [vmem:[#allocation3 + $0x40] sm:$0xf] %vm2012, %v1949
      %2030 = vst.msk [vmem:[#allocation3 + $0x44] sm:$0xf] %vm2012, %v1951
      %2031 = vst.msk [vmem:[#allocation3 + $0x48] sm:$0xf] %vm2012, %v1953
      %2032 = vst.msk [vmem:[#allocation3 + $0x4c] sm:$0xf] %vm2012, %v1955
      %2033 = vst.msk [vmem:[#allocation3 + $0x50] sm:$0xf] %vm2012, %v1957
      %2034 = vst.msk [vmem:[#allocation3 + $0x54] sm:$0xf] %vm2012, %v1959
      %2035 = vst.msk [vmem:[#allocation3 + $0x58] sm:$0xf] %vm2012, %v1961
      %2036 = vst.msk [vmem:[#allocation3 + $0x5c] sm:$0xf] %vm2012, %v1963
      %2037 = vst.msk [vmem:[#allocation3 + $0x60] sm:$0xf] %vm2012, %v1965
      %2038 = vst.msk [vmem:[#allocation3 + $0x64] sm:$0xf] %vm2012, %v1967
      %2039 = vst.msk [vmem:[#allocation3 + $0x68] sm:$0xf] %vm2012, %v1969
      %2040 = vst.msk [vmem:[#allocation3 + $0x6c] sm:$0xf] %vm2012, %v1971
      %2041 = vst.msk [vmem:[#allocation3 + $0x70] sm:$0xf] %vm2012, %v1973
      %2042 = vst.msk [vmem:[#allocation3 + $0x74] sm:$0xf] %vm2012, %v1975
      %2043 = vst.msk [vmem:[#allocation3 + $0x78] sm:$0xf] %vm2012, %v1977
      %2044 = vst.msk [vmem:[#allocation3 + $0x7c] sm:$0xf] %vm2012, %v1979
      %v2045 = vld [vmem:[#allocation2 + $0x8] sm:$0xf]
      %v2046 = vld [vmem:[#allocation2 + $0xc] sm:$0xf]
      %v2047 = vld [vmem:[#allocation2 + $0x10] sm:$0xf]
      %v2048 = vld [vmem:[#allocation2 + $0x14] sm:$0xf]
      %v2049 = vld [vmem:[#allocation2 + $0x18] sm:$0xf]
      %v2050 = vld [vmem:[#allocation2 + $0x1c] sm:$0xf]
      %v2051 = vld [vmem:[#allocation2 + $0x20] sm:$0xf]
      %v2052 = vld [vmem:[#allocation2 + $0x24] sm:$0xf]
      %v2053 = vld [vmem:[#allocation2 + $0x28] sm:$0xf]
      %v2054 = vld [vmem:[#allocation2 + $0x2c] sm:$0xf]
      %v2055 = vld [vmem:[#allocation2 + $0x30] sm:$0xf]
      %v2056 = vld [vmem:[#allocation2 + $0x34] sm:$0xf]
      %v2057 = vld [vmem:[#allocation2 + $0x38] sm:$0xf]
      %v2058 = vld [vmem:[#allocation2 + $0x3c] sm:$0xf]
      %v2059 = vld [vmem:[#allocation2 + $0x40] sm:$0xf]
      %v2060 = vld [vmem:[#allocation2 + $0x44] sm:$0xf]
      %v2061 = vld [vmem:[#allocation2 + $0x48] sm:$0xf]
      %v2062 = vld [vmem:[#allocation2 + $0x4c] sm:$0xf]
      %v2063 = vld [vmem:[#allocation2 + $0x50] sm:$0xf]
      %v2064 = vld [vmem:[#allocation2 + $0x54] sm:$0xf]
      %v2065 = vld [vmem:[#allocation2 + $0x58] sm:$0xf]
      %v2066 = vld [vmem:[#allocation2 + $0x5c] sm:$0xf]
      %v2067 = vld [vmem:[#allocation2 + $0x60] sm:$0xf]
      %v2068 = vld [vmem:[#allocation2 + $0x64] sm:$0xf]
      %v2069 = vld [vmem:[#allocation2 + $0x68] sm:$0xf]
      %v2070 = vld [vmem:[#allocation2 + $0x6c] sm:$0xf]
      %v2071 = vld [vmem:[#allocation2 + $0x70] sm:$0xf]
      %v2072 = vld [vmem:[#allocation2 + $0x74] sm:$0xf]
      %v2073 = vld [vmem:[#allocation2 + $0x78] sm:$0xf]
      %v2074 = vld [vmem:[#allocation2 + $0x7c] sm:$0xf]
      %v2075 = vld [vmem:[#allocation2 + $0x80] sm:$0xf]
      %v2076 = vld [vmem:[#allocation2 + $0x84] sm:$0xf]
      %v2077 = vld [vmem:[#allocation2 + $0x88] sm:$0x1]
      %v2078 = vsel %vm719, 1, 0
      %v2079 = vsel %vm720, 1, 0
      %v2080 = vsel %vm721, 1, 0
      %v2081 = vsel %vm722, 1, 0
      %v2082 = vsel %vm723, 1, 0
      %v2083 = vsel %vm724, 1, 0
      %v2084 = vsel %vm725, 1, 0
      %v2085 = vsel %vm726, 1, 0
      %v2086 = vsel %vm727, 1, 0
      %v2087 = vsel %vm728, 1, 0
      %v2088 = vsel %vm729, 1, 0
      %v2089 = vsel %vm730, 1, 0
      %v2090 = vsel %vm731, 1, 0
      %v2091 = vsel %vm732, 1, 0
      %v2092 = vsel %vm733, 1, 0
      %v2093 = vsel %vm734, 1, 0
      %v2094 = vsel %vm735, 1, 0
      %v2095 = vsel %vm736, 1, 0
      %v2096 = vsel %vm737, 1, 0
      %v2097 = vsel %vm738, 1, 0
      %v2098 = vsel %vm739, 1, 0
      %v2099 = vsel %vm740, 1, 0
      %v2100 = vsel %vm741, 1, 0
      %v2101 = vsel %vm742, 1, 0
      %v2102 = vsel %vm743, 1, 0
      %v2103 = vsel %vm744, 1, 0
      %v2104 = vsel %vm745, 1, 0
      %v2105 = vsel %vm746, 1, 0
      %v2106 = vsel %vm747, 1, 0
      %v2107 = vsel %vm748, 1, 0
      %v2108 = vsel %vm749, 1, 0
      %v2109 = vsel %vm750, 1, 0
      %vm2110 = vcmp.eq.s32.totalorder %v2078, 1
      %vm2111 = vcmp.eq.s32.totalorder %v2079, 1
      %vm2112 = vcmp.eq.s32.totalorder %v2080, 1
      %vm2113 = vcmp.eq.s32.totalorder %v2081, 1
      %vm2114 = vcmp.eq.s32.totalorder %v2082, 1
      %vm2115 = vcmp.eq.s32.totalorder %v2083, 1
      %vm2116 = vcmp.eq.s32.totalorder %v2084, 1
      %vm2117 = vcmp.eq.s32.totalorder %v2085, 1
      %vm2118 = vcmp.eq.s32.totalorder %v2086, 1
      %vm2119 = vcmp.eq.s32.totalorder %v2087, 1
      %vm2120 = vcmp.eq.s32.totalorder %v2088, 1
      %vm2121 = vcmp.eq.s32.totalorder %v2089, 1
      %vm2122 = vcmp.eq.s32.totalorder %v2090, 1
      %vm2123 = vcmp.eq.s32.totalorder %v2091, 1
      %vm2124 = vcmp.eq.s32.totalorder %v2092, 1
      %vm2125 = vcmp.eq.s32.totalorder %v2093, 1
      %vm2126 = vcmp.eq.s32.totalorder %v2094, 1
      %vm2127 = vcmp.eq.s32.totalorder %v2095, 1
      %vm2128 = vcmp.eq.s32.totalorder %v2096, 1
      %vm2129 = vcmp.eq.s32.totalorder %v2097, 1
      %vm2130 = vcmp.eq.s32.totalorder %v2098, 1
      %vm2131 = vcmp.eq.s32.totalorder %v2099, 1
      %vm2132 = vcmp.eq.s32.totalorder %v2100, 1
      %vm2133 = vcmp.eq.s32.totalorder %v2101, 1
      %vm2134 = vcmp.eq.s32.totalorder %v2102, 1
      %vm2135 = vcmp.eq.s32.totalorder %v2103, 1
      %vm2136 = vcmp.eq.s32.totalorder %v2104, 1
      %vm2137 = vcmp.eq.s32.totalorder %v2105, 1
      %vm2138 = vcmp.eq.s32.totalorder %v2106, 1
      %vm2139 = vcmp.eq.s32.totalorder %v2107, 1
      %vm2140 = vcmp.eq.s32.totalorder %v2108, 1
      %vm2141 = vcmp.eq.s32.totalorder %v2109, 1
      %vm2142 = vmpackc.low %vm2110, %vm2110
      %vm2143 = vmpackc.low %vm2111, %vm2111
      %vm2144 = vmpackc.low %vm2112, %vm2112
      %vm2145 = vmpackc.low %vm2113, %vm2113
      %vm2146 = vmpackc.low %vm2114, %vm2114
      %vm2147 = vmpackc.low %vm2115, %vm2115
      %vm2148 = vmpackc.low %vm2116, %vm2116
      %vm2149 = vmpackc.low %vm2117, %vm2117
      %vm2150 = vmpackc.low %vm2118, %vm2118
      %vm2151 = vmpackc.low %vm2119, %vm2119
      %vm2152 = vmpackc.low %vm2120, %vm2120
      %vm2153 = vmpackc.low %vm2121, %vm2121
      %vm2154 = vmpackc.low %vm2122, %vm2122
      %vm2155 = vmpackc.low %vm2123, %vm2123
      %vm2156 = vmpackc.low %vm2124, %vm2124
      %vm2157 = vmpackc.low %vm2125, %vm2125
      %vm2158 = vmpackc.low %vm2126, %vm2126
      %vm2159 = vmpackc.low %vm2127, %vm2127
      %vm2160 = vmpackc.low %vm2128, %vm2128
      %vm2161 = vmpackc.low %vm2129, %vm2129
      %vm2162 = vmpackc.low %vm2130, %vm2130
      %vm2163 = vmpackc.low %vm2131, %vm2131
      %vm2164 = vmpackc.low %vm2132, %vm2132
      %vm2165 = vmpackc.low %vm2133, %vm2133
      %vm2166 = vmpackc.low %vm2134, %vm2134
      %vm2167 = vmpackc.low %vm2135, %vm2135
      %vm2168 = vmpackc.low %vm2136, %vm2136
      %vm2169 = vmpackc.low %vm2137, %vm2137
      %vm2170 = vmpackc.low %vm2138, %vm2138
      %vm2171 = vmpackc.low %vm2139, %vm2139
      %vm2172 = vmpackc.low %vm2140, %vm2140
      %vm2173 = vmpackc.low %vm2141, %vm2141
      %v2174 = vsel %vm2142, 65537, 0
      %v2175 = vsel %vm2143, 65537, 0
      %v2176 = vsel %vm2144, 65537, 0
      %v2177 = vsel %vm2145, 65537, 0
      %v2178 = vsel %vm2146, 65537, 0
      %v2179 = vsel %vm2147, 65537, 0
      %v2180 = vsel %vm2148, 65537, 0
      %v2181 = vsel %vm2149, 65537, 0
      %v2182 = vsel %vm2150, 65537, 0
      %v2183 = vsel %vm2151, 65537, 0
      %v2184 = vsel %vm2152, 65537, 0
      %v2185 = vsel %vm2153, 65537, 0
      %v2186 = vsel %vm2154, 65537, 0
      %v2187 = vsel %vm2155, 65537, 0
      %v2188 = vsel %vm2156, 65537, 0
      %v2189 = vsel %vm2157, 65537, 0
      %v2190 = vsel %vm2158, 65537, 0
      %v2191 = vsel %vm2159, 65537, 0
      %v2192 = vsel %vm2160, 65537, 0
      %v2193 = vsel %vm2161, 65537, 0
      %v2194 = vsel %vm2162, 65537, 0
      %v2195 = vsel %vm2163, 65537, 0
      %v2196 = vsel %vm2164, 65537, 0
      %v2197 = vsel %vm2165, 65537, 0
      %v2198 = vsel %vm2166, 65537, 0
      %v2199 = vsel %vm2167, 65537, 0
      %v2200 = vsel %vm2168, 65537, 0
      %v2201 = vsel %vm2169, 65537, 0
      %v2202 = vsel %vm2170, 65537, 0
      %v2203 = vsel %vm2171, 65537, 0
      %v2204 = vsel %vm2172, 65537, 0
      %v2205 = vsel %vm2173, 65537, 0
      %v2207 = vshrl.u32 %v2174, 16
      %v2209 = vrot.slane %v2207, 7
      %v2210 = vshll.u32 %v2174, 16
      %v2212 = vor.u32 %v2209, %v2210
      %v2213 = vrot.slane %v2209, 4
      %v2215 = vshrl.u32 %v2175, 16
      %v2217 = vrot.slane %v2215, 7
      %v2218 = vshll.u32 %v2175, 16
      %v2220 = vor.u32 %v2217, %v2218
      %v2221 = vsel %vm1495, %v2213, %v2220
      %v2222 = vrot.slane %v2217, 4
      %v2224 = vshrl.u32 %v2176, 16
      %v2226 = vrot.slane %v2224, 7
      %v2227 = vshll.u32 %v2176, 16
      %v2229 = vor.u32 %v2226, %v2227
      %v2230 = vsel %vm1495, %v2222, %v2229
      %v2231 = vrot.slane %v2226, 4
      %v2233 = vshrl.u32 %v2177, 16
      %v2235 = vrot.slane %v2233, 7
      %v2236 = vshll.u32 %v2177, 16
      %v2238 = vor.u32 %v2235, %v2236
      %v2239 = vsel %vm1495, %v2231, %v2238
      %v2240 = vrot.slane %v2235, 4
      %v2242 = vshrl.u32 %v2178, 16
      %v2244 = vrot.slane %v2242, 7
      %v2245 = vshll.u32 %v2178, 16
      %v2247 = vor.u32 %v2244, %v2245
      %v2248 = vsel %vm1495, %v2240, %v2247
      %v2249 = vrot.slane %v2244, 4
      %v2251 = vshrl.u32 %v2179, 16
      %v2253 = vrot.slane %v2251, 7
      %v2254 = vshll.u32 %v2179, 16
      %v2256 = vor.u32 %v2253, %v2254
      %v2257 = vsel %vm1495, %v2249, %v2256
      %v2258 = vrot.slane %v2253, 4
      %v2260 = vshrl.u32 %v2180, 16
      %v2262 = vrot.slane %v2260, 7
      %v2263 = vshll.u32 %v2180, 16
      %v2265 = vor.u32 %v2262, %v2263
      %v2266 = vsel %vm1495, %v2258, %v2265
      %v2267 = vrot.slane %v2262, 4
      %v2269 = vshrl.u32 %v2181, 16
      %v2271 = vrot.slane %v2269, 7
      %v2272 = vshll.u32 %v2181, 16
      %v2274 = vor.u32 %v2271, %v2272
      %v2275 = vsel %vm1495, %v2267, %v2274
      %v2276 = vrot.slane %v2271, 4
      %v2278 = vshrl.u32 %v2182, 16
      %v2280 = vrot.slane %v2278, 7
      %v2281 = vshll.u32 %v2182, 16
      %v2283 = vor.u32 %v2280, %v2281
      %v2284 = vsel %vm1495, %v2276, %v2283
      %v2285 = vrot.slane %v2280, 4
      %v2287 = vshrl.u32 %v2183, 16
      %v2289 = vrot.slane %v2287, 7
      %v2290 = vshll.u32 %v2183, 16
      %v2292 = vor.u32 %v2289, %v2290
      %v2293 = vsel %vm1495, %v2285, %v2292
      %v2294 = vrot.slane %v2289, 4
      %v2296 = vshrl.u32 %v2184, 16
      %v2298 = vrot.slane %v2296, 7
      %v2299 = vshll.u32 %v2184, 16
      %v2301 = vor.u32 %v2298, %v2299
      %v2302 = vsel %vm1495, %v2294, %v2301
      %v2303 = vrot.slane %v2298, 4
      %v2305 = vshrl.u32 %v2185, 16
      %v2307 = vrot.slane %v2305, 7
      %v2308 = vshll.u32 %v2185, 16
      %v2310 = vor.u32 %v2307, %v2308
      %v2311 = vsel %vm1495, %v2303, %v2310
      %v2312 = vrot.slane %v2307, 4
      %v2314 = vshrl.u32 %v2186, 16
      %v2316 = vrot.slane %v2314, 7
      %v2317 = vshll.u32 %v2186, 16
      %v2319 = vor.u32 %v2316, %v2317
      %v2320 = vsel %vm1495, %v2312, %v2319
      %v2321 = vrot.slane %v2316, 4
      %v2323 = vshrl.u32 %v2187, 16
      %v2325 = vrot.slane %v2323, 7
      %v2326 = vshll.u32 %v2187, 16
      %v2328 = vor.u32 %v2325, %v2326
      %v2329 = vsel %vm1495, %v2321, %v2328
      %v2330 = vrot.slane %v2325, 4
      %v2332 = vshrl.u32 %v2188, 16
      %v2334 = vrot.slane %v2332, 7
      %v2335 = vshll.u32 %v2188, 16
      %v2337 = vor.u32 %v2334, %v2335
      %v2338 = vsel %vm1495, %v2330, %v2337
      %v2339 = vrot.slane %v2334, 4
      %v2341 = vshrl.u32 %v2189, 16
      %v2343 = vrot.slane %v2341, 7
      %v2344 = vshll.u32 %v2189, 16
      %v2346 = vor.u32 %v2343, %v2344
      %v2347 = vsel %vm1495, %v2339, %v2346
      %v2348 = vrot.slane %v2343, 4
      %v2350 = vshrl.u32 %v2190, 16
      %v2352 = vrot.slane %v2350, 7
      %v2353 = vshll.u32 %v2190, 16
      %v2355 = vor.u32 %v2352, %v2353
      %v2356 = vsel %vm1495, %v2348, %v2355
      %v2357 = vrot.slane %v2352, 4
      %v2359 = vshrl.u32 %v2191, 16
      %v2361 = vrot.slane %v2359, 7
      %v2362 = vshll.u32 %v2191, 16
      %v2364 = vor.u32 %v2361, %v2362
      %v2365 = vsel %vm1495, %v2357, %v2364
      %v2366 = vrot.slane %v2361, 4
      %v2368 = vshrl.u32 %v2192, 16
      %v2370 = vrot.slane %v2368, 7
      %v2371 = vshll.u32 %v2192, 16
      %v2373 = vor.u32 %v2370, %v2371
      %v2374 = vsel %vm1495, %v2366, %v2373
      %v2375 = vrot.slane %v2370, 4
      %v2377 = vshrl.u32 %v2193, 16
      %v2379 = vrot.slane %v2377, 7
      %v2380 = vshll.u32 %v2193, 16
      %v2382 = vor.u32 %v2379, %v2380
      %v2383 = vsel %vm1495, %v2375, %v2382
      %v2384 = vrot.slane %v2379, 4
      %v2386 = vshrl.u32 %v2194, 16
      %v2388 = vrot.slane %v2386, 7
      %v2389 = vshll.u32 %v2194, 16
      %v2391 = vor.u32 %v2388, %v2389
      %v2392 = vsel %vm1495, %v2384, %v2391
      %v2393 = vrot.slane %v2388, 4
      %v2395 = vshrl.u32 %v2195, 16
      %v2397 = vrot.slane %v2395, 7
      %v2398 = vshll.u32 %v2195, 16
      %v2400 = vor.u32 %v2397, %v2398
      %v2401 = vsel %vm1495, %v2393, %v2400
      %v2402 = vrot.slane %v2397, 4
      %v2404 = vshrl.u32 %v2196, 16
      %v2406 = vrot.slane %v2404, 7
      %v2407 = vshll.u32 %v2196, 16
      %v2409 = vor.u32 %v2406, %v2407
      %v2410 = vsel %vm1495, %v2402, %v2409
      %v2411 = vrot.slane %v2406, 4
      %v2413 = vshrl.u32 %v2197, 16
      %v2415 = vrot.slane %v2413, 7
      %v2416 = vshll.u32 %v2197, 16
      %v2418 = vor.u32 %v2415, %v2416
      %v2419 = vsel %vm1495, %v2411, %v2418
      %v2420 = vrot.slane %v2415, 4
      %v2422 = vshrl.u32 %v2198, 16
      %v2424 = vrot.slane %v2422, 7
      %v2425 = vshll.u32 %v2198, 16
      %v2427 = vor.u32 %v2424, %v2425
      %v2428 = vsel %vm1495, %v2420, %v2427
      %v2429 = vrot.slane %v2424, 4
      %v2431 = vshrl.u32 %v2199, 16
      %v2433 = vrot.slane %v2431, 7
      %v2434 = vshll.u32 %v2199, 16
      %v2436 = vor.u32 %v2433, %v2434
      %v2437 = vsel %vm1495, %v2429, %v2436
      %v2438 = vrot.slane %v2433, 4
      %v2440 = vshrl.u32 %v2200, 16
      %v2442 = vrot.slane %v2440, 7
      %v2443 = vshll.u32 %v2200, 16
      %v2445 = vor.u32 %v2442, %v2443
      %v2446 = vsel %vm1495, %v2438, %v2445
      %v2447 = vrot.slane %v2442, 4
      %v2449 = vshrl.u32 %v2201, 16
      %v2451 = vrot.slane %v2449, 7
      %v2452 = vshll.u32 %v2201, 16
      %v2454 = vor.u32 %v2451, %v2452
      %v2455 = vsel %vm1495, %v2447, %v2454
      %v2456 = vrot.slane %v2451, 4
      %v2458 = vshrl.u32 %v2202, 16
      %v2460 = vrot.slane %v2458, 7
      %v2461 = vshll.u32 %v2202, 16
      %v2463 = vor.u32 %v2460, %v2461
      %v2464 = vsel %vm1495, %v2456, %v2463
      %v2465 = vrot.slane %v2460, 4
      %v2467 = vshrl.u32 %v2203, 16
      %v2469 = vrot.slane %v2467, 7
      %v2470 = vshll.u32 %v2203, 16
      %v2472 = vor.u32 %v2469, %v2470
      %v2473 = vsel %vm1495, %v2465, %v2472
      %v2474 = vrot.slane %v2469, 4
      %v2476 = vshrl.u32 %v2204, 16
      %v2478 = vrot.slane %v2476, 7
      %v2479 = vshll.u32 %v2204, 16
      %v2481 = vor.u32 %v2478, %v2479
      %v2482 = vsel %vm1495, %v2474, %v2481
      %v2483 = vrot.slane %v2478, 4
      %v2485 = vshrl.u32 %v2205, 16
      %v2487 = vrot.slane %v2485, 7
      %v2488 = vshll.u32 %v2205, 16
      %v2490 = vor.u32 %v2487, %v2488
      %v2491 = vsel %vm1495, %v2483, %v2490
      %v2492 = vrot.slane %v2487, 4
      %vm2493 = vcmp.ne.s16.totalorder %v2212, 0
      %vm2494 = vcmp.ne.s16.totalorder %v2221, 0
      %vm2495 = vcmp.ne.s16.totalorder %v2230, 0
      %vm2496 = vcmp.ne.s16.totalorder %v2239, 0
      %vm2497 = vcmp.ne.s16.totalorder %v2248, 0
      %vm2498 = vcmp.ne.s16.totalorder %v2257, 0
      %vm2499 = vcmp.ne.s16.totalorder %v2266, 0
      %vm2500 = vcmp.ne.s16.totalorder %v2275, 0
      %vm2501 = vcmp.ne.s16.totalorder %v2284, 0
      %vm2502 = vcmp.ne.s16.totalorder %v2293, 0
      %vm2503 = vcmp.ne.s16.totalorder %v2302, 0
      %vm2504 = vcmp.ne.s16.totalorder %v2311, 0
      %vm2505 = vcmp.ne.s16.totalorder %v2320, 0
      %vm2506 = vcmp.ne.s16.totalorder %v2329, 0
      %vm2507 = vcmp.ne.s16.totalorder %v2338, 0
      %vm2508 = vcmp.ne.s16.totalorder %v2347, 0
      %vm2509 = vcmp.ne.s16.totalorder %v2356, 0
      %vm2510 = vcmp.ne.s16.totalorder %v2365, 0
      %vm2511 = vcmp.ne.s16.totalorder %v2374, 0
      %vm2512 = vcmp.ne.s16.totalorder %v2383, 0
      %vm2513 = vcmp.ne.s16.totalorder %v2392, 0
      %vm2514 = vcmp.ne.s16.totalorder %v2401, 0
      %vm2515 = vcmp.ne.s16.totalorder %v2410, 0
      %vm2516 = vcmp.ne.s16.totalorder %v2419, 0
      %vm2517 = vcmp.ne.s16.totalorder %v2428, 0
      %vm2518 = vcmp.ne.s16.totalorder %v2437, 0
      %vm2519 = vcmp.ne.s16.totalorder %v2446, 0
      %vm2520 = vcmp.ne.s16.totalorder %v2455, 0
      %vm2521 = vcmp.ne.s16.totalorder %v2464, 0
      %vm2522 = vcmp.ne.s16.totalorder %v2473, 0
      %vm2523 = vcmp.ne.s16.totalorder %v2482, 0
      %vm2524 = vcmp.ne.s16.totalorder %v2491, 0
      %vm2525 = vcmp.ne.s16.totalorder %v2492, 0
      %v2526 = vsel %vm2493, %v2045, 0
      %v2527 = vsel %vm2494, %v2046, 0
      %v2528 = vsel %vm2495, %v2047, 0
      %v2529 = vsel %vm2496, %v2048, 0
      %v2530 = vsel %vm2497, %v2049, 0
      %v2531 = vsel %vm2498, %v2050, 0
      %v2532 = vsel %vm2499, %v2051, 0
      %v2533 = vsel %vm2500, %v2052, 0
      %v2534 = vsel %vm2501, %v2053, 0
      %v2535 = vsel %vm2502, %v2054, 0
      %v2536 = vsel %vm2503, %v2055, 0
      %v2537 = vsel %vm2504, %v2056, 0
      %v2538 = vsel %vm2505, %v2057, 0
      %v2539 = vsel %vm2506, %v2058, 0
      %v2540 = vsel %vm2507, %v2059, 0
      %v2541 = vsel %vm2508, %v2060, 0
      %v2542 = vsel %vm2509, %v2061, 0
      %v2543 = vsel %vm2510, %v2062, 0
      %v2544 = vsel %vm2511, %v2063, 0
      %v2545 = vsel %vm2512, %v2064, 0
      %v2546 = vsel %vm2513, %v2065, 0
      %v2547 = vsel %vm2514, %v2066, 0
      %v2548 = vsel %vm2515, %v2067, 0
      %v2549 = vsel %vm2516, %v2068, 0
      %v2550 = vsel %vm2517, %v2069, 0
      %v2551 = vsel %vm2518, %v2070, 0
      %v2552 = vsel %vm2519, %v2071, 0
      %v2553 = vsel %vm2520, %v2072, 0
      %v2554 = vsel %vm2521, %v2073, 0
      %v2555 = vsel %vm2522, %v2074, 0
      %v2556 = vsel %vm2523, %v2075, 0
      %v2557 = vsel %vm2524, %v2076, 0
      %v2558 = vsel %vm2525, %v2077, 0
      %v2560 = vshrl.u32 %v2526, 16
      %v2562 = vrot.slane %v2560, 4
      %v2563 = vshll.u32 %v2526, 16
      %v2565 = vrot.slane %v2563, 5
      %v2566 = vor.u32 %v2562, %v2565
      %v2567 = vrot.slane %v2566, 4
      %v2569 = vshll.u32 %v2527, 16
      %v2571 = vrot.slane %v2569, 5
      %v2572 = vsel %vm1107, %v2567, %v2571
      %v2573 = vshrl.u32 %v2527, 16
      %v2575 = vrot.slane %v2573, 4
      %v2576 = vor.u32 %v2575, %v2571
      %v2577 = vrot.slane %v2576, 4
      %v2579 = vshll.u32 %v2528, 16
      %v2581 = vrot.slane %v2579, 5
      %v2582 = vsel %vm1107, %v2577, %v2581
      %v2583 = vshrl.u32 %v2528, 16
      %v2585 = vrot.slane %v2583, 4
      %v2586 = vor.u32 %v2585, %v2581
      %v2587 = vrot.slane %v2586, 4
      %v2589 = vshll.u32 %v2529, 16
      %v2591 = vrot.slane %v2589, 5
      %v2592 = vsel %vm1107, %v2587, %v2591
      %v2593 = vshrl.u32 %v2529, 16
      %v2595 = vrot.slane %v2593, 4
      %v2596 = vor.u32 %v2595, %v2591
      %v2597 = vrot.slane %v2596, 4
      %v2599 = vshll.u32 %v2530, 16
      %v2601 = vrot.slane %v2599, 5
      %v2602 = vsel %vm1107, %v2597, %v2601
      %v2603 = vshrl.u32 %v2530, 16
      %v2605 = vrot.slane %v2603, 4
      %v2606 = vor.u32 %v2605, %v2601
      %v2607 = vrot.slane %v2606, 4
      %v2609 = vshll.u32 %v2531, 16
      %v2611 = vrot.slane %v2609, 5
      %v2612 = vsel %vm1107, %v2607, %v2611
      %v2613 = vshrl.u32 %v2531, 16
      %v2615 = vrot.slane %v2613, 4
      %v2616 = vor.u32 %v2615, %v2611
      %v2617 = vrot.slane %v2616, 4
      %v2619 = vshll.u32 %v2532, 16
      %v2621 = vrot.slane %v2619, 5
      %v2622 = vsel %vm1107, %v2617, %v2621
      %v2623 = vshrl.u32 %v2532, 16
      %v2625 = vrot.slane %v2623, 4
      %v2626 = vor.u32 %v2625, %v2621
      %v2627 = vrot.slane %v2626, 4
      %v2629 = vshll.u32 %v2533, 16
      %v2631 = vrot.slane %v2629, 5
      %v2632 = vsel %vm1107, %v2627, %v2631
      %v2633 = vshrl.u32 %v2533, 16
      %v2635 = vrot.slane %v2633, 4
      %v2636 = vor.u32 %v2635, %v2631
      %v2637 = vrot.slane %v2636, 4
      %v2639 = vshll.u32 %v2534, 16
      %v2641 = vrot.slane %v2639, 5
      %v2642 = vsel %vm1107, %v2637, %v2641
      %v2643 = vshrl.u32 %v2534, 16
      %v2645 = vrot.slane %v2643, 4
      %v2646 = vor.u32 %v2645, %v2641
      %v2647 = vrot.slane %v2646, 4
      %v2649 = vshll.u32 %v2535, 16
      %v2651 = vrot.slane %v2649, 5
      %v2652 = vsel %vm1107, %v2647, %v2651
      %v2653 = vshrl.u32 %v2535, 16
      %v2655 = vrot.slane %v2653, 4
      %v2656 = vor.u32 %v2655, %v2651
      %v2657 = vrot.slane %v2656, 4
      %v2659 = vshll.u32 %v2536, 16
      %v2661 = vrot.slane %v2659, 5
      %v2662 = vsel %vm1107, %v2657, %v2661
      %v2663 = vshrl.u32 %v2536, 16
      %v2665 = vrot.slane %v2663, 4
      %v2666 = vor.u32 %v2665, %v2661
      %v2667 = vrot.slane %v2666, 4
      %v2669 = vshll.u32 %v2537, 16
      %v2671 = vrot.slane %v2669, 5
      %v2672 = vsel %vm1107, %v2667, %v2671
      %v2673 = vshrl.u32 %v2537, 16
      %v2675 = vrot.slane %v2673, 4
      %v2676 = vor.u32 %v2675, %v2671
      %v2677 = vrot.slane %v2676, 4
      %v2679 = vshll.u32 %v2538, 16
      %v2681 = vrot.slane %v2679, 5
      %v2682 = vsel %vm1107, %v2677, %v2681
      %v2683 = vshrl.u32 %v2538, 16
      %v2685 = vrot.slane %v2683, 4
      %v2686 = vor.u32 %v2685, %v2681
      %v2687 = vrot.slane %v2686, 4
      %v2689 = vshll.u32 %v2539, 16
      %v2691 = vrot.slane %v2689, 5
      %v2692 = vsel %vm1107, %v2687, %v2691
      %v2693 = vshrl.u32 %v2539, 16
      %v2695 = vrot.slane %v2693, 4
      %v2696 = vor.u32 %v2695, %v2691
      %v2697 = vrot.slane %v2696, 4
      %v2699 = vshll.u32 %v2540, 16
      %v2701 = vrot.slane %v2699, 5
      %v2702 = vsel %vm1107, %v2697, %v2701
      %v2703 = vshrl.u32 %v2540, 16
      %v2705 = vrot.slane %v2703, 4
      %v2706 = vor.u32 %v2705, %v2701
      %v2707 = vrot.slane %v2706, 4
      %v2709 = vshll.u32 %v2541, 16
      %v2711 = vrot.slane %v2709, 5
      %v2712 = vsel %vm1107, %v2707, %v2711
      %v2713 = vshrl.u32 %v2541, 16
      %v2715 = vrot.slane %v2713, 4
      %v2716 = vor.u32 %v2715, %v2711
      %v2717 = vrot.slane %v2716, 4
      %v2719 = vshll.u32 %v2542, 16
      %v2721 = vrot.slane %v2719, 5
      %v2722 = vsel %vm1107, %v2717, %v2721
      %v2723 = vshrl.u32 %v2542, 16
      %v2725 = vrot.slane %v2723, 4
      %v2726 = vor.u32 %v2725, %v2721
      %v2727 = vrot.slane %v2726, 4
      %v2729 = vshll.u32 %v2543, 16
      %v2731 = vrot.slane %v2729, 5
      %v2732 = vsel %vm1107, %v2727, %v2731
      %v2733 = vshrl.u32 %v2543, 16
      %v2735 = vrot.slane %v2733, 4
      %v2736 = vor.u32 %v2735, %v2731
      %v2737 = vrot.slane %v2736, 4
      %v2739 = vshll.u32 %v2544, 16
      %v2741 = vrot.slane %v2739, 5
      %v2742 = vsel %vm1107, %v2737, %v2741
      %v2743 = vshrl.u32 %v2544, 16
      %v2745 = vrot.slane %v2743, 4
      %v2746 = vor.u32 %v2745, %v2741
      %v2747 = vrot.slane %v2746, 4
      %v2749 = vshll.u32 %v2545, 16
      %v2751 = vrot.slane %v2749, 5
      %v2752 = vsel %vm1107, %v2747, %v2751
      %v2753 = vshrl.u32 %v2545, 16
      %v2755 = vrot.slane %v2753, 4
      %v2756 = vor.u32 %v2755, %v2751
      %v2757 = vrot.slane %v2756, 4
      %v2759 = vshll.u32 %v2546, 16
      %v2761 = vrot.slane %v2759, 5
      %v2762 = vsel %vm1107, %v2757, %v2761
      %v2763 = vshrl.u32 %v2546, 16
      %v2765 = vrot.slane %v2763, 4
      %v2766 = vor.u32 %v2765, %v2761
      %v2767 = vrot.slane %v2766, 4
      %v2769 = vshll.u32 %v2547, 16
      %v2771 = vrot.slane %v2769, 5
      %v2772 = vsel %vm1107, %v2767, %v2771
      %v2773 = vshrl.u32 %v2547, 16
      %v2775 = vrot.slane %v2773, 4
      %v2776 = vor.u32 %v2775, %v2771
      %v2777 = vrot.slane %v2776, 4
      %v2779 = vshll.u32 %v2548, 16
      %v2781 = vrot.slane %v2779, 5
      %v2782 = vsel %vm1107, %v2777, %v2781
      %v2783 = vshrl.u32 %v2548, 16
      %v2785 = vrot.slane %v2783, 4
      %v2786 = vor.u32 %v2785, %v2781
      %v2787 = vrot.slane %v2786, 4
      %v2789 = vshll.u32 %v2549, 16
      %v2791 = vrot.slane %v2789, 5
      %v2792 = vsel %vm1107, %v2787, %v2791
      %v2793 = vshrl.u32 %v2549, 16
      %v2795 = vrot.slane %v2793, 4
      %v2796 = vor.u32 %v2795, %v2791
      %v2797 = vrot.slane %v2796, 4
      %v2799 = vshll.u32 %v2550, 16
      %v2801 = vrot.slane %v2799, 5
      %v2802 = vsel %vm1107, %v2797, %v2801
      %v2803 = vshrl.u32 %v2550, 16
      %v2805 = vrot.slane %v2803, 4
      %v2806 = vor.u32 %v2805, %v2801
      %v2807 = vrot.slane %v2806, 4
      %v2809 = vshll.u32 %v2551, 16
      %v2811 = vrot.slane %v2809, 5
      %v2812 = vsel %vm1107, %v2807, %v2811
      %v2813 = vshrl.u32 %v2551, 16
      %v2815 = vrot.slane %v2813, 4
      %v2816 = vor.u32 %v2815, %v2811
      %v2817 = vrot.slane %v2816, 4
      %v2819 = vshll.u32 %v2552, 16
      %v2821 = vrot.slane %v2819, 5
      %v2822 = vsel %vm1107, %v2817, %v2821
      %v2823 = vshrl.u32 %v2552, 16
      %v2825 = vrot.slane %v2823, 4
      %v2826 = vor.u32 %v2825, %v2821
      %v2827 = vrot.slane %v2826, 4
      %v2829 = vshll.u32 %v2553, 16
      %v2831 = vrot.slane %v2829, 5
      %v2832 = vsel %vm1107, %v2827, %v2831
      %v2833 = vshrl.u32 %v2553, 16
      %v2835 = vrot.slane %v2833, 4
      %v2836 = vor.u32 %v2835, %v2831
      %v2837 = vrot.slane %v2836, 4
      %v2839 = vshll.u32 %v2554, 16
      %v2841 = vrot.slane %v2839, 5
      %v2842 = vsel %vm1107, %v2837, %v2841
      %v2843 = vshrl.u32 %v2554, 16
      %v2845 = vrot.slane %v2843, 4
      %v2846 = vor.u32 %v2845, %v2841
      %v2847 = vrot.slane %v2846, 4
      %v2849 = vshll.u32 %v2555, 16
      %v2851 = vrot.slane %v2849, 5
      %v2852 = vsel %vm1107, %v2847, %v2851
      %v2853 = vshrl.u32 %v2555, 16
      %v2855 = vrot.slane %v2853, 4
      %v2856 = vor.u32 %v2855, %v2851
      %v2857 = vrot.slane %v2856, 4
      %v2859 = vshll.u32 %v2556, 16
      %v2861 = vrot.slane %v2859, 5
      %v2862 = vsel %vm1107, %v2857, %v2861
      %v2863 = vshrl.u32 %v2556, 16
      %v2865 = vrot.slane %v2863, 4
      %v2866 = vor.u32 %v2865, %v2861
      %v2867 = vrot.slane %v2866, 4
      %v2869 = vshll.u32 %v2557, 16
      %v2871 = vrot.slane %v2869, 5
      %v2872 = vsel %vm1107, %v2867, %v2871
      %v2873 = vshrl.u32 %v2557, 16
      %v2875 = vrot.slane %v2873, 4
      %v2876 = vor.u32 %v2875, %v2871
      %v2877 = vrot.slane %v2876, 4
      %v2879 = vshll.u32 %v2558, 16
      %v2881 = vrot.slane %v2879, 5
      %v2882 = vsel %vm1107, %v2877, %v2881
      %2883 = vrot.lane.b32.xlu0 %v2572, 8
      %v2884 = vpop.permute.xlu0 %2883
      %2885 = vrot.lane.b32.xlu0 %v2582, 8
      %v2886 = vpop.permute.xlu0 %2885
      %2887 = vrot.lane.b32.xlu0 %v2592, 8
      %v2888 = vpop.permute.xlu0 %2887
      %2889 = vrot.lane.b32.xlu0 %v2602, 8
      %v2890 = vpop.permute.xlu0 %2889
      %2891 = vrot.lane.b32.xlu0 %v2612, 8
      %v2892 = vpop.permute.xlu0 %2891
      %2893 = vrot.lane.b32.xlu0 %v2622, 8
      %v2894 = vpop.permute.xlu0 %2893
      %2895 = vrot.lane.b32.xlu0 %v2632, 8
      %v2896 = vpop.permute.xlu0 %2895
      %2897 = vrot.lane.b32.xlu0 %v2642, 8
      %v2898 = vpop.permute.xlu0 %2897
      %2899 = vrot.lane.b32.xlu0 %v2652, 8
      %v2900 = vpop.permute.xlu0 %2899
      %2901 = vrot.lane.b32.xlu0 %v2662, 8
      %v2902 = vpop.permute.xlu0 %2901
      %2903 = vrot.lane.b32.xlu0 %v2672, 8
      %v2904 = vpop.permute.xlu0 %2903
      %2905 = vrot.lane.b32.xlu0 %v2682, 8
      %v2906 = vpop.permute.xlu0 %2905
      %2907 = vrot.lane.b32.xlu0 %v2692, 8
      %v2908 = vpop.permute.xlu0 %2907
      %2909 = vrot.lane.b32.xlu0 %v2702, 8
      %v2910 = vpop.permute.xlu0 %2909
      %2911 = vrot.lane.b32.xlu0 %v2712, 8
      %v2912 = vpop.permute.xlu0 %2911
      %2913 = vrot.lane.b32.xlu0 %v2722, 8
      %v2914 = vpop.permute.xlu0 %2913
      %2915 = vrot.lane.b32.xlu0 %v2732, 8
      %v2916 = vpop.permute.xlu0 %2915
      %2917 = vrot.lane.b32.xlu0 %v2742, 8
      %v2918 = vpop.permute.xlu0 %2917
      %2919 = vrot.lane.b32.xlu0 %v2752, 8
      %v2920 = vpop.permute.xlu0 %2919
      %2921 = vrot.lane.b32.xlu0 %v2762, 8
      %v2922 = vpop.permute.xlu0 %2921
      %2923 = vrot.lane.b32.xlu0 %v2772, 8
      %v2924 = vpop.permute.xlu0 %2923
      %2925 = vrot.lane.b32.xlu0 %v2782, 8
      %v2926 = vpop.permute.xlu0 %2925
      %2927 = vrot.lane.b32.xlu0 %v2792, 8
      %v2928 = vpop.permute.xlu0 %2927
      %2929 = vrot.lane.b32.xlu0 %v2802, 8
      %v2930 = vpop.permute.xlu0 %2929
      %2931 = vrot.lane.b32.xlu0 %v2812, 8
      %v2932 = vpop.permute.xlu0 %2931
      %2933 = vrot.lane.b32.xlu0 %v2822, 8
      %v2934 = vpop.permute.xlu0 %2933
      %2935 = vrot.lane.b32.xlu0 %v2832, 8
      %v2936 = vpop.permute.xlu0 %2935
      %2937 = vrot.lane.b32.xlu0 %v2842, 8
      %v2938 = vpop.permute.xlu0 %2937
      %2939 = vrot.lane.b32.xlu0 %v2852, 8
      %v2940 = vpop.permute.xlu0 %2939
      %2941 = vrot.lane.b32.xlu0 %v2862, 8
      %v2942 = vpop.permute.xlu0 %2941
      %2943 = vrot.lane.b32.xlu0 %v2872, 8
      %v2944 = vpop.permute.xlu0 %2943
      %2945 = vrot.lane.b32.xlu0 %v2882, 8
      %v2946 = vpop.permute.xlu0 %2945
      %vm2979 = vcmask 93248
      %2980 = vst.msk [vmem:[#allocation3] sm:$0xf] %vm2979, %v2884
      %2981 = vst.msk [vmem:[#allocation3 + $0x4] sm:$0xf] %vm2979, %v2886
      %2982 = vst.msk [vmem:[#allocation3 + $0x8] sm:$0xf] %vm2979, %v2888
      %2983 = vst.msk [vmem:[#allocation3 + $0xc] sm:$0xf] %vm2979, %v2890
      %2984 = vst.msk [vmem:[#allocation3 + $0x10] sm:$0xf] %vm2979, %v2892
      %2985 = vst.msk [vmem:[#allocation3 + $0x14] sm:$0xf] %vm2979, %v2894
      %2986 = vst.msk [vmem:[#allocation3 + $0x18] sm:$0xf] %vm2979, %v2896
      %2987 = vst.msk [vmem:[#allocation3 + $0x1c] sm:$0xf] %vm2979, %v2898
      %2988 = vst.msk [vmem:[#allocation3 + $0x20] sm:$0xf] %vm2979, %v2900
      %2989 = vst.msk [vmem:[#allocation3 + $0x24] sm:$0xf] %vm2979, %v2902
      %2990 = vst.msk [vmem:[#allocation3 + $0x28] sm:$0xf] %vm2979, %v2904
      %2991 = vst.msk [vmem:[#allocation3 + $0x2c] sm:$0xf] %vm2979, %v2906
      %2992 = vst.msk [vmem:[#allocation3 + $0x30] sm:$0xf] %vm2979, %v2908
      %2993 = vst.msk [vmem:[#allocation3 + $0x34] sm:$0xf] %vm2979, %v2910
      %2994 = vst.msk [vmem:[#allocation3 + $0x38] sm:$0xf] %vm2979, %v2912
      %2995 = vst.msk [vmem:[#allocation3 + $0x3c] sm:$0xf] %vm2979, %v2914
      %2996 = vst.msk [vmem:[#allocation3 + $0x40] sm:$0xf] %vm2979, %v2916
      %2997 = vst.msk [vmem:[#allocation3 + $0x44] sm:$0xf] %vm2979, %v2918
      %2998 = vst.msk [vmem:[#allocation3 + $0x48] sm:$0xf] %vm2979, %v2920
      %2999 = vst.msk [vmem:[#allocation3 + $0x4c] sm:$0xf] %vm2979, %v2922
      %3000 = vst.msk [vmem:[#allocation3 + $0x50] sm:$0xf] %vm2979, %v2924
      %3001 = vst.msk [vmem:[#allocation3 + $0x54] sm:$0xf] %vm2979, %v2926
      %3002 = vst.msk [vmem:[#allocation3 + $0x58] sm:$0xf] %vm2979, %v2928
      %3003 = vst.msk [vmem:[#allocation3 + $0x5c] sm:$0xf] %vm2979, %v2930
      %3004 = vst.msk [vmem:[#allocation3 + $0x60] sm:$0xf] %vm2979, %v2932
      %3005 = vst.msk [vmem:[#allocation3 + $0x64] sm:$0xf] %vm2979, %v2934
      %3006 = vst.msk [vmem:[#allocation3 + $0x68] sm:$0xf] %vm2979, %v2936
      %3007 = vst.msk [vmem:[#allocation3 + $0x6c] sm:$0xf] %vm2979, %v2938
      %3008 = vst.msk [vmem:[#allocation3 + $0x70] sm:$0xf] %vm2979, %v2940
      %3009 = vst.msk [vmem:[#allocation3 + $0x74] sm:$0xf] %vm2979, %v2942
      %3010 = vst.msk [vmem:[#allocation3 + $0x78] sm:$0xf] %vm2979, %v2944
      %3011 = vst.msk [vmem:[#allocation3 + $0x7c] sm:$0xf] %vm2979, %v2946
      %v3012 = vld [vmem:[#allocation2 + $0xc] sm:$0x8]
      %v3013 = vld [vmem:[#allocation2 + $0x10] sm:$0xf]
      %v3014 = vld [vmem:[#allocation2 + $0x14] sm:$0xf]
      %v3015 = vld [vmem:[#allocation2 + $0x18] sm:$0xf]
      %v3016 = vld [vmem:[#allocation2 + $0x1c] sm:$0xf]
      %v3017 = vld [vmem:[#allocation2 + $0x20] sm:$0xf]
      %v3018 = vld [vmem:[#allocation2 + $0x24] sm:$0xf]
      %v3019 = vld [vmem:[#allocation2 + $0x28] sm:$0xf]
      %v3020 = vld [vmem:[#allocation2 + $0x2c] sm:$0xf]
      %v3021 = vld [vmem:[#allocation2 + $0x30] sm:$0xf]
      %v3022 = vld [vmem:[#allocation2 + $0x34] sm:$0xf]
      %v3023 = vld [vmem:[#allocation2 + $0x38] sm:$0xf]
      %v3024 = vld [vmem:[#allocation2 + $0x3c] sm:$0xf]
      %v3025 = vld [vmem:[#allocation2 + $0x40] sm:$0xf]
      %v3026 = vld [vmem:[#allocation2 + $0x44] sm:$0xf]
      %v3027 = vld [vmem:[#allocation2 + $0x48] sm:$0xf]
      %v3028 = vld [vmem:[#allocation2 + $0x4c] sm:$0xf]
      %v3029 = vld [vmem:[#allocation2 + $0x50] sm:$0xf]
      %v3030 = vld [vmem:[#allocation2 + $0x54] sm:$0xf]
      %v3031 = vld [vmem:[#allocation2 + $0x58] sm:$0xf]
      %v3032 = vld [vmem:[#allocation2 + $0x5c] sm:$0xf]
      %v3033 = vld [vmem:[#allocation2 + $0x60] sm:$0xf]
      %v3034 = vld [vmem:[#allocation2 + $0x64] sm:$0xf]
      %v3035 = vld [vmem:[#allocation2 + $0x68] sm:$0xf]
      %v3036 = vld [vmem:[#allocation2 + $0x6c] sm:$0xf]
      %v3037 = vld [vmem:[#allocation2 + $0x70] sm:$0xf]
      %v3038 = vld [vmem:[#allocation2 + $0x74] sm:$0xf]
      %v3039 = vld [vmem:[#allocation2 + $0x78] sm:$0xf]
      %v3040 = vld [vmem:[#allocation2 + $0x7c] sm:$0xf]
      %v3041 = vld [vmem:[#allocation2 + $0x80] sm:$0xf]
      %v3042 = vld [vmem:[#allocation2 + $0x84] sm:$0xf]
      %v3043 = vld [vmem:[#allocation2 + $0x88] sm:$0xf]
      %v3044 = vld [vmem:[#allocation2 + $0x8c] sm:$0xf]
      %v3045 = vsel %vm1427, %v3012, 0
      %v3046 = vsel %vm1428, %v3013, 0
      %v3047 = vsel %vm1429, %v3014, 0
      %v3048 = vsel %vm1430, %v3015, 0
      %v3049 = vsel %vm1431, %v3016, 0
      %v3050 = vsel %vm1432, %v3017, 0
      %v3051 = vsel %vm1433, %v3018, 0
      %v3052 = vsel %vm1434, %v3019, 0
      %v3053 = vsel %vm1435, %v3020, 0
      %v3054 = vsel %vm1436, %v3021, 0
      %v3055 = vsel %vm1437, %v3022, 0
      %v3056 = vsel %vm1438, %v3023, 0
      %v3057 = vsel %vm1439, %v3024, 0
      %v3058 = vsel %vm1440, %v3025, 0
      %v3059 = vsel %vm1441, %v3026, 0
      %v3060 = vsel %vm1442, %v3027, 0
      %v3061 = vsel %vm1443, %v3028, 0
      %v3062 = vsel %vm1444, %v3029, 0
      %v3063 = vsel %vm1445, %v3030, 0
      %v3064 = vsel %vm1446, %v3031, 0
      %v3065 = vsel %vm1447, %v3032, 0
      %v3066 = vsel %vm1448, %v3033, 0
      %v3067 = vsel %vm1449, %v3034, 0
      %v3068 = vsel %vm1450, %v3035, 0
      %v3069 = vsel %vm1451, %v3036, 0
      %v3070 = vsel %vm1452, %v3037, 0
      %v3071 = vsel %vm1453, %v3038, 0
      %v3072 = vsel %vm1454, %v3039, 0
      %v3073 = vsel %vm1455, %v3040, 0
      %v3074 = vsel %vm1456, %v3041, 0
      %v3075 = vsel %vm1457, %v3042, 0
      %v3076 = vsel %vm1458, %v3043, 0
      %v3077 = vsel %vm1459, %v3044, 0
      %v3079 = vshrl.u32 %v3045, 16
      %v3081 = vrot.slane %v3079, 7
      %v3082 = vrot.slane %v3081, 4
      %v3084 = vshrl.u32 %v3046, 16
      %v3086 = vrot.slane %v3084, 7
      %v3087 = vshll.u32 %v3046, 16
      %v3089 = vor.u32 %v3086, %v3087
      %v3090 = vsel %vm1495, %v3082, %v3089
      %v3091 = vrot.slane %v3086, 4
      %v3093 = vshrl.u32 %v3047, 16
      %v3095 = vrot.slane %v3093, 7
      %v3096 = vshll.u32 %v3047, 16
      %v3098 = vor.u32 %v3095, %v3096
      %v3099 = vsel %vm1495, %v3091, %v3098
      %v3100 = vrot.slane %v3095, 4
      %v3102 = vshrl.u32 %v3048, 16
      %v3104 = vrot.slane %v3102, 7
      %v3105 = vshll.u32 %v3048, 16
      %v3107 = vor.u32 %v3104, %v3105
      %v3108 = vsel %vm1495, %v3100, %v3107
      %v3109 = vrot.slane %v3104, 4
      %v3111 = vshrl.u32 %v3049, 16
      %v3113 = vrot.slane %v3111, 7
      %v3114 = vshll.u32 %v3049, 16
      %v3116 = vor.u32 %v3113, %v3114
      %v3117 = vsel %vm1495, %v3109, %v3116
      %v3118 = vrot.slane %v3113, 4
      %v3120 = vshrl.u32 %v3050, 16
      %v3122 = vrot.slane %v3120, 7
      %v3123 = vshll.u32 %v3050, 16
      %v3125 = vor.u32 %v3122, %v3123
      %v3126 = vsel %vm1495, %v3118, %v3125
      %v3127 = vrot.slane %v3122, 4
      %v3129 = vshrl.u32 %v3051, 16
      %v3131 = vrot.slane %v3129, 7
      %v3132 = vshll.u32 %v3051, 16
      %v3134 = vor.u32 %v3131, %v3132
      %v3135 = vsel %vm1495, %v3127, %v3134
      %v3136 = vrot.slane %v3131, 4
      %v3138 = vshrl.u32 %v3052, 16
      %v3140 = vrot.slane %v3138, 7
      %v3141 = vshll.u32 %v3052, 16
      %v3143 = vor.u32 %v3140, %v3141
      %v3144 = vsel %vm1495, %v3136, %v3143
      %v3145 = vrot.slane %v3140, 4
      %v3147 = vshrl.u32 %v3053, 16
      %v3149 = vrot.slane %v3147, 7
      %v3150 = vshll.u32 %v3053, 16
      %v3152 = vor.u32 %v3149, %v3150
      %v3153 = vsel %vm1495, %v3145, %v3152
      %v3154 = vrot.slane %v3149, 4
      %v3156 = vshrl.u32 %v3054, 16
      %v3158 = vrot.slane %v3156, 7
      %v3159 = vshll.u32 %v3054, 16
      %v3161 = vor.u32 %v3158, %v3159
      %v3162 = vsel %vm1495, %v3154, %v3161
      %v3163 = vrot.slane %v3158, 4
      %v3165 = vshrl.u32 %v3055, 16
      %v3167 = vrot.slane %v3165, 7
      %v3168 = vshll.u32 %v3055, 16
      %v3170 = vor.u32 %v3167, %v3168
      %v3171 = vsel %vm1495, %v3163, %v3170
      %v3172 = vrot.slane %v3167, 4
      %v3174 = vshrl.u32 %v3056, 16
      %v3176 = vrot.slane %v3174, 7
      %v3177 = vshll.u32 %v3056, 16
      %v3179 = vor.u32 %v3176, %v3177
      %v3180 = vsel %vm1495, %v3172, %v3179
      %v3181 = vrot.slane %v3176, 4
      %v3183 = vshrl.u32 %v3057, 16
      %v3185 = vrot.slane %v3183, 7
      %v3186 = vshll.u32 %v3057, 16
      %v3188 = vor.u32 %v3185, %v3186
      %v3189 = vsel %vm1495, %v3181, %v3188
      %v3190 = vrot.slane %v3185, 4
      %v3192 = vshrl.u32 %v3058, 16
      %v3194 = vrot.slane %v3192, 7
      %v3195 = vshll.u32 %v3058, 16
      %v3197 = vor.u32 %v3194, %v3195
      %v3198 = vsel %vm1495, %v3190, %v3197
      %v3199 = vrot.slane %v3194, 4
      %v3201 = vshrl.u32 %v3059, 16
      %v3203 = vrot.slane %v3201, 7
      %v3204 = vshll.u32 %v3059, 16
      %v3206 = vor.u32 %v3203, %v3204
      %v3207 = vsel %vm1495, %v3199, %v3206
      %v3208 = vrot.slane %v3203, 4
      %v3210 = vshrl.u32 %v3060, 16
      %v3212 = vrot.slane %v3210, 7
      %v3213 = vshll.u32 %v3060, 16
      %v3215 = vor.u32 %v3212, %v3213
      %v3216 = vsel %vm1495, %v3208, %v3215
      %v3217 = vrot.slane %v3212, 4
      %v3219 = vshrl.u32 %v3061, 16
      %v3221 = vrot.slane %v3219, 7
      %v3222 = vshll.u32 %v3061, 16
      %v3224 = vor.u32 %v3221, %v3222
      %v3225 = vsel %vm1495, %v3217, %v3224
      %v3226 = vrot.slane %v3221, 4
      %v3228 = vshrl.u32 %v3062, 16
      %v3230 = vrot.slane %v3228, 7
      %v3231 = vshll.u32 %v3062, 16
      %v3233 = vor.u32 %v3230, %v3231
      %v3234 = vsel %vm1495, %v3226, %v3233
      %v3235 = vrot.slane %v3230, 4
      %v3237 = vshrl.u32 %v3063, 16
      %v3239 = vrot.slane %v3237, 7
      %v3240 = vshll.u32 %v3063, 16
      %v3242 = vor.u32 %v3239, %v3240
      %v3243 = vsel %vm1495, %v3235, %v3242
      %v3244 = vrot.slane %v3239, 4
      %v3246 = vshrl.u32 %v3064, 16
      %v3248 = vrot.slane %v3246, 7
      %v3249 = vshll.u32 %v3064, 16
      %v3251 = vor.u32 %v3248, %v3249
      %v3252 = vsel %vm1495, %v3244, %v3251
      %v3253 = vrot.slane %v3248, 4
      %v3255 = vshrl.u32 %v3065, 16
      %v3257 = vrot.slane %v3255, 7
      %v3258 = vshll.u32 %v3065, 16
      %v3260 = vor.u32 %v3257, %v3258
      %v3261 = vsel %vm1495, %v3253, %v3260
      %v3262 = vrot.slane %v3257, 4
      %v3264 = vshrl.u32 %v3066, 16
      %v3266 = vrot.slane %v3264, 7
      %v3267 = vshll.u32 %v3066, 16
      %v3269 = vor.u32 %v3266, %v3267
      %v3270 = vsel %vm1495, %v3262, %v3269
      %v3271 = vrot.slane %v3266, 4
      %v3273 = vshrl.u32 %v3067, 16
      %v3275 = vrot.slane %v3273, 7
      %v3276 = vshll.u32 %v3067, 16
      %v3278 = vor.u32 %v3275, %v3276
      %v3279 = vsel %vm1495, %v3271, %v3278
      %v3280 = vrot.slane %v3275, 4
      %v3282 = vshrl.u32 %v3068, 16
      %v3284 = vrot.slane %v3282, 7
      %v3285 = vshll.u32 %v3068, 16
      %v3287 = vor.u32 %v3284, %v3285
      %v3288 = vsel %vm1495, %v3280, %v3287
      %v3289 = vrot.slane %v3284, 4
      %v3291 = vshrl.u32 %v3069, 16
      %v3293 = vrot.slane %v3291, 7
      %v3294 = vshll.u32 %v3069, 16
      %v3296 = vor.u32 %v3293, %v3294
      %v3297 = vsel %vm1495, %v3289, %v3296
      %v3298 = vrot.slane %v3293, 4
      %v3300 = vshrl.u32 %v3070, 16
      %v3302 = vrot.slane %v3300, 7
      %v3303 = vshll.u32 %v3070, 16
      %v3305 = vor.u32 %v3302, %v3303
      %v3306 = vsel %vm1495, %v3298, %v3305
      %v3307 = vrot.slane %v3302, 4
      %v3309 = vshrl.u32 %v3071, 16
      %v3311 = vrot.slane %v3309, 7
      %v3312 = vshll.u32 %v3071, 16
      %v3314 = vor.u32 %v3311, %v3312
      %v3315 = vsel %vm1495, %v3307, %v3314
      %v3316 = vrot.slane %v3311, 4
      %v3318 = vshrl.u32 %v3072, 16
      %v3320 = vrot.slane %v3318, 7
      %v3321 = vshll.u32 %v3072, 16
      %v3323 = vor.u32 %v3320, %v3321
      %v3324 = vsel %vm1495, %v3316, %v3323
      %v3325 = vrot.slane %v3320, 4
      %v3327 = vshrl.u32 %v3073, 16
      %v3329 = vrot.slane %v3327, 7
      %v3330 = vshll.u32 %v3073, 16
      %v3332 = vor.u32 %v3329, %v3330
      %v3333 = vsel %vm1495, %v3325, %v3332
      %v3334 = vrot.slane %v3329, 4
      %v3336 = vshrl.u32 %v3074, 16
      %v3338 = vrot.slane %v3336, 7
      %v3339 = vshll.u32 %v3074, 16
      %v3341 = vor.u32 %v3338, %v3339
      %v3342 = vsel %vm1495, %v3334, %v3341
      %v3343 = vrot.slane %v3338, 4
      %v3345 = vshrl.u32 %v3075, 16
      %v3347 = vrot.slane %v3345, 7
      %v3348 = vshll.u32 %v3075, 16
      %v3350 = vor.u32 %v3347, %v3348
      %v3351 = vsel %vm1495, %v3343, %v3350
      %v3352 = vrot.slane %v3347, 4
      %v3354 = vshrl.u32 %v3076, 16
      %v3356 = vrot.slane %v3354, 7
      %v3357 = vshll.u32 %v3076, 16
      %v3359 = vor.u32 %v3356, %v3357
      %v3360 = vsel %vm1495, %v3352, %v3359
      %v3361 = vrot.slane %v3356, 4
      %v3363 = vshrl.u32 %v3077, 16
      %v3365 = vrot.slane %v3363, 7
      %v3366 = vshll.u32 %v3077, 16
      %v3368 = vor.u32 %v3365, %v3366
      %v3369 = vsel %vm1495, %v3361, %v3368
      %3370 = vrot.lane.b32.xlu0 %v3090, 12
      %v3371 = vpop.permute.xlu0 %3370
      %3372 = vrot.lane.b32.xlu0 %v3099, 12
      %v3373 = vpop.permute.xlu0 %3372
      %3374 = vrot.lane.b32.xlu0 %v3108, 12
      %v3375 = vpop.permute.xlu0 %3374
      %3376 = vrot.lane.b32.xlu0 %v3117, 12
      %v3377 = vpop.permute.xlu0 %3376
      %3378 = vrot.lane.b32.xlu0 %v3126, 12
      %v3379 = vpop.permute.xlu0 %3378
      %3380 = vrot.lane.b32.xlu0 %v3135, 12
      %v3381 = vpop.permute.xlu0 %3380
      %3382 = vrot.lane.b32.xlu0 %v3144, 12
      %v3383 = vpop.permute.xlu0 %3382
      %3384 = vrot.lane.b32.xlu0 %v3153, 12
      %v3385 = vpop.permute.xlu0 %3384
      %3386 = vrot.lane.b32.xlu0 %v3162, 12
      %v3387 = vpop.permute.xlu0 %3386
      %3388 = vrot.lane.b32.xlu0 %v3171, 12
      %v3389 = vpop.permute.xlu0 %3388
      %3390 = vrot.lane.b32.xlu0 %v3180, 12
      %v3391 = vpop.permute.xlu0 %3390
      %3392 = vrot.lane.b32.xlu0 %v3189, 12
      %v3393 = vpop.permute.xlu0 %3392
      %3394 = vrot.lane.b32.xlu0 %v3198, 12
      %v3395 = vpop.permute.xlu0 %3394
      %3396 = vrot.lane.b32.xlu0 %v3207, 12
      %v3397 = vpop.permute.xlu0 %3396
      %3398 = vrot.lane.b32.xlu0 %v3216, 12
      %v3399 = vpop.permute.xlu0 %3398
      %3400 = vrot.lane.b32.xlu0 %v3225, 12
      %v3401 = vpop.permute.xlu0 %3400
      %3402 = vrot.lane.b32.xlu0 %v3234, 12
      %v3403 = vpop.permute.xlu0 %3402
      %3404 = vrot.lane.b32.xlu0 %v3243, 12
      %v3405 = vpop.permute.xlu0 %3404
      %3406 = vrot.lane.b32.xlu0 %v3252, 12
      %v3407 = vpop.permute.xlu0 %3406
      %3408 = vrot.lane.b32.xlu0 %v3261, 12
      %v3409 = vpop.permute.xlu0 %3408
      %3410 = vrot.lane.b32.xlu0 %v3270, 12
      %v3411 = vpop.permute.xlu0 %3410
      %3412 = vrot.lane.b32.xlu0 %v3279, 12
      %v3413 = vpop.permute.xlu0 %3412
      %3414 = vrot.lane.b32.xlu0 %v3288, 12
      %v3415 = vpop.permute.xlu0 %3414
      %3416 = vrot.lane.b32.xlu0 %v3297, 12
      %v3417 = vpop.permute.xlu0 %3416
      %3418 = vrot.lane.b32.xlu0 %v3306, 12
      %v3419 = vpop.permute.xlu0 %3418
      %3420 = vrot.lane.b32.xlu0 %v3315, 12
      %v3421 = vpop.permute.xlu0 %3420
      %3422 = vrot.lane.b32.xlu0 %v3324, 12
      %v3423 = vpop.permute.xlu0 %3422
      %3424 = vrot.lane.b32.xlu0 %v3333, 12
      %v3425 = vpop.permute.xlu0 %3424
      %3426 = vrot.lane.b32.xlu0 %v3342, 12
      %v3427 = vpop.permute.xlu0 %3426
      %3428 = vrot.lane.b32.xlu0 %v3351, 12
      %v3429 = vpop.permute.xlu0 %3428
      %3430 = vrot.lane.b32.xlu0 %v3360, 12
      %v3431 = vpop.permute.xlu0 %3430
      %3432 = vrot.lane.b32.xlu0 %v3369, 12
      %v3433 = vpop.permute.xlu0 %3432
      %vm3466 = vcmask 126048
      %3467 = vst.msk [vmem:[#allocation3] sm:$0xf] %vm3466, %v3371
      %3468 = vst.msk [vmem:[#allocation3 + $0x4] sm:$0xf] %vm3466, %v3373
      %3469 = vst.msk [vmem:[#allocation3 + $0x8] sm:$0xf] %vm3466, %v3375
      %3470 = vst.msk [vmem:[#allocation3 + $0xc] sm:$0xf] %vm3466, %v3377
      %3471 = vst.msk [vmem:[#allocation3 + $0x10] sm:$0xf] %vm3466, %v3379
      %3472 = vst.msk [vmem:[#allocation3 + $0x14] sm:$0xf] %vm3466, %v3381
      %3473 = vst.msk [vmem:[#allocation3 + $0x18] sm:$0xf] %vm3466, %v3383
      %3474 = vst.msk [vmem:[#allocation3 + $0x1c] sm:$0xf] %vm3466, %v3385
      %3475 = vst.msk [vmem:[#allocation3 + $0x20] sm:$0xf] %vm3466, %v3387
      %3476 = vst.msk [vmem:[#allocation3 + $0x24] sm:$0xf] %vm3466, %v3389
      %3477 = vst.msk [vmem:[#allocation3 + $0x28] sm:$0xf] %vm3466, %v3391
      %3478 = vst.msk [vmem:[#allocation3 + $0x2c] sm:$0xf] %vm3466, %v3393
      %3479 = vst.msk [vmem:[#allocation3 + $0x30] sm:$0xf] %vm3466, %v3395
      %3480 = vst.msk [vmem:[#allocation3 + $0x34] sm:$0xf] %vm3466, %v3397
      %3481 = vst.msk [vmem:[#allocation3 + $0x38] sm:$0xf] %vm3466, %v3399
      %3482 = vst.msk [vmem:[#allocation3 + $0x3c] sm:$0xf] %vm3466, %v3401
      %3483 = vst.msk [vmem:[#allocation3 + $0x40] sm:$0xf] %vm3466, %v3403
      %3484 = vst.msk [vmem:[#allocation3 + $0x44] sm:$0xf] %vm3466, %v3405
      %3485 = vst.msk [vmem:[#allocation3 + $0x48] sm:$0xf] %vm3466, %v3407
      %3486 = vst.msk [vmem:[#allocation3 + $0x4c] sm:$0xf] %vm3466, %v3409
      %3487 = vst.msk [vmem:[#allocation3 + $0x50] sm:$0xf] %vm3466, %v3411
      %3488 = vst.msk [vmem:[#allocation3 + $0x54] sm:$0xf] %vm3466, %v3413
      %3489 = vst.msk [vmem:[#allocation3 + $0x58] sm:$0xf] %vm3466, %v3415
      %3490 = vst.msk [vmem:[#allocation3 + $0x5c] sm:$0xf] %vm3466, %v3417
      %3491 = vst.msk [vmem:[#allocation3 + $0x60] sm:$0xf] %vm3466, %v3419
      %3492 = vst.msk [vmem:[#allocation3 + $0x64] sm:$0xf] %vm3466, %v3421
      %3493 = vst.msk [vmem:[#allocation3 + $0x68] sm:$0xf] %vm3466, %v3423
      %3494 = vst.msk [vmem:[#allocation3 + $0x6c] sm:$0xf] %vm3466, %v3425
      %3495 = vst.msk [vmem:[#allocation3 + $0x70] sm:$0xf] %vm3466, %v3427
      %3496 = vst.msk [vmem:[#allocation3 + $0x74] sm:$0xf] %vm3466, %v3429
      %3497 = vst.msk [vmem:[#allocation3 + $0x78] sm:$0xf] %vm3466, %v3431
      %3498 = vst.msk [vmem:[#allocation3 + $0x7c] sm:$0xf] %vm3466, %v3433
      %v3499 = vld [vmem:[#allocation2 + $0x10] sm:$0xf]
      %v3500 = vld [vmem:[#allocation2 + $0x14] sm:$0xf]
      %v3501 = vld [vmem:[#allocation2 + $0x18] sm:$0xf]
      %v3502 = vld [vmem:[#allocation2 + $0x1c] sm:$0xf]
      %v3503 = vld [vmem:[#allocation2 + $0x20] sm:$0xf]
      %v3504 = vld [vmem:[#allocation2 + $0x24] sm:$0xf]
      %v3505 = vld [vmem:[#allocation2 + $0x28] sm:$0xf]
      %v3506 = vld [vmem:[#allocation2 + $0x2c] sm:$0xf]
      %v3507 = vld [vmem:[#allocation2 + $0x30] sm:$0xf]
      %v3508 = vld [vmem:[#allocation2 + $0x34] sm:$0xf]
      %v3509 = vld [vmem:[#allocation2 + $0x38] sm:$0xf]
      %v3510 = vld [vmem:[#allocation2 + $0x3c] sm:$0xf]
      %v3511 = vld [vmem:[#allocation2 + $0x40] sm:$0xf]
      %v3512 = vld [vmem:[#allocation2 + $0x44] sm:$0xf]
      %v3513 = vld [vmem:[#allocation2 + $0x48] sm:$0xf]
      %v3514 = vld [vmem:[#allocation2 + $0x4c] sm:$0xf]
      %v3515 = vld [vmem:[#allocation2 + $0x50] sm:$0xf]
      %v3516 = vld [vmem:[#allocation2 + $0x54] sm:$0xf]
      %v3517 = vld [vmem:[#allocation2 + $0x58] sm:$0xf]
      %v3518 = vld [vmem:[#allocation2 + $0x5c] sm:$0xf]
      %v3519 = vld [vmem:[#allocation2 + $0x60] sm:$0xf]
      %v3520 = vld [vmem:[#allocation2 + $0x64] sm:$0xf]
      %v3521 = vld [vmem:[#allocation2 + $0x68] sm:$0xf]
      %v3522 = vld [vmem:[#allocation2 + $0x6c] sm:$0xf]
      %v3523 = vld [vmem:[#allocation2 + $0x70] sm:$0xf]
      %v3524 = vld [vmem:[#allocation2 + $0x74] sm:$0xf]
      %v3525 = vld [vmem:[#allocation2 + $0x78] sm:$0xf]
      %v3526 = vld [vmem:[#allocation2 + $0x7c] sm:$0xf]
      %v3527 = vld [vmem:[#allocation2 + $0x80] sm:$0xf]
      %v3528 = vld [vmem:[#allocation2 + $0x84] sm:$0xf]
      %v3529 = vld [vmem:[#allocation2 + $0x88] sm:$0xf]
      %v3530 = vld [vmem:[#allocation2 + $0x8c] sm:$0xf]
      %3563 = vrot.lane.b32.xlu0 %v3499, 16
      %v3564 = vpop.permute.xlu0 %3563
      %3565 = vrot.lane.b32.xlu0 %v3500, 16
      %v3566 = vpop.permute.xlu0 %3565
      %3567 = vrot.lane.b32.xlu0 %v3501, 16
      %v3568 = vpop.permute.xlu0 %3567
      %3569 = vrot.lane.b32.xlu0 %v3502, 16
      %v3570 = vpop.permute.xlu0 %3569
      %3571 = vrot.lane.b32.xlu0 %v3503, 16
      %v3572 = vpop.permute.xlu0 %3571
      %3573 = vrot.lane.b32.xlu0 %v3504, 16
      %v3574 = vpop.permute.xlu0 %3573
      %3575 = vrot.lane.b32.xlu0 %v3505, 16
      %v3576 = vpop.permute.xlu0 %3575
      %3577 = vrot.lane.b32.xlu0 %v3506, 16
      %v3578 = vpop.permute.xlu0 %3577
      %3579 = vrot.lane.b32.xlu0 %v3507, 16
      %v3580 = vpop.permute.xlu0 %3579
      %3581 = vrot.lane.b32.xlu0 %v3508, 16
      %v3582 = vpop.permute.xlu0 %3581
      %3583 = vrot.lane.b32.xlu0 %v3509, 16
      %v3584 = vpop.permute.xlu0 %3583
      %3585 = vrot.lane.b32.xlu0 %v3510, 16
      %v3586 = vpop.permute.xlu0 %3585
      %3587 = vrot.lane.b32.xlu0 %v3511, 16
      %v3588 = vpop.permute.xlu0 %3587
      %3589 = vrot.lane.b32.xlu0 %v3512, 16
      %v3590 = vpop.permute.xlu0 %3589
      %3591 = vrot.lane.b32.xlu0 %v3513, 16
      %v3592 = vpop.permute.xlu0 %3591
      %3593 = vrot.lane.b32.xlu0 %v3514, 16
      %v3594 = vpop.permute.xlu0 %3593
      %3595 = vrot.lane.b32.xlu0 %v3515, 16
      %v3596 = vpop.permute.xlu0 %3595
      %3597 = vrot.lane.b32.xlu0 %v3516, 16
      %v3598 = vpop.permute.xlu0 %3597
      %3599 = vrot.lane.b32.xlu0 %v3517, 16
      %v3600 = vpop.permute.xlu0 %3599
      %3601 = vrot.lane.b32.xlu0 %v3518, 16
      %v3602 = vpop.permute.xlu0 %3601
      %3603 = vrot.lane.b32.xlu0 %v3519, 16
      %v3604 = vpop.permute.xlu0 %3603
      %3605 = vrot.lane.b32.xlu0 %v3520, 16
      %v3606 = vpop.permute.xlu0 %3605
      %3607 = vrot.lane.b32.xlu0 %v3521, 16
      %v3608 = vpop.permute.xlu0 %3607
      %3609 = vrot.lane.b32.xlu0 %v3522, 16
      %v3610 = vpop.permute.xlu0 %3609
      %3611 = vrot.lane.b32.xlu0 %v3523, 16
      %v3612 = vpop.permute.xlu0 %3611
      %3613 = vrot.lane.b32.xlu0 %v3524, 16
      %v3614 = vpop.permute.xlu0 %3613
      %3615 = vrot.lane.b32.xlu0 %v3525, 16
      %v3616 = vpop.permute.xlu0 %3615
      %3617 = vrot.lane.b32.xlu0 %v3526, 16
      %v3618 = vpop.permute.xlu0 %3617
      %3619 = vrot.lane.b32.xlu0 %v3527, 16
      %v3620 = vpop.permute.xlu0 %3619
      %3621 = vrot.lane.b32.xlu0 %v3528, 16
      %v3622 = vpop.permute.xlu0 %3621
      %3623 = vrot.lane.b32.xlu0 %v3529, 16
      %v3624 = vpop.permute.xlu0 %3623
      %3625 = vrot.lane.b32.xlu0 %v3530, 16
      %v3626 = vpop.permute.xlu0 %3625
      %vm3659 = vcmask 158848
      %3660 = vst.msk [vmem:[#allocation3] sm:$0xf] %vm3659, %v3564
      %3661 = vst.msk [vmem:[#allocation3 + $0x4] sm:$0xf] %vm3659, %v3566
      %3662 = vst.msk [vmem:[#allocation3 + $0x8] sm:$0xf] %vm3659, %v3568
      %3663 = vst.msk [vmem:[#allocation3 + $0xc] sm:$0xf] %vm3659, %v3570
      %3664 = vst.msk [vmem:[#allocation3 + $0x10] sm:$0xf] %vm3659, %v3572
      %3665 = vst.msk [vmem:[#allocation3 + $0x14] sm:$0xf] %vm3659, %v3574
      %3666 = vst.msk [vmem:[#allocation3 + $0x18] sm:$0xf] %vm3659, %v3576
      %3667 = vst.msk [vmem:[#allocation3 + $0x1c] sm:$0xf] %vm3659, %v3578
      %3668 = vst.msk [vmem:[#allocation3 + $0x20] sm:$0xf] %vm3659, %v3580
      %3669 = vst.msk [vmem:[#allocation3 + $0x24] sm:$0xf] %vm3659, %v3582
      %3670 = vst.msk [vmem:[#allocation3 + $0x28] sm:$0xf] %vm3659, %v3584
      %3671 = vst.msk [vmem:[#allocation3 + $0x2c] sm:$0xf] %vm3659, %v3586
      %3672 = vst.msk [vmem:[#allocation3 + $0x30] sm:$0xf] %vm3659, %v3588
      %3673 = vst.msk [vmem:[#allocation3 + $0x34] sm:$0xf] %vm3659, %v3590
      %3674 = vst.msk [vmem:[#allocation3 + $0x38] sm:$0xf] %vm3659, %v3592
      %3675 = vst.msk [vmem:[#allocation3 + $0x3c] sm:$0xf] %vm3659, %v3594
      %3676 = vst.msk [vmem:[#allocation3 + $0x40] sm:$0xf] %vm3659, %v3596
      %3677 = vst.msk [vmem:[#allocation3 + $0x44] sm:$0xf] %vm3659, %v3598
      %3678 = vst.msk [vmem:[#allocation3 + $0x48] sm:$0xf] %vm3659, %v3600
      %3679 = vst.msk [vmem:[#allocation3 + $0x4c] sm:$0xf] %vm3659, %v3602
      %3680 = vst.msk [vmem:[#allocation3 + $0x50] sm:$0xf] %vm3659, %v3604
      %3681 = vst.msk [vmem:[#allocation3 + $0x54] sm:$0xf] %vm3659, %v3606
      %3682 = vst.msk [vmem:[#allocation3 + $0x58] sm:$0xf] %vm3659, %v3608
      %3683 = vst.msk [vmem:[#allocation3 + $0x5c] sm:$0xf] %vm3659, %v3610
      %3684 = vst.msk [vmem:[#allocation3 + $0x60] sm:$0xf] %vm3659, %v3612
      %3685 = vst.msk [vmem:[#allocation3 + $0x64] sm:$0xf] %vm3659, %v3614
      %3686 = vst.msk [vmem:[#allocation3 + $0x68] sm:$0xf] %vm3659, %v3616
      %3687 = vst.msk [vmem:[#allocation3 + $0x6c] sm:$0xf] %vm3659, %v3618
      %3688 = vst.msk [vmem:[#allocation3 + $0x70] sm:$0xf] %vm3659, %v3620
      %3689 = vst.msk [vmem:[#allocation3 + $0x74] sm:$0xf] %vm3659, %v3622
      %3690 = vst.msk [vmem:[#allocation3 + $0x78] sm:$0xf] %vm3659, %v3624
      %3691 = vst.msk [vmem:[#allocation3 + $0x7c] sm:$0xf] %vm3659, %v3626
      %v3692 = vld [vmem:[#allocation2 + $0x10] sm:$0xf]
      %v3693 = vld [vmem:[#allocation2 + $0x14] sm:$0xf]
      %v3694 = vld [vmem:[#allocation2 + $0x18] sm:$0xf]
      %v3695 = vld [vmem:[#allocation2 + $0x1c] sm:$0xf]
      %v3696 = vld [vmem:[#allocation2 + $0x20] sm:$0xf]
      %v3697 = vld [vmem:[#allocation2 + $0x24] sm:$0xf]
      %v3698 = vld [vmem:[#allocation2 + $0x28] sm:$0xf]
      %v3699 = vld [vmem:[#allocation2 + $0x2c] sm:$0xf]
      %v3700 = vld [vmem:[#allocation2 + $0x30] sm:$0xf]
      %v3701 = vld [vmem:[#allocation2 + $0x34] sm:$0xf]
      %v3702 = vld [vmem:[#allocation2 + $0x38] sm:$0xf]
      %v3703 = vld [vmem:[#allocation2 + $0x3c] sm:$0xf]
      %v3704 = vld [vmem:[#allocation2 + $0x40] sm:$0xf]
      %v3705 = vld [vmem:[#allocation2 + $0x44] sm:$0xf]
      %v3706 = vld [vmem:[#allocation2 + $0x48] sm:$0xf]
      %v3707 = vld [vmem:[#allocation2 + $0x4c] sm:$0xf]
      %v3708 = vld [vmem:[#allocation2 + $0x50] sm:$0xf]
      %v3709 = vld [vmem:[#allocation2 + $0x54] sm:$0xf]
      %v3710 = vld [vmem:[#allocation2 + $0x58] sm:$0xf]
      %v3711 = vld [vmem:[#allocation2 + $0x5c] sm:$0xf]
      %v3712 = vld [vmem:[#allocation2 + $0x60] sm:$0xf]
      %v3713 = vld [vmem:[#allocation2 + $0x64] sm:$0xf]
      %v3714 = vld [vmem:[#allocation2 + $0x68] sm:$0xf]
      %v3715 = vld [vmem:[#allocation2 + $0x6c] sm:$0xf]
      %v3716 = vld [vmem:[#allocation2 + $0x70] sm:$0xf]
      %v3717 = vld [vmem:[#allocation2 + $0x74] sm:$0xf]
      %v3718 = vld [vmem:[#allocation2 + $0x78] sm:$0xf]
      %v3719 = vld [vmem:[#allocation2 + $0x7c] sm:$0xf]
      %v3720 = vld [vmem:[#allocation2 + $0x80] sm:$0xf]
      %v3721 = vld [vmem:[#allocation2 + $0x84] sm:$0xf]
      %v3722 = vld [vmem:[#allocation2 + $0x88] sm:$0xf]
      %v3723 = vld [vmem:[#allocation2 + $0x8c] sm:$0xf]
      %v3724 = vld [vmem:[#allocation2 + $0x90] sm:$0x1]
      %v3725 = vsel %vm2493, %v3692, 0
      %v3726 = vsel %vm2494, %v3693, 0
      %v3727 = vsel %vm2495, %v3694, 0
      %v3728 = vsel %vm2496, %v3695, 0
      %v3729 = vsel %vm2497, %v3696, 0
      %v3730 = vsel %vm2498, %v3697, 0
      %v3731 = vsel %vm2499, %v3698, 0
      %v3732 = vsel %vm2500, %v3699, 0
      %v3733 = vsel %vm2501, %v3700, 0
      %v3734 = vsel %vm2502, %v3701, 0
      %v3735 = vsel %vm2503, %v3702, 0
      %v3736 = vsel %vm2504, %v3703, 0
      %v3737 = vsel %vm2505, %v3704, 0
      %v3738 = vsel %vm2506, %v3705, 0
      %v3739 = vsel %vm2507, %v3706, 0
      %v3740 = vsel %vm2508, %v3707, 0
      %v3741 = vsel %vm2509, %v3708, 0
      %v3742 = vsel %vm2510, %v3709, 0
      %v3743 = vsel %vm2511, %v3710, 0
      %v3744 = vsel %vm2512, %v3711, 0
      %v3745 = vsel %vm2513, %v3712, 0
      %v3746 = vsel %vm2514, %v3713, 0
      %v3747 = vsel %vm2515, %v3714, 0
      %v3748 = vsel %vm2516, %v3715, 0
      %v3749 = vsel %vm2517, %v3716, 0
      %v3750 = vsel %vm2518, %v3717, 0
      %v3751 = vsel %vm2519, %v3718, 0
      %v3752 = vsel %vm2520, %v3719, 0
      %v3753 = vsel %vm2521, %v3720, 0
      %v3754 = vsel %vm2522, %v3721, 0
      %v3755 = vsel %vm2523, %v3722, 0
      %v3756 = vsel %vm2524, %v3723, 0
      %v3757 = vsel %vm2525, %v3724, 0
      %v3759 = vshrl.u32 %v3725, 16
      %v3761 = vrot.slane %v3759, 4
      %v3762 = vshll.u32 %v3725, 16
      %v3764 = vrot.slane %v3762, 5
      %v3765 = vor.u32 %v3761, %v3764
      %v3766 = vrot.slane %v3765, 4
      %v3768 = vshll.u32 %v3726, 16
      %v3770 = vrot.slane %v3768, 5
      %v3771 = vsel %vm1107, %v3766, %v3770
      %v3772 = vshrl.u32 %v3726, 16
      %v3774 = vrot.slane %v3772, 4
      %v3775 = vor.u32 %v3774, %v3770
      %v3776 = vrot.slane %v3775, 4
      %v3778 = vshll.u32 %v3727, 16
      %v3780 = vrot.slane %v3778, 5
      %v3781 = vsel %vm1107, %v3776, %v3780
      %v3782 = vshrl.u32 %v3727, 16
      %v3784 = vrot.slane %v3782, 4
      %v3785 = vor.u32 %v3784, %v3780
      %v3786 = vrot.slane %v3785, 4
      %v3788 = vshll.u32 %v3728, 16
      %v3790 = vrot.slane %v3788, 5
      %v3791 = vsel %vm1107, %v3786, %v3790
      %v3792 = vshrl.u32 %v3728, 16
      %v3794 = vrot.slane %v3792, 4
      %v3795 = vor.u32 %v3794, %v3790
      %v3796 = vrot.slane %v3795, 4
      %v3798 = vshll.u32 %v3729, 16
      %v3800 = vrot.slane %v3798, 5
      %v3801 = vsel %vm1107, %v3796, %v3800
      %v3802 = vshrl.u32 %v3729, 16
      %v3804 = vrot.slane %v3802, 4
      %v3805 = vor.u32 %v3804, %v3800
      %v3806 = vrot.slane %v3805, 4
      %v3808 = vshll.u32 %v3730, 16
      %v3810 = vrot.slane %v3808, 5
      %v3811 = vsel %vm1107, %v3806, %v3810
      %v3812 = vshrl.u32 %v3730, 16
      %v3814 = vrot.slane %v3812, 4
      %v3815 = vor.u32 %v3814, %v3810
      %v3816 = vrot.slane %v3815, 4
      %v3818 = vshll.u32 %v3731, 16
      %v3820 = vrot.slane %v3818, 5
      %v3821 = vsel %vm1107, %v3816, %v3820
      %v3822 = vshrl.u32 %v3731, 16
      %v3824 = vrot.slane %v3822, 4
      %v3825 = vor.u32 %v3824, %v3820
      %v3826 = vrot.slane %v3825, 4
      %v3828 = vshll.u32 %v3732, 16
      %v3830 = vrot.slane %v3828, 5
      %v3831 = vsel %vm1107, %v3826, %v3830
      %v3832 = vshrl.u32 %v3732, 16
      %v3834 = vrot.slane %v3832, 4
      %v3835 = vor.u32 %v3834, %v3830
      %v3836 = vrot.slane %v3835, 4
      %v3838 = vshll.u32 %v3733, 16
      %v3840 = vrot.slane %v3838, 5
      %v3841 = vsel %vm1107, %v3836, %v3840
      %v3842 = vshrl.u32 %v3733, 16
      %v3844 = vrot.slane %v3842, 4
      %v3845 = vor.u32 %v3844, %v3840
      %v3846 = vrot.slane %v3845, 4
      %v3848 = vshll.u32 %v3734, 16
      %v3850 = vrot.slane %v3848, 5
      %v3851 = vsel %vm1107, %v3846, %v3850
      %v3852 = vshrl.u32 %v3734, 16
      %v3854 = vrot.slane %v3852, 4
      %v3855 = vor.u32 %v3854, %v3850
      %v3856 = vrot.slane %v3855, 4
      %v3858 = vshll.u32 %v3735, 16
      %v3860 = vrot.slane %v3858, 5
      %v3861 = vsel %vm1107, %v3856, %v3860
      %v3862 = vshrl.u32 %v3735, 16
      %v3864 = vrot.slane %v3862, 4
      %v3865 = vor.u32 %v3864, %v3860
      %v3866 = vrot.slane %v3865, 4
      %v3868 = vshll.u32 %v3736, 16
      %v3870 = vrot.slane %v3868, 5
      %v3871 = vsel %vm1107, %v3866, %v3870
      %v3872 = vshrl.u32 %v3736, 16
      %v3874 = vrot.slane %v3872, 4
      %v3875 = vor.u32 %v3874, %v3870
      %v3876 = vrot.slane %v3875, 4
      %v3878 = vshll.u32 %v3737, 16
      %v3880 = vrot.slane %v3878, 5
      %v3881 = vsel %vm1107, %v3876, %v3880
      %v3882 = vshrl.u32 %v3737, 16
      %v3884 = vrot.slane %v3882, 4
      %v3885 = vor.u32 %v3884, %v3880
      %v3886 = vrot.slane %v3885, 4
      %v3888 = vshll.u32 %v3738, 16
      %v3890 = vrot.slane %v3888, 5
      %v3891 = vsel %vm1107, %v3886, %v3890
      %v3892 = vshrl.u32 %v3738, 16
      %v3894 = vrot.slane %v3892, 4
      %v3895 = vor.u32 %v3894, %v3890
      %v3896 = vrot.slane %v3895, 4
      %v3898 = vshll.u32 %v3739, 16
      %v3900 = vrot.slane %v3898, 5
      %v3901 = vsel %vm1107, %v3896, %v3900
      %v3902 = vshrl.u32 %v3739, 16
      %v3904 = vrot.slane %v3902, 4
      %v3905 = vor.u32 %v3904, %v3900
      %v3906 = vrot.slane %v3905, 4
      %v3908 = vshll.u32 %v3740, 16
      %v3910 = vrot.slane %v3908, 5
      %v3911 = vsel %vm1107, %v3906, %v3910
      %v3912 = vshrl.u32 %v3740, 16
      %v3914 = vrot.slane %v3912, 4
      %v3915 = vor.u32 %v3914, %v3910
      %v3916 = vrot.slane %v3915, 4
      %v3918 = vshll.u32 %v3741, 16
      %v3920 = vrot.slane %v3918, 5
      %v3921 = vsel %vm1107, %v3916, %v3920
      %v3922 = vshrl.u32 %v3741, 16
      %v3924 = vrot.slane %v3922, 4
      %v3925 = vor.u32 %v3924, %v3920
      %v3926 = vrot.slane %v3925, 4
      %v3928 = vshll.u32 %v3742, 16
      %v3930 = vrot.slane %v3928, 5
      %v3931 = vsel %vm1107, %v3926, %v3930
      %v3932 = vshrl.u32 %v3742, 16
      %v3934 = vrot.slane %v3932, 4
      %v3935 = vor.u32 %v3934, %v3930
      %v3936 = vrot.slane %v3935, 4
      %v3938 = vshll.u32 %v3743, 16
      %v3940 = vrot.slane %v3938, 5
      %v3941 = vsel %vm1107, %v3936, %v3940
      %v3942 = vshrl.u32 %v3743, 16
      %v3944 = vrot.slane %v3942, 4
      %v3945 = vor.u32 %v3944, %v3940
      %v3946 = vrot.slane %v3945, 4
      %v3948 = vshll.u32 %v3744, 16
      %v3950 = vrot.slane %v3948, 5
      %v3951 = vsel %vm1107, %v3946, %v3950
      %v3952 = vshrl.u32 %v3744, 16
      %v3954 = vrot.slane %v3952, 4
      %v3955 = vor.u32 %v3954, %v3950
      %v3956 = vrot.slane %v3955, 4
      %v3958 = vshll.u32 %v3745, 16
      %v3960 = vrot.slane %v3958, 5
      %v3961 = vsel %vm1107, %v3956, %v3960
      %v3962 = vshrl.u32 %v3745, 16
      %v3964 = vrot.slane %v3962, 4
      %v3965 = vor.u32 %v3964, %v3960
      %v3966 = vrot.slane %v3965, 4
      %v3968 = vshll.u32 %v3746, 16
      %v3970 = vrot.slane %v3968, 5
      %v3971 = vsel %vm1107, %v3966, %v3970
      %v3972 = vshrl.u32 %v3746, 16
      %v3974 = vrot.slane %v3972, 4
      %v3975 = vor.u32 %v3974, %v3970
      %v3976 = vrot.slane %v3975, 4
      %v3978 = vshll.u32 %v3747, 16
      %v3980 = vrot.slane %v3978, 5
      %v3981 = vsel %vm1107, %v3976, %v3980
      %v3982 = vshrl.u32 %v3747, 16
      %v3984 = vrot.slane %v3982, 4
      %v3985 = vor.u32 %v3984, %v3980
      %v3986 = vrot.slane %v3985, 4
      %v3988 = vshll.u32 %v3748, 16
      %v3990 = vrot.slane %v3988, 5
      %v3991 = vsel %vm1107, %v3986, %v3990
      %v3992 = vshrl.u32 %v3748, 16
      %v3994 = vrot.slane %v3992, 4
      %v3995 = vor.u32 %v3994, %v3990
      %v3996 = vrot.slane %v3995, 4
      %v3998 = vshll.u32 %v3749, 16
      %v4000 = vrot.slane %v3998, 5
      %v4001 = vsel %vm1107, %v3996, %v4000
      %v4002 = vshrl.u32 %v3749, 16
      %v4004 = vrot.slane %v4002, 4
      %v4005 = vor.u32 %v4004, %v4000
      %v4006 = vrot.slane %v4005, 4
      %v4008 = vshll.u32 %v3750, 16
      %v4010 = vrot.slane %v4008, 5
      %v4011 = vsel %vm1107, %v4006, %v4010
      %v4012 = vshrl.u32 %v3750, 16
      %v4014 = vrot.slane %v4012, 4
      %v4015 = vor.u32 %v4014, %v4010
      %v4016 = vrot.slane %v4015, 4
      %v4018 = vshll.u32 %v3751, 16
      %v4020 = vrot.slane %v4018, 5
      %v4021 = vsel %vm1107, %v4016, %v4020
      %v4022 = vshrl.u32 %v3751, 16
      %v4024 = vrot.slane %v4022, 4
      %v4025 = vor.u32 %v4024, %v4020
      %v4026 = vrot.slane %v4025, 4
      %v4028 = vshll.u32 %v3752, 16
      %v4030 = vrot.slane %v4028, 5
      %v4031 = vsel %vm1107, %v4026, %v4030
      %v4032 = vshrl.u32 %v3752, 16
      %v4034 = vrot.slane %v4032, 4
      %v4035 = vor.u32 %v4034, %v4030
      %v4036 = vrot.slane %v4035, 4
      %v4038 = vshll.u32 %v3753, 16
      %v4040 = vrot.slane %v4038, 5
      %v4041 = vsel %vm1107, %v4036, %v4040
      %v4042 = vshrl.u32 %v3753, 16
      %v4044 = vrot.slane %v4042, 4
      %v4045 = vor.u32 %v4044, %v4040
      %v4046 = vrot.slane %v4045, 4
      %v4048 = vshll.u32 %v3754, 16
      %v4050 = vrot.slane %v4048, 5
      %v4051 = vsel %vm1107, %v4046, %v4050
      %v4052 = vshrl.u32 %v3754, 16
      %v4054 = vrot.slane %v4052, 4
      %v4055 = vor.u32 %v4054, %v4050
      %v4056 = vrot.slane %v4055, 4
      %v4058 = vshll.u32 %v3755, 16
      %v4060 = vrot.slane %v4058, 5
      %v4061 = vsel %vm1107, %v4056, %v4060
      %v4062 = vshrl.u32 %v3755, 16
      %v4064 = vrot.slane %v4062, 4
      %v4065 = vor.u32 %v4064, %v4060
      %v4066 = vrot.slane %v4065, 4
      %v4068 = vshll.u32 %v3756, 16
      %v4070 = vrot.slane %v4068, 5
      %v4071 = vsel %vm1107, %v4066, %v4070
      %v4072 = vshrl.u32 %v3756, 16
      %v4074 = vrot.slane %v4072, 4
      %v4075 = vor.u32 %v4074, %v4070
      %v4076 = vrot.slane %v4075, 4
      %v4078 = vshll.u32 %v3757, 16
      %v4080 = vrot.slane %v4078, 5
      %v4081 = vsel %vm1107, %v4076, %v4080
      %4082 = vrot.lane.b32.xlu0 %v3771, 20
      %v4083 = vpop.permute.xlu0 %4082
      %4084 = vrot.lane.b32.xlu0 %v3781, 20
      %v4085 = vpop.permute.xlu0 %4084
      %4086 = vrot.lane.b32.xlu0 %v3791, 20
      %v4087 = vpop.permute.xlu0 %4086
      %4088 = vrot.lane.b32.xlu0 %v3801, 20
      %v4089 = vpop.permute.xlu0 %4088
      %4090 = vrot.lane.b32.xlu0 %v3811, 20
      %v4091 = vpop.permute.xlu0 %4090
      %4092 = vrot.lane.b32.xlu0 %v3821, 20
      %v4093 = vpop.permute.xlu0 %4092
      %4094 = vrot.lane.b32.xlu0 %v3831, 20
      %v4095 = vpop.permute.xlu0 %4094
      %4096 = vrot.lane.b32.xlu0 %v3841, 20
      %v4097 = vpop.permute.xlu0 %4096
      %4098 = vrot.lane.b32.xlu0 %v3851, 20
      %v4099 = vpop.permute.xlu0 %4098
      %4100 = vrot.lane.b32.xlu0 %v3861, 20
      %v4101 = vpop.permute.xlu0 %4100
      %4102 = vrot.lane.b32.xlu0 %v3871, 20
      %v4103 = vpop.permute.xlu0 %4102
      %4104 = vrot.lane.b32.xlu0 %v3881, 20
      %v4105 = vpop.permute.xlu0 %4104
      %4106 = vrot.lane.b32.xlu0 %v3891, 20
      %v4107 = vpop.permute.xlu0 %4106
      %4108 = vrot.lane.b32.xlu0 %v3901, 20
      %v4109 = vpop.permute.xlu0 %4108
      %4110 = vrot.lane.b32.xlu0 %v3911, 20
      %v4111 = vpop.permute.xlu0 %4110
      %4112 = vrot.lane.b32.xlu0 %v3921, 20
      %v4113 = vpop.permute.xlu0 %4112
      %4114 = vrot.lane.b32.xlu0 %v3931, 20
      %v4115 = vpop.permute.xlu0 %4114
      %4116 = vrot.lane.b32.xlu0 %v3941, 20
      %v4117 = vpop.permute.xlu0 %4116
      %4118 = vrot.lane.b32.xlu0 %v3951, 20
      %v4119 = vpop.permute.xlu0 %4118
      %4120 = vrot.lane.b32.xlu0 %v3961, 20
      %v4121 = vpop.permute.xlu0 %4120
      %4122 = vrot.lane.b32.xlu0 %v3971, 20
      %v4123 = vpop.permute.xlu0 %4122
      %4124 = vrot.lane.b32.xlu0 %v3981, 20
      %v4125 = vpop.permute.xlu0 %4124
      %4126 = vrot.lane.b32.xlu0 %v3991, 20
      %v4127 = vpop.permute.xlu0 %4126
      %4128 = vrot.lane.b32.xlu0 %v4001, 20
      %v4129 = vpop.permute.xlu0 %4128
      %4130 = vrot.lane.b32.xlu0 %v4011, 20
      %v4131 = vpop.permute.xlu0 %4130
      %4132 = vrot.lane.b32.xlu0 %v4021, 20
      %v4133 = vpop.permute.xlu0 %4132
      %4134 = vrot.lane.b32.xlu0 %v4031, 20
      %v4135 = vpop.permute.xlu0 %4134
      %4136 = vrot.lane.b32.xlu0 %v4041, 20
      %v4137 = vpop.permute.xlu0 %4136
      %4138 = vrot.lane.b32.xlu0 %v4051, 20
      %v4139 = vpop.permute.xlu0 %4138
      %4140 = vrot.lane.b32.xlu0 %v4061, 20
      %v4141 = vpop.permute.xlu0 %4140
      %4142 = vrot.lane.b32.xlu0 %v4071, 20
      %v4143 = vpop.permute.xlu0 %4142
      %4144 = vrot.lane.b32.xlu0 %v4081, 20
      %v4145 = vpop.permute.xlu0 %4144
      %vm4178 = vcmask 191648
      %4179 = vst.msk [vmem:[#allocation3] sm:$0xf] %vm4178, %v4083
      %4180 = vst.msk [vmem:[#allocation3 + $0x4] sm:$0xf] %vm4178, %v4085
      %4181 = vst.msk [vmem:[#allocation3 + $0x8] sm:$0xf] %vm4178, %v4087
      %4182 = vst.msk [vmem:[#allocation3 + $0xc] sm:$0xf] %vm4178, %v4089
      %4183 = vst.msk [vmem:[#allocation3 + $0x10] sm:$0xf] %vm4178, %v4091
      %4184 = vst.msk [vmem:[#allocation3 + $0x14] sm:$0xf] %vm4178, %v4093
      %4185 = vst.msk [vmem:[#allocation3 + $0x18] sm:$0xf] %vm4178, %v4095
      %4186 = vst.msk [vmem:[#allocation3 + $0x1c] sm:$0xf] %vm4178, %v4097
      %4187 = vst.msk [vmem:[#allocation3 + $0x20] sm:$0xf] %vm4178, %v4099
      %4188 = vst.msk [vmem:[#allocation3 + $0x24] sm:$0xf] %vm4178, %v4101
      %4189 = vst.msk [vmem:[#allocation3 + $0x28] sm:$0xf] %vm4178, %v4103
      %4190 = vst.msk [vmem:[#allocation3 + $0x2c] sm:$0xf] %vm4178, %v4105
      %4191 = vst.msk [vmem:[#allocation3 + $0x30] sm:$0xf] %vm4178, %v4107
      %4192 = vst.msk [vmem:[#allocation3 + $0x34] sm:$0xf] %vm4178, %v4109
      %4193 = vst.msk [vmem:[#allocation3 + $0x38] sm:$0xf] %vm4178, %v4111
      %4194 = vst.msk [vmem:[#allocation3 + $0x3c] sm:$0xf] %vm4178, %v4113
      %4195 = vst.msk [vmem:[#allocation3 + $0x40] sm:$0xf] %vm4178, %v4115
      %4196 = vst.msk [vmem:[#allocation3 + $0x44] sm:$0xf] %vm4178, %v4117
      %4197 = vst.msk [vmem:[#allocation3 + $0x48] sm:$0xf] %vm4178, %v4119
      %4198 = vst.msk [vmem:[#allocation3 + $0x4c] sm:$0xf] %vm4178, %v4121
      %4199 = vst.msk [vmem:[#allocation3 + $0x50] sm:$0xf] %vm4178, %v4123
      %4200 = vst.msk [vmem:[#allocation3 + $0x54] sm:$0xf] %vm4178, %v4125
      %4201 = vst.msk [vmem:[#allocation3 + $0x58] sm:$0xf] %vm4178, %v4127
      %4202 = vst.msk [vmem:[#allocation3 + $0x5c] sm:$0xf] %vm4178, %v4129
      %4203 = vst.msk [vmem:[#allocation3 + $0x60] sm:$0xf] %vm4178, %v4131
      %4204 = vst.msk [vmem:[#allocation3 + $0x64] sm:$0xf] %vm4178, %v4133
      %4205 = vst.msk [vmem:[#allocation3 + $0x68] sm:$0xf] %vm4178, %v4135
      %4206 = vst.msk [vmem:[#allocation3 + $0x6c] sm:$0xf] %vm4178, %v4137
      %4207 = vst.msk [vmem:[#allocation3 + $0x70] sm:$0xf] %vm4178, %v4139
      %4208 = vst.msk [vmem:[#allocation3 + $0x74] sm:$0xf] %vm4178, %v4141
      %4209 = vst.msk [vmem:[#allocation3 + $0x78] sm:$0xf] %vm4178, %v4143
      %4210 = vst.msk [vmem:[#allocation3 + $0x7c] sm:$0xf] %vm4178, %v4145
      %v4211 = vld [vmem:[#allocation2 + $0x14] sm:$0x8]
      %v4212 = vld [vmem:[#allocation2 + $0x18] sm:$0xf]
      %v4213 = vld [vmem:[#allocation2 + $0x1c] sm:$0xf]
      %v4214 = vld [vmem:[#allocation2 + $0x20] sm:$0xf]
      %v4215 = vld [vmem:[#allocation2 + $0x24] sm:$0xf]
      %v4216 = vld [vmem:[#allocation2 + $0x28] sm:$0xf]
      %v4217 = vld [vmem:[#allocation2 + $0x2c] sm:$0xf]
      %v4218 = vld [vmem:[#allocation2 + $0x30] sm:$0xf]
      %v4219 = vld [vmem:[#allocation2 + $0x34] sm:$0xf]
      %v4220 = vld [vmem:[#allocation2 + $0x38] sm:$0xf]
      %v4221 = vld [vmem:[#allocation2 + $0x3c] sm:$0xf]
      %v4222 = vld [vmem:[#allocation2 + $0x40] sm:$0xf]
      %v4223 = vld [vmem:[#allocation2 + $0x44] sm:$0xf]
      %v4224 = vld [vmem:[#allocation2 + $0x48] sm:$0xf]
      %v4225 = vld [vmem:[#allocation2 + $0x4c] sm:$0xf]
      %v4226 = vld [vmem:[#allocation2 + $0x50] sm:$0xf]
      %v4227 = vld [vmem:[#allocation2 + $0x54] sm:$0xf]
      %v4228 = vld [vmem:[#allocation2 + $0x58] sm:$0xf]
      %v4229 = vld [vmem:[#allocation2 + $0x5c] sm:$0xf]
      %v4230 = vld [vmem:[#allocation2 + $0x60] sm:$0xf]
      %v4231 = vld [vmem:[#allocation2 + $0x64] sm:$0xf]
      %v4232 = vld [vmem:[#allocation2 + $0x68] sm:$0xf]
      %v4233 = vld [vmem:[#allocation2 + $0x6c] sm:$0xf]
      %v4234 = vld [vmem:[#allocation2 + $0x70] sm:$0xf]
      %v4235 = vld [vmem:[#allocation2 + $0x74] sm:$0xf]
      %v4236 = vld [vmem:[#allocation2 + $0x78] sm:$0xf]
      %v4237 = vld [vmem:[#allocation2 + $0x7c] sm:$0xf]
      %v4238 = vld [vmem:[#allocation2 + $0x80] sm:$0xf]
      %v4239 = vld [vmem:[#allocation2 + $0x84] sm:$0xf]
      %v4240 = vld [vmem:[#allocation2 + $0x88] sm:$0xf]
      %v4241 = vld [vmem:[#allocation2 + $0x8c] sm:$0xf]
      %v4242 = vld [vmem:[#allocation2 + $0x90] sm:$0xf]
      %v4243 = vld [vmem:[#allocation2 + $0x94] sm:$0xf]
      %v4244 = vsel %vm1427, %v4211, 0
      %v4245 = vsel %vm1428, %v4212, 0
      %v4246 = vsel %vm1429, %v4213, 0
      %v4247 = vsel %vm1430, %v4214, 0
      %v4248 = vsel %vm1431, %v4215, 0
      %v4249 = vsel %vm1432, %v4216, 0
      %v4250 = vsel %vm1433, %v4217, 0
      %v4251 = vsel %vm1434, %v4218, 0
      %v4252 = vsel %vm1435, %v4219, 0
      %v4253 = vsel %vm1436, %v4220, 0
      %v4254 = vsel %vm1437, %v4221, 0
      %v4255 = vsel %vm1438, %v4222, 0
      %v4256 = vsel %vm1439, %v4223, 0
      %v4257 = vsel %vm1440, %v4224, 0
      %v4258 = vsel %vm1441, %v4225, 0
      %v4259 = vsel %vm1442, %v4226, 0
      %v4260 = vsel %vm1443, %v4227, 0
      %v4261 = vsel %vm1444, %v4228, 0
      %v4262 = vsel %vm1445, %v4229, 0
      %v4263 = vsel %vm1446, %v4230, 0
      %v4264 = vsel %vm1447, %v4231, 0
      %v4265 = vsel %vm1448, %v4232, 0
      %v4266 = vsel %vm1449, %v4233, 0
      %v4267 = vsel %vm1450, %v4234, 0
      %v4268 = vsel %vm1451, %v4235, 0
      %v4269 = vsel %vm1452, %v4236, 0
      %v4270 = vsel %vm1453, %v4237, 0
      %v4271 = vsel %vm1454, %v4238, 0
      %v4272 = vsel %vm1455, %v4239, 0
      %v4273 = vsel %vm1456, %v4240, 0
      %v4274 = vsel %vm1457, %v4241, 0
      %v4275 = vsel %vm1458, %v4242, 0
      %v4276 = vsel %vm1459, %v4243, 0
      %v4278 = vshrl.u32 %v4244, 16
      %v4280 = vrot.slane %v4278, 7
      %v4281 = vrot.slane %v4280, 4
      %v4283 = vshrl.u32 %v4245, 16
      %v4285 = vrot.slane %v4283, 7
      %v4286 = vshll.u32 %v4245, 16
      %v4288 = vor.u32 %v4285, %v4286
      %v4289 = vsel %vm1495, %v4281, %v4288
      %v4290 = vrot.slane %v4285, 4
      %v4292 = vshrl.u32 %v4246, 16
      %v4294 = vrot.slane %v4292, 7
      %v4295 = vshll.u32 %v4246, 16
      %v4297 = vor.u32 %v4294, %v4295
      %v4298 = vsel %vm1495, %v4290, %v4297
      %v4299 = vrot.slane %v4294, 4
      %v4301 = vshrl.u32 %v4247, 16
      %v4303 = vrot.slane %v4301, 7
      %v4304 = vshll.u32 %v4247, 16
      %v4306 = vor.u32 %v4303, %v4304
      %v4307 = vsel %vm1495, %v4299, %v4306
      %v4308 = vrot.slane %v4303, 4
      %v4310 = vshrl.u32 %v4248, 16
      %v4312 = vrot.slane %v4310, 7
      %v4313 = vshll.u32 %v4248, 16
      %v4315 = vor.u32 %v4312, %v4313
      %v4316 = vsel %vm1495, %v4308, %v4315
      %v4317 = vrot.slane %v4312, 4
      %v4319 = vshrl.u32 %v4249, 16
      %v4321 = vrot.slane %v4319, 7
      %v4322 = vshll.u32 %v4249, 16
      %v4324 = vor.u32 %v4321, %v4322
      %v4325 = vsel %vm1495, %v4317, %v4324
      %v4326 = vrot.slane %v4321, 4
      %v4328 = vshrl.u32 %v4250, 16
      %v4330 = vrot.slane %v4328, 7
      %v4331 = vshll.u32 %v4250, 16
      %v4333 = vor.u32 %v4330, %v4331
      %v4334 = vsel %vm1495, %v4326, %v4333
      %v4335 = vrot.slane %v4330, 4
      %v4337 = vshrl.u32 %v4251, 16
      %v4339 = vrot.slane %v4337, 7
      %v4340 = vshll.u32 %v4251, 16
      %v4342 = vor.u32 %v4339, %v4340
      %v4343 = vsel %vm1495, %v4335, %v4342
      %v4344 = vrot.slane %v4339, 4
      %v4346 = vshrl.u32 %v4252, 16
      %v4348 = vrot.slane %v4346, 7
      %v4349 = vshll.u32 %v4252, 16
      %v4351 = vor.u32 %v4348, %v4349
      %v4352 = vsel %vm1495, %v4344, %v4351
      %v4353 = vrot.slane %v4348, 4
      %v4355 = vshrl.u32 %v4253, 16
      %v4357 = vrot.slane %v4355, 7
      %v4358 = vshll.u32 %v4253, 16
      %v4360 = vor.u32 %v4357, %v4358
      %v4361 = vsel %vm1495, %v4353, %v4360
      %v4362 = vrot.slane %v4357, 4
      %v4364 = vshrl.u32 %v4254, 16
      %v4366 = vrot.slane %v4364, 7
      %v4367 = vshll.u32 %v4254, 16
      %v4369 = vor.u32 %v4366, %v4367
      %v4370 = vsel %vm1495, %v4362, %v4369
      %v4371 = vrot.slane %v4366, 4
      %v4373 = vshrl.u32 %v4255, 16
      %v4375 = vrot.slane %v4373, 7
      %v4376 = vshll.u32 %v4255, 16
      %v4378 = vor.u32 %v4375, %v4376
      %v4379 = vsel %vm1495, %v4371, %v4378
      %v4380 = vrot.slane %v4375, 4
      %v4382 = vshrl.u32 %v4256, 16
      %v4384 = vrot.slane %v4382, 7
      %v4385 = vshll.u32 %v4256, 16
      %v4387 = vor.u32 %v4384, %v4385
      %v4388 = vsel %vm1495, %v4380, %v4387
      %v4389 = vrot.slane %v4384, 4
      %v4391 = vshrl.u32 %v4257, 16
      %v4393 = vrot.slane %v4391, 7
      %v4394 = vshll.u32 %v4257, 16
      %v4396 = vor.u32 %v4393, %v4394
      %v4397 = vsel %vm1495, %v4389, %v4396
      %v4398 = vrot.slane %v4393, 4
      %v4400 = vshrl.u32 %v4258, 16
      %v4402 = vrot.slane %v4400, 7
      %v4403 = vshll.u32 %v4258, 16
      %v4405 = vor.u32 %v4402, %v4403
      %v4406 = vsel %vm1495, %v4398, %v4405
      %v4407 = vrot.slane %v4402, 4
      %v4409 = vshrl.u32 %v4259, 16
      %v4411 = vrot.slane %v4409, 7
      %v4412 = vshll.u32 %v4259, 16
      %v4414 = vor.u32 %v4411, %v4412
      %v4415 = vsel %vm1495, %v4407, %v4414
      %v4416 = vrot.slane %v4411, 4
      %v4418 = vshrl.u32 %v4260, 16
      %v4420 = vrot.slane %v4418, 7
      %v4421 = vshll.u32 %v4260, 16
      %v4423 = vor.u32 %v4420, %v4421
      %v4424 = vsel %vm1495, %v4416, %v4423
      %v4425 = vrot.slane %v4420, 4
      %v4427 = vshrl.u32 %v4261, 16
      %v4429 = vrot.slane %v4427, 7
      %v4430 = vshll.u32 %v4261, 16
      %v4432 = vor.u32 %v4429, %v4430
      %v4433 = vsel %vm1495, %v4425, %v4432
      %v4434 = vrot.slane %v4429, 4
      %v4436 = vshrl.u32 %v4262, 16
      %v4438 = vrot.slane %v4436, 7
      %v4439 = vshll.u32 %v4262, 16
      %v4441 = vor.u32 %v4438, %v4439
      %v4442 = vsel %vm1495, %v4434, %v4441
      %v4443 = vrot.slane %v4438, 4
      %v4445 = vshrl.u32 %v4263, 16
      %v4447 = vrot.slane %v4445, 7
      %v4448 = vshll.u32 %v4263, 16
      %v4450 = vor.u32 %v4447, %v4448
      %v4451 = vsel %vm1495, %v4443, %v4450
      %v4452 = vrot.slane %v4447, 4
      %v4454 = vshrl.u32 %v4264, 16
      %v4456 = vrot.slane %v4454, 7
      %v4457 = vshll.u32 %v4264, 16
      %v4459 = vor.u32 %v4456, %v4457
      %v4460 = vsel %vm1495, %v4452, %v4459
      %v4461 = vrot.slane %v4456, 4
      %v4463 = vshrl.u32 %v4265, 16
      %v4465 = vrot.slane %v4463, 7
      %v4466 = vshll.u32 %v4265, 16
      %v4468 = vor.u32 %v4465, %v4466
      %v4469 = vsel %vm1495, %v4461, %v4468
      %v4470 = vrot.slane %v4465, 4
      %v4472 = vshrl.u32 %v4266, 16
      %v4474 = vrot.slane %v4472, 7
      %v4475 = vshll.u32 %v4266, 16
      %v4477 = vor.u32 %v4474, %v4475
      %v4478 = vsel %vm1495, %v4470, %v4477
      %v4479 = vrot.slane %v4474, 4
      %v4481 = vshrl.u32 %v4267, 16
      %v4483 = vrot.slane %v4481, 7
      %v4484 = vshll.u32 %v4267, 16
      %v4486 = vor.u32 %v4483, %v4484
      %v4487 = vsel %vm1495, %v4479, %v4486
      %v4488 = vrot.slane %v4483, 4
      %v4490 = vshrl.u32 %v4268, 16
      %v4492 = vrot.slane %v4490, 7
      %v4493 = vshll.u32 %v4268, 16
      %v4495 = vor.u32 %v4492, %v4493
      %v4496 = vsel %vm1495, %v4488, %v4495
      %v4497 = vrot.slane %v4492, 4
      %v4499 = vshrl.u32 %v4269, 16
      %v4501 = vrot.slane %v4499, 7
      %v4502 = vshll.u32 %v4269, 16
      %v4504 = vor.u32 %v4501, %v4502
      %v4505 = vsel %vm1495, %v4497, %v4504
      %v4506 = vrot.slane %v4501, 4
      %v4508 = vshrl.u32 %v4270, 16
      %v4510 = vrot.slane %v4508, 7
      %v4511 = vshll.u32 %v4270, 16
      %v4513 = vor.u32 %v4510, %v4511
      %v4514 = vsel %vm1495, %v4506, %v4513
      %v4515 = vrot.slane %v4510, 4
      %v4517 = vshrl.u32 %v4271, 16
      %v4519 = vrot.slane %v4517, 7
      %v4520 = vshll.u32 %v4271, 16
      %v4522 = vor.u32 %v4519, %v4520
      %v4523 = vsel %vm1495, %v4515, %v4522
      %v4524 = vrot.slane %v4519, 4
      %v4526 = vshrl.u32 %v4272, 16
      %v4528 = vrot.slane %v4526, 7
      %v4529 = vshll.u32 %v4272, 16
      %v4531 = vor.u32 %v4528, %v4529
      %v4532 = vsel %vm1495, %v4524, %v4531
      %v4533 = vrot.slane %v4528, 4
      %v4535 = vshrl.u32 %v4273, 16
      %v4537 = vrot.slane %v4535, 7
      %v4538 = vshll.u32 %v4273, 16
      %v4540 = vor.u32 %v4537, %v4538
      %v4541 = vsel %vm1495, %v4533, %v4540
      %v4542 = vrot.slane %v4537, 4
      %v4544 = vshrl.u32 %v4274, 16
      %v4546 = vrot.slane %v4544, 7
      %v4547 = vshll.u32 %v4274, 16
      %v4549 = vor.u32 %v4546, %v4547
      %v4550 = vsel %vm1495, %v4542, %v4549
      %v4551 = vrot.slane %v4546, 4
      %v4553 = vshrl.u32 %v4275, 16
      %v4555 = vrot.slane %v4553, 7
      %v4556 = vshll.u32 %v4275, 16
      %v4558 = vor.u32 %v4555, %v4556
      %v4559 = vsel %vm1495, %v4551, %v4558
      %v4560 = vrot.slane %v4555, 4
      %v4562 = vshrl.u32 %v4276, 16
      %v4564 = vrot.slane %v4562, 7
      %v4565 = vshll.u32 %v4276, 16
      %v4567 = vor.u32 %v4564, %v4565
      %v4568 = vsel %vm1495, %v4560, %v4567
      %4569 = vrot.lane.b32.xlu0 %v4289, 24
      %v4570 = vpop.permute.xlu0 %4569
      %4571 = vrot.lane.b32.xlu0 %v4298, 24
      %v4572 = vpop.permute.xlu0 %4571
      %4573 = vrot.lane.b32.xlu0 %v4307, 24
      %v4574 = vpop.permute.xlu0 %4573
      %4575 = vrot.lane.b32.xlu0 %v4316, 24
      %v4576 = vpop.permute.xlu0 %4575
      %4577 = vrot.lane.b32.xlu0 %v4325, 24
      %v4578 = vpop.permute.xlu0 %4577
      %4579 = vrot.lane.b32.xlu0 %v4334, 24
      %v4580 = vpop.permute.xlu0 %4579
      %4581 = vrot.lane.b32.xlu0 %v4343, 24
      %v4582 = vpop.permute.xlu0 %4581
      %4583 = vrot.lane.b32.xlu0 %v4352, 24
      %v4584 = vpop.permute.xlu0 %4583
      %4585 = vrot.lane.b32.xlu0 %v4361, 24
      %v4586 = vpop.permute.xlu0 %4585
      %4587 = vrot.lane.b32.xlu0 %v4370, 24
      %v4588 = vpop.permute.xlu0 %4587
      %4589 = vrot.lane.b32.xlu0 %v4379, 24
      %v4590 = vpop.permute.xlu0 %4589
      %4591 = vrot.lane.b32.xlu0 %v4388, 24
      %v4592 = vpop.permute.xlu0 %4591
      %4593 = vrot.lane.b32.xlu0 %v4397, 24
      %v4594 = vpop.permute.xlu0 %4593
      %4595 = vrot.lane.b32.xlu0 %v4406, 24
      %v4596 = vpop.permute.xlu0 %4595
      %4597 = vrot.lane.b32.xlu0 %v4415, 24
      %v4598 = vpop.permute.xlu0 %4597
      %4599 = vrot.lane.b32.xlu0 %v4424, 24
      %v4600 = vpop.permute.xlu0 %4599
      %4601 = vrot.lane.b32.xlu0 %v4433, 24
      %v4602 = vpop.permute.xlu0 %4601
      %4603 = vrot.lane.b32.xlu0 %v4442, 24
      %v4604 = vpop.permute.xlu0 %4603
      %4605 = vrot.lane.b32.xlu0 %v4451, 24
      %v4606 = vpop.permute.xlu0 %4605
      %4607 = vrot.lane.b32.xlu0 %v4460, 24
      %v4608 = vpop.permute.xlu0 %4607
      %4609 = vrot.lane.b32.xlu0 %v4469, 24
      %v4610 = vpop.permute.xlu0 %4609
      %4611 = vrot.lane.b32.xlu0 %v4478, 24
      %v4612 = vpop.permute.xlu0 %4611
      %4613 = vrot.lane.b32.xlu0 %v4487, 24
      %v4614 = vpop.permute.xlu0 %4613
      %4615 = vrot.lane.b32.xlu0 %v4496, 24
      %v4616 = vpop.permute.xlu0 %4615
      %4617 = vrot.lane.b32.xlu0 %v4505, 24
      %v4618 = vpop.permute.xlu0 %4617
      %4619 = vrot.lane.b32.xlu0 %v4514, 24
      %v4620 = vpop.permute.xlu0 %4619
      %4621 = vrot.lane.b32.xlu0 %v4523, 24
      %v4622 = vpop.permute.xlu0 %4621
      %4623 = vrot.lane.b32.xlu0 %v4532, 24
      %v4624 = vpop.permute.xlu0 %4623
      %4625 = vrot.lane.b32.xlu0 %v4541, 24
      %v4626 = vpop.permute.xlu0 %4625
      %4627 = vrot.lane.b32.xlu0 %v4550, 24
      %v4628 = vpop.permute.xlu0 %4627
      %4629 = vrot.lane.b32.xlu0 %v4559, 24
      %v4630 = vpop.permute.xlu0 %4629
      %4631 = vrot.lane.b32.xlu0 %v4568, 24
      %v4632 = vpop.permute.xlu0 %4631
      %vm4665 = vcmask 224448
      %4666 = vst.msk [vmem:[#allocation3] sm:$0xf] %vm4665, %v4570
      %4667 = vst.msk [vmem:[#allocation3 + $0x4] sm:$0xf] %vm4665, %v4572
      %4668 = vst.msk [vmem:[#allocation3 + $0x8] sm:$0xf] %vm4665, %v4574
      %4669 = vst.msk [vmem:[#allocation3 + $0xc] sm:$0xf] %vm4665, %v4576
      %4670 = vst.msk [vmem:[#allocation3 + $0x10] sm:$0xf] %vm4665, %v4578
      %4671 = vst.msk [vmem:[#allocation3 + $0x14] sm:$0xf] %vm4665, %v4580
      %4672 = vst.msk [vmem:[#allocation3 + $0x18] sm:$0xf] %vm4665, %v4582
      %4673 = vst.msk [vmem:[#allocation3 + $0x1c] sm:$0xf] %vm4665, %v4584
      %4674 = vst.msk [vmem:[#allocation3 + $0x20] sm:$0xf] %vm4665, %v4586
      %4675 = vst.msk [vmem:[#allocation3 + $0x24] sm:$0xf] %vm4665, %v4588
      %4676 = vst.msk [vmem:[#allocation3 + $0x28] sm:$0xf] %vm4665, %v4590
      %4677 = vst.msk [vmem:[#allocation3 + $0x2c] sm:$0xf] %vm4665, %v4592
      %4678 = vst.msk [vmem:[#allocation3 + $0x30] sm:$0xf] %vm4665, %v4594
      %4679 = vst.msk [vmem:[#allocation3 + $0x34] sm:$0xf] %vm4665, %v4596
      %4680 = vst.msk [vmem:[#allocation3 + $0x38] sm:$0xf] %vm4665, %v4598
      %4681 = vst.msk [vmem:[#allocation3 + $0x3c] sm:$0xf] %vm4665, %v4600
      %4682 = vst.msk [vmem:[#allocation3 + $0x40] sm:$0xf] %vm4665, %v4602
      %4683 = vst.msk [vmem:[#allocation3 + $0x44] sm:$0xf] %vm4665, %v4604
      %4684 = vst.msk [vmem:[#allocation3 + $0x48] sm:$0xf] %vm4665, %v4606
      %4685 = vst.msk [vmem:[#allocation3 + $0x4c] sm:$0xf] %vm4665, %v4608
      %4686 = vst.msk [vmem:[#allocation3 + $0x50] sm:$0xf] %vm4665, %v4610
      %4687 = vst.msk [vmem:[#allocation3 + $0x54] sm:$0xf] %vm4665, %v4612
      %4688 = vst.msk [vmem:[#allocation3 + $0x58] sm:$0xf] %vm4665, %v4614
      %4689 = vst.msk [vmem:[#allocation3 + $0x5c] sm:$0xf] %vm4665, %v4616
      %4690 = vst.msk [vmem:[#allocation3 + $0x60] sm:$0xf] %vm4665, %v4618
      %4691 = vst.msk [vmem:[#allocation3 + $0x64] sm:$0xf] %vm4665, %v4620
      %4692 = vst.msk [vmem:[#allocation3 + $0x68] sm:$0xf] %vm4665, %v4622
      %4693 = vst.msk [vmem:[#allocation3 + $0x6c] sm:$0xf] %vm4665, %v4624
      %4694 = vst.msk [vmem:[#allocation3 + $0x70] sm:$0xf] %vm4665, %v4626
      %4695 = vst.msk [vmem:[#allocation3 + $0x74] sm:$0xf] %vm4665, %v4628
      %4696 = vst.msk [vmem:[#allocation3 + $0x78] sm:$0xf] %vm4665, %v4630
      %4697 = vst.msk [vmem:[#allocation3 + $0x7c] sm:$0xf] %vm4665, %v4632
      %v4698 = vld [vmem:[#allocation2 + $0x18] sm:$0xf]
      %v4699 = vld [vmem:[#allocation2 + $0x1c] sm:$0xf]
      %v4700 = vld [vmem:[#allocation2 + $0x20] sm:$0xf]
      %v4701 = vld [vmem:[#allocation2 + $0x24] sm:$0xf]
      %v4702 = vld [vmem:[#allocation2 + $0x28] sm:$0xf]
      %v4703 = vld [vmem:[#allocation2 + $0x2c] sm:$0xf]
      %v4704 = vld [vmem:[#allocation2 + $0x30] sm:$0xf]
      %v4705 = vld [vmem:[#allocation2 + $0x34] sm:$0xf]
      %v4706 = vld [vmem:[#allocation2 + $0x38] sm:$0xf]
      %v4707 = vld [vmem:[#allocation2 + $0x3c] sm:$0xf]
      %v4708 = vld [vmem:[#allocation2 + $0x40] sm:$0xf]
      %v4709 = vld [vmem:[#allocation2 + $0x44] sm:$0xf]
      %v4710 = vld [vmem:[#allocation2 + $0x48] sm:$0xf]
      %v4711 = vld [vmem:[#allocation2 + $0x4c] sm:$0xf]
      %v4712 = vld [vmem:[#allocation2 + $0x50] sm:$0xf]
      %v4713 = vld [vmem:[#allocation2 + $0x54] sm:$0xf]
      %v4714 = vld [vmem:[#allocation2 + $0x58] sm:$0xf]
      %v4715 = vld [vmem:[#allocation2 + $0x5c] sm:$0xf]
      %v4716 = vld [vmem:[#allocation2 + $0x60] sm:$0xf]
      %v4717 = vld [vmem:[#allocation2 + $0x64] sm:$0xf]
      %v4718 = vld [vmem:[#allocation2 + $0x68] sm:$0xf]
      %v4719 = vld [vmem:[#allocation2 + $0x6c] sm:$0xf]
      %v4720 = vld [vmem:[#allocation2 + $0x70] sm:$0xf]
      %v4721 = vld [vmem:[#allocation2 + $0x74] sm:$0xf]
      %v4722 = vld [vmem:[#allocation2 + $0x78] sm:$0xf]
      %v4723 = vld [vmem:[#allocation2 + $0x7c] sm:$0xf]
      %v4724 = vld [vmem:[#allocation2 + $0x80] sm:$0xf]
      %v4725 = vld [vmem:[#allocation2 + $0x84] sm:$0xf]
      %v4726 = vld [vmem:[#allocation2 + $0x88] sm:$0xf]
      %v4727 = vld [vmem:[#allocation2 + $0x8c] sm:$0xf]
      %v4728 = vld [vmem:[#allocation2 + $0x90] sm:$0xf]
      %v4729 = vld [vmem:[#allocation2 + $0x94] sm:$0xf]
      %4762 = vrot.lane.b32.xlu0 %v4698, 28
      %v4763 = vpop.permute.xlu0 %4762
      %4764 = vrot.lane.b32.xlu0 %v4699, 28
      %v4765 = vpop.permute.xlu0 %4764
      %4766 = vrot.lane.b32.xlu0 %v4700, 28
      %v4767 = vpop.permute.xlu0 %4766
      %4768 = vrot.lane.b32.xlu0 %v4701, 28
      %v4769 = vpop.permute.xlu0 %4768
      %4770 = vrot.lane.b32.xlu0 %v4702, 28
      %v4771 = vpop.permute.xlu0 %4770
      %4772 = vrot.lane.b32.xlu0 %v4703, 28
      %v4773 = vpop.permute.xlu0 %4772
      %4774 = vrot.lane.b32.xlu0 %v4704, 28
      %v4775 = vpop.permute.xlu0 %4774
      %4776 = vrot.lane.b32.xlu0 %v4705, 28
      %v4777 = vpop.permute.xlu0 %4776
      %4778 = vrot.lane.b32.xlu0 %v4706, 28
      %v4779 = vpop.permute.xlu0 %4778
      %4780 = vrot.lane.b32.xlu0 %v4707, 28
      %v4781 = vpop.permute.xlu0 %4780
      %4782 = vrot.lane.b32.xlu0 %v4708, 28
      %v4783 = vpop.permute.xlu0 %4782
      %4784 = vrot.lane.b32.xlu0 %v4709, 28
      %v4785 = vpop.permute.xlu0 %4784
      %4786 = vrot.lane.b32.xlu0 %v4710, 28
      %v4787 = vpop.permute.xlu0 %4786
      %4788 = vrot.lane.b32.xlu0 %v4711, 28
      %v4789 = vpop.permute.xlu0 %4788
      %4790 = vrot.lane.b32.xlu0 %v4712, 28
      %v4791 = vpop.permute.xlu0 %4790
      %4792 = vrot.lane.b32.xlu0 %v4713, 28
      %v4793 = vpop.permute.xlu0 %4792
      %4794 = vrot.lane.b32.xlu0 %v4714, 28
      %v4795 = vpop.permute.xlu0 %4794
      %4796 = vrot.lane.b32.xlu0 %v4715, 28
      %v4797 = vpop.permute.xlu0 %4796
      %4798 = vrot.lane.b32.xlu0 %v4716, 28
      %v4799 = vpop.permute.xlu0 %4798
      %4800 = vrot.lane.b32.xlu0 %v4717, 28
      %v4801 = vpop.permute.xlu0 %4800
      %4802 = vrot.lane.b32.xlu0 %v4718, 28
      %v4803 = vpop.permute.xlu0 %4802
      %4804 = vrot.lane.b32.xlu0 %v4719, 28
      %v4805 = vpop.permute.xlu0 %4804
      %4806 = vrot.lane.b32.xlu0 %v4720, 28
      %v4807 = vpop.permute.xlu0 %4806
      %4808 = vrot.lane.b32.xlu0 %v4721, 28
      %v4809 = vpop.permute.xlu0 %4808
      %4810 = vrot.lane.b32.xlu0 %v4722, 28
      %v4811 = vpop.permute.xlu0 %4810
      %4812 = vrot.lane.b32.xlu0 %v4723, 28
      %v4813 = vpop.permute.xlu0 %4812
      %4814 = vrot.lane.b32.xlu0 %v4724, 28
      %v4815 = vpop.permute.xlu0 %4814
      %4816 = vrot.lane.b32.xlu0 %v4725, 28
      %v4817 = vpop.permute.xlu0 %4816
      %4818 = vrot.lane.b32.xlu0 %v4726, 28
      %v4819 = vpop.permute.xlu0 %4818
      %4820 = vrot.lane.b32.xlu0 %v4727, 28
      %v4821 = vpop.permute.xlu0 %4820
      %4822 = vrot.lane.b32.xlu0 %v4728, 28
      %v4823 = vpop.permute.xlu0 %4822
      %4824 = vrot.lane.b32.xlu0 %v4729, 28
      %v4825 = vpop.permute.xlu0 %4824
      %vm4858 = vcmask 257248
      %4859 = vst.msk [vmem:[#allocation3] sm:$0xf] %vm4858, %v4763
      %4860 = vst.msk [vmem:[#allocation3 + $0x4] sm:$0xf] %vm4858, %v4765
      %4861 = vst.msk [vmem:[#allocation3 + $0x8] sm:$0xf] %vm4858, %v4767
      %4862 = vst.msk [vmem:[#allocation3 + $0xc] sm:$0xf] %vm4858, %v4769
      %4863 = vst.msk [vmem:[#allocation3 + $0x10] sm:$0xf] %vm4858, %v4771
      %4864 = vst.msk [vmem:[#allocation3 + $0x14] sm:$0xf] %vm4858, %v4773
      %4865 = vst.msk [vmem:[#allocation3 + $0x18] sm:$0xf] %vm4858, %v4775
      %4866 = vst.msk [vmem:[#allocation3 + $0x1c] sm:$0xf] %vm4858, %v4777
      %4867 = vst.msk [vmem:[#allocation3 + $0x20] sm:$0xf] %vm4858, %v4779
      %4868 = vst.msk [vmem:[#allocation3 + $0x24] sm:$0xf] %vm4858, %v4781
      %4869 = vst.msk [vmem:[#allocation3 + $0x28] sm:$0xf] %vm4858, %v4783
      %4870 = vst.msk [vmem:[#allocation3 + $0x2c] sm:$0xf] %vm4858, %v4785
      %4871 = vst.msk [vmem:[#allocation3 + $0x30] sm:$0xf] %vm4858, %v4787
      %4872 = vst.msk [vmem:[#allocation3 + $0x34] sm:$0xf] %vm4858, %v4789
      %4873 = vst.msk [vmem:[#allocation3 + $0x38] sm:$0xf] %vm4858, %v4791
      %4874 = vst.msk [vmem:[#allocation3 + $0x3c] sm:$0xf] %vm4858, %v4793
      %4875 = vst.msk [vmem:[#allocation3 + $0x40] sm:$0xf] %vm4858, %v4795
      %4876 = vst.msk [vmem:[#allocation3 + $0x44] sm:$0xf] %vm4858, %v4797
      %4877 = vst.msk [vmem:[#allocation3 + $0x48] sm:$0xf] %vm4858, %v4799
      %4878 = vst.msk [vmem:[#allocation3 + $0x4c] sm:$0xf] %vm4858, %v4801
      %4879 = vst.msk [vmem:[#allocation3 + $0x50] sm:$0xf] %vm4858, %v4803
      %4880 = vst.msk [vmem:[#allocation3 + $0x54] sm:$0xf] %vm4858, %v4805
      %4881 = vst.msk [vmem:[#allocation3 + $0x58] sm:$0xf] %vm4858, %v4807
      %4882 = vst.msk [vmem:[#allocation3 + $0x5c] sm:$0xf] %vm4858, %v4809
      %4883 = vst.msk [vmem:[#allocation3 + $0x60] sm:$0xf] %vm4858, %v4811
      %4884 = vst.msk [vmem:[#allocation3 + $0x64] sm:$0xf] %vm4858, %v4813
      %4885 = vst.msk [vmem:[#allocation3 + $0x68] sm:$0xf] %vm4858, %v4815
      %4886 = vst.msk [vmem:[#allocation3 + $0x6c] sm:$0xf] %vm4858, %v4817
      %4887 = vst.msk [vmem:[#allocation3 + $0x70] sm:$0xf] %vm4858, %v4819
      %4888 = vst.msk [vmem:[#allocation3 + $0x74] sm:$0xf] %vm4858, %v4821
      %4889 = vst.msk [vmem:[#allocation3 + $0x78] sm:$0xf] %vm4858, %v4823
      %4890 = vst.msk [vmem:[#allocation3 + $0x7c] sm:$0xf] %vm4858, %v4825
      %v4891 = vld [vmem:[#allocation2 + $0x18] sm:$0xf]
      %v4892 = vld [vmem:[#allocation2 + $0x1c] sm:$0xf]
      %v4893 = vld [vmem:[#allocation2 + $0x20] sm:$0xf]
      %v4894 = vld [vmem:[#allocation2 + $0x24] sm:$0xf]
      %v4895 = vld [vmem:[#allocation2 + $0x28] sm:$0xf]
      %v4896 = vld [vmem:[#allocation2 + $0x2c] sm:$0xf]
      %v4897 = vld [vmem:[#allocation2 + $0x30] sm:$0xf]
      %v4898 = vld [vmem:[#allocation2 + $0x34] sm:$0xf]
      %v4899 = vld [vmem:[#allocation2 + $0x38] sm:$0xf]
      %v4900 = vld [vmem:[#allocation2 + $0x3c] sm:$0xf]
      %v4901 = vld [vmem:[#allocation2 + $0x40] sm:$0xf]
      %v4902 = vld [vmem:[#allocation2 + $0x44] sm:$0xf]
      %v4903 = vld [vmem:[#allocation2 + $0x48] sm:$0xf]
      %v4904 = vld [vmem:[#allocation2 + $0x4c] sm:$0xf]
      %v4905 = vld [vmem:[#allocation2 + $0x50] sm:$0xf]
      %v4906 = vld [vmem:[#allocation2 + $0x54] sm:$0xf]
      %v4907 = vld [vmem:[#allocation2 + $0x58] sm:$0xf]
      %v4908 = vld [vmem:[#allocation2 + $0x5c] sm:$0xf]
      %v4909 = vld [vmem:[#allocation2 + $0x60] sm:$0xf]
      %v4910 = vld [vmem:[#allocation2 + $0x64] sm:$0xf]
      %v4911 = vld [vmem:[#allocation2 + $0x68] sm:$0xf]
      %v4912 = vld [vmem:[#allocation2 + $0x6c] sm:$0xf]
      %v4913 = vld [vmem:[#allocation2 + $0x70] sm:$0xf]
      %v4914 = vld [vmem:[#allocation2 + $0x74] sm:$0xf]
      %v4915 = vld [vmem:[#allocation2 + $0x78] sm:$0xf]
      %v4916 = vld [vmem:[#allocation2 + $0x7c] sm:$0xf]
      %v4917 = vld [vmem:[#allocation2 + $0x80] sm:$0xf]
      %v4918 = vld [vmem:[#allocation2 + $0x84] sm:$0xf]
      %v4919 = vld [vmem:[#allocation2 + $0x88] sm:$0xf]
      %v4920 = vld [vmem:[#allocation2 + $0x8c] sm:$0xf]
      %v4921 = vld [vmem:[#allocation2 + $0x90] sm:$0xf]
      %v4922 = vld [vmem:[#allocation2 + $0x94] sm:$0xf]
      %v4923 = vld [vmem:[#allocation2 + $0x98] sm:$0x1]
      %v4924 = vsel %vm2493, %v4891, 0
      %v4925 = vsel %vm2494, %v4892, 0
      %v4926 = vsel %vm2495, %v4893, 0
      %v4927 = vsel %vm2496, %v4894, 0
      %v4928 = vsel %vm2497, %v4895, 0
      %v4929 = vsel %vm2498, %v4896, 0
      %v4930 = vsel %vm2499, %v4897, 0
      %v4931 = vsel %vm2500, %v4898, 0
      %v4932 = vsel %vm2501, %v4899, 0
      %v4933 = vsel %vm2502, %v4900, 0
      %v4934 = vsel %vm2503, %v4901, 0
      %v4935 = vsel %vm2504, %v4902, 0
      %v4936 = vsel %vm2505, %v4903, 0
      %v4937 = vsel %vm2506, %v4904, 0
      %v4938 = vsel %vm2507, %v4905, 0
      %v4939 = vsel %vm2508, %v4906, 0
      %v4940 = vsel %vm2509, %v4907, 0
      %v4941 = vsel %vm2510, %v4908, 0
      %v4942 = vsel %vm2511, %v4909, 0
      %v4943 = vsel %vm2512, %v4910, 0
      %v4944 = vsel %vm2513, %v4911, 0
      %v4945 = vsel %vm2514, %v4912, 0
      %v4946 = vsel %vm2515, %v4913, 0
      %v4947 = vsel %vm2516, %v4914, 0
      %v4948 = vsel %vm2517, %v4915, 0
      %v4949 = vsel %vm2518, %v4916, 0
      %v4950 = vsel %vm2519, %v4917, 0
      %v4951 = vsel %vm2520, %v4918, 0
      %v4952 = vsel %vm2521, %v4919, 0
      %v4953 = vsel %vm2522, %v4920, 0
      %v4954 = vsel %vm2523, %v4921, 0
      %v4955 = vsel %vm2524, %v4922, 0
      %v4956 = vsel %vm2525, %v4923, 0
      %v4958 = vshrl.u32 %v4924, 16
      %v4960 = vrot.slane %v4958, 4
      %v4961 = vshll.u32 %v4924, 16
      %v4963 = vrot.slane %v4961, 5
      %v4964 = vor.u32 %v4960, %v4963
      %v4965 = vrot.slane %v4964, 4
      %v4967 = vshll.u32 %v4925, 16
      %v4969 = vrot.slane %v4967, 5
      %v4970 = vsel %vm1107, %v4965, %v4969
      %v4971 = vshrl.u32 %v4925, 16
      %v4973 = vrot.slane %v4971, 4
      %v4974 = vor.u32 %v4973, %v4969
      %v4975 = vrot.slane %v4974, 4
      %v4977 = vshll.u32 %v4926, 16
      %v4979 = vrot.slane %v4977, 5
      %v4980 = vsel %vm1107, %v4975, %v4979
      %v4981 = vshrl.u32 %v4926, 16
      %v4983 = vrot.slane %v4981, 4
      %v4984 = vor.u32 %v4983, %v4979
      %v4985 = vrot.slane %v4984, 4
      %v4987 = vshll.u32 %v4927, 16
      %v4989 = vrot.slane %v4987, 5
      %v4990 = vsel %vm1107, %v4985, %v4989
      %v4991 = vshrl.u32 %v4927, 16
      %v4993 = vrot.slane %v4991, 4
      %v4994 = vor.u32 %v4993, %v4989
      %v4995 = vrot.slane %v4994, 4
      %v4997 = vshll.u32 %v4928, 16
      %v4999 = vrot.slane %v4997, 5
      %v5000 = vsel %vm1107, %v4995, %v4999
      %v5001 = vshrl.u32 %v4928, 16
      %v5003 = vrot.slane %v5001, 4
      %v5004 = vor.u32 %v5003, %v4999
      %v5005 = vrot.slane %v5004, 4
      %v5007 = vshll.u32 %v4929, 16
      %v5009 = vrot.slane %v5007, 5
      %v5010 = vsel %vm1107, %v5005, %v5009
      %v5011 = vshrl.u32 %v4929, 16
      %v5013 = vrot.slane %v5011, 4
      %v5014 = vor.u32 %v5013, %v5009
      %v5015 = vrot.slane %v5014, 4
      %v5017 = vshll.u32 %v4930, 16
      %v5019 = vrot.slane %v5017, 5
      %v5020 = vsel %vm1107, %v5015, %v5019
      %v5021 = vshrl.u32 %v4930, 16
      %v5023 = vrot.slane %v5021, 4
      %v5024 = vor.u32 %v5023, %v5019
      %v5025 = vrot.slane %v5024, 4
      %v5027 = vshll.u32 %v4931, 16
      %v5029 = vrot.slane %v5027, 5
      %v5030 = vsel %vm1107, %v5025, %v5029
      %v5031 = vshrl.u32 %v4931, 16
      %v5033 = vrot.slane %v5031, 4
      %v5034 = vor.u32 %v5033, %v5029
      %v5035 = vrot.slane %v5034, 4
      %v5037 = vshll.u32 %v4932, 16
      %v5039 = vrot.slane %v5037, 5
      %v5040 = vsel %vm1107, %v5035, %v5039
      %v5041 = vshrl.u32 %v4932, 16
      %v5043 = vrot.slane %v5041, 4
      %v5044 = vor.u32 %v5043, %v5039
      %v5045 = vrot.slane %v5044, 4
      %v5047 = vshll.u32 %v4933, 16
      %v5049 = vrot.slane %v5047, 5
      %v5050 = vsel %vm1107, %v5045, %v5049
      %v5051 = vshrl.u32 %v4933, 16
      %v5053 = vrot.slane %v5051, 4
      %v5054 = vor.u32 %v5053, %v5049
      %v5055 = vrot.slane %v5054, 4
      %v5057 = vshll.u32 %v4934, 16
      %v5059 = vrot.slane %v5057, 5
      %v5060 = vsel %vm1107, %v5055, %v5059
      %v5061 = vshrl.u32 %v4934, 16
      %v5063 = vrot.slane %v5061, 4
      %v5064 = vor.u32 %v5063, %v5059
      %v5065 = vrot.slane %v5064, 4
      %v5067 = vshll.u32 %v4935, 16
      %v5069 = vrot.slane %v5067, 5
      %v5070 = vsel %vm1107, %v5065, %v5069
      %v5071 = vshrl.u32 %v4935, 16
      %v5073 = vrot.slane %v5071, 4
      %v5074 = vor.u32 %v5073, %v5069
      %v5075 = vrot.slane %v5074, 4
      %v5077 = vshll.u32 %v4936, 16
      %v5079 = vrot.slane %v5077, 5
      %v5080 = vsel %vm1107, %v5075, %v5079
      %v5081 = vshrl.u32 %v4936, 16
      %v5083 = vrot.slane %v5081, 4
      %v5084 = vor.u32 %v5083, %v5079
      %v5085 = vrot.slane %v5084, 4
      %v5087 = vshll.u32 %v4937, 16
      %v5089 = vrot.slane %v5087, 5
      %v5090 = vsel %vm1107, %v5085, %v5089
      %v5091 = vshrl.u32 %v4937, 16
      %v5093 = vrot.slane %v5091, 4
      %v5094 = vor.u32 %v5093, %v5089
      %v5095 = vrot.slane %v5094, 4
      %v5097 = vshll.u32 %v4938, 16
      %v5099 = vrot.slane %v5097, 5
      %v5100 = vsel %vm1107, %v5095, %v5099
      %v5101 = vshrl.u32 %v4938, 16
      %v5103 = vrot.slane %v5101, 4
      %v5104 = vor.u32 %v5103, %v5099
      %v5105 = vrot.slane %v5104, 4
      %v5107 = vshll.u32 %v4939, 16
      %v5109 = vrot.slane %v5107, 5
      %v5110 = vsel %vm1107, %v5105, %v5109
      %v5111 = vshrl.u32 %v4939, 16
      %v5113 = vrot.slane %v5111, 4
      %v5114 = vor.u32 %v5113, %v5109
      %v5115 = vrot.slane %v5114, 4
      %v5117 = vshll.u32 %v4940, 16
      %v5119 = vrot.slane %v5117, 5
      %v5120 = vsel %vm1107, %v5115, %v5119
      %v5121 = vshrl.u32 %v4940, 16
      %v5123 = vrot.slane %v5121, 4
      %v5124 = vor.u32 %v5123, %v5119
      %v5125 = vrot.slane %v5124, 4
      %v5127 = vshll.u32 %v4941, 16
      %v5129 = vrot.slane %v5127, 5
      %v5130 = vsel %vm1107, %v5125, %v5129
      %v5131 = vshrl.u32 %v4941, 16
      %v5133 = vrot.slane %v5131, 4
      %v5134 = vor.u32 %v5133, %v5129
      %v5135 = vrot.slane %v5134, 4
      %v5137 = vshll.u32 %v4942, 16
      %v5139 = vrot.slane %v5137, 5
      %v5140 = vsel %vm1107, %v5135, %v5139
      %v5141 = vshrl.u32 %v4942, 16
      %v5143 = vrot.slane %v5141, 4
      %v5144 = vor.u32 %v5143, %v5139
      %v5145 = vrot.slane %v5144, 4
      %v5147 = vshll.u32 %v4943, 16
      %v5149 = vrot.slane %v5147, 5
      %v5150 = vsel %vm1107, %v5145, %v5149
      %v5151 = vshrl.u32 %v4943, 16
      %v5153 = vrot.slane %v5151, 4
      %v5154 = vor.u32 %v5153, %v5149
      %v5155 = vrot.slane %v5154, 4
      %v5157 = vshll.u32 %v4944, 16
      %v5159 = vrot.slane %v5157, 5
      %v5160 = vsel %vm1107, %v5155, %v5159
      %v5161 = vshrl.u32 %v4944, 16
      %v5163 = vrot.slane %v5161, 4
      %v5164 = vor.u32 %v5163, %v5159
      %v5165 = vrot.slane %v5164, 4
      %v5167 = vshll.u32 %v4945, 16
      %v5169 = vrot.slane %v5167, 5
      %v5170 = vsel %vm1107, %v5165, %v5169
      %v5171 = vshrl.u32 %v4945, 16
      %v5173 = vrot.slane %v5171, 4
      %v5174 = vor.u32 %v5173, %v5169
      %v5175 = vrot.slane %v5174, 4
      %v5177 = vshll.u32 %v4946, 16
      %v5179 = vrot.slane %v5177, 5
      %v5180 = vsel %vm1107, %v5175, %v5179
      %v5181 = vshrl.u32 %v4946, 16
      %v5183 = vrot.slane %v5181, 4
      %v5184 = vor.u32 %v5183, %v5179
      %v5185 = vrot.slane %v5184, 4
      %v5187 = vshll.u32 %v4947, 16
      %v5189 = vrot.slane %v5187, 5
      %v5190 = vsel %vm1107, %v5185, %v5189
      %v5191 = vshrl.u32 %v4947, 16
      %v5193 = vrot.slane %v5191, 4
      %v5194 = vor.u32 %v5193, %v5189
      %v5195 = vrot.slane %v5194, 4
      %v5197 = vshll.u32 %v4948, 16
      %v5199 = vrot.slane %v5197, 5
      %v5200 = vsel %vm1107, %v5195, %v5199
      %v5201 = vshrl.u32 %v4948, 16
      %v5203 = vrot.slane %v5201, 4
      %v5204 = vor.u32 %v5203, %v5199
      %v5205 = vrot.slane %v5204, 4
      %v5207 = vshll.u32 %v4949, 16
      %v5209 = vrot.slane %v5207, 5
      %v5210 = vsel %vm1107, %v5205, %v5209
      %v5211 = vshrl.u32 %v4949, 16
      %v5213 = vrot.slane %v5211, 4
      %v5214 = vor.u32 %v5213, %v5209
      %v5215 = vrot.slane %v5214, 4
      %v5217 = vshll.u32 %v4950, 16
      %v5219 = vrot.slane %v5217, 5
      %v5220 = vsel %vm1107, %v5215, %v5219
      %v5221 = vshrl.u32 %v4950, 16
      %v5223 = vrot.slane %v5221, 4
      %v5224 = vor.u32 %v5223, %v5219
      %v5225 = vrot.slane %v5224, 4
      %v5227 = vshll.u32 %v4951, 16
      %v5229 = vrot.slane %v5227, 5
      %v5230 = vsel %vm1107, %v5225, %v5229
      %v5231 = vshrl.u32 %v4951, 16
      %v5233 = vrot.slane %v5231, 4
      %v5234 = vor.u32 %v5233, %v5229
      %v5235 = vrot.slane %v5234, 4
      %v5237 = vshll.u32 %v4952, 16
      %v5239 = vrot.slane %v5237, 5
      %v5240 = vsel %vm1107, %v5235, %v5239
      %v5241 = vshrl.u32 %v4952, 16
      %v5243 = vrot.slane %v5241, 4
      %v5244 = vor.u32 %v5243, %v5239
      %v5245 = vrot.slane %v5244, 4
      %v5247 = vshll.u32 %v4953, 16
      %v5249 = vrot.slane %v5247, 5
      %v5250 = vsel %vm1107, %v5245, %v5249
      %v5251 = vshrl.u32 %v4953, 16
      %v5253 = vrot.slane %v5251, 4
      %v5254 = vor.u32 %v5253, %v5249
      %v5255 = vrot.slane %v5254, 4
      %v5257 = vshll.u32 %v4954, 16
      %v5259 = vrot.slane %v5257, 5
      %v5260 = vsel %vm1107, %v5255, %v5259
      %v5261 = vshrl.u32 %v4954, 16
      %v5263 = vrot.slane %v5261, 4
      %v5264 = vor.u32 %v5263, %v5259
      %v5265 = vrot.slane %v5264, 4
      %v5267 = vshll.u32 %v4955, 16
      %v5269 = vrot.slane %v5267, 5
      %v5270 = vsel %vm1107, %v5265, %v5269
      %v5271 = vshrl.u32 %v4955, 16
      %v5273 = vrot.slane %v5271, 4
      %v5274 = vor.u32 %v5273, %v5269
      %v5275 = vrot.slane %v5274, 4
      %v5277 = vshll.u32 %v4956, 16
      %v5279 = vrot.slane %v5277, 5
      %v5280 = vsel %vm1107, %v5275, %v5279
      %5281 = vrot.lane.b32.xlu0 %v4970, 32
      %v5282 = vpop.permute.xlu0 %5281
      %5283 = vrot.lane.b32.xlu0 %v4980, 32
      %v5284 = vpop.permute.xlu0 %5283
      %5285 = vrot.lane.b32.xlu0 %v4990, 32
      %v5286 = vpop.permute.xlu0 %5285
      %5287 = vrot.lane.b32.xlu0 %v5000, 32
      %v5288 = vpop.permute.xlu0 %5287
      %5289 = vrot.lane.b32.xlu0 %v5010, 32
      %v5290 = vpop.permute.xlu0 %5289
      %5291 = vrot.lane.b32.xlu0 %v5020, 32
      %v5292 = vpop.permute.xlu0 %5291
      %5293 = vrot.lane.b32.xlu0 %v5030, 32
      %v5294 = vpop.permute.xlu0 %5293
      %5295 = vrot.lane.b32.xlu0 %v5040, 32
      %v5296 = vpop.permute.xlu0 %5295
      %5297 = vrot.lane.b32.xlu0 %v5050, 32
      %v5298 = vpop.permute.xlu0 %5297
      %5299 = vrot.lane.b32.xlu0 %v5060, 32
      %v5300 = vpop.permute.xlu0 %5299
      %5301 = vrot.lane.b32.xlu0 %v5070, 32
      %v5302 = vpop.permute.xlu0 %5301
      %5303 = vrot.lane.b32.xlu0 %v5080, 32
      %v5304 = vpop.permute.xlu0 %5303
      %5305 = vrot.lane.b32.xlu0 %v5090, 32
      %v5306 = vpop.permute.xlu0 %5305
      %5307 = vrot.lane.b32.xlu0 %v5100, 32
      %v5308 = vpop.permute.xlu0 %5307
      %5309 = vrot.lane.b32.xlu0 %v5110, 32
      %v5310 = vpop.permute.xlu0 %5309
      %5311 = vrot.lane.b32.xlu0 %v5120, 32
      %v5312 = vpop.permute.xlu0 %5311
      %5313 = vrot.lane.b32.xlu0 %v5130, 32
      %v5314 = vpop.permute.xlu0 %5313
      %5315 = vrot.lane.b32.xlu0 %v5140, 32
      %v5316 = vpop.permute.xlu0 %5315
      %5317 = vrot.lane.b32.xlu0 %v5150, 32
      %v5318 = vpop.permute.xlu0 %5317
      %5319 = vrot.lane.b32.xlu0 %v5160, 32
      %v5320 = vpop.permute.xlu0 %5319
      %5321 = vrot.lane.b32.xlu0 %v5170, 32
      %v5322 = vpop.permute.xlu0 %5321
      %5323 = vrot.lane.b32.xlu0 %v5180, 32
      %v5324 = vpop.permute.xlu0 %5323
      %5325 = vrot.lane.b32.xlu0 %v5190, 32
      %v5326 = vpop.permute.xlu0 %5325
      %5327 = vrot.lane.b32.xlu0 %v5200, 32
      %v5328 = vpop.permute.xlu0 %5327
      %5329 = vrot.lane.b32.xlu0 %v5210, 32
      %v5330 = vpop.permute.xlu0 %5329
      %5331 = vrot.lane.b32.xlu0 %v5220, 32
      %v5332 = vpop.permute.xlu0 %5331
      %5333 = vrot.lane.b32.xlu0 %v5230, 32
      %v5334 = vpop.permute.xlu0 %5333
      %5335 = vrot.lane.b32.xlu0 %v5240, 32
      %v5336 = vpop.permute.xlu0 %5335
      %5337 = vrot.lane.b32.xlu0 %v5250, 32
      %v5338 = vpop.permute.xlu0 %5337
      %5339 = vrot.lane.b32.xlu0 %v5260, 32
      %v5340 = vpop.permute.xlu0 %5339
      %5341 = vrot.lane.b32.xlu0 %v5270, 32
      %v5342 = vpop.permute.xlu0 %5341
      %5343 = vrot.lane.b32.xlu0 %v5280, 32
      %v5344 = vpop.permute.xlu0 %5343
      %vm5377 = vcmask 290048
      %5378 = vst.msk [vmem:[#allocation3] sm:$0xf] %vm5377, %v5282
      %5379 = vst.msk [vmem:[#allocation3 + $0x4] sm:$0xf] %vm5377, %v5284
      %5380 = vst.msk [vmem:[#allocation3 + $0x8] sm:$0xf] %vm5377, %v5286
      %5381 = vst.msk [vmem:[#allocation3 + $0xc] sm:$0xf] %vm5377, %v5288
      %5382 = vst.msk [vmem:[#allocation3 + $0x10] sm:$0xf] %vm5377, %v5290
      %5383 = vst.msk [vmem:[#allocation3 + $0x14] sm:$0xf] %vm5377, %v5292
      %5384 = vst.msk [vmem:[#allocation3 + $0x18] sm:$0xf] %vm5377, %v5294
      %5385 = vst.msk [vmem:[#allocation3 + $0x1c] sm:$0xf] %vm5377, %v5296
      %5386 = vst.msk [vmem:[#allocation3 + $0x20] sm:$0xf] %vm5377, %v5298
      %5387 = vst.msk [vmem:[#allocation3 + $0x24] sm:$0xf] %vm5377, %v5300
      %5388 = vst.msk [vmem:[#allocation3 + $0x28] sm:$0xf] %vm5377, %v5302
      %5389 = vst.msk [vmem:[#allocation3 + $0x2c] sm:$0xf] %vm5377, %v5304
      %5390 = vst.msk [vmem:[#allocation3 + $0x30] sm:$0xf] %vm5377, %v5306
      %5391 = vst.msk [vmem:[#allocation3 + $0x34] sm:$0xf] %vm5377, %v5308
      %5392 = vst.msk [vmem:[#allocation3 + $0x38] sm:$0xf] %vm5377, %v5310
      %5393 = vst.msk [vmem:[#allocation3 + $0x3c] sm:$0xf] %vm5377, %v5312
      %5394 = vst.msk [vmem:[#allocation3 + $0x40] sm:$0xf] %vm5377, %v5314
      %5395 = vst.msk [vmem:[#allocation3 + $0x44] sm:$0xf] %vm5377, %v5316
      %5396 = vst.msk [vmem:[#allocation3 + $0x48] sm:$0xf] %vm5377, %v5318
      %5397 = vst.msk [vmem:[#allocation3 + $0x4c] sm:$0xf] %vm5377, %v5320
      %5398 = vst.msk [vmem:[#allocation3 + $0x50] sm:$0xf] %vm5377, %v5322
      %5399 = vst.msk [vmem:[#allocation3 + $0x54] sm:$0xf] %vm5377, %v5324
      %5400 = vst.msk [vmem:[#allocation3 + $0x58] sm:$0xf] %vm5377, %v5326
      %5401 = vst.msk [vmem:[#allocation3 + $0x5c] sm:$0xf] %vm5377, %v5328
      %5402 = vst.msk [vmem:[#allocation3 + $0x60] sm:$0xf] %vm5377, %v5330
      %5403 = vst.msk [vmem:[#allocation3 + $0x64] sm:$0xf] %vm5377, %v5332
      %5404 = vst.msk [vmem:[#allocation3 + $0x68] sm:$0xf] %vm5377, %v5334
      %5405 = vst.msk [vmem:[#allocation3 + $0x6c] sm:$0xf] %vm5377, %v5336
      %5406 = vst.msk [vmem:[#allocation3 + $0x70] sm:$0xf] %vm5377, %v5338
      %5407 = vst.msk [vmem:[#allocation3 + $0x74] sm:$0xf] %vm5377, %v5340
      %5408 = vst.msk [vmem:[#allocation3 + $0x78] sm:$0xf] %vm5377, %v5342
      %5409 = vst.msk [vmem:[#allocation3 + $0x7c] sm:$0xf] %vm5377, %v5344
      %v5410 = vld [vmem:[#allocation3] sm:$0xf]
      %v5411 = vld [vmem:[#allocation3 + $0x4] sm:$0xf]
      %v5412 = vld [vmem:[#allocation3 + $0x8] sm:$0xf]
      %v5413 = vld [vmem:[#allocation3 + $0xc] sm:$0xf]
      %v5414 = vld [vmem:[#allocation3 + $0x10] sm:$0xf]
      %v5415 = vld [vmem:[#allocation3 + $0x14] sm:$0xf]
      %v5416 = vld [vmem:[#allocation3 + $0x18] sm:$0xf]
      %v5417 = vld [vmem:[#allocation3 + $0x1c] sm:$0xf]
      %v5418 = vld [vmem:[#allocation3 + $0x20] sm:$0xf]
      %v5419 = vld [vmem:[#allocation3 + $0x24] sm:$0xf]
      %v5420 = vld [vmem:[#allocation3 + $0x28] sm:$0xf]
      %v5421 = vld [vmem:[#allocation3 + $0x2c] sm:$0xf]
      %v5422 = vld [vmem:[#allocation3 + $0x30] sm:$0xf]
      %v5423 = vld [vmem:[#allocation3 + $0x34] sm:$0xf]
      %v5424 = vld [vmem:[#allocation3 + $0x38] sm:$0xf]
      %v5425 = vld [vmem:[#allocation3 + $0x3c] sm:$0xf]
      %v5426 = vld [vmem:[#allocation3 + $0x40] sm:$0xf]
      %v5427 = vld [vmem:[#allocation3 + $0x44] sm:$0xf]
      %v5428 = vld [vmem:[#allocation3 + $0x48] sm:$0xf]
      %v5429 = vld [vmem:[#allocation3 + $0x4c] sm:$0xf]
      %v5430 = vld [vmem:[#allocation3 + $0x50] sm:$0xf]
      %v5431 = vld [vmem:[#allocation3 + $0x54] sm:$0xf]
      %v5432 = vld [vmem:[#allocation3 + $0x58] sm:$0xf]
      %v5433 = vld [vmem:[#allocation3 + $0x5c] sm:$0xf]
      %v5434 = vld [vmem:[#allocation3 + $0x60] sm:$0xf]
      %v5435 = vld [vmem:[#allocation3 + $0x64] sm:$0xf]
      %v5436 = vld [vmem:[#allocation3 + $0x68] sm:$0xf]
      %v5437 = vld [vmem:[#allocation3 + $0x6c] sm:$0xf]
      %v5438 = vld [vmem:[#allocation3 + $0x70] sm:$0xf]
      %v5439 = vld [vmem:[#allocation3 + $0x74] sm:$0xf]
      %v5440 = vld [vmem:[#allocation3 + $0x78] sm:$0xf]
      %v5441 = vld [vmem:[#allocation3 + $0x7c] sm:$0xf]
      %v5442 = vld [vmem:[%s1] sm:$0xf]
      %v5443 = vld [vmem:[%s1 + $0x4] sm:$0xf]
      %v5444 = vld [vmem:[%s1 + $0x8] sm:$0xf]
      %v5445 = vld [vmem:[%s1 + $0xc] sm:$0xf]
      %v5446 = vld [vmem:[%s1 + $0x10] sm:$0xf]
      %v5447 = vld [vmem:[%s1 + $0x14] sm:$0xf]
      %v5448 = vld [vmem:[%s1 + $0x18] sm:$0xf]
      %v5449 = vld [vmem:[%s1 + $0x1c] sm:$0xf]
      %v5450 = vld [vmem:[%s1 + $0x20] sm:$0xf]
      %v5451 = vld [vmem:[%s1 + $0x24] sm:$0xf]
      %v5452 = vld [vmem:[%s1 + $0x28] sm:$0xf]
      %v5453 = vld [vmem:[%s1 + $0x2c] sm:$0xf]
      %v5454 = vld [vmem:[%s1 + $0x30] sm:$0xf]
      %v5455 = vld [vmem:[%s1 + $0x34] sm:$0xf]
      %v5456 = vld [vmem:[%s1 + $0x38] sm:$0xf]
      %v5457 = vld [vmem:[%s1 + $0x3c] sm:$0xf]
      %v5458 = vld [vmem:[%s2] sm:$0x1]
      %v5460 = vlaneseq
      %v5461 = vshrl.u32 %v5460, 7
      %v5462 = vsub.s32 0, %v5461
      %v5463 = vrot.slane %v5458, %v5462
      %v5497 = vunpack.c.l.b16 %v5410
      %v5498 = vunpack.c.l.b16 %v5411
      %v5499 = vunpack.c.l.b16 %v5412
      %v5500 = vunpack.c.l.b16 %v5413
      %v5501 = vunpack.c.l.b16 %v5414
      %v5502 = vunpack.c.l.b16 %v5415
      %v5503 = vunpack.c.l.b16 %v5416
      %v5504 = vunpack.c.l.b16 %v5417
      %v5505 = vunpack.c.l.b16 %v5418
      %v5506 = vunpack.c.l.b16 %v5419
      %v5507 = vunpack.c.l.b16 %v5420
      %v5508 = vunpack.c.l.b16 %v5421
      %v5509 = vunpack.c.l.b16 %v5422
      %v5510 = vunpack.c.l.b16 %v5423
      %v5511 = vunpack.c.l.b16 %v5424
      %v5512 = vunpack.c.l.b16 %v5425
      %v5513 = vunpack.c.l.b16 %v5426
      %v5514 = vunpack.c.l.b16 %v5427
      %v5515 = vunpack.c.l.b16 %v5428
      %v5516 = vunpack.c.l.b16 %v5429
      %v5517 = vunpack.c.l.b16 %v5430
      %v5518 = vunpack.c.l.b16 %v5431
      %v5519 = vunpack.c.l.b16 %v5432
      %v5520 = vunpack.c.l.b16 %v5433
      %v5521 = vunpack.c.l.b16 %v5434
      %v5522 = vunpack.c.l.b16 %v5435
      %v5523 = vunpack.c.l.b16 %v5436
      %v5524 = vunpack.c.l.b16 %v5437
      %v5525 = vunpack.c.l.b16 %v5438
      %v5526 = vunpack.c.l.b16 %v5439
      %v5527 = vunpack.c.l.b16 %v5440
      %v5528 = vunpack.c.l.b16 %v5441
      %v5529 = vpack.c.b16 %v5498, %v5497
      %v5530 = vpack.c.b16 %v5500, %v5499
      %v5531 = vpack.c.b16 %v5502, %v5501
      %v5532 = vpack.c.b16 %v5504, %v5503
      %v5533 = vpack.c.b16 %v5506, %v5505
      %v5534 = vpack.c.b16 %v5508, %v5507
      %v5535 = vpack.c.b16 %v5510, %v5509
      %v5536 = vpack.c.b16 %v5512, %v5511
      %v5537 = vpack.c.b16 %v5514, %v5513
      %v5538 = vpack.c.b16 %v5516, %v5515
      %v5539 = vpack.c.b16 %v5518, %v5517
      %v5540 = vpack.c.b16 %v5520, %v5519
      %v5541 = vpack.c.b16 %v5522, %v5521
      %v5542 = vpack.c.b16 %v5524, %v5523
      %v5543 = vpack.c.b16 %v5526, %v5525
      %v5544 = vpack.c.b16 %v5528, %v5527
      %v5577 = vunpack.c.l.b16 %v5442
      %v5578 = vunpack.c.l.b16 %v5443
      %v5579 = vunpack.c.l.b16 %v5444
      %v5580 = vunpack.c.l.b16 %v5445
      %v5581 = vunpack.c.l.b16 %v5446
      %v5582 = vunpack.c.l.b16 %v5447
      %v5583 = vunpack.c.l.b16 %v5448
      %v5584 = vunpack.c.l.b16 %v5449
      %v5585 = vunpack.c.l.b16 %v5450
      %v5586 = vunpack.c.l.b16 %v5451
      %v5587 = vunpack.c.l.b16 %v5452
      %v5588 = vunpack.c.l.b16 %v5453
      %v5589 = vunpack.c.l.b16 %v5454
      %v5590 = vunpack.c.l.b16 %v5455
      %v5591 = vunpack.c.l.b16 %v5456
      %v5592 = vunpack.c.l.b16 %v5457
      %v5593 = vpack.c.b16 %v5578, %v5577
      %v5594 = vpack.c.b16 %v5580, %v5579
      %v5595 = vpack.c.b16 %v5582, %v5581
      %v5596 = vpack.c.b16 %v5584, %v5583
      %v5597 = vpack.c.b16 %v5586, %v5585
      %v5598 = vpack.c.b16 %v5588, %v5587
      %v5599 = vpack.c.b16 %v5590, %v5589
      %v5600 = vpack.c.b16 %v5592, %v5591
      %5609 = vmatprep.subr.bf16.mxu0 0
      %5610 = vmatpush1.bf16.msra.mxu0 %v5600
      %5611 = vmatprep.subr.bf16.mxu0 0
      %5612 = vmatpush1.bf16.msra.mxu0 %v5599
      %5613 = vmatprep.subr.bf16.mxu0 0
      %5614 = vmatpush1.bf16.msra.mxu0 %v5598
      %5615 = vmatprep.subr.bf16.mxu0 0
      %5616 = vmatpush1.bf16.msra.mxu0 %v5597
      %5617 = vmatprep.subr.bf16.mxu0 0
      %5618 = vmatpush1.bf16.msra.mxu0 %v5596
      %5619 = vmatprep.subr.bf16.mxu0 0
      %5620 = vmatpush1.bf16.msra.mxu0 %v5595
      %5621 = vmatprep.subr.bf16.mxu0 0
      %5622 = vmatpush1.bf16.msra.mxu0 %v5594
      %5623 = vmatprep.subr.bf16.mxu0 0
      %5624 = vmatpush1.bf16.msra.mxu0 %v5593
      %5625 = vmatprep.subr.bf16.mxu0 0
      %5626 = vmatpush2.bf16.msra.mxu0 0
      %5627 = vmatprep.subr.bf16.mxu0 0
      %5628 = vmatpush2.bf16.msra.mxu0 0
      %5629 = vmatprep.subr.bf16.mxu0 0
      %5630 = vmatpush2.bf16.msra.mxu0 0
      %5631 = vmatprep.subr.bf16.mxu0 0
      %5632 = vmatpush2.bf16.msra.mxu0 0
      %5633 = vmatprep.subr.bf16.mxu0 0
      %5634 = vmatpush2.bf16.msra.mxu0 0
      %5635 = vmatprep.subr.bf16.mxu0 0
      %5636 = vmatpush2.bf16.msra.mxu0 0
      %5637 = vmatprep.subr.bf16.mxu0 0
      %5638 = vmatpush2.bf16.msra.mxu0 0
      %5639 = vmatprep.subr.bf16.mxu0 0
      %5640 = vmatpush2.bf16.msra.mxu0 0
      %5641 = vmatprep.mubr.bf16.mxu0 0
      %5642 = vmatmul.mubr.bf16.gmra.mxu0 %v5529
      %v5643 = vpop.f32.mrf.mxu0
      %v5644 = vadd.f32 %v5463, %v5643
      %v5645 = vpop.f32.mrf.mxu0
      %v5646 = vpop.f32.mrf.mxu0
      %v5647 = vadd.f32 %v5463, %v5646
      %v5648 = vpop.f32.mrf.mxu0
      %5649 = vmatprep.mubr.bf16.mxu0 0
      %5650 = vmatmul.mubr.bf16.gmra.mxu0 %v5530
      %v5651 = vpop.f32.mrf.mxu0
      %v5652 = vadd.f32 %v5463, %v5651
      %v5653 = vpop.f32.mrf.mxu0
      %v5654 = vpop.f32.mrf.mxu0
      %v5655 = vadd.f32 %v5463, %v5654
      %v5656 = vpop.f32.mrf.mxu0
      %5657 = vmatprep.mubr.bf16.mxu0 0
      %5658 = vmatmul.mubr.bf16.gmra.mxu0 %v5531
      %v5659 = vpop.f32.mrf.mxu0
      %v5660 = vadd.f32 %v5463, %v5659
      %v5661 = vpop.f32.mrf.mxu0
      %v5662 = vpop.f32.mrf.mxu0
      %v5663 = vadd.f32 %v5463, %v5662
      %v5664 = vpop.f32.mrf.mxu0
      %5665 = vmatprep.mubr.bf16.mxu0 0
      %5666 = vmatmul.mubr.bf16.gmra.mxu0 %v5532
      %v5667 = vpop.f32.mrf.mxu0
      %v5668 = vadd.f32 %v5463, %v5667
      %v5669 = vpop.f32.mrf.mxu0
      %v5670 = vpop.f32.mrf.mxu0
      %v5671 = vadd.f32 %v5463, %v5670
      %v5672 = vpop.f32.mrf.mxu0
      %5673 = vmatprep.mubr.bf16.mxu0 0
      %5674 = vmatmul.mubr.bf16.gmra.mxu0 %v5533
      %v5675 = vpop.f32.mrf.mxu0
      %v5676 = vadd.f32 %v5463, %v5675
      %v5677 = vpop.f32.mrf.mxu0
      %v5678 = vpop.f32.mrf.mxu0
      %v5679 = vadd.f32 %v5463, %v5678
      %v5680 = vpop.f32.mrf.mxu0
      %5681 = vmatprep.mubr.bf16.mxu0 0
      %5682 = vmatmul.mubr.bf16.gmra.mxu0 %v5534
      %v5683 = vpop.f32.mrf.mxu0
      %v5684 = vadd.f32 %v5463, %v5683
      %v5685 = vpop.f32.mrf.mxu0
      %v5686 = vpop.f32.mrf.mxu0
      %v5687 = vadd.f32 %v5463, %v5686
      %v5688 = vpop.f32.mrf.mxu0
      %5689 = vmatprep.mubr.bf16.mxu0 0
      %5690 = vmatmul.mubr.bf16.gmra.mxu0 %v5535
      %v5691 = vpop.f32.mrf.mxu0
      %v5692 = vadd.f32 %v5463, %v5691
      %v5693 = vpop.f32.mrf.mxu0
      %v5694 = vpop.f32.mrf.mxu0
      %v5695 = vadd.f32 %v5463, %v5694
      %v5696 = vpop.f32.mrf.mxu0
      %5697 = vmatprep.mubr.bf16.mxu0 0
      %5698 = vmatmul.mubr.bf16.gmra.mxu0 %v5536
      %v5699 = vpop.f32.mrf.mxu0
      %v5700 = vadd.f32 %v5463, %v5699
      %v5701 = vpop.f32.mrf.mxu0
      %v5702 = vpop.f32.mrf.mxu0
      %v5703 = vadd.f32 %v5463, %v5702
      %v5704 = vpop.f32.mrf.mxu0
      %5705 = vmatprep.mubr.bf16.mxu0 0
      %5706 = vmatmul.mubr.bf16.gmra.mxu0 %v5537
      %v5707 = vpop.f32.mrf.mxu0
      %v5708 = vadd.f32 %v5463, %v5707
      %v5709 = vpop.f32.mrf.mxu0
      %v5710 = vpop.f32.mrf.mxu0
      %v5711 = vadd.f32 %v5463, %v5710
      %v5712 = vpop.f32.mrf.mxu0
      %5713 = vmatprep.mubr.bf16.mxu0 0
      %5714 = vmatmul.mubr.bf16.gmra.mxu0 %v5538
      %v5715 = vpop.f32.mrf.mxu0
      %v5716 = vadd.f32 %v5463, %v5715
      %v5717 = vpop.f32.mrf.mxu0
      %v5718 = vpop.f32.mrf.mxu0
      %v5719 = vadd.f32 %v5463, %v5718
      %v5720 = vpop.f32.mrf.mxu0
      %5721 = vmatprep.mubr.bf16.mxu0 0
      %5722 = vmatmul.mubr.bf16.gmra.mxu0 %v5539
      %v5723 = vpop.f32.mrf.mxu0
      %v5724 = vadd.f32 %v5463, %v5723
      %v5725 = vpop.f32.mrf.mxu0
      %v5726 = vpop.f32.mrf.mxu0
      %v5727 = vadd.f32 %v5463, %v5726
      %v5728 = vpop.f32.mrf.mxu0
      %5729 = vmatprep.mubr.bf16.mxu0 0
      %5730 = vmatmul.mubr.bf16.gmra.mxu0 %v5540
      %v5731 = vpop.f32.mrf.mxu0
      %v5732 = vadd.f32 %v5463, %v5731
      %v5733 = vpop.f32.mrf.mxu0
      %v5734 = vpop.f32.mrf.mxu0
      %v5735 = vadd.f32 %v5463, %v5734
      %v5736 = vpop.f32.mrf.mxu0
      %5737 = vmatprep.mubr.bf16.mxu0 0
      %5738 = vmatmul.mubr.bf16.gmra.mxu0 %v5541
      %v5739 = vpop.f32.mrf.mxu0
      %v5740 = vadd.f32 %v5463, %v5739
      %v5741 = vpop.f32.mrf.mxu0
      %v5742 = vpop.f32.mrf.mxu0
      %v5743 = vadd.f32 %v5463, %v5742
      %v5744 = vpop.f32.mrf.mxu0
      %5745 = vmatprep.mubr.bf16.mxu0 0
      %5746 = vmatmul.mubr.bf16.gmra.mxu0 %v5542
      %v5747 = vpop.f32.mrf.mxu0
      %v5748 = vadd.f32 %v5463, %v5747
      %v5749 = vpop.f32.mrf.mxu0
      %v5750 = vpop.f32.mrf.mxu0
      %v5751 = vadd.f32 %v5463, %v5750
      %v5752 = vpop.f32.mrf.mxu0
      %5753 = vmatprep.mubr.bf16.mxu0 0
      %5754 = vmatmul.mubr.bf16.gmra.mxu0 %v5543
      %v5755 = vpop.f32.mrf.mxu0
      %v5756 = vadd.f32 %v5463, %v5755
      %v5757 = vpop.f32.mrf.mxu0
      %v5758 = vpop.f32.mrf.mxu0
      %v5759 = vadd.f32 %v5463, %v5758
      %v5760 = vpop.f32.mrf.mxu0
      %5761 = vmatprep.mubr.bf16.mxu0 0
      %5762 = vmatmul.mubr.bf16.gmra.mxu0 %v5544
      %v5763 = vpop.f32.mrf.mxu0
      %v5764 = vadd.f32 %v5463, %v5763
      %v5765 = vpop.f32.mrf.mxu0
      %v5766 = vpop.f32.mrf.mxu0
      %v5767 = vadd.f32 %v5463, %v5766
      %v5768 = vpop.f32.mrf.mxu0
      %5769 = vdwg.mxu0
      %v5770 = vmax.f32 %v5644, 0.0
      %v5771 = vmax.f32 %v5647, 0.0
      %v5772 = vmax.f32 %v5652, 0.0
      %v5773 = vmax.f32 %v5655, 0.0
      %v5774 = vmax.f32 %v5660, 0.0
      %v5775 = vmax.f32 %v5663, 0.0
      %v5776 = vmax.f32 %v5668, 0.0
      %v5777 = vmax.f32 %v5671, 0.0
      %v5778 = vmax.f32 %v5676, 0.0
      %v5779 = vmax.f32 %v5679, 0.0
      %v5780 = vmax.f32 %v5684, 0.0
      %v5781 = vmax.f32 %v5687, 0.0
      %v5782 = vmax.f32 %v5692, 0.0
      %v5783 = vmax.f32 %v5695, 0.0
      %v5784 = vmax.f32 %v5700, 0.0
      %v5785 = vmax.f32 %v5703, 0.0
      %v5786 = vmax.f32 %v5708, 0.0
      %v5787 = vmax.f32 %v5711, 0.0
      %v5788 = vmax.f32 %v5716, 0.0
      %v5789 = vmax.f32 %v5719, 0.0
      %v5790 = vmax.f32 %v5724, 0.0
      %v5791 = vmax.f32 %v5727, 0.0
      %v5792 = vmax.f32 %v5732, 0.0
      %v5793 = vmax.f32 %v5735, 0.0
      %v5794 = vmax.f32 %v5740, 0.0
      %v5795 = vmax.f32 %v5743, 0.0
      %v5796 = vmax.f32 %v5748, 0.0
      %v5797 = vmax.f32 %v5751, 0.0
      %v5798 = vmax.f32 %v5756, 0.0
      %v5799 = vmax.f32 %v5759, 0.0
      %v5800 = vmax.f32 %v5764, 0.0
      %v5801 = vmax.f32 %v5767, 0.0
      %v5802 = vpack.c.bf16 %v5771, %v5770
      %v5803 = vpack.c.bf16 %v5773, %v5772
      %v5804 = vpack.c.bf16 %v5775, %v5774
      %v5805 = vpack.c.bf16 %v5777, %v5776
      %v5806 = vpack.c.bf16 %v5779, %v5778
      %v5807 = vpack.c.bf16 %v5781, %v5780
      %v5808 = vpack.c.bf16 %v5783, %v5782
      %v5809 = vpack.c.bf16 %v5785, %v5784
      %v5810 = vpack.c.bf16 %v5787, %v5786
      %v5811 = vpack.c.bf16 %v5789, %v5788
      %v5812 = vpack.c.bf16 %v5791, %v5790
      %v5813 = vpack.c.bf16 %v5793, %v5792
      %v5814 = vpack.c.bf16 %v5795, %v5794
      %v5815 = vpack.c.bf16 %v5797, %v5796
      %v5816 = vpack.c.bf16 %v5799, %v5798
      %v5817 = vpack.c.bf16 %v5801, %v5800
      %v5834 = vunpack.c.l.b16 %v5802
      %v5835 = vunpack.c.h.b16 %v5802
      %v5836 = vunpack.c.l.b16 %v5803
      %v5837 = vunpack.c.h.b16 %v5803
      %v5838 = vunpack.c.l.b16 %v5804
      %v5839 = vunpack.c.h.b16 %v5804
      %v5840 = vunpack.c.l.b16 %v5805
      %v5841 = vunpack.c.h.b16 %v5805
      %v5842 = vunpack.c.l.b16 %v5806
      %v5843 = vunpack.c.h.b16 %v5806
      %v5844 = vunpack.c.l.b16 %v5807
      %v5845 = vunpack.c.h.b16 %v5807
      %v5846 = vunpack.c.l.b16 %v5808
      %v5847 = vunpack.c.h.b16 %v5808
      %v5848 = vunpack.c.l.b16 %v5809
      %v5849 = vunpack.c.h.b16 %v5809
      %v5850 = vunpack.c.l.b16 %v5810
      %v5851 = vunpack.c.h.b16 %v5810
      %v5852 = vunpack.c.l.b16 %v5811
      %v5853 = vunpack.c.h.b16 %v5811
      %v5854 = vunpack.c.l.b16 %v5812
      %v5855 = vunpack.c.h.b16 %v5812
      %v5856 = vunpack.c.l.b16 %v5813
      %v5857 = vunpack.c.h.b16 %v5813
      %v5858 = vunpack.c.l.b16 %v5814
      %v5859 = vunpack.c.h.b16 %v5814
      %v5860 = vunpack.c.l.b16 %v5815
      %v5861 = vunpack.c.h.b16 %v5815
      %v5862 = vunpack.c.l.b16 %v5816
      %v5863 = vunpack.c.h.b16 %v5816
      %v5864 = vunpack.c.l.b16 %v5817
      %v5865 = vunpack.c.h.b16 %v5817
      %v5866 = vpack.c.b16 %v5834, %v5834
      %v5867 = vpack.c.b16 %v5835, %v5835
      %v5868 = vpack.c.b16 %v5836, %v5836
      %v5869 = vpack.c.b16 %v5837, %v5837
      %v5870 = vpack.c.b16 %v5838, %v5838
      %v5871 = vpack.c.b16 %v5839, %v5839
      %v5872 = vpack.c.b16 %v5840, %v5840
      %v5873 = vpack.c.b16 %v5841, %v5841
      %v5874 = vpack.c.b16 %v5842, %v5842
      %v5875 = vpack.c.b16 %v5843, %v5843
      %v5876 = vpack.c.b16 %v5844, %v5844
      %v5877 = vpack.c.b16 %v5845, %v5845
      %v5878 = vpack.c.b16 %v5846, %v5846
      %v5879 = vpack.c.b16 %v5847, %v5847
      %v5880 = vpack.c.b16 %v5848, %v5848
      %v5881 = vpack.c.b16 %v5849, %v5849
      %v5882 = vpack.c.b16 %v5850, %v5850
      %v5883 = vpack.c.b16 %v5851, %v5851
      %v5884 = vpack.c.b16 %v5852, %v5852
      %v5885 = vpack.c.b16 %v5853, %v5853
      %v5886 = vpack.c.b16 %v5854, %v5854
      %v5887 = vpack.c.b16 %v5855, %v5855
      %v5888 = vpack.c.b16 %v5856, %v5856
      %v5889 = vpack.c.b16 %v5857, %v5857
      %v5890 = vpack.c.b16 %v5858, %v5858
      %v5891 = vpack.c.b16 %v5859, %v5859
      %v5892 = vpack.c.b16 %v5860, %v5860
      %v5893 = vpack.c.b16 %v5861, %v5861
      %v5894 = vpack.c.b16 %v5862, %v5862
      %v5895 = vpack.c.b16 %v5863, %v5863
      %v5896 = vpack.c.b16 %v5864, %v5864
      %v5897 = vpack.c.b16 %v5865, %v5865
      %5930 = vst.msk [vmem:[#allocation2 + $0x10] sm:$0xf] %vm228, %v5866
      %5931 = vst.msk [vmem:[#allocation2 + $0x14] sm:$0xf] %vm228, %v5867
      %5932 = vst.msk [vmem:[#allocation2 + $0x18] sm:$0xf] %vm228, %v5868
      %5933 = vst.msk [vmem:[#allocation2 + $0x1c] sm:$0xf] %vm228, %v5869
      %5934 = vst.msk [vmem:[#allocation2 + $0x20] sm:$0xf] %vm228, %v5870
      %5935 = vst.msk [vmem:[#allocation2 + $0x24] sm:$0xf] %vm228, %v5871
      %5936 = vst.msk [vmem:[#allocation2 + $0x28] sm:$0xf] %vm228, %v5872
      %5937 = vst.msk [vmem:[#allocation2 + $0x2c] sm:$0xf] %vm228, %v5873
      %5938 = vst.msk [vmem:[#allocation2 + $0x30] sm:$0xf] %vm228, %v5874
      %5939 = vst.msk [vmem:[#allocation2 + $0x34] sm:$0xf] %vm228, %v5875
      %5940 = vst.msk [vmem:[#allocation2 + $0x38] sm:$0xf] %vm228, %v5876
      %5941 = vst.msk [vmem:[#allocation2 + $0x3c] sm:$0xf] %vm228, %v5877
      %5942 = vst.msk [vmem:[#allocation2 + $0x40] sm:$0xf] %vm228, %v5878
      %5943 = vst.msk [vmem:[#allocation2 + $0x44] sm:$0xf] %vm228, %v5879
      %5944 = vst.msk [vmem:[#allocation2 + $0x48] sm:$0xf] %vm228, %v5880
      %5945 = vst.msk [vmem:[#allocation2 + $0x4c] sm:$0xf] %vm228, %v5881
      %5946 = vst.msk [vmem:[#allocation2 + $0x50] sm:$0xf] %vm228, %v5882
      %5947 = vst.msk [vmem:[#allocation2 + $0x54] sm:$0xf] %vm228, %v5883
      %5948 = vst.msk [vmem:[#allocation2 + $0x58] sm:$0xf] %vm228, %v5884
      %5949 = vst.msk [vmem:[#allocation2 + $0x5c] sm:$0xf] %vm228, %v5885
      %5950 = vst.msk [vmem:[#allocation2 + $0x60] sm:$0xf] %vm228, %v5886
      %5951 = vst.msk [vmem:[#allocation2 + $0x64] sm:$0xf] %vm228, %v5887
      %5952 = vst.msk [vmem:[#allocation2 + $0x68] sm:$0xf] %vm228, %v5888
      %5953 = vst.msk [vmem:[#allocation2 + $0x6c] sm:$0xf] %vm228, %v5889
      %5954 = vst.msk [vmem:[#allocation2 + $0x70] sm:$0xf] %vm228, %v5890
      %5955 = vst.msk [vmem:[#allocation2 + $0x74] sm:$0xf] %vm228, %v5891
      %5956 = vst.msk [vmem:[#allocation2 + $0x78] sm:$0xf] %vm228, %v5892
      %5957 = vst.msk [vmem:[#allocation2 + $0x7c] sm:$0xf] %vm228, %v5893
      %5958 = vst.msk [vmem:[#allocation2 + $0x80] sm:$0xf] %vm228, %v5894
      %5959 = vst.msk [vmem:[#allocation2 + $0x84] sm:$0xf] %vm228, %v5895
      %5960 = vst.msk [vmem:[#allocation2 + $0x88] sm:$0xf] %vm228, %v5896
      %5961 = vst.msk [vmem:[#allocation2 + $0x8c] sm:$0xf] %vm228, %v5897
      %v5962 = vld [vmem:[#allocation2 + $0x4] sm:$0x8]
      %v5963 = vld [vmem:[#allocation2 + $0x8] sm:$0xf]
      %v5964 = vld [vmem:[#allocation2 + $0xc] sm:$0xf]
      %v5965 = vld [vmem:[#allocation2 + $0x10] sm:$0xf]
      %v5966 = vld [vmem:[#allocation2 + $0x14] sm:$0xf]
      %v5967 = vld [vmem:[#allocation2 + $0x18] sm:$0xf]
      %v5968 = vld [vmem:[#allocation2 + $0x1c] sm:$0xf]
      %v5969 = vld [vmem:[#allocation2 + $0x20] sm:$0xf]
      %v5970 = vld [vmem:[#allocation2 + $0x24] sm:$0xf]
      %v5971 = vld [vmem:[#allocation2 + $0x28] sm:$0xf]
      %v5972 = vld [vmem:[#allocation2 + $0x2c] sm:$0xf]
      %v5973 = vld [vmem:[#allocation2 + $0x30] sm:$0xf]
      %v5974 = vld [vmem:[#allocation2 + $0x34] sm:$0xf]
      %v5975 = vld [vmem:[#allocation2 + $0x38] sm:$0xf]
      %v5976 = vld [vmem:[#allocation2 + $0x3c] sm:$0xf]
      %v5977 = vld [vmem:[#allocation2 + $0x40] sm:$0xf]
      %v5978 = vld [vmem:[#allocation2 + $0x44] sm:$0xf]
      %v5979 = vld [vmem:[#allocation2 + $0x48] sm:$0xf]
      %v5980 = vld [vmem:[#allocation2 + $0x4c] sm:$0xf]
      %v5981 = vld [vmem:[#allocation2 + $0x50] sm:$0xf]
      %v5982 = vld [vmem:[#allocation2 + $0x54] sm:$0xf]
      %v5983 = vld [vmem:[#allocation2 + $0x58] sm:$0xf]
      %v5984 = vld [vmem:[#allocation2 + $0x5c] sm:$0xf]
      %v5985 = vld [vmem:[#allocation2 + $0x60] sm:$0xf]
      %v5986 = vld [vmem:[#allocation2 + $0x64] sm:$0xf]
      %v5987 = vld [vmem:[#allocation2 + $0x68] sm:$0xf]
      %v5988 = vld [vmem:[#allocation2 + $0x6c] sm:$0xf]
      %v5989 = vld [vmem:[#allocation2 + $0x70] sm:$0xf]
      %v5990 = vld [vmem:[#allocation2 + $0x74] sm:$0xf]
      %v5991 = vld [vmem:[#allocation2 + $0x78] sm:$0xf]
      %v5992 = vld [vmem:[#allocation2 + $0x7c] sm:$0xf]
      %v5993 = vld [vmem:[#allocation2 + $0x80] sm:$0xf]
      %v5994 = vld [vmem:[#allocation2 + $0x84] sm:$0xf]
      %v5995 = vsel %vm1427, %v5962, 0
      %v5996 = vsel %vm1428, %v5963, 0
      %v5997 = vsel %vm1429, %v5964, 0
      %v5998 = vsel %vm1430, %v5965, 0
      %v5999 = vsel %vm1431, %v5966, 0
      %v6000 = vsel %vm1432, %v5967, 0
      %v6001 = vsel %vm1433, %v5968, 0
      %v6002 = vsel %vm1434, %v5969, 0
      %v6003 = vsel %vm1435, %v5970, 0
      %v6004 = vsel %vm1436, %v5971, 0
      %v6005 = vsel %vm1437, %v5972, 0
      %v6006 = vsel %vm1438, %v5973, 0
      %v6007 = vsel %vm1439, %v5974, 0
      %v6008 = vsel %vm1440, %v5975, 0
      %v6009 = vsel %vm1441, %v5976, 0
      %v6010 = vsel %vm1442, %v5977, 0
      %v6011 = vsel %vm1443, %v5978, 0
      %v6012 = vsel %vm1444, %v5979, 0
      %v6013 = vsel %vm1445, %v5980, 0
      %v6014 = vsel %vm1446, %v5981, 0
      %v6015 = vsel %vm1447, %v5982, 0
      %v6016 = vsel %vm1448, %v5983, 0
      %v6017 = vsel %vm1449, %v5984, 0
      %v6018 = vsel %vm1450, %v5985, 0
      %v6019 = vsel %vm1451, %v5986, 0
      %v6020 = vsel %vm1452, %v5987, 0
      %v6021 = vsel %vm1453, %v5988, 0
      %v6022 = vsel %vm1454, %v5989, 0
      %v6023 = vsel %vm1455, %v5990, 0
      %v6024 = vsel %vm1456, %v5991, 0
      %v6025 = vsel %vm1457, %v5992, 0
      %v6026 = vsel %vm1458, %v5993, 0
      %v6027 = vsel %vm1459, %v5994, 0
      %v6029 = vshrl.u32 %v5995, 16
      %v6031 = vrot.slane %v6029, 7
      %v6032 = vrot.slane %v6031, 4
      %v6034 = vshrl.u32 %v5996, 16
      %v6036 = vrot.slane %v6034, 7
      %v6037 = vshll.u32 %v5996, 16
      %v6039 = vor.u32 %v6036, %v6037
      %v6040 = vsel %vm1495, %v6032, %v6039
      %v6041 = vrot.slane %v6036, 4
      %v6043 = vshrl.u32 %v5997, 16
      %v6045 = vrot.slane %v6043, 7
      %v6046 = vshll.u32 %v5997, 16
      %v6048 = vor.u32 %v6045, %v6046
      %v6049 = vsel %vm1495, %v6041, %v6048
      %v6050 = vrot.slane %v6045, 4
      %v6052 = vshrl.u32 %v5998, 16
      %v6054 = vrot.slane %v6052, 7
      %v6055 = vshll.u32 %v5998, 16
      %v6057 = vor.u32 %v6054, %v6055
      %v6058 = vsel %vm1495, %v6050, %v6057
      %v6059 = vrot.slane %v6054, 4
      %v6061 = vshrl.u32 %v5999, 16
      %v6063 = vrot.slane %v6061, 7
      %v6064 = vshll.u32 %v5999, 16
      %v6066 = vor.u32 %v6063, %v6064
      %v6067 = vsel %vm1495, %v6059, %v6066
      %v6068 = vrot.slane %v6063, 4
      %v6070 = vshrl.u32 %v6000, 16
      %v6072 = vrot.slane %v6070, 7
      %v6073 = vshll.u32 %v6000, 16
      %v6075 = vor.u32 %v6072, %v6073
      %v6076 = vsel %vm1495, %v6068, %v6075
      %v6077 = vrot.slane %v6072, 4
      %v6079 = vshrl.u32 %v6001, 16
      %v6081 = vrot.slane %v6079, 7
      %v6082 = vshll.u32 %v6001, 16
      %v6084 = vor.u32 %v6081, %v6082
      %v6085 = vsel %vm1495, %v6077, %v6084
      %v6086 = vrot.slane %v6081, 4
      %v6088 = vshrl.u32 %v6002, 16
      %v6090 = vrot.slane %v6088, 7
      %v6091 = vshll.u32 %v6002, 16
      %v6093 = vor.u32 %v6090, %v6091
      %v6094 = vsel %vm1495, %v6086, %v6093
      %v6095 = vrot.slane %v6090, 4
      %v6097 = vshrl.u32 %v6003, 16
      %v6099 = vrot.slane %v6097, 7
      %v6100 = vshll.u32 %v6003, 16
      %v6102 = vor.u32 %v6099, %v6100
      %v6103 = vsel %vm1495, %v6095, %v6102
      %v6104 = vrot.slane %v6099, 4
      %v6106 = vshrl.u32 %v6004, 16
      %v6108 = vrot.slane %v6106, 7
      %v6109 = vshll.u32 %v6004, 16
      %v6111 = vor.u32 %v6108, %v6109
      %v6112 = vsel %vm1495, %v6104, %v6111
      %v6113 = vrot.slane %v6108, 4
      %v6115 = vshrl.u32 %v6005, 16
      %v6117 = vrot.slane %v6115, 7
      %v6118 = vshll.u32 %v6005, 16
      %v6120 = vor.u32 %v6117, %v6118
      %v6121 = vsel %vm1495, %v6113, %v6120
      %v6122 = vrot.slane %v6117, 4
      %v6124 = vshrl.u32 %v6006, 16
      %v6126 = vrot.slane %v6124, 7
      %v6127 = vshll.u32 %v6006, 16
      %v6129 = vor.u32 %v6126, %v6127
      %v6130 = vsel %vm1495, %v6122, %v6129
      %v6131 = vrot.slane %v6126, 4
      %v6133 = vshrl.u32 %v6007, 16
      %v6135 = vrot.slane %v6133, 7
      %v6136 = vshll.u32 %v6007, 16
      %v6138 = vor.u32 %v6135, %v6136
      %v6139 = vsel %vm1495, %v6131, %v6138
      %v6140 = vrot.slane %v6135, 4
      %v6142 = vshrl.u32 %v6008, 16
      %v6144 = vrot.slane %v6142, 7
      %v6145 = vshll.u32 %v6008, 16
      %v6147 = vor.u32 %v6144, %v6145
      %v6148 = vsel %vm1495, %v6140, %v6147
      %v6149 = vrot.slane %v6144, 4
      %v6151 = vshrl.u32 %v6009, 16
      %v6153 = vrot.slane %v6151, 7
      %v6154 = vshll.u32 %v6009, 16
      %v6156 = vor.u32 %v6153, %v6154
      %v6157 = vsel %vm1495, %v6149, %v6156
      %v6158 = vrot.slane %v6153, 4
      %v6160 = vshrl.u32 %v6010, 16
      %v6162 = vrot.slane %v6160, 7
      %v6163 = vshll.u32 %v6010, 16
      %v6165 = vor.u32 %v6162, %v6163
      %v6166 = vsel %vm1495, %v6158, %v6165
      %v6167 = vrot.slane %v6162, 4
      %v6169 = vshrl.u32 %v6011, 16
      %v6171 = vrot.slane %v6169, 7
      %v6172 = vshll.u32 %v6011, 16
      %v6174 = vor.u32 %v6171, %v6172
      %v6175 = vsel %vm1495, %v6167, %v6174
      %v6176 = vrot.slane %v6171, 4
      %v6178 = vshrl.u32 %v6012, 16
      %v6180 = vrot.slane %v6178, 7
      %v6181 = vshll.u32 %v6012, 16
      %v6183 = vor.u32 %v6180, %v6181
      %v6184 = vsel %vm1495, %v6176, %v6183
      %v6185 = vrot.slane %v6180, 4
      %v6187 = vshrl.u32 %v6013, 16
      %v6189 = vrot.slane %v6187, 7
      %v6190 = vshll.u32 %v6013, 16
      %v6192 = vor.u32 %v6189, %v6190
      %v6193 = vsel %vm1495, %v6185, %v6192
      %v6194 = vrot.slane %v6189, 4
      %v6196 = vshrl.u32 %v6014, 16
      %v6198 = vrot.slane %v6196, 7
      %v6199 = vshll.u32 %v6014, 16
      %v6201 = vor.u32 %v6198, %v6199
      %v6202 = vsel %vm1495, %v6194, %v6201
      %v6203 = vrot.slane %v6198, 4
      %v6205 = vshrl.u32 %v6015, 16
      %v6207 = vrot.slane %v6205, 7
      %v6208 = vshll.u32 %v6015, 16
      %v6210 = vor.u32 %v6207, %v6208
      %v6211 = vsel %vm1495, %v6203, %v6210
      %v6212 = vrot.slane %v6207, 4
      %v6214 = vshrl.u32 %v6016, 16
      %v6216 = vrot.slane %v6214, 7
      %v6217 = vshll.u32 %v6016, 16
      %v6219 = vor.u32 %v6216, %v6217
      %v6220 = vsel %vm1495, %v6212, %v6219
      %v6221 = vrot.slane %v6216, 4
      %v6223 = vshrl.u32 %v6017, 16
      %v6225 = vrot.slane %v6223, 7
      %v6226 = vshll.u32 %v6017, 16
      %v6228 = vor.u32 %v6225, %v6226
      %v6229 = vsel %vm1495, %v6221, %v6228
      %v6230 = vrot.slane %v6225, 4
      %v6232 = vshrl.u32 %v6018, 16
      %v6234 = vrot.slane %v6232, 7
      %v6235 = vshll.u32 %v6018, 16
      %v6237 = vor.u32 %v6234, %v6235
      %v6238 = vsel %vm1495, %v6230, %v6237
      %v6239 = vrot.slane %v6234, 4
      %v6241 = vshrl.u32 %v6019, 16
      %v6243 = vrot.slane %v6241, 7
      %v6244 = vshll.u32 %v6019, 16
      %v6246 = vor.u32 %v6243, %v6244
      %v6247 = vsel %vm1495, %v6239, %v6246
      %v6248 = vrot.slane %v6243, 4
      %v6250 = vshrl.u32 %v6020, 16
      %v6252 = vrot.slane %v6250, 7
      %v6253 = vshll.u32 %v6020, 16
      %v6255 = vor.u32 %v6252, %v6253
      %v6256 = vsel %vm1495, %v6248, %v6255
      %v6257 = vrot.slane %v6252, 4
      %v6259 = vshrl.u32 %v6021, 16
      %v6261 = vrot.slane %v6259, 7
      %v6262 = vshll.u32 %v6021, 16
      %v6264 = vor.u32 %v6261, %v6262
      %v6265 = vsel %vm1495, %v6257, %v6264
      %v6266 = vrot.slane %v6261, 4
      %v6268 = vshrl.u32 %v6022, 16
      %v6270 = vrot.slane %v6268, 7
      %v6271 = vshll.u32 %v6022, 16
      %v6273 = vor.u32 %v6270, %v6271
      %v6274 = vsel %vm1495, %v6266, %v6273
      %v6275 = vrot.slane %v6270, 4
      %v6277 = vshrl.u32 %v6023, 16
      %v6279 = vrot.slane %v6277, 7
      %v6280 = vshll.u32 %v6023, 16
      %v6282 = vor.u32 %v6279, %v6280
      %v6283 = vsel %vm1495, %v6275, %v6282
      %v6284 = vrot.slane %v6279, 4
      %v6286 = vshrl.u32 %v6024, 16
      %v6288 = vrot.slane %v6286, 7
      %v6289 = vshll.u32 %v6024, 16
      %v6291 = vor.u32 %v6288, %v6289
      %v6292 = vsel %vm1495, %v6284, %v6291
      %v6293 = vrot.slane %v6288, 4
      %v6295 = vshrl.u32 %v6025, 16
      %v6297 = vrot.slane %v6295, 7
      %v6298 = vshll.u32 %v6025, 16
      %v6300 = vor.u32 %v6297, %v6298
      %v6301 = vsel %vm1495, %v6293, %v6300
      %v6302 = vrot.slane %v6297, 4
      %v6304 = vshrl.u32 %v6026, 16
      %v6306 = vrot.slane %v6304, 7
      %v6307 = vshll.u32 %v6026, 16
      %v6309 = vor.u32 %v6306, %v6307
      %v6310 = vsel %vm1495, %v6302, %v6309
      %v6311 = vrot.slane %v6306, 4
      %v6313 = vshrl.u32 %v6027, 16
      %v6315 = vrot.slane %v6313, 7
      %v6316 = vshll.u32 %v6027, 16
      %v6318 = vor.u32 %v6315, %v6316
      %v6319 = vsel %vm1495, %v6311, %v6318
      %6352 = vst.msk [vmem:[#allocation3] sm:$0xf] %vm228, %v6040
      %6353 = vst.msk [vmem:[#allocation3 + $0x4] sm:$0xf] %vm228, %v6049
      %6354 = vst.msk [vmem:[#allocation3 + $0x8] sm:$0xf] %vm228, %v6058
      %6355 = vst.msk [vmem:[#allocation3 + $0xc] sm:$0xf] %vm228, %v6067
      %6356 = vst.msk [vmem:[#allocation3 + $0x10] sm:$0xf] %vm228, %v6076
      %6357 = vst.msk [vmem:[#allocation3 + $0x14] sm:$0xf] %vm228, %v6085
      %6358 = vst.msk [vmem:[#allocation3 + $0x18] sm:$0xf] %vm228, %v6094
      %6359 = vst.msk [vmem:[#allocation3 + $0x1c] sm:$0xf] %vm228, %v6103
      %6360 = vst.msk [vmem:[#allocation3 + $0x20] sm:$0xf] %vm228, %v6112
      %6361 = vst.msk [vmem:[#allocation3 + $0x24] sm:$0xf] %vm228, %v6121
      %6362 = vst.msk [vmem:[#allocation3 + $0x28] sm:$0xf] %vm228, %v6130
      %6363 = vst.msk [vmem:[#allocation3 + $0x2c] sm:$0xf] %vm228, %v6139
      %6364 = vst.msk [vmem:[#allocation3 + $0x30] sm:$0xf] %vm228, %v6148
      %6365 = vst.msk [vmem:[#allocation3 + $0x34] sm:$0xf] %vm228, %v6157
      %6366 = vst.msk [vmem:[#allocation3 + $0x38] sm:$0xf] %vm228, %v6166
      %6367 = vst.msk [vmem:[#allocation3 + $0x3c] sm:$0xf] %vm228, %v6175
      %6368 = vst.msk [vmem:[#allocation3 + $0x40] sm:$0xf] %vm228, %v6184
      %6369 = vst.msk [vmem:[#allocation3 + $0x44] sm:$0xf] %vm228, %v6193
      %6370 = vst.msk [vmem:[#allocation3 + $0x48] sm:$0xf] %vm228, %v6202
      %6371 = vst.msk [vmem:[#allocation3 + $0x4c] sm:$0xf] %vm228, %v6211
      %6372 = vst.msk [vmem:[#allocation3 + $0x50] sm:$0xf] %vm228, %v6220
      %6373 = vst.msk [vmem:[#allocation3 + $0x54] sm:$0xf] %vm228, %v6229
      %6374 = vst.msk [vmem:[#allocation3 + $0x58] sm:$0xf] %vm228, %v6238
      %6375 = vst.msk [vmem:[#allocation3 + $0x5c] sm:$0xf] %vm228, %v6247
      %6376 = vst.msk [vmem:[#allocation3 + $0x60] sm:$0xf] %vm228, %v6256
      %6377 = vst.msk [vmem:[#allocation3 + $0x64] sm:$0xf] %vm228, %v6265
      %6378 = vst.msk [vmem:[#allocation3 + $0x68] sm:$0xf] %vm228, %v6274
      %6379 = vst.msk [vmem:[#allocation3 + $0x6c] sm:$0xf] %vm228, %v6283
      %6380 = vst.msk [vmem:[#allocation3 + $0x70] sm:$0xf] %vm228, %v6292
      %6381 = vst.msk [vmem:[#allocation3 + $0x74] sm:$0xf] %vm228, %v6301
      %6382 = vst.msk [vmem:[#allocation3 + $0x78] sm:$0xf] %vm228, %v6310
      %6383 = vst.msk [vmem:[#allocation3 + $0x7c] sm:$0xf] %vm228, %v6319
      %v6384 = vld [vmem:[#allocation2 + $0x8] sm:$0xf]
      %v6385 = vld [vmem:[#allocation2 + $0xc] sm:$0xf]
      %v6386 = vld [vmem:[#allocation2 + $0x10] sm:$0xf]
      %v6387 = vld [vmem:[#allocation2 + $0x14] sm:$0xf]
      %v6388 = vld [vmem:[#allocation2 + $0x18] sm:$0xf]
      %v6389 = vld [vmem:[#allocation2 + $0x1c] sm:$0xf]
      %v6390 = vld [vmem:[#allocation2 + $0x20] sm:$0xf]
      %v6391 = vld [vmem:[#allocation2 + $0x24] sm:$0xf]
      %v6392 = vld [vmem:[#allocation2 + $0x28] sm:$0xf]
      %v6393 = vld [vmem:[#allocation2 + $0x2c] sm:$0xf]
      %v6394 = vld [vmem:[#allocation2 + $0x30] sm:$0xf]
      %v6395 = vld [vmem:[#allocation2 + $0x34] sm:$0xf]
      %v6396 = vld [vmem:[#allocation2 + $0x38] sm:$0xf]
      %v6397 = vld [vmem:[#allocation2 + $0x3c] sm:$0xf]
      %v6398 = vld [vmem:[#allocation2 + $0x40] sm:$0xf]
      %v6399 = vld [vmem:[#allocation2 + $0x44] sm:$0xf]
      %v6400 = vld [vmem:[#allocation2 + $0x48] sm:$0xf]
      %v6401 = vld [vmem:[#allocation2 + $0x4c] sm:$0xf]
      %v6402 = vld [vmem:[#allocation2 + $0x50] sm:$0xf]
      %v6403 = vld [vmem:[#allocation2 + $0x54] sm:$0xf]
      %v6404 = vld [vmem:[#allocation2 + $0x58] sm:$0xf]
      %v6405 = vld [vmem:[#allocation2 + $0x5c] sm:$0xf]
      %v6406 = vld [vmem:[#allocation2 + $0x60] sm:$0xf]
      %v6407 = vld [vmem:[#allocation2 + $0x64] sm:$0xf]
      %v6408 = vld [vmem:[#allocation2 + $0x68] sm:$0xf]
      %v6409 = vld [vmem:[#allocation2 + $0x6c] sm:$0xf]
      %v6410 = vld [vmem:[#allocation2 + $0x70] sm:$0xf]
      %v6411 = vld [vmem:[#allocation2 + $0x74] sm:$0xf]
      %v6412 = vld [vmem:[#allocation2 + $0x78] sm:$0xf]
      %v6413 = vld [vmem:[#allocation2 + $0x7c] sm:$0xf]
      %v6414 = vld [vmem:[#allocation2 + $0x80] sm:$0xf]
      %v6415 = vld [vmem:[#allocation2 + $0x84] sm:$0xf]
      %6448 = vrot.lane.b32.xlu0 %v6384, 8
      %v6449 = vpop.permute.xlu0 %6448
      %6450 = vrot.lane.b32.xlu0 %v6385, 8
      %v6451 = vpop.permute.xlu0 %6450
      %6452 = vrot.lane.b32.xlu0 %v6386, 8
      %v6453 = vpop.permute.xlu0 %6452
      %6454 = vrot.lane.b32.xlu0 %v6387, 8
      %v6455 = vpop.permute.xlu0 %6454
      %6456 = vrot.lane.b32.xlu0 %v6388, 8
      %v6457 = vpop.permute.xlu0 %6456
      %6458 = vrot.lane.b32.xlu0 %v6389, 8
      %v6459 = vpop.permute.xlu0 %6458
      %6460 = vrot.lane.b32.xlu0 %v6390, 8
      %v6461 = vpop.permute.xlu0 %6460
      %6462 = vrot.lane.b32.xlu0 %v6391, 8
      %v6463 = vpop.permute.xlu0 %6462
      %6464 = vrot.lane.b32.xlu0 %v6392, 8
      %v6465 = vpop.permute.xlu0 %6464
      %6466 = vrot.lane.b32.xlu0 %v6393, 8
      %v6467 = vpop.permute.xlu0 %6466
      %6468 = vrot.lane.b32.xlu0 %v6394, 8
      %v6469 = vpop.permute.xlu0 %6468
      %6470 = vrot.lane.b32.xlu0 %v6395, 8
      %v6471 = vpop.permute.xlu0 %6470
      %6472 = vrot.lane.b32.xlu0 %v6396, 8
      %v6473 = vpop.permute.xlu0 %6472
      %6474 = vrot.lane.b32.xlu0 %v6397, 8
      %v6475 = vpop.permute.xlu0 %6474
      %6476 = vrot.lane.b32.xlu0 %v6398, 8
      %v6477 = vpop.permute.xlu0 %6476
      %6478 = vrot.lane.b32.xlu0 %v6399, 8
      %v6479 = vpop.permute.xlu0 %6478
      %6480 = vrot.lane.b32.xlu0 %v6400, 8
      %v6481 = vpop.permute.xlu0 %6480
      %6482 = vrot.lane.b32.xlu0 %v6401, 8
      %v6483 = vpop.permute.xlu0 %6482
      %6484 = vrot.lane.b32.xlu0 %v6402, 8
      %v6485 = vpop.permute.xlu0 %6484
      %6486 = vrot.lane.b32.xlu0 %v6403, 8
      %v6487 = vpop.permute.xlu0 %6486
      %6488 = vrot.lane.b32.xlu0 %v6404, 8
      %v6489 = vpop.permute.xlu0 %6488
      %6490 = vrot.lane.b32.xlu0 %v6405, 8
      %v6491 = vpop.permute.xlu0 %6490
      %6492 = vrot.lane.b32.xlu0 %v6406, 8
      %v6493 = vpop.permute.xlu0 %6492
      %6494 = vrot.lane.b32.xlu0 %v6407, 8
      %v6495 = vpop.permute.xlu0 %6494
      %6496 = vrot.lane.b32.xlu0 %v6408, 8
      %v6497 = vpop.permute.xlu0 %6496
      %6498 = vrot.lane.b32.xlu0 %v6409, 8
      %v6499 = vpop.permute.xlu0 %6498
      %6500 = vrot.lane.b32.xlu0 %v6410, 8
      %v6501 = vpop.permute.xlu0 %6500
      %6502 = vrot.lane.b32.xlu0 %v6411, 8
      %v6503 = vpop.permute.xlu0 %6502
      %6504 = vrot.lane.b32.xlu0 %v6412, 8
      %v6505 = vpop.permute.xlu0 %6504
      %6506 = vrot.lane.b32.xlu0 %v6413, 8
      %v6507 = vpop.permute.xlu0 %6506
      %6508 = vrot.lane.b32.xlu0 %v6414, 8
      %v6509 = vpop.permute.xlu0 %6508
      %6510 = vrot.lane.b32.xlu0 %v6415, 8
      %v6511 = vpop.permute.xlu0 %6510
      %vm6544 = vcmask 126016
      %6545 = vst.msk [vmem:[#allocation3] sm:$0xf] %vm6544, %v6449
      %6546 = vst.msk [vmem:[#allocation3 + $0x4] sm:$0xf] %vm6544, %v6451
      %6547 = vst.msk [vmem:[#allocation3 + $0x8] sm:$0xf] %vm6544, %v6453
      %6548 = vst.msk [vmem:[#allocation3 + $0xc] sm:$0xf] %vm6544, %v6455
      %6549 = vst.msk [vmem:[#allocation3 + $0x10] sm:$0xf] %vm6544, %v6457
      %6550 = vst.msk [vmem:[#allocation3 + $0x14] sm:$0xf] %vm6544, %v6459
      %6551 = vst.msk [vmem:[#allocation3 + $0x18] sm:$0xf] %vm6544, %v6461
      %6552 = vst.msk [vmem:[#allocation3 + $0x1c] sm:$0xf] %vm6544, %v6463
      %6553 = vst.msk [vmem:[#allocation3 + $0x20] sm:$0xf] %vm6544, %v6465
      %6554 = vst.msk [vmem:[#allocation3 + $0x24] sm:$0xf] %vm6544, %v6467
      %6555 = vst.msk [vmem:[#allocation3 + $0x28] sm:$0xf] %vm6544, %v6469
      %6556 = vst.msk [vmem:[#allocation3 + $0x2c] sm:$0xf] %vm6544, %v6471
      %6557 = vst.msk [vmem:[#allocation3 + $0x30] sm:$0xf] %vm6544, %v6473
      %6558 = vst.msk [vmem:[#allocation3 + $0x34] sm:$0xf] %vm6544, %v6475
      %6559 = vst.msk [vmem:[#allocation3 + $0x38] sm:$0xf] %vm6544, %v6477
      %6560 = vst.msk [vmem:[#allocation3 + $0x3c] sm:$0xf] %vm6544, %v6479
      %6561 = vst.msk [vmem:[#allocation3 + $0x40] sm:$0xf] %vm6544, %v6481
      %6562 = vst.msk [vmem:[#allocation3 + $0x44] sm:$0xf] %vm6544, %v6483
      %6563 = vst.msk [vmem:[#allocation3 + $0x48] sm:$0xf] %vm6544, %v6485
      %6564 = vst.msk [vmem:[#allocation3 + $0x4c] sm:$0xf] %vm6544, %v6487
      %6565 = vst.msk [vmem:[#allocation3 + $0x50] sm:$0xf] %vm6544, %v6489
      %6566 = vst.msk [vmem:[#allocation3 + $0x54] sm:$0xf] %vm6544, %v6491
      %6567 = vst.msk [vmem:[#allocation3 + $0x58] sm:$0xf] %vm6544, %v6493
      %6568 = vst.msk [vmem:[#allocation3 + $0x5c] sm:$0xf] %vm6544, %v6495
      %6569 = vst.msk [vmem:[#allocation3 + $0x60] sm:$0xf] %vm6544, %v6497
      %6570 = vst.msk [vmem:[#allocation3 + $0x64] sm:$0xf] %vm6544, %v6499
      %6571 = vst.msk [vmem:[#allocation3 + $0x68] sm:$0xf] %vm6544, %v6501
      %6572 = vst.msk [vmem:[#allocation3 + $0x6c] sm:$0xf] %vm6544, %v6503
      %6573 = vst.msk [vmem:[#allocation3 + $0x70] sm:$0xf] %vm6544, %v6505
      %6574 = vst.msk [vmem:[#allocation3 + $0x74] sm:$0xf] %vm6544, %v6507
      %6575 = vst.msk [vmem:[#allocation3 + $0x78] sm:$0xf] %vm6544, %v6509
      %6576 = vst.msk [vmem:[#allocation3 + $0x7c] sm:$0xf] %vm6544, %v6511
      %v6577 = vld [vmem:[#allocation2 + $0x8] sm:$0xf]
      %v6578 = vld [vmem:[#allocation2 + $0xc] sm:$0xf]
      %v6579 = vld [vmem:[#allocation2 + $0x10] sm:$0xf]
      %v6580 = vld [vmem:[#allocation2 + $0x14] sm:$0xf]
      %v6581 = vld [vmem:[#allocation2 + $0x18] sm:$0xf]
      %v6582 = vld [vmem:[#allocation2 + $0x1c] sm:$0xf]
      %v6583 = vld [vmem:[#allocation2 + $0x20] sm:$0xf]
      %v6584 = vld [vmem:[#allocation2 + $0x24] sm:$0xf]
      %v6585 = vld [vmem:[#allocation2 + $0x28] sm:$0xf]
      %v6586 = vld [vmem:[#allocation2 + $0x2c] sm:$0xf]
      %v6587 = vld [vmem:[#allocation2 + $0x30] sm:$0xf]
      %v6588 = vld [vmem:[#allocation2 + $0x34] sm:$0xf]
      %v6589 = vld [vmem:[#allocation2 + $0x38] sm:$0xf]
      %v6590 = vld [vmem:[#allocation2 + $0x3c] sm:$0xf]
      %v6591 = vld [vmem:[#allocation2 + $0x40] sm:$0xf]
      %v6592 = vld [vmem:[#allocation2 + $0x44] sm:$0xf]
      %v6593 = vld [vmem:[#allocation2 + $0x48] sm:$0xf]
      %v6594 = vld [vmem:[#allocation2 + $0x4c] sm:$0xf]
      %v6595 = vld [vmem:[#allocation2 + $0x50] sm:$0xf]
      %v6596 = vld [vmem:[#allocation2 + $0x54] sm:$0xf]
      %v6597 = vld [vmem:[#allocation2 + $0x58] sm:$0xf]
      %v6598 = vld [vmem:[#allocation2 + $0x5c] sm:$0xf]
      %v6599 = vld [vmem:[#allocation2 + $0x60] sm:$0xf]
      %v6600 = vld [vmem:[#allocation2 + $0x64] sm:$0xf]
      %v6601 = vld [vmem:[#allocation2 + $0x68] sm:$0xf]
      %v6602 = vld [vmem:[#allocation2 + $0x6c] sm:$0xf]
      %v6603 = vld [vmem:[#allocation2 + $0x70] sm:$0xf]
      %v6604 = vld [vmem:[#allocation2 + $0x74] sm:$0xf]
      %v6605 = vld [vmem:[#allocation2 + $0x78] sm:$0xf]
      %v6606 = vld [vmem:[#allocation2 + $0x7c] sm:$0xf]
      %v6607 = vld [vmem:[#allocation2 + $0x80] sm:$0xf]
      %v6608 = vld [vmem:[#allocation2 + $0x84] sm:$0xf]
      %v6609 = vld [vmem:[#allocation2 + $0x88] sm:$0x1]
      %v6610 = vsel %vm2493, %v6577, 0
      %v6611 = vsel %vm2494, %v6578, 0
      %v6612 = vsel %vm2495, %v6579, 0
      %v6613 = vsel %vm2496, %v6580, 0
      %v6614 = vsel %vm2497, %v6581, 0
      %v6615 = vsel %vm2498, %v6582, 0
      %v6616 = vsel %vm2499, %v6583, 0
      %v6617 = vsel %vm2500, %v6584, 0
      %v6618 = vsel %vm2501, %v6585, 0
      %v6619 = vsel %vm2502, %v6586, 0
      %v6620 = vsel %vm2503, %v6587, 0
      %v6621 = vsel %vm2504, %v6588, 0
      %v6622 = vsel %vm2505, %v6589, 0
      %v6623 = vsel %vm2506, %v6590, 0
      %v6624 = vsel %vm2507, %v6591, 0
      %v6625 = vsel %vm2508, %v6592, 0
      %v6626 = vsel %vm2509, %v6593, 0
      %v6627 = vsel %vm2510, %v6594, 0
      %v6628 = vsel %vm2511, %v6595, 0
      %v6629 = vsel %vm2512, %v6596, 0
      %v6630 = vsel %vm2513, %v6597, 0
      %v6631 = vsel %vm2514, %v6598, 0
      %v6632 = vsel %vm2515, %v6599, 0
      %v6633 = vsel %vm2516, %v6600, 0
      %v6634 = vsel %vm2517, %v6601, 0
      %v6635 = vsel %vm2518, %v6602, 0
      %v6636 = vsel %vm2519, %v6603, 0
      %v6637 = vsel %vm2520, %v6604, 0
      %v6638 = vsel %vm2521, %v6605, 0
      %v6639 = vsel %vm2522, %v6606, 0
      %v6640 = vsel %vm2523, %v6607, 0
      %v6641 = vsel %vm2524, %v6608, 0
      %v6642 = vsel %vm2525, %v6609, 0
      %v6644 = vshrl.u32 %v6610, 16
      %v6646 = vrot.slane %v6644, 4
      %v6647 = vshll.u32 %v6610, 16
      %v6649 = vrot.slane %v6647, 5
      %v6650 = vor.u32 %v6646, %v6649
      %v6651 = vrot.slane %v6650, 4
      %v6653 = vshll.u32 %v6611, 16
      %v6655 = vrot.slane %v6653, 5
      %v6656 = vsel %vm1107, %v6651, %v6655
      %v6657 = vshrl.u32 %v6611, 16
      %v6659 = vrot.slane %v6657, 4
      %v6660 = vor.u32 %v6659, %v6655
      %v6661 = vrot.slane %v6660, 4
      %v6663 = vshll.u32 %v6612, 16
      %v6665 = vrot.slane %v6663, 5
      %v6666 = vsel %vm1107, %v6661, %v6665
      %v6667 = vshrl.u32 %v6612, 16
      %v6669 = vrot.slane %v6667, 4
      %v6670 = vor.u32 %v6669, %v6665
      %v6671 = vrot.slane %v6670, 4
      %v6673 = vshll.u32 %v6613, 16
      %v6675 = vrot.slane %v6673, 5
      %v6676 = vsel %vm1107, %v6671, %v6675
      %v6677 = vshrl.u32 %v6613, 16
      %v6679 = vrot.slane %v6677, 4
      %v6680 = vor.u32 %v6679, %v6675
      %v6681 = vrot.slane %v6680, 4
      %v6683 = vshll.u32 %v6614, 16
      %v6685 = vrot.slane %v6683, 5
      %v6686 = vsel %vm1107, %v6681, %v6685
      %v6687 = vshrl.u32 %v6614, 16
      %v6689 = vrot.slane %v6687, 4
      %v6690 = vor.u32 %v6689, %v6685
      %v6691 = vrot.slane %v6690, 4
      %v6693 = vshll.u32 %v6615, 16
      %v6695 = vrot.slane %v6693, 5
      %v6696 = vsel %vm1107, %v6691, %v6695
      %v6697 = vshrl.u32 %v6615, 16
      %v6699 = vrot.slane %v6697, 4
      %v6700 = vor.u32 %v6699, %v6695
      %v6701 = vrot.slane %v6700, 4
      %v6703 = vshll.u32 %v6616, 16
      %v6705 = vrot.slane %v6703, 5
      %v6706 = vsel %vm1107, %v6701, %v6705
      %v6707 = vshrl.u32 %v6616, 16
      %v6709 = vrot.slane %v6707, 4
      %v6710 = vor.u32 %v6709, %v6705
      %v6711 = vrot.slane %v6710, 4
      %v6713 = vshll.u32 %v6617, 16
      %v6715 = vrot.slane %v6713, 5
      %v6716 = vsel %vm1107, %v6711, %v6715
      %v6717 = vshrl.u32 %v6617, 16
      %v6719 = vrot.slane %v6717, 4
      %v6720 = vor.u32 %v6719, %v6715
      %v6721 = vrot.slane %v6720, 4
      %v6723 = vshll.u32 %v6618, 16
      %v6725 = vrot.slane %v6723, 5
      %v6726 = vsel %vm1107, %v6721, %v6725
      %v6727 = vshrl.u32 %v6618, 16
      %v6729 = vrot.slane %v6727, 4
      %v6730 = vor.u32 %v6729, %v6725
      %v6731 = vrot.slane %v6730, 4
      %v6733 = vshll.u32 %v6619, 16
      %v6735 = vrot.slane %v6733, 5
      %v6736 = vsel %vm1107, %v6731, %v6735
      %v6737 = vshrl.u32 %v6619, 16
      %v6739 = vrot.slane %v6737, 4
      %v6740 = vor.u32 %v6739, %v6735
      %v6741 = vrot.slane %v6740, 4
      %v6743 = vshll.u32 %v6620, 16
      %v6745 = vrot.slane %v6743, 5
      %v6746 = vsel %vm1107, %v6741, %v6745
      %v6747 = vshrl.u32 %v6620, 16
      %v6749 = vrot.slane %v6747, 4
      %v6750 = vor.u32 %v6749, %v6745
      %v6751 = vrot.slane %v6750, 4
      %v6753 = vshll.u32 %v6621, 16
      %v6755 = vrot.slane %v6753, 5
      %v6756 = vsel %vm1107, %v6751, %v6755
      %v6757 = vshrl.u32 %v6621, 16
      %v6759 = vrot.slane %v6757, 4
      %v6760 = vor.u32 %v6759, %v6755
      %v6761 = vrot.slane %v6760, 4
      %v6763 = vshll.u32 %v6622, 16
      %v6765 = vrot.slane %v6763, 5
      %v6766 = vsel %vm1107, %v6761, %v6765
      %v6767 = vshrl.u32 %v6622, 16
      %v6769 = vrot.slane %v6767, 4
      %v6770 = vor.u32 %v6769, %v6765
      %v6771 = vrot.slane %v6770, 4
      %v6773 = vshll.u32 %v6623, 16
      %v6775 = vrot.slane %v6773, 5
      %v6776 = vsel %vm1107, %v6771, %v6775
      %v6777 = vshrl.u32 %v6623, 16
      %v6779 = vrot.slane %v6777, 4
      %v6780 = vor.u32 %v6779, %v6775
      %v6781 = vrot.slane %v6780, 4
      %v6783 = vshll.u32 %v6624, 16
      %v6785 = vrot.slane %v6783, 5
      %v6786 = vsel %vm1107, %v6781, %v6785
      %v6787 = vshrl.u32 %v6624, 16
      %v6789 = vrot.slane %v6787, 4
      %v6790 = vor.u32 %v6789, %v6785
      %v6791 = vrot.slane %v6790, 4
      %v6793 = vshll.u32 %v6625, 16
      %v6795 = vrot.slane %v6793, 5
      %v6796 = vsel %vm1107, %v6791, %v6795
      %v6797 = vshrl.u32 %v6625, 16
      %v6799 = vrot.slane %v6797, 4
      %v6800 = vor.u32 %v6799, %v6795
      %v6801 = vrot.slane %v6800, 4
      %v6803 = vshll.u32 %v6626, 16
      %v6805 = vrot.slane %v6803, 5
      %v6806 = vsel %vm1107, %v6801, %v6805
      %v6807 = vshrl.u32 %v6626, 16
      %v6809 = vrot.slane %v6807, 4
      %v6810 = vor.u32 %v6809, %v6805
      %v6811 = vrot.slane %v6810, 4
      %v6813 = vshll.u32 %v6627, 16
      %v6815 = vrot.slane %v6813, 5
      %v6816 = vsel %vm1107, %v6811, %v6815
      %v6817 = vshrl.u32 %v6627, 16
      %v6819 = vrot.slane %v6817, 4
      %v6820 = vor.u32 %v6819, %v6815
      %v6821 = vrot.slane %v6820, 4
      %v6823 = vshll.u32 %v6628, 16
      %v6825 = vrot.slane %v6823, 5
      %v6826 = vsel %vm1107, %v6821, %v6825
      %v6827 = vshrl.u32 %v6628, 16
      %v6829 = vrot.slane %v6827, 4
      %v6830 = vor.u32 %v6829, %v6825
      %v6831 = vrot.slane %v6830, 4
      %v6833 = vshll.u32 %v6629, 16
      %v6835 = vrot.slane %v6833, 5
      %v6836 = vsel %vm1107, %v6831, %v6835
      %v6837 = vshrl.u32 %v6629, 16
      %v6839 = vrot.slane %v6837, 4
      %v6840 = vor.u32 %v6839, %v6835
      %v6841 = vrot.slane %v6840, 4
      %v6843 = vshll.u32 %v6630, 16
      %v6845 = vrot.slane %v6843, 5
      %v6846 = vsel %vm1107, %v6841, %v6845
      %v6847 = vshrl.u32 %v6630, 16
      %v6849 = vrot.slane %v6847, 4
      %v6850 = vor.u32 %v6849, %v6845
      %v6851 = vrot.slane %v6850, 4
      %v6853 = vshll.u32 %v6631, 16
      %v6855 = vrot.slane %v6853, 5
      %v6856 = vsel %vm1107, %v6851, %v6855
      %v6857 = vshrl.u32 %v6631, 16
      %v6859 = vrot.slane %v6857, 4
      %v6860 = vor.u32 %v6859, %v6855
      %v6861 = vrot.slane %v6860, 4
      %v6863 = vshll.u32 %v6632, 16
      %v6865 = vrot.slane %v6863, 5
      %v6866 = vsel %vm1107, %v6861, %v6865
      %v6867 = vshrl.u32 %v6632, 16
      %v6869 = vrot.slane %v6867, 4
      %v6870 = vor.u32 %v6869, %v6865
      %v6871 = vrot.slane %v6870, 4
      %v6873 = vshll.u32 %v6633, 16
      %v6875 = vrot.slane %v6873, 5
      %v6876 = vsel %vm1107, %v6871, %v6875
      %v6877 = vshrl.u32 %v6633, 16
      %v6879 = vrot.slane %v6877, 4
      %v6880 = vor.u32 %v6879, %v6875
      %v6881 = vrot.slane %v6880, 4
      %v6883 = vshll.u32 %v6634, 16
      %v6885 = vrot.slane %v6883, 5
      %v6886 = vsel %vm1107, %v6881, %v6885
      %v6887 = vshrl.u32 %v6634, 16
      %v6889 = vrot.slane %v6887, 4
      %v6890 = vor.u32 %v6889, %v6885
      %v6891 = vrot.slane %v6890, 4
      %v6893 = vshll.u32 %v6635, 16
      %v6895 = vrot.slane %v6893, 5
      %v6896 = vsel %vm1107, %v6891, %v6895
      %v6897 = vshrl.u32 %v6635, 16
      %v6899 = vrot.slane %v6897, 4
      %v6900 = vor.u32 %v6899, %v6895
      %v6901 = vrot.slane %v6900, 4
      %v6903 = vshll.u32 %v6636, 16
      %v6905 = vrot.slane %v6903, 5
      %v6906 = vsel %vm1107, %v6901, %v6905
      %v6907 = vshrl.u32 %v6636, 16
      %v6909 = vrot.slane %v6907, 4
      %v6910 = vor.u32 %v6909, %v6905
      %v6911 = vrot.slane %v6910, 4
      %v6913 = vshll.u32 %v6637, 16
      %v6915 = vrot.slane %v6913, 5
      %v6916 = vsel %vm1107, %v6911, %v6915
      %v6917 = vshrl.u32 %v6637, 16
      %v6919 = vrot.slane %v6917, 4
      %v6920 = vor.u32 %v6919, %v6915
      %v6921 = vrot.slane %v6920, 4
      %v6923 = vshll.u32 %v6638, 16
      %v6925 = vrot.slane %v6923, 5
      %v6926 = vsel %vm1107, %v6921, %v6925
      %v6927 = vshrl.u32 %v6638, 16
      %v6929 = vrot.slane %v6927, 4
      %v6930 = vor.u32 %v6929, %v6925
      %v6931 = vrot.slane %v6930, 4
      %v6933 = vshll.u32 %v6639, 16
      %v6935 = vrot.slane %v6933, 5
      %v6936 = vsel %vm1107, %v6931, %v6935
      %v6937 = vshrl.u32 %v6639, 16
      %v6939 = vrot.slane %v6937, 4
      %v6940 = vor.u32 %v6939, %v6935
      %v6941 = vrot.slane %v6940, 4
      %v6943 = vshll.u32 %v6640, 16
      %v6945 = vrot.slane %v6943, 5
      %v6946 = vsel %vm1107, %v6941, %v6945
      %v6947 = vshrl.u32 %v6640, 16
      %v6949 = vrot.slane %v6947, 4
      %v6950 = vor.u32 %v6949, %v6945
      %v6951 = vrot.slane %v6950, 4
      %v6953 = vshll.u32 %v6641, 16
      %v6955 = vrot.slane %v6953, 5
      %v6956 = vsel %vm1107, %v6951, %v6955
      %v6957 = vshrl.u32 %v6641, 16
      %v6959 = vrot.slane %v6957, 4
      %v6960 = vor.u32 %v6959, %v6955
      %v6961 = vrot.slane %v6960, 4
      %v6963 = vshll.u32 %v6642, 16
      %v6965 = vrot.slane %v6963, 5
      %v6966 = vsel %vm1107, %v6961, %v6965
      %6967 = vrot.lane.b32.xlu0 %v6656, 16
      %v6968 = vpop.permute.xlu0 %6967
      %6969 = vrot.lane.b32.xlu0 %v6666, 16
      %v6970 = vpop.permute.xlu0 %6969
      %6971 = vrot.lane.b32.xlu0 %v6676, 16
      %v6972 = vpop.permute.xlu0 %6971
      %6973 = vrot.lane.b32.xlu0 %v6686, 16
      %v6974 = vpop.permute.xlu0 %6973
      %6975 = vrot.lane.b32.xlu0 %v6696, 16
      %v6976 = vpop.permute.xlu0 %6975
      %6977 = vrot.lane.b32.xlu0 %v6706, 16
      %v6978 = vpop.permute.xlu0 %6977
      %6979 = vrot.lane.b32.xlu0 %v6716, 16
      %v6980 = vpop.permute.xlu0 %6979
      %6981 = vrot.lane.b32.xlu0 %v6726, 16
      %v6982 = vpop.permute.xlu0 %6981
      %6983 = vrot.lane.b32.xlu0 %v6736, 16
      %v6984 = vpop.permute.xlu0 %6983
      %6985 = vrot.lane.b32.xlu0 %v6746, 16
      %v6986 = vpop.permute.xlu0 %6985
      %6987 = vrot.lane.b32.xlu0 %v6756, 16
      %v6988 = vpop.permute.xlu0 %6987
      %6989 = vrot.lane.b32.xlu0 %v6766, 16
      %v6990 = vpop.permute.xlu0 %6989
      %6991 = vrot.lane.b32.xlu0 %v6776, 16
      %v6992 = vpop.permute.xlu0 %6991
      %6993 = vrot.lane.b32.xlu0 %v6786, 16
      %v6994 = vpop.permute.xlu0 %6993
      %6995 = vrot.lane.b32.xlu0 %v6796, 16
      %v6996 = vpop.permute.xlu0 %6995
      %6997 = vrot.lane.b32.xlu0 %v6806, 16
      %v6998 = vpop.permute.xlu0 %6997
      %6999 = vrot.lane.b32.xlu0 %v6816, 16
      %v7000 = vpop.permute.xlu0 %6999
      %7001 = vrot.lane.b32.xlu0 %v6826, 16
      %v7002 = vpop.permute.xlu0 %7001
      %7003 = vrot.lane.b32.xlu0 %v6836, 16
      %v7004 = vpop.permute.xlu0 %7003
      %7005 = vrot.lane.b32.xlu0 %v6846, 16
      %v7006 = vpop.permute.xlu0 %7005
      %7007 = vrot.lane.b32.xlu0 %v6856, 16
      %v7008 = vpop.permute.xlu0 %7007
      %7009 = vrot.lane.b32.xlu0 %v6866, 16
      %v7010 = vpop.permute.xlu0 %7009
      %7011 = vrot.lane.b32.xlu0 %v6876, 16
      %v7012 = vpop.permute.xlu0 %7011
      %7013 = vrot.lane.b32.xlu0 %v6886, 16
      %v7014 = vpop.permute.xlu0 %7013
      %7015 = vrot.lane.b32.xlu0 %v6896, 16
      %v7016 = vpop.permute.xlu0 %7015
      %7017 = vrot.lane.b32.xlu0 %v6906, 16
      %v7018 = vpop.permute.xlu0 %7017
      %7019 = vrot.lane.b32.xlu0 %v6916, 16
      %v7020 = vpop.permute.xlu0 %7019
      %7021 = vrot.lane.b32.xlu0 %v6926, 16
      %v7022 = vpop.permute.xlu0 %7021
      %7023 = vrot.lane.b32.xlu0 %v6936, 16
      %v7024 = vpop.permute.xlu0 %7023
      %7025 = vrot.lane.b32.xlu0 %v6946, 16
      %v7026 = vpop.permute.xlu0 %7025
      %7027 = vrot.lane.b32.xlu0 %v6956, 16
      %v7028 = vpop.permute.xlu0 %7027
      %7029 = vrot.lane.b32.xlu0 %v6966, 16
      %v7030 = vpop.permute.xlu0 %7029
      %vm7063 = vcmask 191616
      %7064 = vst.msk [vmem:[#allocation3] sm:$0xf] %vm7063, %v6968
      %7065 = vst.msk [vmem:[#allocation3 + $0x4] sm:$0xf] %vm7063, %v6970
      %7066 = vst.msk [vmem:[#allocation3 + $0x8] sm:$0xf] %vm7063, %v6972
      %7067 = vst.msk [vmem:[#allocation3 + $0xc] sm:$0xf] %vm7063, %v6974
      %7068 = vst.msk [vmem:[#allocation3 + $0x10] sm:$0xf] %vm7063, %v6976
      %7069 = vst.msk [vmem:[#allocation3 + $0x14] sm:$0xf] %vm7063, %v6978
      %7070 = vst.msk [vmem:[#allocation3 + $0x18] sm:$0xf] %vm7063, %v6980
      %7071 = vst.msk [vmem:[#allocation3 + $0x1c] sm:$0xf] %vm7063, %v6982
      %7072 = vst.msk [vmem:[#allocation3 + $0x20] sm:$0xf] %vm7063, %v6984
      %7073 = vst.msk [vmem:[#allocation3 + $0x24] sm:$0xf] %vm7063, %v6986
      %7074 = vst.msk [vmem:[#allocation3 + $0x28] sm:$0xf] %vm7063, %v6988
      %7075 = vst.msk [vmem:[#allocation3 + $0x2c] sm:$0xf] %vm7063, %v6990
      %7076 = vst.msk [vmem:[#allocation3 + $0x30] sm:$0xf] %vm7063, %v6992
      %7077 = vst.msk [vmem:[#allocation3 + $0x34] sm:$0xf] %vm7063, %v6994
      %7078 = vst.msk [vmem:[#allocation3 + $0x38] sm:$0xf] %vm7063, %v6996
      %7079 = vst.msk [vmem:[#allocation3 + $0x3c] sm:$0xf] %vm7063, %v6998
      %7080 = vst.msk [vmem:[#allocation3 + $0x40] sm:$0xf] %vm7063, %v7000
      %7081 = vst.msk [vmem:[#allocation3 + $0x44] sm:$0xf] %vm7063, %v7002
      %7082 = vst.msk [vmem:[#allocation3 + $0x48] sm:$0xf] %vm7063, %v7004
      %7083 = vst.msk [vmem:[#allocation3 + $0x4c] sm:$0xf] %vm7063, %v7006
      %7084 = vst.msk [vmem:[#allocation3 + $0x50] sm:$0xf] %vm7063, %v7008
      %7085 = vst.msk [vmem:[#allocation3 + $0x54] sm:$0xf] %vm7063, %v7010
      %7086 = vst.msk [vmem:[#allocation3 + $0x58] sm:$0xf] %vm7063, %v7012
      %7087 = vst.msk [vmem:[#allocation3 + $0x5c] sm:$0xf] %vm7063, %v7014
      %7088 = vst.msk [vmem:[#allocation3 + $0x60] sm:$0xf] %vm7063, %v7016
      %7089 = vst.msk [vmem:[#allocation3 + $0x64] sm:$0xf] %vm7063, %v7018
      %7090 = vst.msk [vmem:[#allocation3 + $0x68] sm:$0xf] %vm7063, %v7020
      %7091 = vst.msk [vmem:[#allocation3 + $0x6c] sm:$0xf] %vm7063, %v7022
      %7092 = vst.msk [vmem:[#allocation3 + $0x70] sm:$0xf] %vm7063, %v7024
      %7093 = vst.msk [vmem:[#allocation3 + $0x74] sm:$0xf] %vm7063, %v7026
      %7094 = vst.msk [vmem:[#allocation3 + $0x78] sm:$0xf] %vm7063, %v7028
      %7095 = vst.msk [vmem:[#allocation3 + $0x7c] sm:$0xf] %vm7063, %v7030
      %v7096 = vld [vmem:[#allocation2 + $0xc] sm:$0x8]
      %v7097 = vld [vmem:[#allocation2 + $0x10] sm:$0xf]
      %v7098 = vld [vmem:[#allocation2 + $0x14] sm:$0xf]
      %v7099 = vld [vmem:[#allocation2 + $0x18] sm:$0xf]
      %v7100 = vld [vmem:[#allocation2 + $0x1c] sm:$0xf]
      %v7101 = vld [vmem:[#allocation2 + $0x20] sm:$0xf]
      %v7102 = vld [vmem:[#allocation2 + $0x24] sm:$0xf]
      %v7103 = vld [vmem:[#allocation2 + $0x28] sm:$0xf]
      %v7104 = vld [vmem:[#allocation2 + $0x2c] sm:$0xf]
      %v7105 = vld [vmem:[#allocation2 + $0x30] sm:$0xf]
      %v7106 = vld [vmem:[#allocation2 + $0x34] sm:$0xf]
      %v7107 = vld [vmem:[#allocation2 + $0x38] sm:$0xf]
      %v7108 = vld [vmem:[#allocation2 + $0x3c] sm:$0xf]
      %v7109 = vld [vmem:[#allocation2 + $0x40] sm:$0xf]
      %v7110 = vld [vmem:[#allocation2 + $0x44] sm:$0xf]
      %v7111 = vld [vmem:[#allocation2 + $0x48] sm:$0xf]
      %v7112 = vld [vmem:[#allocation2 + $0x4c] sm:$0xf]
      %v7113 = vld [vmem:[#allocation2 + $0x50] sm:$0xf]
      %v7114 = vld [vmem:[#allocation2 + $0x54] sm:$0xf]
      %v7115 = vld [vmem:[#allocation2 + $0x58] sm:$0xf]
      %v7116 = vld [vmem:[#allocation2 + $0x5c] sm:$0xf]
      %v7117 = vld [vmem:[#allocation2 + $0x60] sm:$0xf]
      %v7118 = vld [vmem:[#allocation2 + $0x64] sm:$0xf]
      %v7119 = vld [vmem:[#allocation2 + $0x68] sm:$0xf]
      %v7120 = vld [vmem:[#allocation2 + $0x6c] sm:$0xf]
      %v7121 = vld [vmem:[#allocation2 + $0x70] sm:$0xf]
      %v7122 = vld [vmem:[#allocation2 + $0x74] sm:$0xf]
      %v7123 = vld [vmem:[#allocation2 + $0x78] sm:$0xf]
      %v7124 = vld [vmem:[#allocation2 + $0x7c] sm:$0xf]
      %v7125 = vld [vmem:[#allocation2 + $0x80] sm:$0xf]
      %v7126 = vld [vmem:[#allocation2 + $0x84] sm:$0xf]
      %v7127 = vld [vmem:[#allocation2 + $0x88] sm:$0xf]
      %v7128 = vld [vmem:[#allocation2 + $0x8c] sm:$0xf]
      %v7129 = vsel %vm1427, %v7096, 0
      %v7130 = vsel %vm1428, %v7097, 0
      %v7131 = vsel %vm1429, %v7098, 0
      %v7132 = vsel %vm1430, %v7099, 0
      %v7133 = vsel %vm1431, %v7100, 0
      %v7134 = vsel %vm1432, %v7101, 0
      %v7135 = vsel %vm1433, %v7102, 0
      %v7136 = vsel %vm1434, %v7103, 0
      %v7137 = vsel %vm1435, %v7104, 0
      %v7138 = vsel %vm1436, %v7105, 0
      %v7139 = vsel %vm1437, %v7106, 0
      %v7140 = vsel %vm1438, %v7107, 0
      %v7141 = vsel %vm1439, %v7108, 0
      %v7142 = vsel %vm1440, %v7109, 0
      %v7143 = vsel %vm1441, %v7110, 0
      %v7144 = vsel %vm1442, %v7111, 0
      %v7145 = vsel %vm1443, %v7112, 0
      %v7146 = vsel %vm1444, %v7113, 0
      %v7147 = vsel %vm1445, %v7114, 0
      %v7148 = vsel %vm1446, %v7115, 0
      %v7149 = vsel %vm1447, %v7116, 0
      %v7150 = vsel %vm1448, %v7117, 0
      %v7151 = vsel %vm1449, %v7118, 0
      %v7152 = vsel %vm1450, %v7119, 0
      %v7153 = vsel %vm1451, %v7120, 0
      %v7154 = vsel %vm1452, %v7121, 0
      %v7155 = vsel %vm1453, %v7122, 0
      %v7156 = vsel %vm1454, %v7123, 0
      %v7157 = vsel %vm1455, %v7124, 0
      %v7158 = vsel %vm1456, %v7125, 0
      %v7159 = vsel %vm1457, %v7126, 0
      %v7160 = vsel %vm1458, %v7127, 0
      %v7161 = vsel %vm1459, %v7128, 0
      %v7163 = vshrl.u32 %v7129, 16
      %v7165 = vrot.slane %v7163, 7
      %v7166 = vrot.slane %v7165, 4
      %v7168 = vshrl.u32 %v7130, 16
      %v7170 = vrot.slane %v7168, 7
      %v7171 = vshll.u32 %v7130, 16
      %v7173 = vor.u32 %v7170, %v7171
      %v7174 = vsel %vm1495, %v7166, %v7173
      %v7175 = vrot.slane %v7170, 4
      %v7177 = vshrl.u32 %v7131, 16
      %v7179 = vrot.slane %v7177, 7
      %v7180 = vshll.u32 %v7131, 16
      %v7182 = vor.u32 %v7179, %v7180
      %v7183 = vsel %vm1495, %v7175, %v7182
      %v7184 = vrot.slane %v7179, 4
      %v7186 = vshrl.u32 %v7132, 16
      %v7188 = vrot.slane %v7186, 7
      %v7189 = vshll.u32 %v7132, 16
      %v7191 = vor.u32 %v7188, %v7189
      %v7192 = vsel %vm1495, %v7184, %v7191
      %v7193 = vrot.slane %v7188, 4
      %v7195 = vshrl.u32 %v7133, 16
      %v7197 = vrot.slane %v7195, 7
      %v7198 = vshll.u32 %v7133, 16
      %v7200 = vor.u32 %v7197, %v7198
      %v7201 = vsel %vm1495, %v7193, %v7200
      %v7202 = vrot.slane %v7197, 4
      %v7204 = vshrl.u32 %v7134, 16
      %v7206 = vrot.slane %v7204, 7
      %v7207 = vshll.u32 %v7134, 16
      %v7209 = vor.u32 %v7206, %v7207
      %v7210 = vsel %vm1495, %v7202, %v7209
      %v7211 = vrot.slane %v7206, 4
      %v7213 = vshrl.u32 %v7135, 16
      %v7215 = vrot.slane %v7213, 7
      %v7216 = vshll.u32 %v7135, 16
      %v7218 = vor.u32 %v7215, %v7216
      %v7219 = vsel %vm1495, %v7211, %v7218
      %v7220 = vrot.slane %v7215, 4
      %v7222 = vshrl.u32 %v7136, 16
      %v7224 = vrot.slane %v7222, 7
      %v7225 = vshll.u32 %v7136, 16
      %v7227 = vor.u32 %v7224, %v7225
      %v7228 = vsel %vm1495, %v7220, %v7227
      %v7229 = vrot.slane %v7224, 4
      %v7231 = vshrl.u32 %v7137, 16
      %v7233 = vrot.slane %v7231, 7
      %v7234 = vshll.u32 %v7137, 16
      %v7236 = vor.u32 %v7233, %v7234
      %v7237 = vsel %vm1495, %v7229, %v7236
      %v7238 = vrot.slane %v7233, 4
      %v7240 = vshrl.u32 %v7138, 16
      %v7242 = vrot.slane %v7240, 7
      %v7243 = vshll.u32 %v7138, 16
      %v7245 = vor.u32 %v7242, %v7243
      %v7246 = vsel %vm1495, %v7238, %v7245
      %v7247 = vrot.slane %v7242, 4
      %v7249 = vshrl.u32 %v7139, 16
      %v7251 = vrot.slane %v7249, 7
      %v7252 = vshll.u32 %v7139, 16
      %v7254 = vor.u32 %v7251, %v7252
      %v7255 = vsel %vm1495, %v7247, %v7254
      %v7256 = vrot.slane %v7251, 4
      %v7258 = vshrl.u32 %v7140, 16
      %v7260 = vrot.slane %v7258, 7
      %v7261 = vshll.u32 %v7140, 16
      %v7263 = vor.u32 %v7260, %v7261
      %v7264 = vsel %vm1495, %v7256, %v7263
      %v7265 = vrot.slane %v7260, 4
      %v7267 = vshrl.u32 %v7141, 16
      %v7269 = vrot.slane %v7267, 7
      %v7270 = vshll.u32 %v7141, 16
      %v7272 = vor.u32 %v7269, %v7270
      %v7273 = vsel %vm1495, %v7265, %v7272
      %v7274 = vrot.slane %v7269, 4
      %v7276 = vshrl.u32 %v7142, 16
      %v7278 = vrot.slane %v7276, 7
      %v7279 = vshll.u32 %v7142, 16
      %v7281 = vor.u32 %v7278, %v7279
      %v7282 = vsel %vm1495, %v7274, %v7281
      %v7283 = vrot.slane %v7278, 4
      %v7285 = vshrl.u32 %v7143, 16
      %v7287 = vrot.slane %v7285, 7
      %v7288 = vshll.u32 %v7143, 16
      %v7290 = vor.u32 %v7287, %v7288
      %v7291 = vsel %vm1495, %v7283, %v7290
      %v7292 = vrot.slane %v7287, 4
      %v7294 = vshrl.u32 %v7144, 16
      %v7296 = vrot.slane %v7294, 7
      %v7297 = vshll.u32 %v7144, 16
      %v7299 = vor.u32 %v7296, %v7297
      %v7300 = vsel %vm1495, %v7292, %v7299
      %v7301 = vrot.slane %v7296, 4
      %v7303 = vshrl.u32 %v7145, 16
      %v7305 = vrot.slane %v7303, 7
      %v7306 = vshll.u32 %v7145, 16
      %v7308 = vor.u32 %v7305, %v7306
      %v7309 = vsel %vm1495, %v7301, %v7308
      %v7310 = vrot.slane %v7305, 4
      %v7312 = vshrl.u32 %v7146, 16
      %v7314 = vrot.slane %v7312, 7
      %v7315 = vshll.u32 %v7146, 16
      %v7317 = vor.u32 %v7314, %v7315
      %v7318 = vsel %vm1495, %v7310, %v7317
      %v7319 = vrot.slane %v7314, 4
      %v7321 = vshrl.u32 %v7147, 16
      %v7323 = vrot.slane %v7321, 7
      %v7324 = vshll.u32 %v7147, 16
      %v7326 = vor.u32 %v7323, %v7324
      %v7327 = vsel %vm1495, %v7319, %v7326
      %v7328 = vrot.slane %v7323, 4
      %v7330 = vshrl.u32 %v7148, 16
      %v7332 = vrot.slane %v7330, 7
      %v7333 = vshll.u32 %v7148, 16
      %v7335 = vor.u32 %v7332, %v7333
      %v7336 = vsel %vm1495, %v7328, %v7335
      %v7337 = vrot.slane %v7332, 4
      %v7339 = vshrl.u32 %v7149, 16
      %v7341 = vrot.slane %v7339, 7
      %v7342 = vshll.u32 %v7149, 16
      %v7344 = vor.u32 %v7341, %v7342
      %v7345 = vsel %vm1495, %v7337, %v7344
      %v7346 = vrot.slane %v7341, 4
      %v7348 = vshrl.u32 %v7150, 16
      %v7350 = vrot.slane %v7348, 7
      %v7351 = vshll.u32 %v7150, 16
      %v7353 = vor.u32 %v7350, %v7351
      %v7354 = vsel %vm1495, %v7346, %v7353
      %v7355 = vrot.slane %v7350, 4
      %v7357 = vshrl.u32 %v7151, 16
      %v7359 = vrot.slane %v7357, 7
      %v7360 = vshll.u32 %v7151, 16
      %v7362 = vor.u32 %v7359, %v7360
      %v7363 = vsel %vm1495, %v7355, %v7362
      %v7364 = vrot.slane %v7359, 4
      %v7366 = vshrl.u32 %v7152, 16
      %v7368 = vrot.slane %v7366, 7
      %v7369 = vshll.u32 %v7152, 16
      %v7371 = vor.u32 %v7368, %v7369
      %v7372 = vsel %vm1495, %v7364, %v7371
      %v7373 = vrot.slane %v7368, 4
      %v7375 = vshrl.u32 %v7153, 16
      %v7377 = vrot.slane %v7375, 7
      %v7378 = vshll.u32 %v7153, 16
      %v7380 = vor.u32 %v7377, %v7378
      %v7381 = vsel %vm1495, %v7373, %v7380
      %v7382 = vrot.slane %v7377, 4
      %v7384 = vshrl.u32 %v7154, 16
      %v7386 = vrot.slane %v7384, 7
      %v7387 = vshll.u32 %v7154, 16
      %v7389 = vor.u32 %v7386, %v7387
      %v7390 = vsel %vm1495, %v7382, %v7389
      %v7391 = vrot.slane %v7386, 4
      %v7393 = vshrl.u32 %v7155, 16
      %v7395 = vrot.slane %v7393, 7
      %v7396 = vshll.u32 %v7155, 16
      %v7398 = vor.u32 %v7395, %v7396
      %v7399 = vsel %vm1495, %v7391, %v7398
      %v7400 = vrot.slane %v7395, 4
      %v7402 = vshrl.u32 %v7156, 16
      %v7404 = vrot.slane %v7402, 7
      %v7405 = vshll.u32 %v7156, 16
      %v7407 = vor.u32 %v7404, %v7405
      %v7408 = vsel %vm1495, %v7400, %v7407
      %v7409 = vrot.slane %v7404, 4
      %v7411 = vshrl.u32 %v7157, 16
      %v7413 = vrot.slane %v7411, 7
      %v7414 = vshll.u32 %v7157, 16
      %v7416 = vor.u32 %v7413, %v7414
      %v7417 = vsel %vm1495, %v7409, %v7416
      %v7418 = vrot.slane %v7413, 4
      %v7420 = vshrl.u32 %v7158, 16
      %v7422 = vrot.slane %v7420, 7
      %v7423 = vshll.u32 %v7158, 16
      %v7425 = vor.u32 %v7422, %v7423
      %v7426 = vsel %vm1495, %v7418, %v7425
      %v7427 = vrot.slane %v7422, 4
      %v7429 = vshrl.u32 %v7159, 16
      %v7431 = vrot.slane %v7429, 7
      %v7432 = vshll.u32 %v7159, 16
      %v7434 = vor.u32 %v7431, %v7432
      %v7435 = vsel %vm1495, %v7427, %v7434
      %v7436 = vrot.slane %v7431, 4
      %v7438 = vshrl.u32 %v7160, 16
      %v7440 = vrot.slane %v7438, 7
      %v7441 = vshll.u32 %v7160, 16
      %v7443 = vor.u32 %v7440, %v7441
      %v7444 = vsel %vm1495, %v7436, %v7443
      %v7445 = vrot.slane %v7440, 4
      %v7447 = vshrl.u32 %v7161, 16
      %v7449 = vrot.slane %v7447, 7
      %v7450 = vshll.u32 %v7161, 16
      %v7452 = vor.u32 %v7449, %v7450
      %v7453 = vsel %vm1495, %v7445, %v7452
      %7454 = vrot.lane.b32.xlu0 %v7174, 24
      %v7455 = vpop.permute.xlu0 %7454
      %7456 = vrot.lane.b32.xlu0 %v7183, 24
      %v7457 = vpop.permute.xlu0 %7456
      %7458 = vrot.lane.b32.xlu0 %v7192, 24
      %v7459 = vpop.permute.xlu0 %7458
      %7460 = vrot.lane.b32.xlu0 %v7201, 24
      %v7461 = vpop.permute.xlu0 %7460
      %7462 = vrot.lane.b32.xlu0 %v7210, 24
      %v7463 = vpop.permute.xlu0 %7462
      %7464 = vrot.lane.b32.xlu0 %v7219, 24
      %v7465 = vpop.permute.xlu0 %7464
      %7466 = vrot.lane.b32.xlu0 %v7228, 24
      %v7467 = vpop.permute.xlu0 %7466
      %7468 = vrot.lane.b32.xlu0 %v7237, 24
      %v7469 = vpop.permute.xlu0 %7468
      %7470 = vrot.lane.b32.xlu0 %v7246, 24
      %v7471 = vpop.permute.xlu0 %7470
      %7472 = vrot.lane.b32.xlu0 %v7255, 24
      %v7473 = vpop.permute.xlu0 %7472
      %7474 = vrot.lane.b32.xlu0 %v7264, 24
      %v7475 = vpop.permute.xlu0 %7474
      %7476 = vrot.lane.b32.xlu0 %v7273, 24
      %v7477 = vpop.permute.xlu0 %7476
      %7478 = vrot.lane.b32.xlu0 %v7282, 24
      %v7479 = vpop.permute.xlu0 %7478
      %7480 = vrot.lane.b32.xlu0 %v7291, 24
      %v7481 = vpop.permute.xlu0 %7480
      %7482 = vrot.lane.b32.xlu0 %v7300, 24
      %v7483 = vpop.permute.xlu0 %7482
      %7484 = vrot.lane.b32.xlu0 %v7309, 24
      %v7485 = vpop.permute.xlu0 %7484
      %7486 = vrot.lane.b32.xlu0 %v7318, 24
      %v7487 = vpop.permute.xlu0 %7486
      %7488 = vrot.lane.b32.xlu0 %v7327, 24
      %v7489 = vpop.permute.xlu0 %7488
      %7490 = vrot.lane.b32.xlu0 %v7336, 24
      %v7491 = vpop.permute.xlu0 %7490
      %7492 = vrot.lane.b32.xlu0 %v7345, 24
      %v7493 = vpop.permute.xlu0 %7492
      %7494 = vrot.lane.b32.xlu0 %v7354, 24
      %v7495 = vpop.permute.xlu0 %7494
      %7496 = vrot.lane.b32.xlu0 %v7363, 24
      %v7497 = vpop.permute.xlu0 %7496
      %7498 = vrot.lane.b32.xlu0 %v7372, 24
      %v7499 = vpop.permute.xlu0 %7498
      %7500 = vrot.lane.b32.xlu0 %v7381, 24
      %v7501 = vpop.permute.xlu0 %7500
      %7502 = vrot.lane.b32.xlu0 %v7390, 24
      %v7503 = vpop.permute.xlu0 %7502
      %7504 = vrot.lane.b32.xlu0 %v7399, 24
      %v7505 = vpop.permute.xlu0 %7504
      %7506 = vrot.lane.b32.xlu0 %v7408, 24
      %v7507 = vpop.permute.xlu0 %7506
      %7508 = vrot.lane.b32.xlu0 %v7417, 24
      %v7509 = vpop.permute.xlu0 %7508
      %7510 = vrot.lane.b32.xlu0 %v7426, 24
      %v7511 = vpop.permute.xlu0 %7510
      %7512 = vrot.lane.b32.xlu0 %v7435, 24
      %v7513 = vpop.permute.xlu0 %7512
      %7514 = vrot.lane.b32.xlu0 %v7444, 24
      %v7515 = vpop.permute.xlu0 %7514
      %7516 = vrot.lane.b32.xlu0 %v7453, 24
      %v7517 = vpop.permute.xlu0 %7516
      %vm7550 = vcmask 257216
      %7551 = vst.msk [vmem:[#allocation3] sm:$0xf] %vm7550, %v7455
      %7552 = vst.msk [vmem:[#allocation3 + $0x4] sm:$0xf] %vm7550, %v7457
      %7553 = vst.msk [vmem:[#allocation3 + $0x8] sm:$0xf] %vm7550, %v7459
      %7554 = vst.msk [vmem:[#allocation3 + $0xc] sm:$0xf] %vm7550, %v7461
      %7555 = vst.msk [vmem:[#allocation3 + $0x10] sm:$0xf] %vm7550, %v7463
      %7556 = vst.msk [vmem:[#allocation3 + $0x14] sm:$0xf] %vm7550, %v7465
      %7557 = vst.msk [vmem:[#allocation3 + $0x18] sm:$0xf] %vm7550, %v7467
      %7558 = vst.msk [vmem:[#allocation3 + $0x1c] sm:$0xf] %vm7550, %v7469
      %7559 = vst.msk [vmem:[#allocation3 + $0x20] sm:$0xf] %vm7550, %v7471
      %7560 = vst.msk [vmem:[#allocation3 + $0x24] sm:$0xf] %vm7550, %v7473
      %7561 = vst.msk [vmem:[#allocation3 + $0x28] sm:$0xf] %vm7550, %v7475
      %7562 = vst.msk [vmem:[#allocation3 + $0x2c] sm:$0xf] %vm7550, %v7477
      %7563 = vst.msk [vmem:[#allocation3 + $0x30] sm:$0xf] %vm7550, %v7479
      %7564 = vst.msk [vmem:[#allocation3 + $0x34] sm:$0xf] %vm7550, %v7481
      %7565 = vst.msk [vmem:[#allocation3 + $0x38] sm:$0xf] %vm7550, %v7483
      %7566 = vst.msk [vmem:[#allocation3 + $0x3c] sm:$0xf] %vm7550, %v7485
      %7567 = vst.msk [vmem:[#allocation3 + $0x40] sm:$0xf] %vm7550, %v7487
      %7568 = vst.msk [vmem:[#allocation3 + $0x44] sm:$0xf] %vm7550, %v7489
      %7569 = vst.msk [vmem:[#allocation3 + $0x48] sm:$0xf] %vm7550, %v7491
      %7570 = vst.msk [vmem:[#allocation3 + $0x4c] sm:$0xf] %vm7550, %v7493
      %7571 = vst.msk [vmem:[#allocation3 + $0x50] sm:$0xf] %vm7550, %v7495
      %7572 = vst.msk [vmem:[#allocation3 + $0x54] sm:$0xf] %vm7550, %v7497
      %7573 = vst.msk [vmem:[#allocation3 + $0x58] sm:$0xf] %vm7550, %v7499
      %7574 = vst.msk [vmem:[#allocation3 + $0x5c] sm:$0xf] %vm7550, %v7501
      %7575 = vst.msk [vmem:[#allocation3 + $0x60] sm:$0xf] %vm7550, %v7503
      %7576 = vst.msk [vmem:[#allocation3 + $0x64] sm:$0xf] %vm7550, %v7505
      %7577 = vst.msk [vmem:[#allocation3 + $0x68] sm:$0xf] %vm7550, %v7507
      %7578 = vst.msk [vmem:[#allocation3 + $0x6c] sm:$0xf] %vm7550, %v7509
      %7579 = vst.msk [vmem:[#allocation3 + $0x70] sm:$0xf] %vm7550, %v7511
      %7580 = vst.msk [vmem:[#allocation3 + $0x74] sm:$0xf] %vm7550, %v7513
      %7581 = vst.msk [vmem:[#allocation3 + $0x78] sm:$0xf] %vm7550, %v7515
      %7582 = vst.msk [vmem:[#allocation3 + $0x7c] sm:$0xf] %vm7550, %v7517
      %v7583 = vld [vmem:[#allocation2 + $0x10] sm:$0xf]
      %v7584 = vld [vmem:[#allocation2 + $0x14] sm:$0xf]
      %v7585 = vld [vmem:[#allocation2 + $0x18] sm:$0xf]
      %v7586 = vld [vmem:[#allocation2 + $0x1c] sm:$0xf]
      %v7587 = vld [vmem:[#allocation2 + $0x20] sm:$0xf]
      %v7588 = vld [vmem:[#allocation2 + $0x24] sm:$0xf]
      %v7589 = vld [vmem:[#allocation2 + $0x28] sm:$0xf]
      %v7590 = vld [vmem:[#allocation2 + $0x2c] sm:$0xf]
      %v7591 = vld [vmem:[#allocation2 + $0x30] sm:$0xf]
      %v7592 = vld [vmem:[#allocation2 + $0x34] sm:$0xf]
      %v7593 = vld [vmem:[#allocation2 + $0x38] sm:$0xf]
      %v7594 = vld [vmem:[#allocation2 + $0x3c] sm:$0xf]
      %v7595 = vld [vmem:[#allocation2 + $0x40] sm:$0xf]
      %v7596 = vld [vmem:[#allocation2 + $0x44] sm:$0xf]
      %v7597 = vld [vmem:[#allocation2 + $0x48] sm:$0xf]
      %v7598 = vld [vmem:[#allocation2 + $0x4c] sm:$0xf]
      %v7599 = vld [vmem:[#allocation2 + $0x50] sm:$0xf]
      %v7600 = vld [vmem:[#allocation2 + $0x54] sm:$0xf]
      %v7601 = vld [vmem:[#allocation2 + $0x58] sm:$0xf]
      %v7602 = vld [vmem:[#allocation2 + $0x5c] sm:$0xf]
      %v7603 = vld [vmem:[#allocation2 + $0x60] sm:$0xf]
      %v7604 = vld [vmem:[#allocation2 + $0x64] sm:$0xf]
      %v7605 = vld [vmem:[#allocation2 + $0x68] sm:$0xf]
      %v7606 = vld [vmem:[#allocation2 + $0x6c] sm:$0xf]
      %v7607 = vld [vmem:[#allocation2 + $0x70] sm:$0xf]
      %v7608 = vld [vmem:[#allocation2 + $0x74] sm:$0xf]
      %v7609 = vld [vmem:[#allocation2 + $0x78] sm:$0xf]
      %v7610 = vld [vmem:[#allocation2 + $0x7c] sm:$0xf]
      %v7611 = vld [vmem:[#allocation2 + $0x80] sm:$0xf]
      %v7612 = vld [vmem:[#allocation2 + $0x84] sm:$0xf]
      %v7613 = vld [vmem:[#allocation2 + $0x88] sm:$0xf]
      %v7614 = vld [vmem:[#allocation2 + $0x8c] sm:$0xf]
      %7647 = vrot.lane.b32.xlu0 %v7583, 32
      %v7648 = vpop.permute.xlu0 %7647
      %7649 = vrot.lane.b32.xlu0 %v7584, 32
      %v7650 = vpop.permute.xlu0 %7649
      %7651 = vrot.lane.b32.xlu0 %v7585, 32
      %v7652 = vpop.permute.xlu0 %7651
      %7653 = vrot.lane.b32.xlu0 %v7586, 32
      %v7654 = vpop.permute.xlu0 %7653
      %7655 = vrot.lane.b32.xlu0 %v7587, 32
      %v7656 = vpop.permute.xlu0 %7655
      %7657 = vrot.lane.b32.xlu0 %v7588, 32
      %v7658 = vpop.permute.xlu0 %7657
      %7659 = vrot.lane.b32.xlu0 %v7589, 32
      %v7660 = vpop.permute.xlu0 %7659
      %7661 = vrot.lane.b32.xlu0 %v7590, 32
      %v7662 = vpop.permute.xlu0 %7661
      %7663 = vrot.lane.b32.xlu0 %v7591, 32
      %v7664 = vpop.permute.xlu0 %7663
      %7665 = vrot.lane.b32.xlu0 %v7592, 32
      %v7666 = vpop.permute.xlu0 %7665
      %7667 = vrot.lane.b32.xlu0 %v7593, 32
      %v7668 = vpop.permute.xlu0 %7667
      %7669 = vrot.lane.b32.xlu0 %v7594, 32
      %v7670 = vpop.permute.xlu0 %7669
      %7671 = vrot.lane.b32.xlu0 %v7595, 32
      %v7672 = vpop.permute.xlu0 %7671
      %7673 = vrot.lane.b32.xlu0 %v7596, 32
      %v7674 = vpop.permute.xlu0 %7673
      %7675 = vrot.lane.b32.xlu0 %v7597, 32
      %v7676 = vpop.permute.xlu0 %7675
      %7677 = vrot.lane.b32.xlu0 %v7598, 32
      %v7678 = vpop.permute.xlu0 %7677
      %7679 = vrot.lane.b32.xlu0 %v7599, 32
      %v7680 = vpop.permute.xlu0 %7679
      %7681 = vrot.lane.b32.xlu0 %v7600, 32
      %v7682 = vpop.permute.xlu0 %7681
      %7683 = vrot.lane.b32.xlu0 %v7601, 32
      %v7684 = vpop.permute.xlu0 %7683
      %7685 = vrot.lane.b32.xlu0 %v7602, 32
      %v7686 = vpop.permute.xlu0 %7685
      %7687 = vrot.lane.b32.xlu0 %v7603, 32
      %v7688 = vpop.permute.xlu0 %7687
      %7689 = vrot.lane.b32.xlu0 %v7604, 32
      %v7690 = vpop.permute.xlu0 %7689
      %7691 = vrot.lane.b32.xlu0 %v7605, 32
      %v7692 = vpop.permute.xlu0 %7691
      %7693 = vrot.lane.b32.xlu0 %v7606, 32
      %v7694 = vpop.permute.xlu0 %7693
      %7695 = vrot.lane.b32.xlu0 %v7607, 32
      %v7696 = vpop.permute.xlu0 %7695
      %7697 = vrot.lane.b32.xlu0 %v7608, 32
      %v7698 = vpop.permute.xlu0 %7697
      %7699 = vrot.lane.b32.xlu0 %v7609, 32
      %v7700 = vpop.permute.xlu0 %7699
      %7701 = vrot.lane.b32.xlu0 %v7610, 32
      %v7702 = vpop.permute.xlu0 %7701
      %7703 = vrot.lane.b32.xlu0 %v7611, 32
      %v7704 = vpop.permute.xlu0 %7703
      %7705 = vrot.lane.b32.xlu0 %v7612, 32
      %v7706 = vpop.permute.xlu0 %7705
      %7707 = vrot.lane.b32.xlu0 %v7613, 32
      %v7708 = vpop.permute.xlu0 %7707
      %7709 = vrot.lane.b32.xlu0 %v7614, 32
      %v7710 = vpop.permute.xlu0 %7709
      %vm7743 = vcmask 322816
      %7744 = vst.msk [vmem:[#allocation3] sm:$0xf] %vm7743, %v7648
      %7745 = vst.msk [vmem:[#allocation3 + $0x4] sm:$0xf] %vm7743, %v7650
      %7746 = vst.msk [vmem:[#allocation3 + $0x8] sm:$0xf] %vm7743, %v7652
      %7747 = vst.msk [vmem:[#allocation3 + $0xc] sm:$0xf] %vm7743, %v7654
      %7748 = vst.msk [vmem:[#allocation3 + $0x10] sm:$0xf] %vm7743, %v7656
      %7749 = vst.msk [vmem:[#allocation3 + $0x14] sm:$0xf] %vm7743, %v7658
      %7750 = vst.msk [vmem:[#allocation3 + $0x18] sm:$0xf] %vm7743, %v7660
      %7751 = vst.msk [vmem:[#allocation3 + $0x1c] sm:$0xf] %vm7743, %v7662
      %7752 = vst.msk [vmem:[#allocation3 + $0x20] sm:$0xf] %vm7743, %v7664
      %7753 = vst.msk [vmem:[#allocation3 + $0x24] sm:$0xf] %vm7743, %v7666
      %7754 = vst.msk [vmem:[#allocation3 + $0x28] sm:$0xf] %vm7743, %v7668
      %7755 = vst.msk [vmem:[#allocation3 + $0x2c] sm:$0xf] %vm7743, %v7670
      %7756 = vst.msk [vmem:[#allocation3 + $0x30] sm:$0xf] %vm7743, %v7672
      %7757 = vst.msk [vmem:[#allocation3 + $0x34] sm:$0xf] %vm7743, %v7674
      %7758 = vst.msk [vmem:[#allocation3 + $0x38] sm:$0xf] %vm7743, %v7676
      %7759 = vst.msk [vmem:[#allocation3 + $0x3c] sm:$0xf] %vm7743, %v7678
      %7760 = vst.msk [vmem:[#allocation3 + $0x40] sm:$0xf] %vm7743, %v7680
      %7761 = vst.msk [vmem:[#allocation3 + $0x44] sm:$0xf] %vm7743, %v7682
      %7762 = vst.msk [vmem:[#allocation3 + $0x48] sm:$0xf] %vm7743, %v7684
      %7763 = vst.msk [vmem:[#allocation3 + $0x4c] sm:$0xf] %vm7743, %v7686
      %7764 = vst.msk [vmem:[#allocation3 + $0x50] sm:$0xf] %vm7743, %v7688
      %7765 = vst.msk [vmem:[#allocation3 + $0x54] sm:$0xf] %vm7743, %v7690
      %7766 = vst.msk [vmem:[#allocation3 + $0x58] sm:$0xf] %vm7743, %v7692
      %7767 = vst.msk [vmem:[#allocation3 + $0x5c] sm:$0xf] %vm7743, %v7694
      %7768 = vst.msk [vmem:[#allocation3 + $0x60] sm:$0xf] %vm7743, %v7696
      %7769 = vst.msk [vmem:[#allocation3 + $0x64] sm:$0xf] %vm7743, %v7698
      %7770 = vst.msk [vmem:[#allocation3 + $0x68] sm:$0xf] %vm7743, %v7700
      %7771 = vst.msk [vmem:[#allocation3 + $0x6c] sm:$0xf] %vm7743, %v7702
      %7772 = vst.msk [vmem:[#allocation3 + $0x70] sm:$0xf] %vm7743, %v7704
      %7773 = vst.msk [vmem:[#allocation3 + $0x74] sm:$0xf] %vm7743, %v7706
      %7774 = vst.msk [vmem:[#allocation3 + $0x78] sm:$0xf] %vm7743, %v7708
      %7775 = vst.msk [vmem:[#allocation3 + $0x7c] sm:$0xf] %vm7743, %v7710
      %v7776 = vld [vmem:[#allocation2 + $0x10] sm:$0xf]
      %v7777 = vld [vmem:[#allocation2 + $0x14] sm:$0xf]
      %v7778 = vld [vmem:[#allocation2 + $0x18] sm:$0xf]
      %v7779 = vld [vmem:[#allocation2 + $0x1c] sm:$0xf]
      %v7780 = vld [vmem:[#allocation2 + $0x20] sm:$0xf]
      %v7781 = vld [vmem:[#allocation2 + $0x24] sm:$0xf]
      %v7782 = vld [vmem:[#allocation2 + $0x28] sm:$0xf]
      %v7783 = vld [vmem:[#allocation2 + $0x2c] sm:$0xf]
      %v7784 = vld [vmem:[#allocation2 + $0x30] sm:$0xf]
      %v7785 = vld [vmem:[#allocation2 + $0x34] sm:$0xf]
      %v7786 = vld [vmem:[#allocation2 + $0x38] sm:$0xf]
      %v7787 = vld [vmem:[#allocation2 + $0x3c] sm:$0xf]
      %v7788 = vld [vmem:[#allocation2 + $0x40] sm:$0xf]
      %v7789 = vld [vmem:[#allocation2 + $0x44] sm:$0xf]
      %v7790 = vld [vmem:[#allocation2 + $0x48] sm:$0xf]
      %v7791 = vld [vmem:[#allocation2 + $0x4c] sm:$0xf]
      %v7792 = vld [vmem:[#allocation2 + $0x50] sm:$0xf]
      %v7793 = vld [vmem:[#allocation2 + $0x54] sm:$0xf]
      %v7794 = vld [vmem:[#allocation2 + $0x58] sm:$0xf]
      %v7795 = vld [vmem:[#allocation2 + $0x5c] sm:$0xf]
      %v7796 = vld [vmem:[#allocation2 + $0x60] sm:$0xf]
      %v7797 = vld [vmem:[#allocation2 + $0x64] sm:$0xf]
      %v7798 = vld [vmem:[#allocation2 + $0x68] sm:$0xf]
      %v7799 = vld [vmem:[#allocation2 + $0x6c] sm:$0xf]
      %v7800 = vld [vmem:[#allocation2 + $0x70] sm:$0xf]
      %v7801 = vld [vmem:[#allocation2 + $0x74] sm:$0xf]
      %v7802 = vld [vmem:[#allocation2 + $0x78] sm:$0xf]
      %v7803 = vld [vmem:[#allocation2 + $0x7c] sm:$0xf]
      %v7804 = vld [vmem:[#allocation2 + $0x80] sm:$0xf]
      %v7805 = vld [vmem:[#allocation2 + $0x84] sm:$0xf]
      %v7806 = vld [vmem:[#allocation2 + $0x88] sm:$0xf]
      %v7807 = vld [vmem:[#allocation2 + $0x8c] sm:$0xf]
      %v7808 = vld [vmem:[#allocation2 + $0x90] sm:$0x1]
      %v7809 = vsel %vm2493, %v7776, 0
      %v7810 = vsel %vm2494, %v7777, 0
      %v7811 = vsel %vm2495, %v7778, 0
      %v7812 = vsel %vm2496, %v7779, 0
      %v7813 = vsel %vm2497, %v7780, 0
      %v7814 = vsel %vm2498, %v7781, 0
      %v7815 = vsel %vm2499, %v7782, 0
      %v7816 = vsel %vm2500, %v7783, 0
      %v7817 = vsel %vm2501, %v7784, 0
      %v7818 = vsel %vm2502, %v7785, 0
      %v7819 = vsel %vm2503, %v7786, 0
      %v7820 = vsel %vm2504, %v7787, 0
      %v7821 = vsel %vm2505, %v7788, 0
      %v7822 = vsel %vm2506, %v7789, 0
      %v7823 = vsel %vm2507, %v7790, 0
      %v7824 = vsel %vm2508, %v7791, 0
      %v7825 = vsel %vm2509, %v7792, 0
      %v7826 = vsel %vm2510, %v7793, 0
      %v7827 = vsel %vm2511, %v7794, 0
      %v7828 = vsel %vm2512, %v7795, 0
      %v7829 = vsel %vm2513, %v7796, 0
      %v7830 = vsel %vm2514, %v7797, 0
      %v7831 = vsel %vm2515, %v7798, 0
      %v7832 = vsel %vm2516, %v7799, 0
      %v7833 = vsel %vm2517, %v7800, 0
      %v7834 = vsel %vm2518, %v7801, 0
      %v7835 = vsel %vm2519, %v7802, 0
      %v7836 = vsel %vm2520, %v7803, 0
      %v7837 = vsel %vm2521, %v7804, 0
      %v7838 = vsel %vm2522, %v7805, 0
      %v7839 = vsel %vm2523, %v7806, 0
      %v7840 = vsel %vm2524, %v7807, 0
      %v7841 = vsel %vm2525, %v7808, 0
      %v7843 = vshrl.u32 %v7809, 16
      %v7845 = vrot.slane %v7843, 4
      %v7846 = vshll.u32 %v7809, 16
      %v7848 = vrot.slane %v7846, 5
      %v7849 = vor.u32 %v7845, %v7848
      %v7850 = vrot.slane %v7849, 4
      %v7852 = vshll.u32 %v7810, 16
      %v7854 = vrot.slane %v7852, 5
      %v7855 = vsel %vm1107, %v7850, %v7854
      %v7856 = vshrl.u32 %v7810, 16
      %v7858 = vrot.slane %v7856, 4
      %v7859 = vor.u32 %v7858, %v7854
      %v7860 = vrot.slane %v7859, 4
      %v7862 = vshll.u32 %v7811, 16
      %v7864 = vrot.slane %v7862, 5
      %v7865 = vsel %vm1107, %v7860, %v7864
      %v7866 = vshrl.u32 %v7811, 16
      %v7868 = vrot.slane %v7866, 4
      %v7869 = vor.u32 %v7868, %v7864
      %v7870 = vrot.slane %v7869, 4
      %v7872 = vshll.u32 %v7812, 16
      %v7874 = vrot.slane %v7872, 5
      %v7875 = vsel %vm1107, %v7870, %v7874
      %v7876 = vshrl.u32 %v7812, 16
      %v7878 = vrot.slane %v7876, 4
      %v7879 = vor.u32 %v7878, %v7874
      %v7880 = vrot.slane %v7879, 4
      %v7882 = vshll.u32 %v7813, 16
      %v7884 = vrot.slane %v7882, 5
      %v7885 = vsel %vm1107, %v7880, %v7884
      %v7886 = vshrl.u32 %v7813, 16
      %v7888 = vrot.slane %v7886, 4
      %v7889 = vor.u32 %v7888, %v7884
      %v7890 = vrot.slane %v7889, 4
      %v7892 = vshll.u32 %v7814, 16
      %v7894 = vrot.slane %v7892, 5
      %v7895 = vsel %vm1107, %v7890, %v7894
      %v7896 = vshrl.u32 %v7814, 16
      %v7898 = vrot.slane %v7896, 4
      %v7899 = vor.u32 %v7898, %v7894
      %v7900 = vrot.slane %v7899, 4
      %v7902 = vshll.u32 %v7815, 16
      %v7904 = vrot.slane %v7902, 5
      %v7905 = vsel %vm1107, %v7900, %v7904
      %v7906 = vshrl.u32 %v7815, 16
      %v7908 = vrot.slane %v7906, 4
      %v7909 = vor.u32 %v7908, %v7904
      %v7910 = vrot.slane %v7909, 4
      %v7912 = vshll.u32 %v7816, 16
      %v7914 = vrot.slane %v7912, 5
      %v7915 = vsel %vm1107, %v7910, %v7914
      %v7916 = vshrl.u32 %v7816, 16
      %v7918 = vrot.slane %v7916, 4
      %v7919 = vor.u32 %v7918, %v7914
      %v7920 = vrot.slane %v7919, 4
      %v7922 = vshll.u32 %v7817, 16
      %v7924 = vrot.slane %v7922, 5
      %v7925 = vsel %vm1107, %v7920, %v7924
      %v7926 = vshrl.u32 %v7817, 16
      %v7928 = vrot.slane %v7926, 4
      %v7929 = vor.u32 %v7928, %v7924
      %v7930 = vrot.slane %v7929, 4
      %v7932 = vshll.u32 %v7818, 16
      %v7934 = vrot.slane %v7932, 5
      %v7935 = vsel %vm1107, %v7930, %v7934
      %v7936 = vshrl.u32 %v7818, 16
      %v7938 = vrot.slane %v7936, 4
      %v7939 = vor.u32 %v7938, %v7934
      %v7940 = vrot.slane %v7939, 4
      %v7942 = vshll.u32 %v7819, 16
      %v7944 = vrot.slane %v7942, 5
      %v7945 = vsel %vm1107, %v7940, %v7944
      %v7946 = vshrl.u32 %v7819, 16
      %v7948 = vrot.slane %v7946, 4
      %v7949 = vor.u32 %v7948, %v7944
      %v7950 = vrot.slane %v7949, 4
      %v7952 = vshll.u32 %v7820, 16
      %v7954 = vrot.slane %v7952, 5
      %v7955 = vsel %vm1107, %v7950, %v7954
      %v7956 = vshrl.u32 %v7820, 16
      %v7958 = vrot.slane %v7956, 4
      %v7959 = vor.u32 %v7958, %v7954
      %v7960 = vrot.slane %v7959, 4
      %v7962 = vshll.u32 %v7821, 16
      %v7964 = vrot.slane %v7962, 5
      %v7965 = vsel %vm1107, %v7960, %v7964
      %v7966 = vshrl.u32 %v7821, 16
      %v7968 = vrot.slane %v7966, 4
      %v7969 = vor.u32 %v7968, %v7964
      %v7970 = vrot.slane %v7969, 4
      %v7972 = vshll.u32 %v7822, 16
      %v7974 = vrot.slane %v7972, 5
      %v7975 = vsel %vm1107, %v7970, %v7974
      %v7976 = vshrl.u32 %v7822, 16
      %v7978 = vrot.slane %v7976, 4
      %v7979 = vor.u32 %v7978, %v7974
      %v7980 = vrot.slane %v7979, 4
      %v7982 = vshll.u32 %v7823, 16
      %v7984 = vrot.slane %v7982, 5
      %v7985 = vsel %vm1107, %v7980, %v7984
      %v7986 = vshrl.u32 %v7823, 16
      %v7988 = vrot.slane %v7986, 4
      %v7989 = vor.u32 %v7988, %v7984
      %v7990 = vrot.slane %v7989, 4
      %v7992 = vshll.u32 %v7824, 16
      %v7994 = vrot.slane %v7992, 5
      %v7995 = vsel %vm1107, %v7990, %v7994
      %v7996 = vshrl.u32 %v7824, 16
      %v7998 = vrot.slane %v7996, 4
      %v7999 = vor.u32 %v7998, %v7994
      %v8000 = vrot.slane %v7999, 4
      %v8002 = vshll.u32 %v7825, 16
      %v8004 = vrot.slane %v8002, 5
      %v8005 = vsel %vm1107, %v8000, %v8004
      %v8006 = vshrl.u32 %v7825, 16
      %v8008 = vrot.slane %v8006, 4
      %v8009 = vor.u32 %v8008, %v8004
      %v8010 = vrot.slane %v8009, 4
      %v8012 = vshll.u32 %v7826, 16
      %v8014 = vrot.slane %v8012, 5
      %v8015 = vsel %vm1107, %v8010, %v8014
      %v8016 = vshrl.u32 %v7826, 16
      %v8018 = vrot.slane %v8016, 4
      %v8019 = vor.u32 %v8018, %v8014
      %v8020 = vrot.slane %v8019, 4
      %v8022 = vshll.u32 %v7827, 16
      %v8024 = vrot.slane %v8022, 5
      %v8025 = vsel %vm1107, %v8020, %v8024
      %v8026 = vshrl.u32 %v7827, 16
      %v8028 = vrot.slane %v8026, 4
      %v8029 = vor.u32 %v8028, %v8024
      %v8030 = vrot.slane %v8029, 4
      %v8032 = vshll.u32 %v7828, 16
      %v8034 = vrot.slane %v8032, 5
      %v8035 = vsel %vm1107, %v8030, %v8034
      %v8036 = vshrl.u32 %v7828, 16
      %v8038 = vrot.slane %v8036, 4
      %v8039 = vor.u32 %v8038, %v8034
      %v8040 = vrot.slane %v8039, 4
      %v8042 = vshll.u32 %v7829, 16
      %v8044 = vrot.slane %v8042, 5
      %v8045 = vsel %vm1107, %v8040, %v8044
      %v8046 = vshrl.u32 %v7829, 16
      %v8048 = vrot.slane %v8046, 4
      %v8049 = vor.u32 %v8048, %v8044
      %v8050 = vrot.slane %v8049, 4
      %v8052 = vshll.u32 %v7830, 16
      %v8054 = vrot.slane %v8052, 5
      %v8055 = vsel %vm1107, %v8050, %v8054
      %v8056 = vshrl.u32 %v7830, 16
      %v8058 = vrot.slane %v8056, 4
      %v8059 = vor.u32 %v8058, %v8054
      %v8060 = vrot.slane %v8059, 4
      %v8062 = vshll.u32 %v7831, 16
      %v8064 = vrot.slane %v8062, 5
      %v8065 = vsel %vm1107, %v8060, %v8064
      %v8066 = vshrl.u32 %v7831, 16
      %v8068 = vrot.slane %v8066, 4
      %v8069 = vor.u32 %v8068, %v8064
      %v8070 = vrot.slane %v8069, 4
      %v8072 = vshll.u32 %v7832, 16
      %v8074 = vrot.slane %v8072, 5
      %v8075 = vsel %vm1107, %v8070, %v8074
      %v8076 = vshrl.u32 %v7832, 16
      %v8078 = vrot.slane %v8076, 4
      %v8079 = vor.u32 %v8078, %v8074
      %v8080 = vrot.slane %v8079, 4
      %v8082 = vshll.u32 %v7833, 16
      %v8084 = vrot.slane %v8082, 5
      %v8085 = vsel %vm1107, %v8080, %v8084
      %v8086 = vshrl.u32 %v7833, 16
      %v8088 = vrot.slane %v8086, 4
      %v8089 = vor.u32 %v8088, %v8084
      %v8090 = vrot.slane %v8089, 4
      %v8092 = vshll.u32 %v7834, 16
      %v8094 = vrot.slane %v8092, 5
      %v8095 = vsel %vm1107, %v8090, %v8094
      %v8096 = vshrl.u32 %v7834, 16
      %v8098 = vrot.slane %v8096, 4
      %v8099 = vor.u32 %v8098, %v8094
      %v8100 = vrot.slane %v8099, 4
      %v8102 = vshll.u32 %v7835, 16
      %v8104 = vrot.slane %v8102, 5
      %v8105 = vsel %vm1107, %v8100, %v8104
      %v8106 = vshrl.u32 %v7835, 16
      %v8108 = vrot.slane %v8106, 4
      %v8109 = vor.u32 %v8108, %v8104
      %v8110 = vrot.slane %v8109, 4
      %v8112 = vshll.u32 %v7836, 16
      %v8114 = vrot.slane %v8112, 5
      %v8115 = vsel %vm1107, %v8110, %v8114
      %v8116 = vshrl.u32 %v7836, 16
      %v8118 = vrot.slane %v8116, 4
      %v8119 = vor.u32 %v8118, %v8114
      %v8120 = vrot.slane %v8119, 4
      %v8122 = vshll.u32 %v7837, 16
      %v8124 = vrot.slane %v8122, 5
      %v8125 = vsel %vm1107, %v8120, %v8124
      %v8126 = vshrl.u32 %v7837, 16
      %v8128 = vrot.slane %v8126, 4
      %v8129 = vor.u32 %v8128, %v8124
      %v8130 = vrot.slane %v8129, 4
      %v8132 = vshll.u32 %v7838, 16
      %v8134 = vrot.slane %v8132, 5
      %v8135 = vsel %vm1107, %v8130, %v8134
      %v8136 = vshrl.u32 %v7838, 16
      %v8138 = vrot.slane %v8136, 4
      %v8139 = vor.u32 %v8138, %v8134
      %v8140 = vrot.slane %v8139, 4
      %v8142 = vshll.u32 %v7839, 16
      %v8144 = vrot.slane %v8142, 5
      %v8145 = vsel %vm1107, %v8140, %v8144
      %v8146 = vshrl.u32 %v7839, 16
      %v8148 = vrot.slane %v8146, 4
      %v8149 = vor.u32 %v8148, %v8144
      %v8150 = vrot.slane %v8149, 4
      %v8152 = vshll.u32 %v7840, 16
      %v8154 = vrot.slane %v8152, 5
      %v8155 = vsel %vm1107, %v8150, %v8154
      %v8156 = vshrl.u32 %v7840, 16
      %v8158 = vrot.slane %v8156, 4
      %v8159 = vor.u32 %v8158, %v8154
      %v8160 = vrot.slane %v8159, 4
      %v8162 = vshll.u32 %v7841, 16
      %v8164 = vrot.slane %v8162, 5
      %v8165 = vsel %vm1107, %v8160, %v8164
      %8166 = vrot.lane.b32.xlu0 %v7855, 40
      %v8167 = vpop.permute.xlu0 %8166
      %8168 = vrot.lane.b32.xlu0 %v7865, 40
      %v8169 = vpop.permute.xlu0 %8168
      %8170 = vrot.lane.b32.xlu0 %v7875, 40
      %v8171 = vpop.permute.xlu0 %8170
      %8172 = vrot.lane.b32.xlu0 %v7885, 40
      %v8173 = vpop.permute.xlu0 %8172
      %8174 = vrot.lane.b32.xlu0 %v7895, 40
      %v8175 = vpop.permute.xlu0 %8174
      %8176 = vrot.lane.b32.xlu0 %v7905, 40
      %v8177 = vpop.permute.xlu0 %8176
      %8178 = vrot.lane.b32.xlu0 %v7915, 40
      %v8179 = vpop.permute.xlu0 %8178
      %8180 = vrot.lane.b32.xlu0 %v7925, 40
      %v8181 = vpop.permute.xlu0 %8180
      %8182 = vrot.lane.b32.xlu0 %v7935, 40
      %v8183 = vpop.permute.xlu0 %8182
      %8184 = vrot.lane.b32.xlu0 %v7945, 40
      %v8185 = vpop.permute.xlu0 %8184
      %8186 = vrot.lane.b32.xlu0 %v7955, 40
      %v8187 = vpop.permute.xlu0 %8186
      %8188 = vrot.lane.b32.xlu0 %v7965, 40
      %v8189 = vpop.permute.xlu0 %8188
      %8190 = vrot.lane.b32.xlu0 %v7975, 40
      %v8191 = vpop.permute.xlu0 %8190
      %8192 = vrot.lane.b32.xlu0 %v7985, 40
      %v8193 = vpop.permute.xlu0 %8192
      %8194 = vrot.lane.b32.xlu0 %v7995, 40
      %v8195 = vpop.permute.xlu0 %8194
      %8196 = vrot.lane.b32.xlu0 %v8005, 40
      %v8197 = vpop.permute.xlu0 %8196
      %8198 = vrot.lane.b32.xlu0 %v8015, 40
      %v8199 = vpop.permute.xlu0 %8198
      %8200 = vrot.lane.b32.xlu0 %v8025, 40
      %v8201 = vpop.permute.xlu0 %8200
      %8202 = vrot.lane.b32.xlu0 %v8035, 40
      %v8203 = vpop.permute.xlu0 %8202
      %8204 = vrot.lane.b32.xlu0 %v8045, 40
      %v8205 = vpop.permute.xlu0 %8204
      %8206 = vrot.lane.b32.xlu0 %v8055, 40
      %v8207 = vpop.permute.xlu0 %8206
      %8208 = vrot.lane.b32.xlu0 %v8065, 40
      %v8209 = vpop.permute.xlu0 %8208
      %8210 = vrot.lane.b32.xlu0 %v8075, 40
      %v8211 = vpop.permute.xlu0 %8210
      %8212 = vrot.lane.b32.xlu0 %v8085, 40
      %v8213 = vpop.permute.xlu0 %8212
      %8214 = vrot.lane.b32.xlu0 %v8095, 40
      %v8215 = vpop.permute.xlu0 %8214
      %8216 = vrot.lane.b32.xlu0 %v8105, 40
      %v8217 = vpop.permute.xlu0 %8216
      %8218 = vrot.lane.b32.xlu0 %v8115, 40
      %v8219 = vpop.permute.xlu0 %8218
      %8220 = vrot.lane.b32.xlu0 %v8125, 40
      %v8221 = vpop.permute.xlu0 %8220
      %8222 = vrot.lane.b32.xlu0 %v8135, 40
      %v8223 = vpop.permute.xlu0 %8222
      %8224 = vrot.lane.b32.xlu0 %v8145, 40
      %v8225 = vpop.permute.xlu0 %8224
      %8226 = vrot.lane.b32.xlu0 %v8155, 40
      %v8227 = vpop.permute.xlu0 %8226
      %8228 = vrot.lane.b32.xlu0 %v8165, 40
      %v8229 = vpop.permute.xlu0 %8228
      %vm8262 = vcmask 388416
      %8263 = vst.msk [vmem:[#allocation3] sm:$0xf] %vm8262, %v8167
      %8264 = vst.msk [vmem:[#allocation3 + $0x4] sm:$0xf] %vm8262, %v8169
      %8265 = vst.msk [vmem:[#allocation3 + $0x8] sm:$0xf] %vm8262, %v8171
      %8266 = vst.msk [vmem:[#allocation3 + $0xc] sm:$0xf] %vm8262, %v8173
      %8267 = vst.msk [vmem:[#allocation3 + $0x10] sm:$0xf] %vm8262, %v8175
      %8268 = vst.msk [vmem:[#allocation3 + $0x14] sm:$0xf] %vm8262, %v8177
      %8269 = vst.msk [vmem:[#allocation3 + $0x18] sm:$0xf] %vm8262, %v8179
      %8270 = vst.msk [vmem:[#allocation3 + $0x1c] sm:$0xf] %vm8262, %v8181
      %8271 = vst.msk [vmem:[#allocation3 + $0x20] sm:$0xf] %vm8262, %v8183
      %8272 = vst.msk [vmem:[#allocation3 + $0x24] sm:$0xf] %vm8262, %v8185
      %8273 = vst.msk [vmem:[#allocation3 + $0x28] sm:$0xf] %vm8262, %v8187
      %8274 = vst.msk [vmem:[#allocation3 + $0x2c] sm:$0xf] %vm8262, %v8189
      %8275 = vst.msk [vmem:[#allocation3 + $0x30] sm:$0xf] %vm8262, %v8191
      %8276 = vst.msk [vmem:[#allocation3 + $0x34] sm:$0xf] %vm8262, %v8193
      %8277 = vst.msk [vmem:[#allocation3 + $0x38] sm:$0xf] %vm8262, %v8195
      %8278 = vst.msk [vmem:[#allocation3 + $0x3c] sm:$0xf] %vm8262, %v8197
      %8279 = vst.msk [vmem:[#allocation3 + $0x40] sm:$0xf] %vm8262, %v8199
      %8280 = vst.msk [vmem:[#allocation3 + $0x44] sm:$0xf] %vm8262, %v8201
      %8281 = vst.msk [vmem:[#allocation3 + $0x48] sm:$0xf] %vm8262, %v8203
      %8282 = vst.msk [vmem:[#allocation3 + $0x4c] sm:$0xf] %vm8262, %v8205
      %8283 = vst.msk [vmem:[#allocation3 + $0x50] sm:$0xf] %vm8262, %v8207
      %8284 = vst.msk [vmem:[#allocation3 + $0x54] sm:$0xf] %vm8262, %v8209
      %8285 = vst.msk [vmem:[#allocation3 + $0x58] sm:$0xf] %vm8262, %v8211
      %8286 = vst.msk [vmem:[#allocation3 + $0x5c] sm:$0xf] %vm8262, %v8213
      %8287 = vst.msk [vmem:[#allocation3 + $0x60] sm:$0xf] %vm8262, %v8215
      %8288 = vst.msk [vmem:[#allocation3 + $0x64] sm:$0xf] %vm8262, %v8217
      %8289 = vst.msk [vmem:[#allocation3 + $0x68] sm:$0xf] %vm8262, %v8219
      %8290 = vst.msk [vmem:[#allocation3 + $0x6c] sm:$0xf] %vm8262, %v8221
      %8291 = vst.msk [vmem:[#allocation3 + $0x70] sm:$0xf] %vm8262, %v8223
      %8292 = vst.msk [vmem:[#allocation3 + $0x74] sm:$0xf] %vm8262, %v8225
      %8293 = vst.msk [vmem:[#allocation3 + $0x78] sm:$0xf] %vm8262, %v8227
      %8294 = vst.msk [vmem:[#allocation3 + $0x7c] sm:$0xf] %vm8262, %v8229
      %v8295 = vld [vmem:[#allocation2 + $0x14] sm:$0x8]
      %v8296 = vld [vmem:[#allocation2 + $0x18] sm:$0xf]
      %v8297 = vld [vmem:[#allocation2 + $0x1c] sm:$0xf]
      %v8298 = vld [vmem:[#allocation2 + $0x20] sm:$0xf]
      %v8299 = vld [vmem:[#allocation2 + $0x24] sm:$0xf]
      %v8300 = vld [vmem:[#allocation2 + $0x28] sm:$0xf]
      %v8301 = vld [vmem:[#allocation2 + $0x2c] sm:$0xf]
      %v8302 = vld [vmem:[#allocation2 + $0x30] sm:$0xf]
      %v8303 = vld [vmem:[#allocation2 + $0x34] sm:$0xf]
      %v8304 = vld [vmem:[#allocation2 + $0x38] sm:$0xf]
      %v8305 = vld [vmem:[#allocation2 + $0x3c] sm:$0xf]
      %v8306 = vld [vmem:[#allocation2 + $0x40] sm:$0xf]
      %v8307 = vld [vmem:[#allocation2 + $0x44] sm:$0xf]
      %v8308 = vld [vmem:[#allocation2 + $0x48] sm:$0xf]
      %v8309 = vld [vmem:[#allocation2 + $0x4c] sm:$0xf]
      %v8310 = vld [vmem:[#allocation2 + $0x50] sm:$0xf]
      %v8311 = vld [vmem:[#allocation2 + $0x54] sm:$0xf]
      %v8312 = vld [vmem:[#allocation2 + $0x58] sm:$0xf]
      %v8313 = vld [vmem:[#allocation2 + $0x5c] sm:$0xf]
      %v8314 = vld [vmem:[#allocation2 + $0x60] sm:$0xf]
      %v8315 = vld [vmem:[#allocation2 + $0x64] sm:$0xf]
      %v8316 = vld [vmem:[#allocation2 + $0x68] sm:$0xf]
      %v8317 = vld [vmem:[#allocation2 + $0x6c] sm:$0xf]
      %v8318 = vld [vmem:[#allocation2 + $0x70] sm:$0xf]
      %v8319 = vld [vmem:[#allocation2 + $0x74] sm:$0xf]
      %v8320 = vld [vmem:[#allocation2 + $0x78] sm:$0xf]
      %v8321 = vld [vmem:[#allocation2 + $0x7c] sm:$0xf]
      %v8322 = vld [vmem:[#allocation2 + $0x80] sm:$0xf]
      %v8323 = vld [vmem:[#allocation2 + $0x84] sm:$0xf]
      %v8324 = vld [vmem:[#allocation2 + $0x88] sm:$0xf]
      %v8325 = vld [vmem:[#allocation2 + $0x8c] sm:$0xf]
      %v8326 = vld [vmem:[#allocation2 + $0x90] sm:$0xf]
      %v8327 = vld [vmem:[#allocation2 + $0x94] sm:$0xf]
      %v8328 = vsel %vm1427, %v8295, 0
      %v8329 = vsel %vm1428, %v8296, 0
      %v8330 = vsel %vm1429, %v8297, 0
      %v8331 = vsel %vm1430, %v8298, 0
      %v8332 = vsel %vm1431, %v8299, 0
      %v8333 = vsel %vm1432, %v8300, 0
      %v8334 = vsel %vm1433, %v8301, 0
      %v8335 = vsel %vm1434, %v8302, 0
      %v8336 = vsel %vm1435, %v8303, 0
      %v8337 = vsel %vm1436, %v8304, 0
      %v8338 = vsel %vm1437, %v8305, 0
      %v8339 = vsel %vm1438, %v8306, 0
      %v8340 = vsel %vm1439, %v8307, 0
      %v8341 = vsel %vm1440, %v8308, 0
      %v8342 = vsel %vm1441, %v8309, 0
      %v8343 = vsel %vm1442, %v8310, 0
      %v8344 = vsel %vm1443, %v8311, 0
      %v8345 = vsel %vm1444, %v8312, 0
      %v8346 = vsel %vm1445, %v8313, 0
      %v8347 = vsel %vm1446, %v8314, 0
      %v8348 = vsel %vm1447, %v8315, 0
      %v8349 = vsel %vm1448, %v8316, 0
      %v8350 = vsel %vm1449, %v8317, 0
      %v8351 = vsel %vm1450, %v8318, 0
      %v8352 = vsel %vm1451, %v8319, 0
      %v8353 = vsel %vm1452, %v8320, 0
      %v8354 = vsel %vm1453, %v8321, 0
      %v8355 = vsel %vm1454, %v8322, 0
      %v8356 = vsel %vm1455, %v8323, 0
      %v8357 = vsel %vm1456, %v8324, 0
      %v8358 = vsel %vm1457, %v8325, 0
      %v8359 = vsel %vm1458, %v8326, 0
      %v8360 = vsel %vm1459, %v8327, 0
      %v8362 = vshrl.u32 %v8328, 16
      %v8364 = vrot.slane %v8362, 7
      %v8365 = vrot.slane %v8364, 4
      %v8367 = vshrl.u32 %v8329, 16
      %v8369 = vrot.slane %v8367, 7
      %v8370 = vshll.u32 %v8329, 16
      %v8372 = vor.u32 %v8369, %v8370
      %v8373 = vsel %vm1495, %v8365, %v8372
      %v8374 = vrot.slane %v8369, 4
      %v8376 = vshrl.u32 %v8330, 16
      %v8378 = vrot.slane %v8376, 7
      %v8379 = vshll.u32 %v8330, 16
      %v8381 = vor.u32 %v8378, %v8379
      %v8382 = vsel %vm1495, %v8374, %v8381
      %v8383 = vrot.slane %v8378, 4
      %v8385 = vshrl.u32 %v8331, 16
      %v8387 = vrot.slane %v8385, 7
      %v8388 = vshll.u32 %v8331, 16
      %v8390 = vor.u32 %v8387, %v8388
      %v8391 = vsel %vm1495, %v8383, %v8390
      %v8392 = vrot.slane %v8387, 4
      %v8394 = vshrl.u32 %v8332, 16
      %v8396 = vrot.slane %v8394, 7
      %v8397 = vshll.u32 %v8332, 16
      %v8399 = vor.u32 %v8396, %v8397
      %v8400 = vsel %vm1495, %v8392, %v8399
      %v8401 = vrot.slane %v8396, 4
      %v8403 = vshrl.u32 %v8333, 16
      %v8405 = vrot.slane %v8403, 7
      %v8406 = vshll.u32 %v8333, 16
      %v8408 = vor.u32 %v8405, %v8406
      %v8409 = vsel %vm1495, %v8401, %v8408
      %v8410 = vrot.slane %v8405, 4
      %v8412 = vshrl.u32 %v8334, 16
      %v8414 = vrot.slane %v8412, 7
      %v8415 = vshll.u32 %v8334, 16
      %v8417 = vor.u32 %v8414, %v8415
      %v8418 = vsel %vm1495, %v8410, %v8417
      %v8419 = vrot.slane %v8414, 4
      %v8421 = vshrl.u32 %v8335, 16
      %v8423 = vrot.slane %v8421, 7
      %v8424 = vshll.u32 %v8335, 16
      %v8426 = vor.u32 %v8423, %v8424
      %v8427 = vsel %vm1495, %v8419, %v8426
      %v8428 = vrot.slane %v8423, 4
      %v8430 = vshrl.u32 %v8336, 16
      %v8432 = vrot.slane %v8430, 7
      %v8433 = vshll.u32 %v8336, 16
      %v8435 = vor.u32 %v8432, %v8433
      %v8436 = vsel %vm1495, %v8428, %v8435
      %v8437 = vrot.slane %v8432, 4
      %v8439 = vshrl.u32 %v8337, 16
      %v8441 = vrot.slane %v8439, 7
      %v8442 = vshll.u32 %v8337, 16
      %v8444 = vor.u32 %v8441, %v8442
      %v8445 = vsel %vm1495, %v8437, %v8444
      %v8446 = vrot.slane %v8441, 4
      %v8448 = vshrl.u32 %v8338, 16
      %v8450 = vrot.slane %v8448, 7
      %v8451 = vshll.u32 %v8338, 16
      %v8453 = vor.u32 %v8450, %v8451
      %v8454 = vsel %vm1495, %v8446, %v8453
      %v8455 = vrot.slane %v8450, 4
      %v8457 = vshrl.u32 %v8339, 16
      %v8459 = vrot.slane %v8457, 7
      %v8460 = vshll.u32 %v8339, 16
      %v8462 = vor.u32 %v8459, %v8460
      %v8463 = vsel %vm1495, %v8455, %v8462
      %v8464 = vrot.slane %v8459, 4
      %v8466 = vshrl.u32 %v8340, 16
      %v8468 = vrot.slane %v8466, 7
      %v8469 = vshll.u32 %v8340, 16
      %v8471 = vor.u32 %v8468, %v8469
      %v8472 = vsel %vm1495, %v8464, %v8471
      %v8473 = vrot.slane %v8468, 4
      %v8475 = vshrl.u32 %v8341, 16
      %v8477 = vrot.slane %v8475, 7
      %v8478 = vshll.u32 %v8341, 16
      %v8480 = vor.u32 %v8477, %v8478
      %v8481 = vsel %vm1495, %v8473, %v8480
      %v8482 = vrot.slane %v8477, 4
      %v8484 = vshrl.u32 %v8342, 16
      %v8486 = vrot.slane %v8484, 7
      %v8487 = vshll.u32 %v8342, 16
      %v8489 = vor.u32 %v8486, %v8487
      %v8490 = vsel %vm1495, %v8482, %v8489
      %v8491 = vrot.slane %v8486, 4
      %v8493 = vshrl.u32 %v8343, 16
      %v8495 = vrot.slane %v8493, 7
      %v8496 = vshll.u32 %v8343, 16
      %v8498 = vor.u32 %v8495, %v8496
      %v8499 = vsel %vm1495, %v8491, %v8498
      %v8500 = vrot.slane %v8495, 4
      %v8502 = vshrl.u32 %v8344, 16
      %v8504 = vrot.slane %v8502, 7
      %v8505 = vshll.u32 %v8344, 16
      %v8507 = vor.u32 %v8504, %v8505
      %v8508 = vsel %vm1495, %v8500, %v8507
      %v8509 = vrot.slane %v8504, 4
      %v8511 = vshrl.u32 %v8345, 16
      %v8513 = vrot.slane %v8511, 7
      %v8514 = vshll.u32 %v8345, 16
      %v8516 = vor.u32 %v8513, %v8514
      %v8517 = vsel %vm1495, %v8509, %v8516
      %v8518 = vrot.slane %v8513, 4
      %v8520 = vshrl.u32 %v8346, 16
      %v8522 = vrot.slane %v8520, 7
      %v8523 = vshll.u32 %v8346, 16
      %v8525 = vor.u32 %v8522, %v8523
      %v8526 = vsel %vm1495, %v8518, %v8525
      %v8527 = vrot.slane %v8522, 4
      %v8529 = vshrl.u32 %v8347, 16
      %v8531 = vrot.slane %v8529, 7
      %v8532 = vshll.u32 %v8347, 16
      %v8534 = vor.u32 %v8531, %v8532
      %v8535 = vsel %vm1495, %v8527, %v8534
      %v8536 = vrot.slane %v8531, 4
      %v8538 = vshrl.u32 %v8348, 16
      %v8540 = vrot.slane %v8538, 7
      %v8541 = vshll.u32 %v8348, 16
      %v8543 = vor.u32 %v8540, %v8541
      %v8544 = vsel %vm1495, %v8536, %v8543
      %v8545 = vrot.slane %v8540, 4
      %v8547 = vshrl.u32 %v8349, 16
      %v8549 = vrot.slane %v8547, 7
      %v8550 = vshll.u32 %v8349, 16
      %v8552 = vor.u32 %v8549, %v8550
      %v8553 = vsel %vm1495, %v8545, %v8552
      %v8554 = vrot.slane %v8549, 4
      %v8556 = vshrl.u32 %v8350, 16
      %v8558 = vrot.slane %v8556, 7
      %v8559 = vshll.u32 %v8350, 16
      %v8561 = vor.u32 %v8558, %v8559
      %v8562 = vsel %vm1495, %v8554, %v8561
      %v8563 = vrot.slane %v8558, 4
      %v8565 = vshrl.u32 %v8351, 16
      %v8567 = vrot.slane %v8565, 7
      %v8568 = vshll.u32 %v8351, 16
      %v8570 = vor.u32 %v8567, %v8568
      %v8571 = vsel %vm1495, %v8563, %v8570
      %v8572 = vrot.slane %v8567, 4
      %v8574 = vshrl.u32 %v8352, 16
      %v8576 = vrot.slane %v8574, 7
      %v8577 = vshll.u32 %v8352, 16
      %v8579 = vor.u32 %v8576, %v8577
      %v8580 = vsel %vm1495, %v8572, %v8579
      %v8581 = vrot.slane %v8576, 4
      %v8583 = vshrl.u32 %v8353, 16
      %v8585 = vrot.slane %v8583, 7
      %v8586 = vshll.u32 %v8353, 16
      %v8588 = vor.u32 %v8585, %v8586
      %v8589 = vsel %vm1495, %v8581, %v8588
      %v8590 = vrot.slane %v8585, 4
      %v8592 = vshrl.u32 %v8354, 16
      %v8594 = vrot.slane %v8592, 7
      %v8595 = vshll.u32 %v8354, 16
      %v8597 = vor.u32 %v8594, %v8595
      %v8598 = vsel %vm1495, %v8590, %v8597
      %v8599 = vrot.slane %v8594, 4
      %v8601 = vshrl.u32 %v8355, 16
      %v8603 = vrot.slane %v8601, 7
      %v8604 = vshll.u32 %v8355, 16
      %v8606 = vor.u32 %v8603, %v8604
      %v8607 = vsel %vm1495, %v8599, %v8606
      %v8608 = vrot.slane %v8603, 4
      %v8610 = vshrl.u32 %v8356, 16
      %v8612 = vrot.slane %v8610, 7
      %v8613 = vshll.u32 %v8356, 16
      %v8615 = vor.u32 %v8612, %v8613
      %v8616 = vsel %vm1495, %v8608, %v8615
      %v8617 = vrot.slane %v8612, 4
      %v8619 = vshrl.u32 %v8357, 16
      %v8621 = vrot.slane %v8619, 7
      %v8622 = vshll.u32 %v8357, 16
      %v8624 = vor.u32 %v8621, %v8622
      %v8625 = vsel %vm1495, %v8617, %v8624
      %v8626 = vrot.slane %v8621, 4
      %v8628 = vshrl.u32 %v8358, 16
      %v8630 = vrot.slane %v8628, 7
      %v8631 = vshll.u32 %v8358, 16
      %v8633 = vor.u32 %v8630, %v8631
      %v8634 = vsel %vm1495, %v8626, %v8633
      %v8635 = vrot.slane %v8630, 4
      %v8637 = vshrl.u32 %v8359, 16
      %v8639 = vrot.slane %v8637, 7
      %v8640 = vshll.u32 %v8359, 16
      %v8642 = vor.u32 %v8639, %v8640
      %v8643 = vsel %vm1495, %v8635, %v8642
      %v8644 = vrot.slane %v8639, 4
      %v8646 = vshrl.u32 %v8360, 16
      %v8648 = vrot.slane %v8646, 7
      %v8649 = vshll.u32 %v8360, 16
      %v8651 = vor.u32 %v8648, %v8649
      %v8652 = vsel %vm1495, %v8644, %v8651
      %8653 = vrot.lane.b32.xlu0 %v8373, 48
      %v8654 = vpop.permute.xlu0 %8653
      %8655 = vrot.lane.b32.xlu0 %v8382, 48
      %v8656 = vpop.permute.xlu0 %8655
      %8657 = vrot.lane.b32.xlu0 %v8391, 48
      %v8658 = vpop.permute.xlu0 %8657
      %8659 = vrot.lane.b32.xlu0 %v8400, 48
      %v8660 = vpop.permute.xlu0 %8659
      %8661 = vrot.lane.b32.xlu0 %v8409, 48
      %v8662 = vpop.permute.xlu0 %8661
      %8663 = vrot.lane.b32.xlu0 %v8418, 48
      %v8664 = vpop.permute.xlu0 %8663
      %8665 = vrot.lane.b32.xlu0 %v8427, 48
      %v8666 = vpop.permute.xlu0 %8665
      %8667 = vrot.lane.b32.xlu0 %v8436, 48
      %v8668 = vpop.permute.xlu0 %8667
      %8669 = vrot.lane.b32.xlu0 %v8445, 48
      %v8670 = vpop.permute.xlu0 %8669
      %8671 = vrot.lane.b32.xlu0 %v8454, 48
      %v8672 = vpop.permute.xlu0 %8671
      %8673 = vrot.lane.b32.xlu0 %v8463, 48
      %v8674 = vpop.permute.xlu0 %8673
      %8675 = vrot.lane.b32.xlu0 %v8472, 48
      %v8676 = vpop.permute.xlu0 %8675
      %8677 = vrot.lane.b32.xlu0 %v8481, 48
      %v8678 = vpop.permute.xlu0 %8677
      %8679 = vrot.lane.b32.xlu0 %v8490, 48
      %v8680 = vpop.permute.xlu0 %8679
      %8681 = vrot.lane.b32.xlu0 %v8499, 48
      %v8682 = vpop.permute.xlu0 %8681
      %8683 = vrot.lane.b32.xlu0 %v8508, 48
      %v8684 = vpop.permute.xlu0 %8683
      %8685 = vrot.lane.b32.xlu0 %v8517, 48
      %v8686 = vpop.permute.xlu0 %8685
      %8687 = vrot.lane.b32.xlu0 %v8526, 48
      %v8688 = vpop.permute.xlu0 %8687
      %8689 = vrot.lane.b32.xlu0 %v8535, 48
      %v8690 = vpop.permute.xlu0 %8689
      %8691 = vrot.lane.b32.xlu0 %v8544, 48
      %v8692 = vpop.permute.xlu0 %8691
      %8693 = vrot.lane.b32.xlu0 %v8553, 48
      %v8694 = vpop.permute.xlu0 %8693
      %8695 = vrot.lane.b32.xlu0 %v8562, 48
      %v8696 = vpop.permute.xlu0 %8695
      %8697 = vrot.lane.b32.xlu0 %v8571, 48
      %v8698 = vpop.permute.xlu0 %8697
      %8699 = vrot.lane.b32.xlu0 %v8580, 48
      %v8700 = vpop.permute.xlu0 %8699
      %8701 = vrot.lane.b32.xlu0 %v8589, 48
      %v8702 = vpop.permute.xlu0 %8701
      %8703 = vrot.lane.b32.xlu0 %v8598, 48
      %v8704 = vpop.permute.xlu0 %8703
      %8705 = vrot.lane.b32.xlu0 %v8607, 48
      %v8706 = vpop.permute.xlu0 %8705
      %8707 = vrot.lane.b32.xlu0 %v8616, 48
      %v8708 = vpop.permute.xlu0 %8707
      %8709 = vrot.lane.b32.xlu0 %v8625, 48
      %v8710 = vpop.permute.xlu0 %8709
      %8711 = vrot.lane.b32.xlu0 %v8634, 48
      %v8712 = vpop.permute.xlu0 %8711
      %8713 = vrot.lane.b32.xlu0 %v8643, 48
      %v8714 = vpop.permute.xlu0 %8713
      %8715 = vrot.lane.b32.xlu0 %v8652, 48
      %v8716 = vpop.permute.xlu0 %8715
      %vm8749 = vcmask 454016
      %8750 = vst.msk [vmem:[#allocation3] sm:$0xf] %vm8749, %v8654
      %8751 = vst.msk [vmem:[#allocation3 + $0x4] sm:$0xf] %vm8749, %v8656
      %8752 = vst.msk [vmem:[#allocation3 + $0x8] sm:$0xf] %vm8749, %v8658
      %8753 = vst.msk [vmem:[#allocation3 + $0xc] sm:$0xf] %vm8749, %v8660
      %8754 = vst.msk [vmem:[#allocation3 + $0x10] sm:$0xf] %vm8749, %v8662
      %8755 = vst.msk [vmem:[#allocation3 + $0x14] sm:$0xf] %vm8749, %v8664
      %8756 = vst.msk [vmem:[#allocation3 + $0x18] sm:$0xf] %vm8749, %v8666
      %8757 = vst.msk [vmem:[#allocation3 + $0x1c] sm:$0xf] %vm8749, %v8668
      %8758 = vst.msk [vmem:[#allocation3 + $0x20] sm:$0xf] %vm8749, %v8670
      %8759 = vst.msk [vmem:[#allocation3 + $0x24] sm:$0xf] %vm8749, %v8672
      %8760 = vst.msk [vmem:[#allocation3 + $0x28] sm:$0xf] %vm8749, %v8674
      %8761 = vst.msk [vmem:[#allocation3 + $0x2c] sm:$0xf] %vm8749, %v8676
      %8762 = vst.msk [vmem:[#allocation3 + $0x30] sm:$0xf] %vm8749, %v8678
      %8763 = vst.msk [vmem:[#allocation3 + $0x34] sm:$0xf] %vm8749, %v8680
      %8764 = vst.msk [vmem:[#allocation3 + $0x38] sm:$0xf] %vm8749, %v8682
      %8765 = vst.msk [vmem:[#allocation3 + $0x3c] sm:$0xf] %vm8749, %v8684
      %8766 = vst.msk [vmem:[#allocation3 + $0x40] sm:$0xf] %vm8749, %v8686
      %8767 = vst.msk [vmem:[#allocation3 + $0x44] sm:$0xf] %vm8749, %v8688
      %8768 = vst.msk [vmem:[#allocation3 + $0x48] sm:$0xf] %vm8749, %v8690
      %8769 = vst.msk [vmem:[#allocation3 + $0x4c] sm:$0xf] %vm8749, %v8692
      %8770 = vst.msk [vmem:[#allocation3 + $0x50] sm:$0xf] %vm8749, %v8694
      %8771 = vst.msk [vmem:[#allocation3 + $0x54] sm:$0xf] %vm8749, %v8696
      %8772 = vst.msk [vmem:[#allocation3 + $0x58] sm:$0xf] %vm8749, %v8698
      %8773 = vst.msk [vmem:[#allocation3 + $0x5c] sm:$0xf] %vm8749, %v8700
      %8774 = vst.msk [vmem:[#allocation3 + $0x60] sm:$0xf] %vm8749, %v8702
      %8775 = vst.msk [vmem:[#allocation3 + $0x64] sm:$0xf] %vm8749, %v8704
      %8776 = vst.msk [vmem:[#allocation3 + $0x68] sm:$0xf] %vm8749, %v8706
      %8777 = vst.msk [vmem:[#allocation3 + $0x6c] sm:$0xf] %vm8749, %v8708
      %8778 = vst.msk [vmem:[#allocation3 + $0x70] sm:$0xf] %vm8749, %v8710
      %8779 = vst.msk [vmem:[#allocation3 + $0x74] sm:$0xf] %vm8749, %v8712
      %8780 = vst.msk [vmem:[#allocation3 + $0x78] sm:$0xf] %vm8749, %v8714
      %8781 = vst.msk [vmem:[#allocation3 + $0x7c] sm:$0xf] %vm8749, %v8716
      %v8782 = vld [vmem:[#allocation2 + $0x18] sm:$0xf]
      %v8783 = vld [vmem:[#allocation2 + $0x1c] sm:$0xf]
      %v8784 = vld [vmem:[#allocation2 + $0x20] sm:$0xf]
      %v8785 = vld [vmem:[#allocation2 + $0x24] sm:$0xf]
      %v8786 = vld [vmem:[#allocation2 + $0x28] sm:$0xf]
      %v8787 = vld [vmem:[#allocation2 + $0x2c] sm:$0xf]
      %v8788 = vld [vmem:[#allocation2 + $0x30] sm:$0xf]
      %v8789 = vld [vmem:[#allocation2 + $0x34] sm:$0xf]
      %v8790 = vld [vmem:[#allocation2 + $0x38] sm:$0xf]
      %v8791 = vld [vmem:[#allocation2 + $0x3c] sm:$0xf]
      %v8792 = vld [vmem:[#allocation2 + $0x40] sm:$0xf]
      %v8793 = vld [vmem:[#allocation2 + $0x44] sm:$0xf]
      %v8794 = vld [vmem:[#allocation2 + $0x48] sm:$0xf]
      %v8795 = vld [vmem:[#allocation2 + $0x4c] sm:$0xf]
      %v8796 = vld [vmem:[#allocation2 + $0x50] sm:$0xf]
      %v8797 = vld [vmem:[#allocation2 + $0x54] sm:$0xf]
      %v8798 = vld [vmem:[#allocation2 + $0x58] sm:$0xf]
      %v8799 = vld [vmem:[#allocation2 + $0x5c] sm:$0xf]
      %v8800 = vld [vmem:[#allocation2 + $0x60] sm:$0xf]
      %v8801 = vld [vmem:[#allocation2 + $0x64] sm:$0xf]
      %v8802 = vld [vmem:[#allocation2 + $0x68] sm:$0xf]
      %v8803 = vld [vmem:[#allocation2 + $0x6c] sm:$0xf]
      %v8804 = vld [vmem:[#allocation2 + $0x70] sm:$0xf]
      %v8805 = vld [vmem:[#allocation2 + $0x74] sm:$0xf]
      %v8806 = vld [vmem:[#allocation2 + $0x78] sm:$0xf]
      %v8807 = vld [vmem:[#allocation2 + $0x7c] sm:$0xf]
      %v8808 = vld [vmem:[#allocation2 + $0x80] sm:$0xf]
      %v8809 = vld [vmem:[#allocation2 + $0x84] sm:$0xf]
      %v8810 = vld [vmem:[#allocation2 + $0x88] sm:$0xf]
      %v8811 = vld [vmem:[#allocation2 + $0x8c] sm:$0xf]
      %v8812 = vld [vmem:[#allocation2 + $0x90] sm:$0xf]
      %v8813 = vld [vmem:[#allocation2 + $0x94] sm:$0xf]
      %8846 = vrot.lane.b32.xlu0 %v8782, 56
      %v8847 = vpop.permute.xlu0 %8846
      %8848 = vrot.lane.b32.xlu0 %v8783, 56
      %v8849 = vpop.permute.xlu0 %8848
      %8850 = vrot.lane.b32.xlu0 %v8784, 56
      %v8851 = vpop.permute.xlu0 %8850
      %8852 = vrot.lane.b32.xlu0 %v8785, 56
      %v8853 = vpop.permute.xlu0 %8852
      %8854 = vrot.lane.b32.xlu0 %v8786, 56
      %v8855 = vpop.permute.xlu0 %8854
      %8856 = vrot.lane.b32.xlu0 %v8787, 56
      %v8857 = vpop.permute.xlu0 %8856
      %8858 = vrot.lane.b32.xlu0 %v8788, 56
      %v8859 = vpop.permute.xlu0 %8858
      %8860 = vrot.lane.b32.xlu0 %v8789, 56
      %v8861 = vpop.permute.xlu0 %8860
      %8862 = vrot.lane.b32.xlu0 %v8790, 56
      %v8863 = vpop.permute.xlu0 %8862
      %8864 = vrot.lane.b32.xlu0 %v8791, 56
      %v8865 = vpop.permute.xlu0 %8864
      %8866 = vrot.lane.b32.xlu0 %v8792, 56
      %v8867 = vpop.permute.xlu0 %8866
      %8868 = vrot.lane.b32.xlu0 %v8793, 56
      %v8869 = vpop.permute.xlu0 %8868
      %8870 = vrot.lane.b32.xlu0 %v8794, 56
      %v8871 = vpop.permute.xlu0 %8870
      %8872 = vrot.lane.b32.xlu0 %v8795, 56
      %v8873 = vpop.permute.xlu0 %8872
      %8874 = vrot.lane.b32.xlu0 %v8796, 56
      %v8875 = vpop.permute.xlu0 %8874
      %8876 = vrot.lane.b32.xlu0 %v8797, 56
      %v8877 = vpop.permute.xlu0 %8876
      %8878 = vrot.lane.b32.xlu0 %v8798, 56
      %v8879 = vpop.permute.xlu0 %8878
      %8880 = vrot.lane.b32.xlu0 %v8799, 56
      %v8881 = vpop.permute.xlu0 %8880
      %8882 = vrot.lane.b32.xlu0 %v8800, 56
      %v8883 = vpop.permute.xlu0 %8882
      %8884 = vrot.lane.b32.xlu0 %v8801, 56
      %v8885 = vpop.permute.xlu0 %8884
      %8886 = vrot.lane.b32.xlu0 %v8802, 56
      %v8887 = vpop.permute.xlu0 %8886
      %8888 = vrot.lane.b32.xlu0 %v8803, 56
      %v8889 = vpop.permute.xlu0 %8888
      %8890 = vrot.lane.b32.xlu0 %v8804, 56
      %v8891 = vpop.permute.xlu0 %8890
      %8892 = vrot.lane.b32.xlu0 %v8805, 56
      %v8893 = vpop.permute.xlu0 %8892
      %8894 = vrot.lane.b32.xlu0 %v8806, 56
      %v8895 = vpop.permute.xlu0 %8894
      %8896 = vrot.lane.b32.xlu0 %v8807, 56
      %v8897 = vpop.permute.xlu0 %8896
      %8898 = vrot.lane.b32.xlu0 %v8808, 56
      %v8899 = vpop.permute.xlu0 %8898
      %8900 = vrot.lane.b32.xlu0 %v8809, 56
      %v8901 = vpop.permute.xlu0 %8900
      %8902 = vrot.lane.b32.xlu0 %v8810, 56
      %v8903 = vpop.permute.xlu0 %8902
      %8904 = vrot.lane.b32.xlu0 %v8811, 56
      %v8905 = vpop.permute.xlu0 %8904
      %8906 = vrot.lane.b32.xlu0 %v8812, 56
      %v8907 = vpop.permute.xlu0 %8906
      %8908 = vrot.lane.b32.xlu0 %v8813, 56
      %v8909 = vpop.permute.xlu0 %8908
      %vm8942 = vcmask 519616
      %8943 = vst.msk [vmem:[#allocation3] sm:$0xf] %vm8942, %v8847
      %8944 = vst.msk [vmem:[#allocation3 + $0x4] sm:$0xf] %vm8942, %v8849
      %8945 = vst.msk [vmem:[#allocation3 + $0x8] sm:$0xf] %vm8942, %v8851
      %8946 = vst.msk [vmem:[#allocation3 + $0xc] sm:$0xf] %vm8942, %v8853
      %8947 = vst.msk [vmem:[#allocation3 + $0x10] sm:$0xf] %vm8942, %v8855
      %8948 = vst.msk [vmem:[#allocation3 + $0x14] sm:$0xf] %vm8942, %v8857
      %8949 = vst.msk [vmem:[#allocation3 + $0x18] sm:$0xf] %vm8942, %v8859
      %8950 = vst.msk [vmem:[#allocation3 + $0x1c] sm:$0xf] %vm8942, %v8861
      %8951 = vst.msk [vmem:[#allocation3 + $0x20] sm:$0xf] %vm8942, %v8863
      %8952 = vst.msk [vmem:[#allocation3 + $0x24] sm:$0xf] %vm8942, %v8865
      %8953 = vst.msk [vmem:[#allocation3 + $0x28] sm:$0xf] %vm8942, %v8867
      %8954 = vst.msk [vmem:[#allocation3 + $0x2c] sm:$0xf] %vm8942, %v8869
      %8955 = vst.msk [vmem:[#allocation3 + $0x30] sm:$0xf] %vm8942, %v8871
      %8956 = vst.msk [vmem:[#allocation3 + $0x34] sm:$0xf] %vm8942, %v8873
      %8957 = vst.msk [vmem:[#allocation3 + $0x38] sm:$0xf] %vm8942, %v8875
      %8958 = vst.msk [vmem:[#allocation3 + $0x3c] sm:$0xf] %vm8942, %v8877
      %8959 = vst.msk [vmem:[#allocation3 + $0x40] sm:$0xf] %vm8942, %v8879
      %8960 = vst.msk [vmem:[#allocation3 + $0x44] sm:$0xf] %vm8942, %v8881
      %8961 = vst.msk [vmem:[#allocation3 + $0x48] sm:$0xf] %vm8942, %v8883
      %8962 = vst.msk [vmem:[#allocation3 + $0x4c] sm:$0xf] %vm8942, %v8885
      %8963 = vst.msk [vmem:[#allocation3 + $0x50] sm:$0xf] %vm8942, %v8887
      %8964 = vst.msk [vmem:[#allocation3 + $0x54] sm:$0xf] %vm8942, %v8889
      %8965 = vst.msk [vmem:[#allocation3 + $0x58] sm:$0xf] %vm8942, %v8891
      %8966 = vst.msk [vmem:[#allocation3 + $0x5c] sm:$0xf] %vm8942, %v8893
      %8967 = vst.msk [vmem:[#allocation3 + $0x60] sm:$0xf] %vm8942, %v8895
      %8968 = vst.msk [vmem:[#allocation3 + $0x64] sm:$0xf] %vm8942, %v8897
      %8969 = vst.msk [vmem:[#allocation3 + $0x68] sm:$0xf] %vm8942, %v8899
      %8970 = vst.msk [vmem:[#allocation3 + $0x6c] sm:$0xf] %vm8942, %v8901
      %8971 = vst.msk [vmem:[#allocation3 + $0x70] sm:$0xf] %vm8942, %v8903
      %8972 = vst.msk [vmem:[#allocation3 + $0x74] sm:$0xf] %vm8942, %v8905
      %8973 = vst.msk [vmem:[#allocation3 + $0x78] sm:$0xf] %vm8942, %v8907
      %8974 = vst.msk [vmem:[#allocation3 + $0x7c] sm:$0xf] %vm8942, %v8909
      %v8975 = vld [vmem:[#allocation2 + $0x18] sm:$0xf]
      %v8976 = vld [vmem:[#allocation2 + $0x1c] sm:$0xf]
      %v8977 = vld [vmem:[#allocation2 + $0x20] sm:$0xf]
      %v8978 = vld [vmem:[#allocation2 + $0x24] sm:$0xf]
      %v8979 = vld [vmem:[#allocation2 + $0x28] sm:$0xf]
      %v8980 = vld [vmem:[#allocation2 + $0x2c] sm:$0xf]
      %v8981 = vld [vmem:[#allocation2 + $0x30] sm:$0xf]
      %v8982 = vld [vmem:[#allocation2 + $0x34] sm:$0xf]
      %v8983 = vld [vmem:[#allocation2 + $0x38] sm:$0xf]
      %v8984 = vld [vmem:[#allocation2 + $0x3c] sm:$0xf]
      %v8985 = vld [vmem:[#allocation2 + $0x40] sm:$0xf]
      %v8986 = vld [vmem:[#allocation2 + $0x44] sm:$0xf]
      %v8987 = vld [vmem:[#allocation2 + $0x48] sm:$0xf]
      %v8988 = vld [vmem:[#allocation2 + $0x4c] sm:$0xf]
      %v8989 = vld [vmem:[#allocation2 + $0x50] sm:$0xf]
      %v8990 = vld [vmem:[#allocation2 + $0x54] sm:$0xf]
      %v8991 = vld [vmem:[#allocation2 + $0x58] sm:$0xf]
      %v8992 = vld [vmem:[#allocation2 + $0x5c] sm:$0xf]
      %v8993 = vld [vmem:[#allocation2 + $0x60] sm:$0xf]
      %v8994 = vld [vmem:[#allocation2 + $0x64] sm:$0xf]
      %v8995 = vld [vmem:[#allocation2 + $0x68] sm:$0xf]
      %v8996 = vld [vmem:[#allocation2 + $0x6c] sm:$0xf]
      %v8997 = vld [vmem:[#allocation2 + $0x70] sm:$0xf]
      %v8998 = vld [vmem:[#allocation2 + $0x74] sm:$0xf]
      %v8999 = vld [vmem:[#allocation2 + $0x78] sm:$0xf]
      %v9000 = vld [vmem:[#allocation2 + $0x7c] sm:$0xf]
      %v9001 = vld [vmem:[#allocation2 + $0x80] sm:$0xf]
      %v9002 = vld [vmem:[#allocation2 + $0x84] sm:$0xf]
      %v9003 = vld [vmem:[#allocation2 + $0x88] sm:$0xf]
      %v9004 = vld [vmem:[#allocation2 + $0x8c] sm:$0xf]
      %v9005 = vld [vmem:[#allocation2 + $0x90] sm:$0xf]
      %v9006 = vld [vmem:[#allocation2 + $0x94] sm:$0xf]
      %v9007 = vld [vmem:[#allocation2 + $0x98] sm:$0x1]
      %v9008 = vsel %vm2493, %v8975, 0
      %v9009 = vsel %vm2494, %v8976, 0
      %v9010 = vsel %vm2495, %v8977, 0
      %v9011 = vsel %vm2496, %v8978, 0
      %v9012 = vsel %vm2497, %v8979, 0
      %v9013 = vsel %vm2498, %v8980, 0
      %v9014 = vsel %vm2499, %v8981, 0
      %v9015 = vsel %vm2500, %v8982, 0
      %v9016 = vsel %vm2501, %v8983, 0
      %v9017 = vsel %vm2502, %v8984, 0
      %v9018 = vsel %vm2503, %v8985, 0
      %v9019 = vsel %vm2504, %v8986, 0
      %v9020 = vsel %vm2505, %v8987, 0
      %v9021 = vsel %vm2506, %v8988, 0
      %v9022 = vsel %vm2507, %v8989, 0
      %v9023 = vsel %vm2508, %v8990, 0
      %v9024 = vsel %vm2509, %v8991, 0
      %v9025 = vsel %vm2510, %v8992, 0
      %v9026 = vsel %vm2511, %v8993, 0
      %v9027 = vsel %vm2512, %v8994, 0
      %v9028 = vsel %vm2513, %v8995, 0
      %v9029 = vsel %vm2514, %v8996, 0
      %v9030 = vsel %vm2515, %v8997, 0
      %v9031 = vsel %vm2516, %v8998, 0
      %v9032 = vsel %vm2517, %v8999, 0
      %v9033 = vsel %vm2518, %v9000, 0
      %v9034 = vsel %vm2519, %v9001, 0
      %v9035 = vsel %vm2520, %v9002, 0
      %v9036 = vsel %vm2521, %v9003, 0
      %v9037 = vsel %vm2522, %v9004, 0
      %v9038 = vsel %vm2523, %v9005, 0
      %v9039 = vsel %vm2524, %v9006, 0
      %v9040 = vsel %vm2525, %v9007, 0
      %v9042 = vshrl.u32 %v9008, 16
      %v9044 = vrot.slane %v9042, 4
      %v9045 = vshll.u32 %v9008, 16
      %v9047 = vrot.slane %v9045, 5
      %v9048 = vor.u32 %v9044, %v9047
      %v9049 = vrot.slane %v9048, 4
      %v9051 = vshll.u32 %v9009, 16
      %v9053 = vrot.slane %v9051, 5
      %v9054 = vsel %vm1107, %v9049, %v9053
      %v9055 = vshrl.u32 %v9009, 16
      %v9057 = vrot.slane %v9055, 4
      %v9058 = vor.u32 %v9057, %v9053
      %v9059 = vrot.slane %v9058, 4
      %v9061 = vshll.u32 %v9010, 16
      %v9063 = vrot.slane %v9061, 5
      %v9064 = vsel %vm1107, %v9059, %v9063
      %v9065 = vshrl.u32 %v9010, 16
      %v9067 = vrot.slane %v9065, 4
      %v9068 = vor.u32 %v9067, %v9063
      %v9069 = vrot.slane %v9068, 4
      %v9071 = vshll.u32 %v9011, 16
      %v9073 = vrot.slane %v9071, 5
      %v9074 = vsel %vm1107, %v9069, %v9073
      %v9075 = vshrl.u32 %v9011, 16
      %v9077 = vrot.slane %v9075, 4
      %v9078 = vor.u32 %v9077, %v9073
      %v9079 = vrot.slane %v9078, 4
      %v9081 = vshll.u32 %v9012, 16
      %v9083 = vrot.slane %v9081, 5
      %v9084 = vsel %vm1107, %v9079, %v9083
      %v9085 = vshrl.u32 %v9012, 16
      %v9087 = vrot.slane %v9085, 4
      %v9088 = vor.u32 %v9087, %v9083
      %v9089 = vrot.slane %v9088, 4
      %v9091 = vshll.u32 %v9013, 16
      %v9093 = vrot.slane %v9091, 5
      %v9094 = vsel %vm1107, %v9089, %v9093
      %v9095 = vshrl.u32 %v9013, 16
      %v9097 = vrot.slane %v9095, 4
      %v9098 = vor.u32 %v9097, %v9093
      %v9099 = vrot.slane %v9098, 4
      %v9101 = vshll.u32 %v9014, 16
      %v9103 = vrot.slane %v9101, 5
      %v9104 = vsel %vm1107, %v9099, %v9103
      %v9105 = vshrl.u32 %v9014, 16
      %v9107 = vrot.slane %v9105, 4
      %v9108 = vor.u32 %v9107, %v9103
      %v9109 = vrot.slane %v9108, 4
      %v9111 = vshll.u32 %v9015, 16
      %v9113 = vrot.slane %v9111, 5
      %v9114 = vsel %vm1107, %v9109, %v9113
      %v9115 = vshrl.u32 %v9015, 16
      %v9117 = vrot.slane %v9115, 4
      %v9118 = vor.u32 %v9117, %v9113
      %v9119 = vrot.slane %v9118, 4
      %v9121 = vshll.u32 %v9016, 16
      %v9123 = vrot.slane %v9121, 5
      %v9124 = vsel %vm1107, %v9119, %v9123
      %v9125 = vshrl.u32 %v9016, 16
      %v9127 = vrot.slane %v9125, 4
      %v9128 = vor.u32 %v9127, %v9123
      %v9129 = vrot.slane %v9128, 4
      %v9131 = vshll.u32 %v9017, 16
      %v9133 = vrot.slane %v9131, 5
      %v9134 = vsel %vm1107, %v9129, %v9133
      %v9135 = vshrl.u32 %v9017, 16
      %v9137 = vrot.slane %v9135, 4
      %v9138 = vor.u32 %v9137, %v9133
      %v9139 = vrot.slane %v9138, 4
      %v9141 = vshll.u32 %v9018, 16
      %v9143 = vrot.slane %v9141, 5
      %v9144 = vsel %vm1107, %v9139, %v9143
      %v9145 = vshrl.u32 %v9018, 16
      %v9147 = vrot.slane %v9145, 4
      %v9148 = vor.u32 %v9147, %v9143
      %v9149 = vrot.slane %v9148, 4
      %v9151 = vshll.u32 %v9019, 16
      %v9153 = vrot.slane %v9151, 5
      %v9154 = vsel %vm1107, %v9149, %v9153
      %v9155 = vshrl.u32 %v9019, 16
      %v9157 = vrot.slane %v9155, 4
      %v9158 = vor.u32 %v9157, %v9153
      %v9159 = vrot.slane %v9158, 4
      %v9161 = vshll.u32 %v9020, 16
      %v9163 = vrot.slane %v9161, 5
      %v9164 = vsel %vm1107, %v9159, %v9163
      %v9165 = vshrl.u32 %v9020, 16
      %v9167 = vrot.slane %v9165, 4
      %v9168 = vor.u32 %v9167, %v9163
      %v9169 = vrot.slane %v9168, 4
      %v9171 = vshll.u32 %v9021, 16
      %v9173 = vrot.slane %v9171, 5
      %v9174 = vsel %vm1107, %v9169, %v9173
      %v9175 = vshrl.u32 %v9021, 16
      %v9177 = vrot.slane %v9175, 4
      %v9178 = vor.u32 %v9177, %v9173
      %v9179 = vrot.slane %v9178, 4
      %v9181 = vshll.u32 %v9022, 16
      %v9183 = vrot.slane %v9181, 5
      %v9184 = vsel %vm1107, %v9179, %v9183
      %v9185 = vshrl.u32 %v9022, 16
      %v9187 = vrot.slane %v9185, 4
      %v9188 = vor.u32 %v9187, %v9183
      %v9189 = vrot.slane %v9188, 4
      %v9191 = vshll.u32 %v9023, 16
      %v9193 = vrot.slane %v9191, 5
      %v9194 = vsel %vm1107, %v9189, %v9193
      %v9195 = vshrl.u32 %v9023, 16
      %v9197 = vrot.slane %v9195, 4
      %v9198 = vor.u32 %v9197, %v9193
      %v9199 = vrot.slane %v9198, 4
      %v9201 = vshll.u32 %v9024, 16
      %v9203 = vrot.slane %v9201, 5
      %v9204 = vsel %vm1107, %v9199, %v9203
      %v9205 = vshrl.u32 %v9024, 16
      %v9207 = vrot.slane %v9205, 4
      %v9208 = vor.u32 %v9207, %v9203
      %v9209 = vrot.slane %v9208, 4
      %v9211 = vshll.u32 %v9025, 16
      %v9213 = vrot.slane %v9211, 5
      %v9214 = vsel %vm1107, %v9209, %v9213
      %v9215 = vshrl.u32 %v9025, 16
      %v9217 = vrot.slane %v9215, 4
      %v9218 = vor.u32 %v9217, %v9213
      %v9219 = vrot.slane %v9218, 4
      %v9221 = vshll.u32 %v9026, 16
      %v9223 = vrot.slane %v9221, 5
      %v9224 = vsel %vm1107, %v9219, %v9223
      %v9225 = vshrl.u32 %v9026, 16
      %v9227 = vrot.slane %v9225, 4
      %v9228 = vor.u32 %v9227, %v9223
      %v9229 = vrot.slane %v9228, 4
      %v9231 = vshll.u32 %v9027, 16
      %v9233 = vrot.slane %v9231, 5
      %v9234 = vsel %vm1107, %v9229, %v9233
      %v9235 = vshrl.u32 %v9027, 16
      %v9237 = vrot.slane %v9235, 4
      %v9238 = vor.u32 %v9237, %v9233
      %v9239 = vrot.slane %v9238, 4
      %v9241 = vshll.u32 %v9028, 16
      %v9243 = vrot.slane %v9241, 5
      %v9244 = vsel %vm1107, %v9239, %v9243
      %v9245 = vshrl.u32 %v9028, 16
      %v9247 = vrot.slane %v9245, 4
      %v9248 = vor.u32 %v9247, %v9243
      %v9249 = vrot.slane %v9248, 4
      %v9251 = vshll.u32 %v9029, 16
      %v9253 = vrot.slane %v9251, 5
      %v9254 = vsel %vm1107, %v9249, %v9253
      %v9255 = vshrl.u32 %v9029, 16
      %v9257 = vrot.slane %v9255, 4
      %v9258 = vor.u32 %v9257, %v9253
      %v9259 = vrot.slane %v9258, 4
      %v9261 = vshll.u32 %v9030, 16
      %v9263 = vrot.slane %v9261, 5
      %v9264 = vsel %vm1107, %v9259, %v9263
      %v9265 = vshrl.u32 %v9030, 16
      %v9267 = vrot.slane %v9265, 4
      %v9268 = vor.u32 %v9267, %v9263
      %v9269 = vrot.slane %v9268, 4
      %v9271 = vshll.u32 %v9031, 16
      %v9273 = vrot.slane %v9271, 5
      %v9274 = vsel %vm1107, %v9269, %v9273
      %v9275 = vshrl.u32 %v9031, 16
      %v9277 = vrot.slane %v9275, 4
      %v9278 = vor.u32 %v9277, %v9273
      %v9279 = vrot.slane %v9278, 4
      %v9281 = vshll.u32 %v9032, 16
      %v9283 = vrot.slane %v9281, 5
      %v9284 = vsel %vm1107, %v9279, %v9283
      %v9285 = vshrl.u32 %v9032, 16
      %v9287 = vrot.slane %v9285, 4
      %v9288 = vor.u32 %v9287, %v9283
      %v9289 = vrot.slane %v9288, 4
      %v9291 = vshll.u32 %v9033, 16
      %v9293 = vrot.slane %v9291, 5
      %v9294 = vsel %vm1107, %v9289, %v9293
      %v9295 = vshrl.u32 %v9033, 16
      %v9297 = vrot.slane %v9295, 4
      %v9298 = vor.u32 %v9297, %v9293
      %v9299 = vrot.slane %v9298, 4
      %v9301 = vshll.u32 %v9034, 16
      %v9303 = vrot.slane %v9301, 5
      %v9304 = vsel %vm1107, %v9299, %v9303
      %v9305 = vshrl.u32 %v9034, 16
      %v9307 = vrot.slane %v9305, 4
      %v9308 = vor.u32 %v9307, %v9303
      %v9309 = vrot.slane %v9308, 4
      %v9311 = vshll.u32 %v9035, 16
      %v9313 = vrot.slane %v9311, 5
      %v9314 = vsel %vm1107, %v9309, %v9313
      %v9315 = vshrl.u32 %v9035, 16
      %v9317 = vrot.slane %v9315, 4
      %v9318 = vor.u32 %v9317, %v9313
      %v9319 = vrot.slane %v9318, 4
      %v9321 = vshll.u32 %v9036, 16
      %v9323 = vrot.slane %v9321, 5
      %v9324 = vsel %vm1107, %v9319, %v9323
      %v9325 = vshrl.u32 %v9036, 16
      %v9327 = vrot.slane %v9325, 4
      %v9328 = vor.u32 %v9327, %v9323
      %v9329 = vrot.slane %v9328, 4
      %v9331 = vshll.u32 %v9037, 16
      %v9333 = vrot.slane %v9331, 5
      %v9334 = vsel %vm1107, %v9329, %v9333
      %v9335 = vshrl.u32 %v9037, 16
      %v9337 = vrot.slane %v9335, 4
      %v9338 = vor.u32 %v9337, %v9333
      %v9339 = vrot.slane %v9338, 4
      %v9341 = vshll.u32 %v9038, 16
      %v9343 = vrot.slane %v9341, 5
      %v9344 = vsel %vm1107, %v9339, %v9343
      %v9345 = vshrl.u32 %v9038, 16
      %v9347 = vrot.slane %v9345, 4
      %v9348 = vor.u32 %v9347, %v9343
      %v9349 = vrot.slane %v9348, 4
      %v9351 = vshll.u32 %v9039, 16
      %v9353 = vrot.slane %v9351, 5
      %v9354 = vsel %vm1107, %v9349, %v9353
      %v9355 = vshrl.u32 %v9039, 16
      %v9357 = vrot.slane %v9355, 4
      %v9358 = vor.u32 %v9357, %v9353
      %v9359 = vrot.slane %v9358, 4
      %v9361 = vshll.u32 %v9040, 16
      %v9363 = vrot.slane %v9361, 5
      %v9364 = vsel %vm1107, %v9359, %v9363
      %9365 = vrot.lane.b32.xlu0 %v9054, 64
      %v9366 = vpop.permute.xlu0 %9365
      %9367 = vrot.lane.b32.xlu0 %v9064, 64
      %v9368 = vpop.permute.xlu0 %9367
      %9369 = vrot.lane.b32.xlu0 %v9074, 64
      %v9370 = vpop.permute.xlu0 %9369
      %9371 = vrot.lane.b32.xlu0 %v9084, 64
      %v9372 = vpop.permute.xlu0 %9371
      %9373 = vrot.lane.b32.xlu0 %v9094, 64
      %v9374 = vpop.permute.xlu0 %9373
      %9375 = vrot.lane.b32.xlu0 %v9104, 64
      %v9376 = vpop.permute.xlu0 %9375
      %9377 = vrot.lane.b32.xlu0 %v9114, 64
      %v9378 = vpop.permute.xlu0 %9377
      %9379 = vrot.lane.b32.xlu0 %v9124, 64
      %v9380 = vpop.permute.xlu0 %9379
      %9381 = vrot.lane.b32.xlu0 %v9134, 64
      %v9382 = vpop.permute.xlu0 %9381
      %9383 = vrot.lane.b32.xlu0 %v9144, 64
      %v9384 = vpop.permute.xlu0 %9383
      %9385 = vrot.lane.b32.xlu0 %v9154, 64
      %v9386 = vpop.permute.xlu0 %9385
      %9387 = vrot.lane.b32.xlu0 %v9164, 64
      %v9388 = vpop.permute.xlu0 %9387
      %9389 = vrot.lane.b32.xlu0 %v9174, 64
      %v9390 = vpop.permute.xlu0 %9389
      %9391 = vrot.lane.b32.xlu0 %v9184, 64
      %v9392 = vpop.permute.xlu0 %9391
      %9393 = vrot.lane.b32.xlu0 %v9194, 64
      %v9394 = vpop.permute.xlu0 %9393
      %9395 = vrot.lane.b32.xlu0 %v9204, 64
      %v9396 = vpop.permute.xlu0 %9395
      %9397 = vrot.lane.b32.xlu0 %v9214, 64
      %v9398 = vpop.permute.xlu0 %9397
      %9399 = vrot.lane.b32.xlu0 %v9224, 64
      %v9400 = vpop.permute.xlu0 %9399
      %9401 = vrot.lane.b32.xlu0 %v9234, 64
      %v9402 = vpop.permute.xlu0 %9401
      %9403 = vrot.lane.b32.xlu0 %v9244, 64
      %v9404 = vpop.permute.xlu0 %9403
      %9405 = vrot.lane.b32.xlu0 %v9254, 64
      %v9406 = vpop.permute.xlu0 %9405
      %9407 = vrot.lane.b32.xlu0 %v9264, 64
      %v9408 = vpop.permute.xlu0 %9407
      %9409 = vrot.lane.b32.xlu0 %v9274, 64
      %v9410 = vpop.permute.xlu0 %9409
      %9411 = vrot.lane.b32.xlu0 %v9284, 64
      %v9412 = vpop.permute.xlu0 %9411
      %9413 = vrot.lane.b32.xlu0 %v9294, 64
      %v9414 = vpop.permute.xlu0 %9413
      %9415 = vrot.lane.b32.xlu0 %v9304, 64
      %v9416 = vpop.permute.xlu0 %9415
      %9417 = vrot.lane.b32.xlu0 %v9314, 64
      %v9418 = vpop.permute.xlu0 %9417
      %9419 = vrot.lane.b32.xlu0 %v9324, 64
      %v9420 = vpop.permute.xlu0 %9419
      %9421 = vrot.lane.b32.xlu0 %v9334, 64
      %v9422 = vpop.permute.xlu0 %9421
      %9423 = vrot.lane.b32.xlu0 %v9344, 64
      %v9424 = vpop.permute.xlu0 %9423
      %9425 = vrot.lane.b32.xlu0 %v9354, 64
      %v9426 = vpop.permute.xlu0 %9425
      %9427 = vrot.lane.b32.xlu0 %v9364, 64
      %v9428 = vpop.permute.xlu0 %9427
      %vm9461 = vcmask 585216
      %9462 = vst.msk [vmem:[#allocation3] sm:$0xf] %vm9461, %v9366
      %9463 = vst.msk [vmem:[#allocation3 + $0x4] sm:$0xf] %vm9461, %v9368
      %9464 = vst.msk [vmem:[#allocation3 + $0x8] sm:$0xf] %vm9461, %v9370
      %9465 = vst.msk [vmem:[#allocation3 + $0xc] sm:$0xf] %vm9461, %v9372
      %9466 = vst.msk [vmem:[#allocation3 + $0x10] sm:$0xf] %vm9461, %v9374
      %9467 = vst.msk [vmem:[#allocation3 + $0x14] sm:$0xf] %vm9461, %v9376
      %9468 = vst.msk [vmem:[#allocation3 + $0x18] sm:$0xf] %vm9461, %v9378
      %9469 = vst.msk [vmem:[#allocation3 + $0x1c] sm:$0xf] %vm9461, %v9380
      %9470 = vst.msk [vmem:[#allocation3 + $0x20] sm:$0xf] %vm9461, %v9382
      %9471 = vst.msk [vmem:[#allocation3 + $0x24] sm:$0xf] %vm9461, %v9384
      %9472 = vst.msk [vmem:[#allocation3 + $0x28] sm:$0xf] %vm9461, %v9386
      %9473 = vst.msk [vmem:[#allocation3 + $0x2c] sm:$0xf] %vm9461, %v9388
      %9474 = vst.msk [vmem:[#allocation3 + $0x30] sm:$0xf] %vm9461, %v9390
      %9475 = vst.msk [vmem:[#allocation3 + $0x34] sm:$0xf] %vm9461, %v9392
      %9476 = vst.msk [vmem:[#allocation3 + $0x38] sm:$0xf] %vm9461, %v9394
      %9477 = vst.msk [vmem:[#allocation3 + $0x3c] sm:$0xf] %vm9461, %v9396
      %9478 = vst.msk [vmem:[#allocation3 + $0x40] sm:$0xf] %vm9461, %v9398
      %9479 = vst.msk [vmem:[#allocation3 + $0x44] sm:$0xf] %vm9461, %v9400
      %9480 = vst.msk [vmem:[#allocation3 + $0x48] sm:$0xf] %vm9461, %v9402
      %9481 = vst.msk [vmem:[#allocation3 + $0x4c] sm:$0xf] %vm9461, %v9404
      %9482 = vst.msk [vmem:[#allocation3 + $0x50] sm:$0xf] %vm9461, %v9406
      %9483 = vst.msk [vmem:[#allocation3 + $0x54] sm:$0xf] %vm9461, %v9408
      %9484 = vst.msk [vmem:[#allocation3 + $0x58] sm:$0xf] %vm9461, %v9410
      %9485 = vst.msk [vmem:[#allocation3 + $0x5c] sm:$0xf] %vm9461, %v9412
      %9486 = vst.msk [vmem:[#allocation3 + $0x60] sm:$0xf] %vm9461, %v9414
      %9487 = vst.msk [vmem:[#allocation3 + $0x64] sm:$0xf] %vm9461, %v9416
      %9488 = vst.msk [vmem:[#allocation3 + $0x68] sm:$0xf] %vm9461, %v9418
      %9489 = vst.msk [vmem:[#allocation3 + $0x6c] sm:$0xf] %vm9461, %v9420
      %9490 = vst.msk [vmem:[#allocation3 + $0x70] sm:$0xf] %vm9461, %v9422
      %9491 = vst.msk [vmem:[#allocation3 + $0x74] sm:$0xf] %vm9461, %v9424
      %9492 = vst.msk [vmem:[#allocation3 + $0x78] sm:$0xf] %vm9461, %v9426
      %9493 = vst.msk [vmem:[#allocation3 + $0x7c] sm:$0xf] %vm9461, %v9428
      %v9494 = vld [vmem:[%s219] sm:$0xff]
      %v9495 = vld [vmem:[%s219 + $0x8] sm:$0xff]
      %v9496 = vld [vmem:[%s219 + $0x10] sm:$0xff]
      %v9497 = vld [vmem:[%s219 + $0x18] sm:$0xff]
      %v9498 = vld [vmem:[%s219 + $0x20] sm:$0xff]
      %v9499 = vld [vmem:[%s219 + $0x28] sm:$0xff]
      %v9500 = vld [vmem:[%s219 + $0x30] sm:$0xff]
      %v9501 = vld [vmem:[%s219 + $0x38] sm:$0xff]
      %v9502 = vld [vmem:[%s219 + $0x40] sm:$0xff]
      %v9503 = vld [vmem:[%s219 + $0x48] sm:$0xff]
      %v9504 = vld [vmem:[%s219 + $0x50] sm:$0xff]
      %v9505 = vld [vmem:[%s219 + $0x58] sm:$0xff]
      %v9506 = vld [vmem:[%s219 + $0x60] sm:$0xff]
      %v9507 = vld [vmem:[%s219 + $0x68] sm:$0xff]
      %v9508 = vld [vmem:[%s219 + $0x70] sm:$0xff]
      %v9509 = vld [vmem:[%s219 + $0x78] sm:$0xff]
      %v9510 = vld [vmem:[%s219 + $0x80] sm:$0xff]
      %v9511 = vld [vmem:[%s219 + $0x88] sm:$0xff]
      %v9512 = vld [vmem:[%s219 + $0x90] sm:$0xff]
      %v9513 = vld [vmem:[%s219 + $0x98] sm:$0xff]
      %v9514 = vld [vmem:[%s219 + $0xa0] sm:$0xff]
      %v9515 = vld [vmem:[%s219 + $0xa8] sm:$0xff]
      %v9516 = vld [vmem:[%s219 + $0xb0] sm:$0xff]
      %v9517 = vld [vmem:[%s219 + $0xb8] sm:$0xff]
      %v9518 = vld [vmem:[%s219 + $0xc0] sm:$0xff]
      %v9519 = vld [vmem:[%s219 + $0xc8] sm:$0xff]
      %v9520 = vld [vmem:[%s219 + $0xd0] sm:$0xff]
      %v9521 = vld [vmem:[%s219 + $0xd8] sm:$0xff]
      %v9522 = vld [vmem:[%s219 + $0xe0] sm:$0xff]
      %v9523 = vld [vmem:[%s219 + $0xe8] sm:$0xff]
      %v9524 = vld [vmem:[%s219 + $0xf0] sm:$0xff]
      %v9525 = vld [vmem:[%s219 + $0xf8] sm:$0xff]
      %v9526 = vpack.c.bf16 %v9495, %v9494
      %v9527 = vpack.c.bf16 %v9497, %v9496
      %v9528 = vpack.c.bf16 %v9499, %v9498
      %v9529 = vpack.c.bf16 %v9501, %v9500
      %v9530 = vpack.c.bf16 %v9503, %v9502
      %v9531 = vpack.c.bf16 %v9505, %v9504
      %v9532 = vpack.c.bf16 %v9507, %v9506
      %v9533 = vpack.c.bf16 %v9509, %v9508
      %v9534 = vpack.c.bf16 %v9511, %v9510
      %v9535 = vpack.c.bf16 %v9513, %v9512
      %v9536 = vpack.c.bf16 %v9515, %v9514
      %v9537 = vpack.c.bf16 %v9517, %v9516
      %v9538 = vpack.c.bf16 %v9519, %v9518
      %v9539 = vpack.c.bf16 %v9521, %v9520
      %v9540 = vpack.c.bf16 %v9523, %v9522
      %v9541 = vpack.c.bf16 %v9525, %v9524
      %v9558 = vunpack.c.l.b16 %v9526
      %v9559 = vunpack.c.h.b16 %v9526
      %v9560 = vunpack.c.l.b16 %v9527
      %v9561 = vunpack.c.h.b16 %v9527
      %v9562 = vunpack.c.l.b16 %v9528
      %v9563 = vunpack.c.h.b16 %v9528
      %v9564 = vunpack.c.l.b16 %v9529
      %v9565 = vunpack.c.h.b16 %v9529
      %v9566 = vunpack.c.l.b16 %v9530
      %v9567 = vunpack.c.h.b16 %v9530
      %v9568 = vunpack.c.l.b16 %v9531
      %v9569 = vunpack.c.h.b16 %v9531
      %v9570 = vunpack.c.l.b16 %v9532
      %v9571 = vunpack.c.h.b16 %v9532
      %v9572 = vunpack.c.l.b16 %v9533
      %v9573 = vunpack.c.h.b16 %v9533
      %v9574 = vunpack.c.l.b16 %v9534
      %v9575 = vunpack.c.h.b16 %v9534
      %v9576 = vunpack.c.l.b16 %v9535
      %v9577 = vunpack.c.h.b16 %v9535
      %v9578 = vunpack.c.l.b16 %v9536
      %v9579 = vunpack.c.h.b16 %v9536
      %v9580 = vunpack.c.l.b16 %v9537
      %v9581 = vunpack.c.h.b16 %v9537
      %v9582 = vunpack.c.l.b16 %v9538
      %v9583 = vunpack.c.h.b16 %v9538
      %v9584 = vunpack.c.l.b16 %v9539
      %v9585 = vunpack.c.h.b16 %v9539
      %v9586 = vunpack.c.l.b16 %v9540
      %v9587 = vunpack.c.h.b16 %v9540
      %v9588 = vunpack.c.l.b16 %v9541
      %v9589 = vunpack.c.h.b16 %v9541
      %v9590 = vpack.c.b16 %v9558, %v9558
      %v9591 = vpack.c.b16 %v9559, %v9559
      %v9592 = vpack.c.b16 %v9560, %v9560
      %v9593 = vpack.c.b16 %v9561, %v9561
      %v9594 = vpack.c.b16 %v9562, %v9562
      %v9595 = vpack.c.b16 %v9563, %v9563
      %v9596 = vpack.c.b16 %v9564, %v9564
      %v9597 = vpack.c.b16 %v9565, %v9565
      %v9598 = vpack.c.b16 %v9566, %v9566
      %v9599 = vpack.c.b16 %v9567, %v9567
      %v9600 = vpack.c.b16 %v9568, %v9568
      %v9601 = vpack.c.b16 %v9569, %v9569
      %v9602 = vpack.c.b16 %v9570, %v9570
      %v9603 = vpack.c.b16 %v9571, %v9571
      %v9604 = vpack.c.b16 %v9572, %v9572
      %v9605 = vpack.c.b16 %v9573, %v9573
      %v9606 = vpack.c.b16 %v9574, %v9574
      %v9607 = vpack.c.b16 %v9575, %v9575
      %v9608 = vpack.c.b16 %v9576, %v9576
      %v9609 = vpack.c.b16 %v9577, %v9577
      %v9610 = vpack.c.b16 %v9578, %v9578
      %v9611 = vpack.c.b16 %v9579, %v9579
      %v9612 = vpack.c.b16 %v9580, %v9580
      %v9613 = vpack.c.b16 %v9581, %v9581
      %v9614 = vpack.c.b16 %v9582, %v9582
      %v9615 = vpack.c.b16 %v9583, %v9583
      %v9616 = vpack.c.b16 %v9584, %v9584
      %v9617 = vpack.c.b16 %v9585, %v9585
      %v9618 = vpack.c.b16 %v9586, %v9586
      %v9619 = vpack.c.b16 %v9587, %v9587
      %v9620 = vpack.c.b16 %v9588, %v9588
      %v9621 = vpack.c.b16 %v9589, %v9589
      %9622 = vrot.lane.b32.xlu0 %v9590, 72
      %v9623 = vpop.permute.xlu0 %9622
      %9624 = vrot.lane.b32.xlu0 %v9591, 72
      %v9625 = vpop.permute.xlu0 %9624
      %9626 = vrot.lane.b32.xlu0 %v9592, 72
      %v9627 = vpop.permute.xlu0 %9626
      %9628 = vrot.lane.b32.xlu0 %v9593, 72
      %v9629 = vpop.permute.xlu0 %9628
      %9630 = vrot.lane.b32.xlu0 %v9594, 72
      %v9631 = vpop.permute.xlu0 %9630
      %9632 = vrot.lane.b32.xlu0 %v9595, 72
      %v9633 = vpop.permute.xlu0 %9632
      %9634 = vrot.lane.b32.xlu0 %v9596, 72
      %v9635 = vpop.permute.xlu0 %9634
      %9636 = vrot.lane.b32.xlu0 %v9597, 72
      %v9637 = vpop.permute.xlu0 %9636
      %9638 = vrot.lane.b32.xlu0 %v9598, 72
      %v9639 = vpop.permute.xlu0 %9638
      %9640 = vrot.lane.b32.xlu0 %v9599, 72
      %v9641 = vpop.permute.xlu0 %9640
      %9642 = vrot.lane.b32.xlu0 %v9600, 72
      %v9643 = vpop.permute.xlu0 %9642
      %9644 = vrot.lane.b32.xlu0 %v9601, 72
      %v9645 = vpop.permute.xlu0 %9644
      %9646 = vrot.lane.b32.xlu0 %v9602, 72
      %v9647 = vpop.permute.xlu0 %9646
      %9648 = vrot.lane.b32.xlu0 %v9603, 72
      %v9649 = vpop.permute.xlu0 %9648
      %9650 = vrot.lane.b32.xlu0 %v9604, 72
      %v9651 = vpop.permute.xlu0 %9650
      %9652 = vrot.lane.b32.xlu0 %v9605, 72
      %v9653 = vpop.permute.xlu0 %9652
      %9654 = vrot.lane.b32.xlu0 %v9606, 72
      %v9655 = vpop.permute.xlu0 %9654
      %9656 = vrot.lane.b32.xlu0 %v9607, 72
      %v9657 = vpop.permute.xlu0 %9656
      %9658 = vrot.lane.b32.xlu0 %v9608, 72
      %v9659 = vpop.permute.xlu0 %9658
      %9660 = vrot.lane.b32.xlu0 %v9609, 72
      %v9661 = vpop.permute.xlu0 %9660
      %9662 = vrot.lane.b32.xlu0 %v9610, 72
      %v9663 = vpop.permute.xlu0 %9662
      %9664 = vrot.lane.b32.xlu0 %v9611, 72
      %v9665 = vpop.permute.xlu0 %9664
      %9666 = vrot.lane.b32.xlu0 %v9612, 72
      %v9667 = vpop.permute.xlu0 %9666
      %9668 = vrot.lane.b32.xlu0 %v9613, 72
      %v9669 = vpop.permute.xlu0 %9668
      %9670 = vrot.lane.b32.xlu0 %v9614, 72
      %v9671 = vpop.permute.xlu0 %9670
      %9672 = vrot.lane.b32.xlu0 %v9615, 72
      %v9673 = vpop.permute.xlu0 %9672
      %9674 = vrot.lane.b32.xlu0 %v9616, 72
      %v9675 = vpop.permute.xlu0 %9674
      %9676 = vrot.lane.b32.xlu0 %v9617, 72
      %v9677 = vpop.permute.xlu0 %9676
      %9678 = vrot.lane.b32.xlu0 %v9618, 72
      %v9679 = vpop.permute.xlu0 %9678
      %9680 = vrot.lane.b32.xlu0 %v9619, 72
      %v9681 = vpop.permute.xlu0 %9680
      %9682 = vrot.lane.b32.xlu0 %v9620, 72
      %v9683 = vpop.permute.xlu0 %9682
      %9684 = vrot.lane.b32.xlu0 %v9621, 72
      %v9685 = vpop.permute.xlu0 %9684
      %vm9718 = vcmask 618048
      %9719 = vst.msk [vmem:[#allocation3] sm:$0xf] %vm9718, %v9623
      %9720 = vst.msk [vmem:[#allocation3 + $0x4] sm:$0xf] %vm9718, %v9625
      %9721 = vst.msk [vmem:[#allocation3 + $0x8] sm:$0xf] %vm9718, %v9627
      %9722 = vst.msk [vmem:[#allocation3 + $0xc] sm:$0xf] %vm9718, %v9629
      %9723 = vst.msk [vmem:[#allocation3 + $0x10] sm:$0xf] %vm9718, %v9631
      %9724 = vst.msk [vmem:[#allocation3 + $0x14] sm:$0xf] %vm9718, %v9633
      %9725 = vst.msk [vmem:[#allocation3 + $0x18] sm:$0xf] %vm9718, %v9635
      %9726 = vst.msk [vmem:[#allocation3 + $0x1c] sm:$0xf] %vm9718, %v9637
      %9727 = vst.msk [vmem:[#allocation3 + $0x20] sm:$0xf] %vm9718, %v9639
      %9728 = vst.msk [vmem:[#allocation3 + $0x24] sm:$0xf] %vm9718, %v9641
      %9729 = vst.msk [vmem:[#allocation3 + $0x28] sm:$0xf] %vm9718, %v9643
      %9730 = vst.msk [vmem:[#allocation3 + $0x2c] sm:$0xf] %vm9718, %v9645
      %9731 = vst.msk [vmem:[#allocation3 + $0x30] sm:$0xf] %vm9718, %v9647
      %9732 = vst.msk [vmem:[#allocation3 + $0x34] sm:$0xf] %vm9718, %v9649
      %9733 = vst.msk [vmem:[#allocation3 + $0x38] sm:$0xf] %vm9718, %v9651
      %9734 = vst.msk [vmem:[#allocation3 + $0x3c] sm:$0xf] %vm9718, %v9653
      %9735 = vst.msk [vmem:[#allocation3 + $0x40] sm:$0xf] %vm9718, %v9655
      %9736 = vst.msk [vmem:[#allocation3 + $0x44] sm:$0xf] %vm9718, %v9657
      %9737 = vst.msk [vmem:[#allocation3 + $0x48] sm:$0xf] %vm9718, %v9659
      %9738 = vst.msk [vmem:[#allocation3 + $0x4c] sm:$0xf] %vm9718, %v9661
      %9739 = vst.msk [vmem:[#allocation3 + $0x50] sm:$0xf] %vm9718, %v9663
      %9740 = vst.msk [vmem:[#allocation3 + $0x54] sm:$0xf] %vm9718, %v9665
      %9741 = vst.msk [vmem:[#allocation3 + $0x58] sm:$0xf] %vm9718, %v9667
      %9742 = vst.msk [vmem:[#allocation3 + $0x5c] sm:$0xf] %vm9718, %v9669
      %9743 = vst.msk [vmem:[#allocation3 + $0x60] sm:$0xf] %vm9718, %v9671
      %9744 = vst.msk [vmem:[#allocation3 + $0x64] sm:$0xf] %vm9718, %v9673
      %9745 = vst.msk [vmem:[#allocation3 + $0x68] sm:$0xf] %vm9718, %v9675
      %9746 = vst.msk [vmem:[#allocation3 + $0x6c] sm:$0xf] %vm9718, %v9677
      %9747 = vst.msk [vmem:[#allocation3 + $0x70] sm:$0xf] %vm9718, %v9679
      %9748 = vst.msk [vmem:[#allocation3 + $0x74] sm:$0xf] %vm9718, %v9681
      %9749 = vst.msk [vmem:[#allocation3 + $0x78] sm:$0xf] %vm9718, %v9683
      %9750 = vst.msk [vmem:[#allocation3 + $0x7c] sm:$0xf] %vm9718, %v9685
      %v9751 = vld [vmem:[#allocation3] sm:$0xf]
      %v9752 = vld [vmem:[#allocation3 + $0x4] sm:$0xf]
      %v9753 = vld [vmem:[#allocation3 + $0x8] sm:$0xf]
      %v9754 = vld [vmem:[#allocation3 + $0xc] sm:$0xf]
      %v9755 = vld [vmem:[#allocation3 + $0x10] sm:$0xf]
      %v9756 = vld [vmem:[#allocation3 + $0x14] sm:$0xf]
      %v9757 = vld [vmem:[#allocation3 + $0x18] sm:$0xf]
      %v9758 = vld [vmem:[#allocation3 + $0x1c] sm:$0xf]
      %v9759 = vld [vmem:[#allocation3 + $0x20] sm:$0xf]
      %v9760 = vld [vmem:[#allocation3 + $0x24] sm:$0xf]
      %v9761 = vld [vmem:[#allocation3 + $0x28] sm:$0xf]
      %v9762 = vld [vmem:[#allocation3 + $0x2c] sm:$0xf]
      %v9763 = vld [vmem:[#allocation3 + $0x30] sm:$0xf]
      %v9764 = vld [vmem:[#allocation3 + $0x34] sm:$0xf]
      %v9765 = vld [vmem:[#allocation3 + $0x38] sm:$0xf]
      %v9766 = vld [vmem:[#allocation3 + $0x3c] sm:$0xf]
      %v9767 = vld [vmem:[#allocation3 + $0x40] sm:$0xf]
      %v9768 = vld [vmem:[#allocation3 + $0x44] sm:$0xf]
      %v9769 = vld [vmem:[#allocation3 + $0x48] sm:$0xf]
      %v9770 = vld [vmem:[#allocation3 + $0x4c] sm:$0xf]
      %v9771 = vld [vmem:[#allocation3 + $0x50] sm:$0xf]
      %v9772 = vld [vmem:[#allocation3 + $0x54] sm:$0xf]
      %v9773 = vld [vmem:[#allocation3 + $0x58] sm:$0xf]
      %v9774 = vld [vmem:[#allocation3 + $0x5c] sm:$0xf]
      %v9775 = vld [vmem:[#allocation3 + $0x60] sm:$0xf]
      %v9776 = vld [vmem:[#allocation3 + $0x64] sm:$0xf]
      %v9777 = vld [vmem:[#allocation3 + $0x68] sm:$0xf]
      %v9778 = vld [vmem:[#allocation3 + $0x6c] sm:$0xf]
      %v9779 = vld [vmem:[#allocation3 + $0x70] sm:$0xf]
      %v9780 = vld [vmem:[#allocation3 + $0x74] sm:$0xf]
      %v9781 = vld [vmem:[#allocation3 + $0x78] sm:$0xf]
      %v9782 = vld [vmem:[#allocation3 + $0x7c] sm:$0xf]
      %v9783 = vld [vmem:[%s3] sm:$0xf]
      %v9784 = vld [vmem:[%s3 + $0x4] sm:$0xf]
      %v9785 = vld [vmem:[%s3 + $0x8] sm:$0xf]
      %v9786 = vld [vmem:[%s3 + $0xc] sm:$0xf]
      %v9787 = vld [vmem:[%s3 + $0x10] sm:$0xf]
      %v9788 = vld [vmem:[%s3 + $0x14] sm:$0xf]
      %v9789 = vld [vmem:[%s3 + $0x18] sm:$0xf]
      %v9790 = vld [vmem:[%s3 + $0x1c] sm:$0xf]
      %v9791 = vld [vmem:[%s3 + $0x20] sm:$0xf]
      %v9792 = vld [vmem:[%s3 + $0x24] sm:$0xf]
      %v9793 = vld [vmem:[%s3 + $0x28] sm:$0xf]
      %v9794 = vld [vmem:[%s3 + $0x2c] sm:$0xf]
      %v9795 = vld [vmem:[%s3 + $0x30] sm:$0xf]
      %v9796 = vld [vmem:[%s3 + $0x34] sm:$0xf]
      %v9797 = vld [vmem:[%s3 + $0x38] sm:$0xf]
      %v9798 = vld [vmem:[%s3 + $0x3c] sm:$0xf]
      %v9799 = vld [vmem:[%s4] sm:$0x1]
      %v9801 = vlaneseq
      %v9802 = vshrl.u32 %v9801, 7
      %v9803 = vsub.s32 0, %v9802
      %v9804 = vrot.slane %v9799, %v9803
      %v9838 = vunpack.c.l.b16 %v9751
      %v9839 = vunpack.c.l.b16 %v9752
      %v9840 = vunpack.c.l.b16 %v9753
      %v9841 = vunpack.c.l.b16 %v9754
      %v9842 = vunpack.c.l.b16 %v9755
      %v9843 = vunpack.c.l.b16 %v9756
      %v9844 = vunpack.c.l.b16 %v9757
      %v9845 = vunpack.c.l.b16 %v9758
      %v9846 = vunpack.c.l.b16 %v9759
      %v9847 = vunpack.c.l.b16 %v9760
      %v9848 = vunpack.c.l.b16 %v9761
      %v9849 = vunpack.c.l.b16 %v9762
      %v9850 = vunpack.c.l.b16 %v9763
      %v9851 = vunpack.c.l.b16 %v9764
      %v9852 = vunpack.c.l.b16 %v9765
      %v9853 = vunpack.c.l.b16 %v9766
      %v9854 = vunpack.c.l.b16 %v9767
      %v9855 = vunpack.c.l.b16 %v9768
      %v9856 = vunpack.c.l.b16 %v9769
      %v9857 = vunpack.c.l.b16 %v9770
      %v9858 = vunpack.c.l.b16 %v9771
      %v9859 = vunpack.c.l.b16 %v9772
      %v9860 = vunpack.c.l.b16 %v9773
      %v9861 = vunpack.c.l.b16 %v9774
      %v9862 = vunpack.c.l.b16 %v9775
      %v9863 = vunpack.c.l.b16 %v9776
      %v9864 = vunpack.c.l.b16 %v9777
      %v9865 = vunpack.c.l.b16 %v9778
      %v9866 = vunpack.c.l.b16 %v9779
      %v9867 = vunpack.c.l.b16 %v9780
      %v9868 = vunpack.c.l.b16 %v9781
      %v9869 = vunpack.c.l.b16 %v9782
      %v9870 = vpack.c.b16 %v9839, %v9838
      %v9871 = vpack.c.b16 %v9841, %v9840
      %v9872 = vpack.c.b16 %v9843, %v9842
      %v9873 = vpack.c.b16 %v9845, %v9844
      %v9874 = vpack.c.b16 %v9847, %v9846
      %v9875 = vpack.c.b16 %v9849, %v9848
      %v9876 = vpack.c.b16 %v9851, %v9850
      %v9877 = vpack.c.b16 %v9853, %v9852
      %v9878 = vpack.c.b16 %v9855, %v9854
      %v9879 = vpack.c.b16 %v9857, %v9856
      %v9880 = vpack.c.b16 %v9859, %v9858
      %v9881 = vpack.c.b16 %v9861, %v9860
      %v9882 = vpack.c.b16 %v9863, %v9862
      %v9883 = vpack.c.b16 %v9865, %v9864
      %v9884 = vpack.c.b16 %v9867, %v9866
      %v9885 = vpack.c.b16 %v9869, %v9868
      %v9918 = vunpack.c.l.b16 %v9783
      %v9919 = vunpack.c.l.b16 %v9784
      %v9920 = vunpack.c.l.b16 %v9785
      %v9921 = vunpack.c.l.b16 %v9786
      %v9922 = vunpack.c.l.b16 %v9787
      %v9923 = vunpack.c.l.b16 %v9788
      %v9924 = vunpack.c.l.b16 %v9789
      %v9925 = vunpack.c.l.b16 %v9790
      %v9926 = vunpack.c.l.b16 %v9791
      %v9927 = vunpack.c.l.b16 %v9792
      %v9928 = vunpack.c.l.b16 %v9793
      %v9929 = vunpack.c.l.b16 %v9794
      %v9930 = vunpack.c.l.b16 %v9795
      %v9931 = vunpack.c.l.b16 %v9796
      %v9932 = vunpack.c.l.b16 %v9797
      %v9933 = vunpack.c.l.b16 %v9798
      %v9934 = vpack.c.b16 %v9919, %v9918
      %v9935 = vpack.c.b16 %v9921, %v9920
      %v9936 = vpack.c.b16 %v9923, %v9922
      %v9937 = vpack.c.b16 %v9925, %v9924
      %v9938 = vpack.c.b16 %v9927, %v9926
      %v9939 = vpack.c.b16 %v9929, %v9928
      %v9940 = vpack.c.b16 %v9931, %v9930
      %v9941 = vpack.c.b16 %v9933, %v9932
      %9950 = vmatprep.subr.bf16.mxu0 0
      %9951 = vmatpush1.bf16.msra.mxu0 %v9941
      %9952 = vmatprep.subr.bf16.mxu0 0
      %9953 = vmatpush1.bf16.msra.mxu0 %v9940
      %9954 = vmatprep.subr.bf16.mxu0 0
      %9955 = vmatpush1.bf16.msra.mxu0 %v9939
      %9956 = vmatprep.subr.bf16.mxu0 0
      %9957 = vmatpush1.bf16.msra.mxu0 %v9938
      %9958 = vmatprep.subr.bf16.mxu0 0
      %9959 = vmatpush1.bf16.msra.mxu0 %v9937
      %9960 = vmatprep.subr.bf16.mxu0 0
      %9961 = vmatpush1.bf16.msra.mxu0 %v9936
      %9962 = vmatprep.subr.bf16.mxu0 0
      %9963 = vmatpush1.bf16.msra.mxu0 %v9935
      %9964 = vmatprep.subr.bf16.mxu0 0
      %9965 = vmatpush1.bf16.msra.mxu0 %v9934
      %9966 = vmatprep.subr.bf16.mxu0 0
      %9967 = vmatpush2.bf16.msra.mxu0 0
      %9968 = vmatprep.subr.bf16.mxu0 0
      %9969 = vmatpush2.bf16.msra.mxu0 0
      %9970 = vmatprep.subr.bf16.mxu0 0
      %9971 = vmatpush2.bf16.msra.mxu0 0
      %9972 = vmatprep.subr.bf16.mxu0 0
      %9973 = vmatpush2.bf16.msra.mxu0 0
      %9974 = vmatprep.subr.bf16.mxu0 0
      %9975 = vmatpush2.bf16.msra.mxu0 0
      %9976 = vmatprep.subr.bf16.mxu0 0
      %9977 = vmatpush2.bf16.msra.mxu0 0
      %9978 = vmatprep.subr.bf16.mxu0 0
      %9979 = vmatpush2.bf16.msra.mxu0 0
      %9980 = vmatprep.subr.bf16.mxu0 0
      %9981 = vmatpush2.bf16.msra.mxu0 0
      %9982 = vmatprep.mubr.bf16.mxu0 0
      %9983 = vmatmul.mubr.bf16.gmra.mxu0 %v9870
      %v9984 = vpop.f32.mrf.mxu0
      %v9985 = vadd.f32 %v9804, %v9984
      %v9986 = vpop.f32.mrf.mxu0
      %v9987 = vpop.f32.mrf.mxu0
      %v9988 = vadd.f32 %v9804, %v9987
      %v9989 = vpop.f32.mrf.mxu0
      %9990 = vmatprep.mubr.bf16.mxu0 0
      %9991 = vmatmul.mubr.bf16.gmra.mxu0 %v9871
      %v9992 = vpop.f32.mrf.mxu0
      %v9993 = vadd.f32 %v9804, %v9992
      %v9994 = vpop.f32.mrf.mxu0
      %v9995 = vpop.f32.mrf.mxu0
      %v9996 = vadd.f32 %v9804, %v9995
      %v9997 = vpop.f32.mrf.mxu0
      %9998 = vmatprep.mubr.bf16.mxu0 0
      %9999 = vmatmul.mubr.bf16.gmra.mxu0 %v9872
      %v10000 = vpop.f32.mrf.mxu0
      %v10001 = vadd.f32 %v9804, %v10000
      %v10002 = vpop.f32.mrf.mxu0
      %v10003 = vpop.f32.mrf.mxu0
      %v10004 = vadd.f32 %v9804, %v10003
      %v10005 = vpop.f32.mrf.mxu0
      %10006 = vmatprep.mubr.bf16.mxu0 0
      %10007 = vmatmul.mubr.bf16.gmra.mxu0 %v9873
      %v10008 = vpop.f32.mrf.mxu0
      %v10009 = vadd.f32 %v9804, %v10008
      %v10010 = vpop.f32.mrf.mxu0
      %v10011 = vpop.f32.mrf.mxu0
      %v10012 = vadd.f32 %v9804, %v10011
      %v10013 = vpop.f32.mrf.mxu0
      %10014 = vmatprep.mubr.bf16.mxu0 0
      %10015 = vmatmul.mubr.bf16.gmra.mxu0 %v9874
      %v10016 = vpop.f32.mrf.mxu0
      %v10017 = vadd.f32 %v9804, %v10016
      %v10018 = vpop.f32.mrf.mxu0
      %v10019 = vpop.f32.mrf.mxu0
      %v10020 = vadd.f32 %v9804, %v10019
      %v10021 = vpop.f32.mrf.mxu0
      %10022 = vmatprep.mubr.bf16.mxu0 0
      %10023 = vmatmul.mubr.bf16.gmra.mxu0 %v9875
      %v10024 = vpop.f32.mrf.mxu0
      %v10025 = vadd.f32 %v9804, %v10024
      %v10026 = vpop.f32.mrf.mxu0
      %v10027 = vpop.f32.mrf.mxu0
      %v10028 = vadd.f32 %v9804, %v10027
      %v10029 = vpop.f32.mrf.mxu0
      %10030 = vmatprep.mubr.bf16.mxu0 0
      %10031 = vmatmul.mubr.bf16.gmra.mxu0 %v9876
      %v10032 = vpop.f32.mrf.mxu0
      %v10033 = vadd.f32 %v9804, %v10032
      %v10034 = vpop.f32.mrf.mxu0
      %v10035 = vpop.f32.mrf.mxu0
      %v10036 = vadd.f32 %v9804, %v10035
      %v10037 = vpop.f32.mrf.mxu0
      %10038 = vmatprep.mubr.bf16.mxu0 0
      %10039 = vmatmul.mubr.bf16.gmra.mxu0 %v9877
      %v10040 = vpop.f32.mrf.mxu0
      %v10041 = vadd.f32 %v9804, %v10040
      %v10042 = vpop.f32.mrf.mxu0
      %v10043 = vpop.f32.mrf.mxu0
      %v10044 = vadd.f32 %v9804, %v10043
      %v10045 = vpop.f32.mrf.mxu0
      %10046 = vmatprep.mubr.bf16.mxu0 0
      %10047 = vmatmul.mubr.bf16.gmra.mxu0 %v9878
      %v10048 = vpop.f32.mrf.mxu0
      %v10049 = vadd.f32 %v9804, %v10048
      %v10050 = vpop.f32.mrf.mxu0
      %v10051 = vpop.f32.mrf.mxu0
      %v10052 = vadd.f32 %v9804, %v10051
      %v10053 = vpop.f32.mrf.mxu0
      %10054 = vmatprep.mubr.bf16.mxu0 0
      %10055 = vmatmul.mubr.bf16.gmra.mxu0 %v9879
      %v10056 = vpop.f32.mrf.mxu0
      %v10057 = vadd.f32 %v9804, %v10056
      %v10058 = vpop.f32.mrf.mxu0
      %v10059 = vpop.f32.mrf.mxu0
      %v10060 = vadd.f32 %v9804, %v10059
      %v10061 = vpop.f32.mrf.mxu0
      %10062 = vmatprep.mubr.bf16.mxu0 0
      %10063 = vmatmul.mubr.bf16.gmra.mxu0 %v9880
      %v10064 = vpop.f32.mrf.mxu0
      %v10065 = vadd.f32 %v9804, %v10064
      %v10066 = vpop.f32.mrf.mxu0
      %v10067 = vpop.f32.mrf.mxu0
      %v10068 = vadd.f32 %v9804, %v10067
      %v10069 = vpop.f32.mrf.mxu0
      %10070 = vmatprep.mubr.bf16.mxu0 0
      %10071 = vmatmul.mubr.bf16.gmra.mxu0 %v9881
      %v10072 = vpop.f32.mrf.mxu0
      %v10073 = vadd.f32 %v9804, %v10072
      %v10074 = vpop.f32.mrf.mxu0
      %v10075 = vpop.f32.mrf.mxu0
      %v10076 = vadd.f32 %v9804, %v10075
      %v10077 = vpop.f32.mrf.mxu0
      %10078 = vmatprep.mubr.bf16.mxu0 0
      %10079 = vmatmul.mubr.bf16.gmra.mxu0 %v9882
      %v10080 = vpop.f32.mrf.mxu0
      %v10081 = vadd.f32 %v9804, %v10080
      %v10082 = vpop.f32.mrf.mxu0
      %v10083 = vpop.f32.mrf.mxu0
      %v10084 = vadd.f32 %v9804, %v10083
      %v10085 = vpop.f32.mrf.mxu0
      %10086 = vmatprep.mubr.bf16.mxu0 0
      %10087 = vmatmul.mubr.bf16.gmra.mxu0 %v9883
      %v10088 = vpop.f32.mrf.mxu0
      %v10089 = vadd.f32 %v9804, %v10088
      %v10090 = vpop.f32.mrf.mxu0
      %v10091 = vpop.f32.mrf.mxu0
      %v10092 = vadd.f32 %v9804, %v10091
      %v10093 = vpop.f32.mrf.mxu0
      %10094 = vmatprep.mubr.bf16.mxu0 0
      %10095 = vmatmul.mubr.bf16.gmra.mxu0 %v9884
      %v10096 = vpop.f32.mrf.mxu0
      %v10097 = vadd.f32 %v9804, %v10096
      %v10098 = vpop.f32.mrf.mxu0
      %v10099 = vpop.f32.mrf.mxu0
      %v10100 = vadd.f32 %v9804, %v10099
      %v10101 = vpop.f32.mrf.mxu0
      %10102 = vmatprep.mubr.bf16.mxu0 0
      %10103 = vmatmul.mubr.bf16.gmra.mxu0 %v9885
      %v10104 = vpop.f32.mrf.mxu0
      %v10105 = vadd.f32 %v9804, %v10104
      %v10106 = vpop.f32.mrf.mxu0
      %v10107 = vpop.f32.mrf.mxu0
      %v10108 = vadd.f32 %v9804, %v10107
      %v10109 = vpop.f32.mrf.mxu0
      %10110 = vdwg.mxu0
      %v10111 = vmax.f32 %v9985, 0.0
      %v10112 = vmax.f32 %v9988, 0.0
      %v10113 = vmax.f32 %v9993, 0.0
      %v10114 = vmax.f32 %v9996, 0.0
      %v10115 = vmax.f32 %v10001, 0.0
      %v10116 = vmax.f32 %v10004, 0.0
      %v10117 = vmax.f32 %v10009, 0.0
      %v10118 = vmax.f32 %v10012, 0.0
      %v10119 = vmax.f32 %v10017, 0.0
      %v10120 = vmax.f32 %v10020, 0.0
      %v10121 = vmax.f32 %v10025, 0.0
      %v10122 = vmax.f32 %v10028, 0.0
      %v10123 = vmax.f32 %v10033, 0.0
      %v10124 = vmax.f32 %v10036, 0.0
      %v10125 = vmax.f32 %v10041, 0.0
      %v10126 = vmax.f32 %v10044, 0.0
      %v10127 = vmax.f32 %v10049, 0.0
      %v10128 = vmax.f32 %v10052, 0.0
      %v10129 = vmax.f32 %v10057, 0.0
      %v10130 = vmax.f32 %v10060, 0.0
      %v10131 = vmax.f32 %v10065, 0.0
      %v10132 = vmax.f32 %v10068, 0.0
      %v10133 = vmax.f32 %v10073, 0.0
      %v10134 = vmax.f32 %v10076, 0.0
      %v10135 = vmax.f32 %v10081, 0.0
      %v10136 = vmax.f32 %v10084, 0.0
      %v10137 = vmax.f32 %v10089, 0.0
      %v10138 = vmax.f32 %v10092, 0.0
      %v10139 = vmax.f32 %v10097, 0.0
      %v10140 = vmax.f32 %v10100, 0.0
      %v10141 = vmax.f32 %v10105, 0.0
      %v10142 = vmax.f32 %v10108, 0.0
      %v10143 = vpack.c.bf16 %v10112, %v10111
      %v10144 = vpack.c.bf16 %v10114, %v10113
      %v10145 = vpack.c.bf16 %v10116, %v10115
      %v10146 = vpack.c.bf16 %v10118, %v10117
      %v10147 = vpack.c.bf16 %v10120, %v10119
      %v10148 = vpack.c.bf16 %v10122, %v10121
      %v10149 = vpack.c.bf16 %v10124, %v10123
      %v10150 = vpack.c.bf16 %v10126, %v10125
      %v10151 = vpack.c.bf16 %v10128, %v10127
      %v10152 = vpack.c.bf16 %v10130, %v10129
      %v10153 = vpack.c.bf16 %v10132, %v10131
      %v10154 = vpack.c.bf16 %v10134, %v10133
      %v10155 = vpack.c.bf16 %v10136, %v10135
      %v10156 = vpack.c.bf16 %v10138, %v10137
      %v10157 = vpack.c.bf16 %v10140, %v10139
      %v10158 = vpack.c.bf16 %v10142, %v10141
      %v10175 = vunpack.c.l.b16 %v10143
      %v10176 = vunpack.c.h.b16 %v10143
      %v10177 = vunpack.c.l.b16 %v10144
      %v10178 = vunpack.c.h.b16 %v10144
      %v10179 = vunpack.c.l.b16 %v10145
      %v10180 = vunpack.c.h.b16 %v10145
      %v10181 = vunpack.c.l.b16 %v10146
      %v10182 = vunpack.c.h.b16 %v10146
      %v10183 = vunpack.c.l.b16 %v10147
      %v10184 = vunpack.c.h.b16 %v10147
      %v10185 = vunpack.c.l.b16 %v10148
      %v10186 = vunpack.c.h.b16 %v10148
      %v10187 = vunpack.c.l.b16 %v10149
      %v10188 = vunpack.c.h.b16 %v10149
      %v10189 = vunpack.c.l.b16 %v10150
      %v10190 = vunpack.c.h.b16 %v10150
      %v10191 = vunpack.c.l.b16 %v10151
      %v10192 = vunpack.c.h.b16 %v10151
      %v10193 = vunpack.c.l.b16 %v10152
      %v10194 = vunpack.c.h.b16 %v10152
      %v10195 = vunpack.c.l.b16 %v10153
      %v10196 = vunpack.c.h.b16 %v10153
      %v10197 = vunpack.c.l.b16 %v10154
      %v10198 = vunpack.c.h.b16 %v10154
      %v10199 = vunpack.c.l.b16 %v10155
      %v10200 = vunpack.c.h.b16 %v10155
      %v10201 = vunpack.c.l.b16 %v10156
      %v10202 = vunpack.c.h.b16 %v10156
      %v10203 = vunpack.c.l.b16 %v10157
      %v10204 = vunpack.c.h.b16 %v10157
      %v10205 = vunpack.c.l.b16 %v10158
      %v10206 = vunpack.c.h.b16 %v10158
      %v10207 = vpack.c.b16 %v10175, %v10175
      %v10208 = vpack.c.b16 %v10176, %v10176
      %v10209 = vpack.c.b16 %v10177, %v10177
      %v10210 = vpack.c.b16 %v10178, %v10178
      %v10211 = vpack.c.b16 %v10179, %v10179
      %v10212 = vpack.c.b16 %v10180, %v10180
      %v10213 = vpack.c.b16 %v10181, %v10181
      %v10214 = vpack.c.b16 %v10182, %v10182
      %v10215 = vpack.c.b16 %v10183, %v10183
      %v10216 = vpack.c.b16 %v10184, %v10184
      %v10217 = vpack.c.b16 %v10185, %v10185
      %v10218 = vpack.c.b16 %v10186, %v10186
      %v10219 = vpack.c.b16 %v10187, %v10187
      %v10220 = vpack.c.b16 %v10188, %v10188
      %v10221 = vpack.c.b16 %v10189, %v10189
      %v10222 = vpack.c.b16 %v10190, %v10190
      %v10223 = vpack.c.b16 %v10191, %v10191
      %v10224 = vpack.c.b16 %v10192, %v10192
      %v10225 = vpack.c.b16 %v10193, %v10193
      %v10226 = vpack.c.b16 %v10194, %v10194
      %v10227 = vpack.c.b16 %v10195, %v10195
      %v10228 = vpack.c.b16 %v10196, %v10196
      %v10229 = vpack.c.b16 %v10197, %v10197
      %v10230 = vpack.c.b16 %v10198, %v10198
      %v10231 = vpack.c.b16 %v10199, %v10199
      %v10232 = vpack.c.b16 %v10200, %v10200
      %v10233 = vpack.c.b16 %v10201, %v10201
      %v10234 = vpack.c.b16 %v10202, %v10202
      %v10235 = vpack.c.b16 %v10203, %v10203
      %v10236 = vpack.c.b16 %v10204, %v10204
      %v10237 = vpack.c.b16 %v10205, %v10205
      %v10238 = vpack.c.b16 %v10206, %v10206
      %10271 = vst.msk [vmem:[%s224] sm:$0xf] %vm228, %v10207
      %10272 = vst.msk [vmem:[%s224 + $0x4] sm:$0xf] %vm228, %v10208
      %10273 = vst.msk [vmem:[%s224 + $0x8] sm:$0xf] %vm228, %v10209
      %10274 = vst.msk [vmem:[%s224 + $0xc] sm:$0xf] %vm228, %v10210
      %10275 = vst.msk [vmem:[%s224 + $0x10] sm:$0xf] %vm228, %v10211
      %10276 = vst.msk [vmem:[%s224 + $0x14] sm:$0xf] %vm228, %v10212
      %10277 = vst.msk [vmem:[%s224 + $0x18] sm:$0xf] %vm228, %v10213
      %10278 = vst.msk [vmem:[%s224 + $0x1c] sm:$0xf] %vm228, %v10214
      %10279 = vst.msk [vmem:[%s224 + $0x20] sm:$0xf] %vm228, %v10215
      %10280 = vst.msk [vmem:[%s224 + $0x24] sm:$0xf] %vm228, %v10216
      %10281 = vst.msk [vmem:[%s224 + $0x28] sm:$0xf] %vm228, %v10217
      %10282 = vst.msk [vmem:[%s224 + $0x2c] sm:$0xf] %vm228, %v10218
      %10283 = vst.msk [vmem:[%s224 + $0x30] sm:$0xf] %vm228, %v10219
      %10284 = vst.msk [vmem:[%s224 + $0x34] sm:$0xf] %vm228, %v10220
      %10285 = vst.msk [vmem:[%s224 + $0x38] sm:$0xf] %vm228, %v10221
      %10286 = vst.msk [vmem:[%s224 + $0x3c] sm:$0xf] %vm228, %v10222
      %10287 = vst.msk [vmem:[%s224 + $0x40] sm:$0xf] %vm228, %v10223
      %10288 = vst.msk [vmem:[%s224 + $0x44] sm:$0xf] %vm228, %v10224
      %10289 = vst.msk [vmem:[%s224 + $0x48] sm:$0xf] %vm228, %v10225
      %10290 = vst.msk [vmem:[%s224 + $0x4c] sm:$0xf] %vm228, %v10226
      %10291 = vst.msk [vmem:[%s224 + $0x50] sm:$0xf] %vm228, %v10227
      %10292 = vst.msk [vmem:[%s224 + $0x54] sm:$0xf] %vm228, %v10228
      %10293 = vst.msk [vmem:[%s224 + $0x58] sm:$0xf] %vm228, %v10229
      %10294 = vst.msk [vmem:[%s224 + $0x5c] sm:$0xf] %vm228, %v10230
      %10295 = vst.msk [vmem:[%s224 + $0x60] sm:$0xf] %vm228, %v10231
      %10296 = vst.msk [vmem:[%s224 + $0x64] sm:$0xf] %vm228, %v10232
      %10297 = vst.msk [vmem:[%s224 + $0x68] sm:$0xf] %vm228, %v10233
      %10298 = vst.msk [vmem:[%s224 + $0x6c] sm:$0xf] %vm228, %v10234
      %10299 = vst.msk [vmem:[%s224 + $0x70] sm:$0xf] %vm228, %v10235
      %10300 = vst.msk [vmem:[%s224 + $0x74] sm:$0xf] %vm228, %v10236
      %10301 = vst.msk [vmem:[%s224 + $0x78] sm:$0xf] %vm228, %v10237
      %10302 = vst.msk [vmem:[%s224 + $0x7c] sm:$0xf] %vm228, %v10238
      %p10303 = scmp.lt.s32.totalorder %s16, 1
      %s10304 = scalar_select %p10303, %s16, 1
      %s10305 = smul.addr %s10304, 32
      %s10306 = smul.addr %s10305, 4
      %s10307 = scalar_lea.vmem %s5, %s10306
      // Predicated region
      $region41: #{tpu_custom_call.1} parent=39 // pred_check
        %p10308 = pneg %p144
      $region42: #{tpu_custom_call.1} parent=39 // pred_check_branch
        %10310 = sbr.rel (%p10308) target = $region44
      $region43: #{tpu_custom_call.1} parent=39 // pred_region
        _
      $region44: #{tpu_custom_call.1} parent=39 // pred_fallthru
        _
    $region40: #{tpu_custom_call.1} parent=5 // pred_fallthru
      _
    %p10311 = scmp.le.s32.totalorder 2, %s11
    // Predicated region
    $region45: #{tpu_custom_call.1} parent=5 // pred_check
      %p10312 = pneg %p10311
    $region46: #{tpu_custom_call.1} parent=5 // pred_check_branch
      %10314 = sbr.rel (%p10312) target = $region48
    $region47: #{tpu_custom_call.1} parent=5 // pred_region
      %s10315 = ssub.s32 %s11, 2
      // Predicated region
      $region49: #{tpu_custom_call.1} parent=47 // pred_check
        %p10316 = pneg %p150
      $region50: #{tpu_custom_call.1} parent=47 // pred_check_branch
        %10318 = sbr.rel (%p10316) target = $region52
      $region51: #{tpu_custom_call.1} parent=47 // pred_region
        %p10319 = scmp.lt.s32.totalorder %s17, 1
        %s10320 = scalar_select %p10319, %s17, 1
        %s10321 = smul.addr %s10320, 32
        %s10322 = smul.addr %s10321, 4
        %s10323 = scalar_lea.vmem %s5, %s10322
      $region52: #{tpu_custom_call.1} parent=47 // pred_fallthru
        _
    $region48: #{tpu_custom_call.1} parent=5 // pred_fallthru
      _
  $region6: #{tpu_custom_call.1} parent=0 // loop_footer
    %s15 = sadd.s32 1, %s11
  $region7: #{tpu_custom_call.1} parent=0 // loop_footer_branch
    %10 = sbr.rel target = $region3
  $region8: #{tpu_custom_call.1} parent=0 // loop_exit
    _

</llo_original>
